<compile_context>
chip_gen: v7x
topology: tpu7x:2x2x1
jax: 0.10.0
libtpu: 0.0.40
codegen_flags: <defaults>
</compile_context>

<pallas_src>
import functools

import jax
import jax.numpy as jnp
from jax.experimental import pallas as pl
from jax.experimental.pallas import tpu as pltpu


# ----------------------------- small helpers -----------------------------

def _round_up(v, m):
    return -(-v // m) * m


def _row_tile(m):
    """Row tile: multiple of 8, <=256, and >=2 grid steps once m >= 128."""
    m8 = _round_up(m, 8)
    if m8 <= 64:
        return m8
    half = _round_up(m8 // 2, 8)
    return max(64, min(256, half))


def _pad_rows_to(x2d, mp):
    m = x2d.shape[0]
    if mp != m:
        x2d = jnp.pad(x2d, ((0, mp - m), (0, 0)))
    return x2d


def _extract_patches(x, k, stride, pad):
    """NHWC -> (N*Ho*Wo, k*k*Cin) zero-padded patches, column order (dy, dx, cin)."""
    N, H, W, C = x.shape
    xp = jnp.pad(x, ((0, 0), (pad, pad), (pad, pad), (0, 0)))
    Ho = (H + 2 * pad - k) // stride + 1
    Wo = (W + 2 * pad - k) // stride + 1
    cols = []
    for dy in range(k):
        for dx in range(k):
            cols.append(xp[:, dy:dy + stride * Ho:stride, dx:dx + stride * Wo:stride, :])
    patches = jnp.concatenate(cols, axis=-1)
    return patches.reshape(N * Ho * Wo, k * k * C), (N, Ho, Wo)


# ----------------------------- Pallas kernels -----------------------------

def _dense_matmul_kernel(*refs, k_sizes, prologue, epilogue, relu_out):
    """acc = sum_j relu(x_j*psc_j+pbs_j) @ W[off_j:off_j+k_j]; optional epilogue affine+relu.

    The per-slab accumulation makes the dense-block channel concatenation virtual.
    """
    J = len(k_sizes)
    x_refs = refs[:J]
    idx = J
    w_ref = refs[idx]
    idx += 1
    psc_ref = pbs_ref = esc_ref = ebs_ref = None
    if prologue:
        psc_ref, pbs_ref = refs[idx], refs[idx + 1]
        idx += 2
    if epilogue:
        esc_ref, ebs_ref = refs[idx], refs[idx + 1]
        idx += 2
    o_ref = refs[idx]

    acc = None
    off = 0
    for j, kj in enumerate(k_sizes):
        xj = x_refs[j][...].astype(jnp.float32)
        if prologue:
            xj = jnp.maximum(xj * psc_ref[:, off:off + kj] + pbs_ref[:, off:off + kj], 0.0)
        c = jnp.dot(xj.astype(jnp.bfloat16), w_ref[off:off + kj, :],
                    preferred_element_type=jnp.float32)
        acc = c if acc is None else acc + c
        off += kj
    if epilogue:
        acc = acc * esc_ref[...] + ebs_ref[...]
    if relu_out:
        acc = jnp.maximum(acc, 0.0)
    o_ref[...] = acc.astype(o_ref.dtype)


def _conv3x3_kernel(x_ref, w_ref, o_ref):
    """Per-image fused 3x3/stride-1/pad-1 conv: 9 shifted slices + MXU matmuls."""
    Ho, Wo, Cout = o_ref.shape[1], o_ref.shape[2], o_ref.shape[3]
    Cin = x_ref.shape[3]
    acc = None
    for dy in range(3):
        for dx in range(3):
            xs = x_ref[0, dy:dy + Ho, dx:dx + Wo, :]
            xs = xs.reshape(Ho * Wo, Cin).astype(jnp.bfloat16)
            c = jnp.dot(xs, w_ref[dy * 3 + dx], preferred_element_type=jnp.float32)
            acc = c if acc is None else acc + c
    o_ref[0] = acc.reshape(Ho, Wo, Cout).astype(o_ref.dtype)


def _pool2x_kernel(p00, p01, p10, p11, o_ref, *, k, op):
    """Stride-2 kxk pooling from 4 parity views of the padded input (in-kernel reduce)."""
    parts = ((p00, p01), (p10, p11))
    Ho, Wo = o_ref.shape[1], o_ref.shape[2]
    acc = None
    for dy in range(k):
        for dx in range(k):
            ry, qy = dy % 2, dy // 2
            rx, qx = dx % 2, dx // 2
            s = parts[ry][rx][0, qy:qy + Ho, qx:qx + Wo, :].astype(jnp.float32)
            if acc is None:
                acc = s
            elif op == "max":
                acc = jnp.maximum(acc, s)
            else:
                acc = acc + s
    if op == "mean":
        acc = acc * (1.0 / (k * k))
    o_ref[0] = acc.astype(o_ref.dtype)


def _head_kernel(*refs, k_sizes):
    """relu -> global avg pool -> Linear -> relu -> Linear, all fused.

    Feature slabs are consumed separately (virtual concat): each slab is relu'd,
    mean-pooled over H,W, and matmul'd with its slice of the first Linear weight.
    """
    J = len(k_sizes)
    x_refs = refs[:J]
    w1_ref, b1_ref, w2_ref, b2_ref, o_ref = refs[J:J + 5]
    h = None
    off = 0
    for j, kj in enumerate(k_sizes):
        x = jnp.maximum(x_refs[j][...].astype(jnp.float32), 0.0)     # (B, H, W, kj)
        inv_hw = 1.0 / (x.shape[1] * x.shape[2])
        p = jnp.sum(jnp.sum(x, axis=2), axis=1) * inv_hw              # (B, kj)
        c = jnp.dot(p.astype(jnp.bfloat16), w1_ref[off:off + kj, :],
                    preferred_element_type=jnp.float32)
        h = c if h is None else h + c
        off += kj
    h = jnp.maximum(h + b1_ref[...], 0.0)                             # (B, 512)
    out = jnp.dot(h.astype(jnp.bfloat16), w2_ref[...],
                  preferred_element_type=jnp.float32) + b2_ref[...]
    o_ref[...] = out.astype(o_ref.dtype)


# ----------------------------- kernel wrappers -----------------------------

def dense_matmul(feat_list, w, *, pro=None, epi=None, relu_out=False):
    """[relu][epi]( concat_K( relu(pro(feat_j)) ) @ w ) without materializing the concat.

    feat_list: list of (M, K_j) f32 slabs sharing M.   w: (sum K_j, N) f32.
    pro / epi: None or (scale, bias) 1-D vectors over K_total / N (BN folded, relu'd).
    """
    M = int(feat_list[0].shape[0])
    k_sizes = tuple(int(f.shape[1]) for f in feat_list)
    K = sum(k_sizes)
    N = int(w.shape[1])
    TM = _row_tile(M)
    Mp = _round_up(M, TM)

    args = [_pad_rows_to(f, Mp) for f in feat_list]
    in_specs = [pl.BlockSpec((TM, kj), lambda i: (i, 0)) for kj in k_sizes]
    args.append(w.astype(jnp.bfloat16))
    in_specs.append(pl.BlockSpec((K, N), lambda i: (0, 0)))
    if pro is not None:
        args += [pro[0].reshape(1, K), pro[1].reshape(1, K)]
        in_specs += [pl.BlockSpec((1, K), lambda i: (0, 0))] * 2
    if epi is not None:
        args += [epi[0].reshape(1, N), epi[1].reshape(1, N)]
        in_specs += [pl.BlockSpec((1, N), lambda i: (0, 0))] * 2

    kern = functools.partial(_dense_matmul_kernel, k_sizes=k_sizes,
                             prologue=pro is not None, epilogue=epi is not None,
                             relu_out=relu_out)
    out = pl.pallas_call(
        kern,
        out_shape=jax.ShapeDtypeStruct((Mp, N), jnp.float32),
        grid=(Mp // TM,),
        in_specs=in_specs,
        out_specs=pl.BlockSpec((TM, N), lambda i: (i, 0)),
        compiler_params=pltpu.CompilerParams(dimension_semantics=("parallel",)),
    )(*args)
    return out[:M]


def conv3x3(x, w):
    """3x3, stride 1, pad 1, bias-free conv.  x: NHWC, w: (3,3,Cin,Cout)."""
    N, H, W, Cin = x.shape
    Cout = w.shape[-1]
    if H * W < 16:
        # tiny spatial extent -> im2col slab is negligible; reuse the matmul kernel
        patches, (n, Ho, Wo) = _extract_patches(x, 3, 1, 1)
        out = dense_matmul([patches], w.reshape(9 * Cin, Cout))
        return out.reshape(n, Ho, Wo, Cout)
    xp = jnp.pad(x, ((0, 0), (1, 1), (1, 1), (0, 0)))
    wr = w.reshape(9, Cin, Cout).astype(jnp.bfloat16)
    return pl.pallas_call(
        _conv3x3_kernel,
        out_shape=jax.ShapeDtypeStruct((N, H, W, Cout), jnp.float32),
        grid=(N,),
        in_specs=[pl.BlockSpec((1, H + 2, W + 2, Cin), lambda n: (n, 0, 0, 0)),
                  pl.BlockSpec((9, Cin, Cout), lambda n: (0, 0, 0))],
        out_specs=pl.BlockSpec((1, H, W, Cout), lambda n: (n, 0, 0, 0)),
        compiler_params=pltpu.CompilerParams(dimension_semantics=("parallel",)),
    )(xp, wr)


def pool2x(x, *, k, op, pad):
    """Stride-2 kxk pooling ("max" or "mean") via parity decomposition (no HBM inflation)."""
    N, H, W, C = x.shape
    Ho = (H + 2 * pad - k) // 2 + 1
    Wo = (W + 2 * pad - k) // 2 + 1
    Hq = (k - 1) // 2 + Ho
    Wq = (k - 1) // 2 + Wo
    Hp, Wp = 2 * Hq, 2 * Wq
    pad_value = float("-inf") if op == "max" else 0.0
    xp = jnp.pad(x, ((0, 0), (pad, Hp - H - pad), (pad, Wp - W - pad), (0, 0)),
                 constant_values=pad_value)
    xr = xp.reshape(N, Hq, 2, Wq, 2, C)
    parts = [xr[:, :, ry, :, rx, :] for ry in (0, 1) for rx in (0, 1)]  # 4x (N,Hq,Wq,C)
    out = pl.pallas_call(
        functools.partial(_pool2x_kernel, k=k, op=op),
        out_shape=jax.ShapeDtypeStruct((N, Ho, Wo, C), x.dtype),
        grid=(N,),
        in_specs=[pl.BlockSpec((1, Hq, Wq, C), lambda n: (n, 0, 0, 0))] * 4,
        out_specs=pl.BlockSpec((1, Ho, Wo, C), lambda n: (n, 0, 0, 0)),
        compiler_params=pltpu.CompilerParams(dimension_semantics=("parallel",)),
    )(*parts)
    return out


def head(feats, lin1, lin2):
    """Fused relu -> adaptive_avg_pool2d(1) -> flatten -> Linear -> relu -> Linear."""
    N, H, W, _ = feats[0].shape
    B = max(8, N)                     # keep in-kernel matmul M >= 8
    feats_p = [jnp.pad(f, ((0, B - N), (0, 0), (0, 0), (0, 0))) for f in feats]
    k_sizes = tuple(int(f.shape[-1]) for f in feats)
    C = sum(k_sizes)
    Dh = int(lin1["w"].shape[1])
    Z = int(lin2["w"].shape[1])
    args = feats_p + [lin1["w"].astype(jnp.bfloat16), lin1["b"].reshape(1, Dh),
                      lin2["w"].astype(jnp.bfloat16), lin2["b"].reshape(1, Z)]
    in_specs = ([pl.BlockSpec((B, H, W, kj), lambda i: (0, 0, 0, 0)) for kj in k_sizes]
                + [pl.BlockSpec((C, Dh), lambda i: (0, 0)),
                   pl.BlockSpec((1, Dh), lambda i: (0, 0)),
                   pl.BlockSpec((Dh, Z), lambda i: (0, 0)),
                   pl.BlockSpec((1, Z), lambda i: (0, 0))])
    out = pl.pallas_call(
        functools.partial(_head_kernel, k_sizes=k_sizes),
        out_shape=jax.ShapeDtypeStruct((B, Z), jnp.float32),
        grid=(1,),
        in_specs=in_specs,
        out_specs=pl.BlockSpec((B, Z), lambda i: (0, 0)),
    )(*args)
    return out[:N]


# ----------------------------- parameters -----------------------------

def init_params(key, *, growth_rate, block_config, num_init_features, bn_size,
                in_channels, z_dim):
    keys = iter(jax.random.split(key, 512))

    def conv_w(kh, kw, cin, cout):              # kaiming_normal_ (fan_in, relu gain)
        std = (2.0 / (cin * kh * kw)) ** 0.5
        return jax.random.normal(next(keys), (kh, kw, cin, cout), jnp.float32) * std

    def bn(c):                                  # gamma=1, beta=0, running stats 0/1
        return dict(gamma=jnp.ones((c,), jnp.float32), beta=jnp.zeros((c,), jnp.float32),
                    mean=jnp.zeros((c,), jnp.float32), var=jnp.ones((c,), jnp.float32))

    def linear(cin, cout):                      # weight ~ default torch init, bias = 0
        bound = 1.0 / (cin ** 0.5)
        w = jax.random.uniform(next(keys), (cin, cout), jnp.float32, -bound, bound)
        return dict(w=w, b=jnp.zeros((cout,), jnp.float32))

    params = {
        "conv0": conv_w(7, 7, in_channels, num_init_features),
        "norm0": bn(num_init_features),
        "blocks": [],
        "transitions": [],
    }
    num_features = num_init_features
    for i, num_layers in enumerate(block_config):
        block = []
        for j in range(num_layers):
            cin = num_features + j * growth_rate
            block.append(dict(
                norm1=bn(cin),
                conv1=conv_w(1, 1, cin, bn_size * growth_rate),
                norm2=bn(bn_size * growth_rate),
                conv2=conv_w(3, 3, bn_size * growth_rate, growth_rate),
            ))
        params["blocks"].append(block)
        num_features = num_features + num_layers * growth_rate
        if i != len(block_config) - 1:
            params["transitions"].append(dict(
                norm=bn(num_features),
                conv=conv_w(1, 1, num_features, num_features // 2),
            ))
            num_features //= 2
    params["hidden_representation"] = linear(num_features, 512)   # encoder mode
    params["head_projection"] = linear(512, z_dim)
    return params


# ----------------------------- forward (mode='encoder') -----------------------------

def densenet_forward(params, x_nchw):
    eps = 1e-5

    def bn_affine(p):
        sc = p["gamma"] / jnp.sqrt(p["var"] + eps)
        return sc, p["beta"] - p["mean"] * sc

    x = jnp.transpose(x_nchw, (0, 2, 3, 1)).astype(jnp.float32)       # NCHW -> NHWC

    # conv0 (7x7/s2, Cin tiny -> im2col) fused with norm0 + relu0 epilogue
    patches, (n, Ho, Wo) = _extract_patches(x, 7, 2, 3)
    c0 = params["conv0"].reshape(-1, params["conv0"].shape[-1])
    x = dense_matmul([patches], c0, epi=bn_affine(params["norm0"]), relu_out=True)
    x = x.reshape(n, Ho, Wo, -1)

    # pool0: maxpool 3x3 / stride 2 / pad 1 (in-kernel window reduction)
    x = pool2x(x, k=3, op="max", pad=1)

    final_feats = None
    for bi, block in enumerate(params["blocks"]):
        feats = [x]
        for layer in block:
            Nb, H, W, _ = feats[0].shape
            flat = [f.reshape(Nb * H * W, f.shape[-1]) for f in feats]
            # conv1(relu1(norm1(cat(feats)))) with norm2+relu2 fused as epilogue
            bott = dense_matmul(
                flat, layer["conv1"].reshape(layer["conv1"].shape[2], -1),
                pro=bn_affine(layer["norm1"]), epi=bn_affine(layer["norm2"]),
                relu_out=True)
            bott = bott.reshape(Nb, H, W, -1)
            y = conv3x3(bott, layer["conv2"])       # drop_rate=0 -> dropout is identity
            feats.append(y)
        if bi < len(params["transitions"]):
            t = params["transitions"][bi]
            Nb, H, W, _ = feats[0].shape
            flat = [f.reshape(Nb * H * W, f.shape[-1]) for f in feats]
            z = dense_matmul(flat, t["conv"].reshape(t["conv"].shape[2], -1),
                             pro=bn_affine(t["norm"]), relu_out=False)
            z = z.reshape(Nb, H, W, -1)
            x = pool2x(z, k=2, op="mean", pad=0)    # AvgPool2d(2, 2)
        else:
            final_feats = feats

    # encoder head: relu -> adaptive_avg_pool2d(1) -> flatten -> Linear -> relu -> Linear
    out = head(final_feats, params["hidden_representation"], params["head_projection"])
    if out.shape[1] == 1:                           # .squeeze(dim=1)
        out = out[:, 0]
    return out


# ----------------------------- main -----------------------------

if __name__ == "__main__":
    key = jax.random.PRNGKey(0)
    kp, kx = jax.random.split(key)

    # Small but architecture-faithful config (pretrained=False -> in_channels=1).
    cfg = dict(growth_rate=8, block_config=(2, 2, 2, 2), num_init_features=16,
               bn_size=2, in_channels=1, z_dim=16)
    params = init_params(kp, **cfg)

    x = jax.random.normal(kx, (2, cfg["in_channels"], 32, 32), jnp.float32)  # NCHW input
    fwd = jax.jit(densenet_forward)
    out = fwd(params, x)
    out = jax.block_until_ready(out)
    assert out.shape == (2, cfg["z_dim"]), out.shape
    assert bool(jnp.all(jnp.isfinite(out)))
    print("KERNEL_OK")
</pallas_src>

<mosaic_0001>
module attributes {stable_mosaic.version = 11 : i64} {
  func.func @_dense_matmul_kernel(%arg0: i32, %arg1: memref<256x49xf32, #tpu.memory_space<vmem>>, %arg2: memref<49x16xbf16, #tpu.memory_space<vmem>>, %arg3: memref<1x16xf32, #tpu.memory_space<vmem>>, %arg4: memref<1x16xf32, #tpu.memory_space<vmem>>, %arg5: memref<256x16xf32, #tpu.memory_space<vmem>>) attributes {dimension_semantics = [#tpu.dimension_semantics<parallel>], iteration_bounds = array<i64: 2>, scalar_prefetch = 0 : i64, scratch_operands = 0 : i64, tpu.core_type = #tpu.core_type<tc>, window_params = [{transform_indices = @transform_0, window_bounds = array<i64: 256, 49>}, {pipeline_mode = #tpu.pipeline_mode<synchronous>, transform_indices = @transform_1, window_bounds = array<i64: 49, 16>}, {pipeline_mode = #tpu.pipeline_mode<synchronous>, transform_indices = @transform_2, window_bounds = array<i64: 1, 16>}, {pipeline_mode = #tpu.pipeline_mode<synchronous>, transform_indices = @transform_3, window_bounds = array<i64: 1, 16>}, {transform_indices = @transform_4, window_bounds = array<i64: 256, 16>}]} {
    %c0 = arith.constant 0 : index
    %c0_0 = arith.constant 0 : index
    %0 = vector.load %arg1[%c0, %c0_0] : memref<256x49xf32, #tpu.memory_space<vmem>>, vector<256x49xf32>
    %1 = arith.truncf %0 : vector<256x49xf32> to vector<256x49xbf16>
    %c0_1 = arith.constant 0 : index
    %c0_2 = arith.constant 0 : index
    %2 = vector.load %arg2[%c0_1, %c0_2] : memref<49x16xbf16, #tpu.memory_space<vmem>>, vector<49x16xbf16>
    %cst = arith.constant dense<0.000000e+00> : vector<256x16xf32>
    %3 = tpu.matmul %1, %2, %cst {dimension_numbers = #tpu.dot_dimension_numbers<[1], [0], [0], [1], [0, 0, 1, 1], [], []>} : vector<256x49xbf16>, vector<49x16xbf16>, vector<256x16xf32> -> vector<256x16xf32>
    %c0_3 = arith.constant 0 : index
    %c0_4 = arith.constant 0 : index
    %4 = vector.load %arg3[%c0_3, %c0_4] : memref<1x16xf32, #tpu.memory_space<vmem>>, vector<1x16xf32>
    %5 = vector.broadcast %4 : vector<1x16xf32> to vector<256x16xf32>
    %6 = arith.mulf %3, %5 : vector<256x16xf32>
    %c0_5 = arith.constant 0 : index
    %c0_6 = arith.constant 0 : index
    %7 = vector.load %arg4[%c0_5, %c0_6] : memref<1x16xf32, #tpu.memory_space<vmem>>, vector<1x16xf32>
    %8 = vector.broadcast %7 : vector<1x16xf32> to vector<256x16xf32>
    %9 = arith.addf %6, %8 : vector<256x16xf32>
    %cst_7 = arith.constant 0.000000e+00 : f32
    %10 = vector.broadcast %cst_7 : f32 to vector<256x16xf32>
    %11 = arith.maximumf %9, %10 : vector<256x16xf32>
    %c0_8 = arith.constant 0 : index
    %c0_9 = arith.constant 0 : index
    %12 = vector.load %arg5[%c0_8, %c0_9] : memref<256x16xf32, #tpu.memory_space<vmem>>, vector<256x16xf32>
    tpu.vector_store %arg5[%c0_8, %c0_9], %11 {strides = array<i32>} : memref<256x16xf32, #tpu.memory_space<vmem>>, vector<256x16xf32>,
    return
  }
  func.func @transform_0(%arg0: i32) -> (i32, i32) {
    %c0_i32 = arith.constant 0 : i32
    %c0_i32_0 = arith.constant 0 : i32
    return %arg0, %c0_i32 : i32, i32
  }
  func.func @transform_1(%arg0: i32) -> (i32, i32) {
    %c0_i32 = arith.constant 0 : i32
    %c0_i32_0 = arith.constant 0 : i32
    %c0_i32_1 = arith.constant 0 : i32
    return %c0_i32, %c0_i32_0 : i32, i32
  }
  func.func @transform_2(%arg0: i32) -> (i32, i32) {
    %c0_i32 = arith.constant 0 : i32
    %c0_i32_0 = arith.constant 0 : i32
    %c0_i32_1 = arith.constant 0 : i32
    return %c0_i32, %c0_i32_0 : i32, i32
  }
  func.func @transform_3(%arg0: i32) -> (i32, i32) {
    %c0_i32 = arith.constant 0 : i32
    %c0_i32_0 = arith.constant 0 : i32
    %c0_i32_1 = arith.constant 0 : i32
    return %c0_i32, %c0_i32_0 : i32, i32
  }
  func.func @transform_4(%arg0: i32) -> (i32, i32) {
    %c0_i32 = arith.constant 0 : i32
    %c0_i32_0 = arith.constant 0 : i32
    return %arg0, %c0_i32 : i32, i32
  }
}

module attributes {stable_mosaic.version = 11 : i64} {
  func.func @_pool2x_kernel(%arg0: i32, %arg1: memref<1x9x9x16xf32, #tpu.memory_space<vmem>>, %arg2: memref<1x9x9x16xf32, #tpu.memory_space<vmem>>, %arg3: memref<1x9x9x16xf32, #tpu.memory_space<vmem>>, %arg4: memref<1x9x9x16xf32, #tpu.memory_space<vmem>>, %arg5: memref<1x8x8x16xf32, #tpu.memory_space<vmem>>) attributes {dimension_semantics = [#tpu.dimension_semantics<parallel>], iteration_bounds = array<i64: 2>, scalar_prefetch = 0 : i64, scratch_operands = 0 : i64, tpu.core_type = #tpu.core_type<tc>, window_params = [{transform_indices = @transform_0, window_bounds = array<i64: 1, 9, 9, 16>}, {transform_indices = @transform_1, window_bounds = array<i64: 1, 9, 9, 16>}, {transform_indices = @transform_2, window_bounds = array<i64: 1, 9, 9, 16>}, {transform_indices = @transform_3, window_bounds = array<i64: 1, 9, 9, 16>}, {transform_indices = @transform_4, window_bounds = array<i64: 1, 8, 8, 16>}]} {
    %c0 = arith.constant 0 : index
    %c0_0 = arith.constant 0 : index
    %c0_1 = arith.constant 0 : index
    %c0_2 = arith.constant 0 : index
    %0 = vector.load %arg1[%c0, %c0_0, %c0_1, %c0_2] : memref<1x9x9x16xf32, #tpu.memory_space<vmem>>, vector<1x8x8x16xf32>
    %1 = vector.shape_cast %0 : vector<1x8x8x16xf32> to vector<8x8x16xf32>
    %c0_3 = arith.constant 0 : index
    %c0_4 = arith.constant 0 : index
    %c0_5 = arith.constant 0 : index
    %c0_6 = arith.constant 0 : index
    %2 = vector.load %arg2[%c0_3, %c0_4, %c0_5, %c0_6] : memref<1x9x9x16xf32, #tpu.memory_space<vmem>>, vector<1x8x8x16xf32>
    %3 = vector.shape_cast %2 : vector<1x8x8x16xf32> to vector<8x8x16xf32>
    %4 = arith.maximumf %1, %3 : vector<8x8x16xf32>
    %c0_7 = arith.constant 0 : index
    %c0_8 = arith.constant 0 : index
    %c1 = arith.constant 1 : index
    %c0_9 = arith.constant 0 : index
    %5 = vector.load %arg1[%c0_7, %c0_8, %c1, %c0_9] : memref<1x9x9x16xf32, #tpu.memory_space<vmem>>, vector<1x8x8x16xf32>
    %6 = vector.shape_cast %5 : vector<1x8x8x16xf32> to vector<8x8x16xf32>
    %7 = arith.maximumf %4, %6 : vector<8x8x16xf32>
    %c0_10 = arith.constant 0 : index
    %c0_11 = arith.constant 0 : index
    %c0_12 = arith.constant 0 : index
    %c0_13 = arith.constant 0 : index
    %8 = vector.load %arg3[%c0_10, %c0_11, %c0_12, %c0_13] : memref<1x9x9x16xf32, #tpu.memory_space<vmem>>, vector<1x8x8x16xf32>
    %9 = vector.shape_cast %8 : vector<1x8x8x16xf32> to vector<8x8x16xf32>
    %10 = arith.maximumf %7, %9 : vector<8x8x16xf32>
    %c0_14 = arith.constant 0 : index
    %c0_15 = arith.constant 0 : index
    %c0_16 = arith.constant 0 : index
    %c0_17 = arith.constant 0 : index
    %11 = vector.load %arg4[%c0_14, %c0_15, %c0_16, %c0_17] : memref<1x9x9x16xf32, #tpu.memory_space<vmem>>, vector<1x8x8x16xf32>
    %12 = vector.shape_cast %11 : vector<1x8x8x16xf32> to vector<8x8x16xf32>
    %13 = arith.maximumf %10, %12 : vector<8x8x16xf32>
    %c0_18 = arith.constant 0 : index
    %c0_19 = arith.constant 0 : index
    %c1_20 = arith.constant 1 : index
    %c0_21 = arith.constant 0 : index
    %14 = vector.load %arg3[%c0_18, %c0_19, %c1_20, %c0_21] : memref<1x9x9x16xf32, #tpu.memory_space<vmem>>, vector<1x8x8x16xf32>
    %15 = vector.shape_cast %14 : vector<1x8x8x16xf32> to vector<8x8x16xf32>
    %16 = arith.maximumf %13, %15 : vector<8x8x16xf32>
    %c0_22 = arith.constant 0 : index
    %c1_23 = arith.constant 1 : index
    %c0_24 = arith.constant 0 : index
    %c0_25 = arith.constant 0 : index
    %17 = vector.load %arg1[%c0_22, %c1_23, %c0_24, %c0_25] : memref<1x9x9x16xf32, #tpu.memory_space<vmem>>, vector<1x8x8x16xf32>
    %18 = vector.shape_cast %17 : vector<1x8x8x16xf32> to vector<8x8x16xf32>
    %19 = arith.maximumf %16, %18 : vector<8x8x16xf32>
    %c0_26 = arith.constant 0 : index
    %c1_27 = arith.constant 1 : index
    %c0_28 = arith.constant 0 : index
    %c0_29 = arith.constant 0 : index
    %20 = vector.load %arg2[%c0_26, %c1_27, %c0_28, %c0_29] : memref<1x9x9x16xf32, #tpu.memory_space<vmem>>, vector<1x8x8x16xf32>
    %21 = vector.shape_cast %20 : vector<1x8x8x16xf32> to vector<8x8x16xf32>
    %22 = arith.maximumf %19, %21 : vector<8x8x16xf32>
    %c0_30 = arith.constant 0 : index
    %c1_31 = arith.constant 1 : index
    %c1_32 = arith.constant 1 : index
    %c0_33 = arith.constant 0 : index
    %23 = vector.load %arg1[%c0_30, %c1_31, %c1_32, %c0_33] : memref<1x9x9x16xf32, #tpu.memory_space<vmem>>, vector<1x8x8x16xf32>
    %24 = vector.shape_cast %23 : vector<1x8x8x16xf32> to vector<8x8x16xf32>
    %25 = arith.maximumf %22, %24 : vector<8x8x16xf32>
    %c0_34 = arith.constant 0 : index
    %c0_35 = arith.constant 0 : index
    %c0_36 = arith.constant 0 : index
    %c0_37 = arith.constant 0 : index
    %26 = vector.load %arg5[%c0_34, %c0_35, %c0_36, %c0_37] : memref<1x8x8x16xf32, #tpu.memory_space<vmem>>, vector<1x8x8x16xf32>
    %27 = vector.shape_cast %26 : vector<1x8x8x16xf32> to vector<8x8x16xf32>
    %28 = vector.shape_cast %25 : vector<8x8x16xf32> to vector<1x8x8x16xf32>
    tpu.vector_store %arg5[%c0_34, %c0_35, %c0_36, %c0_37], %28 {strides = array<i32>} : memref<1x8x8x16xf32, #tpu.memory_space<vmem>>, vector<1x8x8x16xf32>,
    return
  }
  func.func @transform_0(%arg0: i32) -> (i32, i32, i32, i32) {
    %c0_i32 = arith.constant 0 : i32
    %c0_i32_0 = arith.constant 0 : i32
    %c0_i32_1 = arith.constant 0 : i32
    %c0_i32_2 = arith.constant 0 : i32
    return %arg0, %c0_i32, %c0_i32_0, %c0_i32_1 : i32, i32, i32, i32
  }
  func.func @transform_1(%arg0: i32) -> (i32, i32, i32, i32) {
    %c0_i32 = arith.constant 0 : i32
    %c0_i32_0 = arith.constant 0 : i32
    %c0_i32_1 = arith.constant 0 : i32
    %c0_i32_2 = arith.constant 0 : i32
    return %arg0, %c0_i32, %c0_i32_0, %c0_i32_1 : i32, i32, i32, i32
  }
  func.func @transform_2(%arg0: i32) -> (i32, i32, i32, i32) {
    %c0_i32 = arith.constant 0 : i32
    %c0_i32_0 = arith.constant 0 : i32
    %c0_i32_1 = arith.constant 0 : i32
    %c0_i32_2 = arith.constant 0 : i32
    return %arg0, %c0_i32, %c0_i32_0, %c0_i32_1 : i32, i32, i32, i32
  }
  func.func @transform_3(%arg0: i32) -> (i32, i32, i32, i32) {
    %c0_i32 = arith.constant 0 : i32
    %c0_i32_0 = arith.constant 0 : i32
    %c0_i32_1 = arith.constant 0 : i32
    %c0_i32_2 = arith.constant 0 : i32
    return %arg0, %c0_i32, %c0_i32_0, %c0_i32_1 : i32, i32, i32, i32
  }
  func.func @transform_4(%arg0: i32) -> (i32, i32, i32, i32) {
    %c0_i32 = arith.constant 0 : i32
    %c0_i32_0 = arith.constant 0 : i32
    %c0_i32_1 = arith.constant 0 : i32
    %c0_i32_2 = arith.constant 0 : i32
    return %arg0, %c0_i32, %c0_i32_0, %c0_i32_1 : i32, i32, i32, i32
  }
}

module attributes {stable_mosaic.version = 11 : i64} {
  func.func @_dense_matmul_kernel(%arg0: i32, %arg1: memref<64x16xf32, #tpu.memory_space<vmem>>, %arg2: memref<16x16xbf16, #tpu.memory_space<vmem>>, %arg3: memref<1x16xf32, #tpu.memory_space<vmem>>, %arg4: memref<1x16xf32, #tpu.memory_space<vmem>>, %arg5: memref<1x16xf32, #tpu.memory_space<vmem>>, %arg6: memref<1x16xf32, #tpu.memory_space<vmem>>, %arg7: memref<64x16xf32, #tpu.memory_space<vmem>>) attributes {dimension_semantics = [#tpu.dimension_semantics<parallel>], iteration_bounds = array<i64: 2>, scalar_prefetch = 0 : i64, scratch_operands = 0 : i64, tpu.core_type = #tpu.core_type<tc>, window_params = [{transform_indices = @transform_0, window_bounds = array<i64: 64, 16>}, {pipeline_mode = #tpu.pipeline_mode<synchronous>, transform_indices = @transform_1, window_bounds = array<i64: 16, 16>}, {pipeline_mode = #tpu.pipeline_mode<synchronous>, transform_indices = @transform_2, window_bounds = array<i64: 1, 16>}, {pipeline_mode = #tpu.pipeline_mode<synchronous>, transform_indices = @transform_3, window_bounds = array<i64: 1, 16>}, {pipeline_mode = #tpu.pipeline_mode<synchronous>, transform_indices = @transform_4, window_bounds = array<i64: 1, 16>}, {pipeline_mode = #tpu.pipeline_mode<synchronous>, transform_indices = @transform_5, window_bounds = array<i64: 1, 16>}, {transform_indices = @transform_6, window_bounds = array<i64: 64, 16>}]} {
    %c0 = arith.constant 0 : index
    %c0_0 = arith.constant 0 : index
    %0 = vector.load %arg1[%c0, %c0_0] : memref<64x16xf32, #tpu.memory_space<vmem>>, vector<64x16xf32>
    %c0_1 = arith.constant 0 : index
    %c0_2 = arith.constant 0 : index
    %1 = vector.load %arg3[%c0_1, %c0_2] : memref<1x16xf32, #tpu.memory_space<vmem>>, vector<1x16xf32>
    %2 = vector.broadcast %1 : vector<1x16xf32> to vector<64x16xf32>
    %3 = arith.mulf %0, %2 : vector<64x16xf32>
    %c0_3 = arith.constant 0 : index
    %c0_4 = arith.constant 0 : index
    %4 = vector.load %arg4[%c0_3, %c0_4] : memref<1x16xf32, #tpu.memory_space<vmem>>, vector<1x16xf32>
    %5 = vector.broadcast %4 : vector<1x16xf32> to vector<64x16xf32>
    %6 = arith.addf %3, %5 : vector<64x16xf32>
    %cst = arith.constant 0.000000e+00 : f32
    %7 = vector.broadcast %cst : f32 to vector<64x16xf32>
    %8 = arith.maximumf %6, %7 : vector<64x16xf32>
    %9 = arith.truncf %8 : vector<64x16xf32> to vector<64x16xbf16>
    %c0_5 = arith.constant 0 : index
    %c0_6 = arith.constant 0 : index
    %10 = vector.load %arg2[%c0_5, %c0_6] : memref<16x16xbf16, #tpu.memory_space<vmem>>, vector<16x16xbf16>
    %cst_7 = arith.constant dense<0.000000e+00> : vector<64x16xf32>
    %11 = tpu.matmul %9, %10, %cst_7 {dimension_numbers = #tpu.dot_dimension_numbers<[1], [0], [0], [1], [0, 0, 1, 1], [], []>} : vector<64x16xbf16>, vector<16x16xbf16>, vector<64x16xf32> -> vector<64x16xf32>
    %c0_8 = arith.constant 0 : index
    %c0_9 = arith.constant 0 : index
    %12 = vector.load %arg5[%c0_8, %c0_9] : memref<1x16xf32, #tpu.memory_space<vmem>>, vector<1x16xf32>
    %13 = vector.broadcast %12 : vector<1x16xf32> to vector<64x16xf32>
    %14 = arith.mulf %11, %13 : vector<64x16xf32>
    %c0_10 = arith.constant 0 : index
    %c0_11 = arith.constant 0 : index
    %15 = vector.load %arg6[%c0_10, %c0_11] : memref<1x16xf32, #tpu.memory_space<vmem>>, vector<1x16xf32>
    %16 = vector.broadcast %15 : vector<1x16xf32> to vector<64x16xf32>
    %17 = arith.addf %14, %16 : vector<64x16xf32>
    %cst_12 = arith.constant 0.000000e+00 : f32
    %18 = vector.broadcast %cst_12 : f32 to vector<64x16xf32>
    %19 = arith.maximumf %17, %18 : vector<64x16xf32>
    %c0_13 = arith.constant 0 : index
    %c0_14 = arith.constant 0 : index
    %20 = vector.load %arg7[%c0_13, %c0_14] : memref<64x16xf32, #tpu.memory_space<vmem>>, vector<64x16xf32>
    tpu.vector_store %arg7[%c0_13, %c0_14], %19 {strides = array<i32>} : memref<64x16xf32, #tpu.memory_space<vmem>>, vector<64x16xf32>,
    return
  }
  func.func @transform_0(%arg0: i32) -> (i32, i32) {
    %c0_i32 = arith.constant 0 : i32
    %c0_i32_0 = arith.constant 0 : i32
    return %arg0, %c0_i32 : i32, i32
  }
  func.func @transform_1(%arg0: i32) -> (i32, i32) {
    %c0_i32 = arith.constant 0 : i32
    %c0_i32_0 = arith.constant 0 : i32
    %c0_i32_1 = arith.constant 0 : i32
    return %c0_i32, %c0_i32_0 : i32, i32
  }
  func.func @transform_2(%arg0: i32) -> (i32, i32) {
    %c0_i32 = arith.constant 0 : i32
    %c0_i32_0 = arith.constant 0 : i32
    %c0_i32_1 = arith.constant 0 : i32
    return %c0_i32, %c0_i32_0 : i32, i32
  }
  func.func @transform_3(%arg0: i32) -> (i32, i32) {
    %c0_i32 = arith.constant 0 : i32
    %c0_i32_0 = arith.constant 0 : i32
    %c0_i32_1 = arith.constant 0 : i32
    return %c0_i32, %c0_i32_0 : i32, i32
  }
  func.func @transform_4(%arg0: i32) -> (i32, i32) {
    %c0_i32 = arith.constant 0 : i32
    %c0_i32_0 = arith.constant 0 : i32
    %c0_i32_1 = arith.constant 0 : i32
    return %c0_i32, %c0_i32_0 : i32, i32
  }
  func.func @transform_5(%arg0: i32) -> (i32, i32) {
    %c0_i32 = arith.constant 0 : i32
    %c0_i32_0 = arith.constant 0 : i32
    %c0_i32_1 = arith.constant 0 : i32
    return %c0_i32, %c0_i32_0 : i32, i32
  }
  func.func @transform_6(%arg0: i32) -> (i32, i32) {
    %c0_i32 = arith.constant 0 : i32
    %c0_i32_0 = arith.constant 0 : i32
    return %arg0, %c0_i32 : i32, i32
  }
}

module attributes {stable_mosaic.version = 11 : i64} {
  func.func @_conv3x3_kernel(%arg0: i32, %arg1: memref<1x10x10x16xf32, #tpu.memory_space<vmem>>, %arg2: memref<9x16x8xbf16, #tpu.memory_space<vmem>>, %arg3: memref<1x8x8x8xf32, #tpu.memory_space<vmem>>) attributes {dimension_semantics = [#tpu.dimension_semantics<parallel>], iteration_bounds = array<i64: 2>, scalar_prefetch = 0 : i64, scratch_operands = 0 : i64, tpu.core_type = #tpu.core_type<tc>, window_params = [{transform_indices = @transform_0, window_bounds = array<i64: 1, 10, 10, 16>}, {pipeline_mode = #tpu.pipeline_mode<synchronous>, transform_indices = @transform_1, window_bounds = array<i64: 9, 16, 8>}, {transform_indices = @transform_2, window_bounds = array<i64: 1, 8, 8, 8>}]} {
    %c0 = arith.constant 0 : index
    %c0_0 = arith.constant 0 : index
    %c0_1 = arith.constant 0 : index
    %c0_2 = arith.constant 0 : index
    %0 = vector.load %arg1[%c0, %c0_0, %c0_1, %c0_2] : memref<1x10x10x16xf32, #tpu.memory_space<vmem>>, vector<1x8x8x16xf32>
    %1 = vector.shape_cast %0 : vector<1x8x8x16xf32> to vector<8x8x16xf32>
    %2 = vector.shape_cast %1 : vector<8x8x16xf32> to vector<64x16xf32>
    %3 = arith.truncf %2 : vector<64x16xf32> to vector<64x16xbf16>
    %c0_3 = arith.constant 0 : index
    %c0_4 = arith.constant 0 : index
    %c0_5 = arith.constant 0 : index
    %4 = vector.load %arg2[%c0_3, %c0_4, %c0_5] : memref<9x16x8xbf16, #tpu.memory_space<vmem>>, vector<1x16x8xbf16>
    %5 = vector.shape_cast %4 : vector<1x16x8xbf16> to vector<16x8xbf16>
    %cst = arith.constant dense<0.000000e+00> : vector<64x8xf32>
    %6 = tpu.matmul %3, %5, %cst {dimension_numbers = #tpu.dot_dimension_numbers<[1], [0], [0], [1], [0, 0, 1, 1], [], []>} : vector<64x16xbf16>, vector<16x8xbf16>, vector<64x8xf32> -> vector<64x8xf32>
    %c0_6 = arith.constant 0 : index
    %c0_7 = arith.constant 0 : index
    %c1 = arith.constant 1 : index
    %c0_8 = arith.constant 0 : index
    %7 = vector.load %arg1[%c0_6, %c0_7, %c1, %c0_8] : memref<1x10x10x16xf32, #tpu.memory_space<vmem>>, vector<1x8x8x16xf32>
    %8 = vector.shape_cast %7 : vector<1x8x8x16xf32> to vector<8x8x16xf32>
    %9 = vector.shape_cast %8 : vector<8x8x16xf32> to vector<64x16xf32>
    %10 = arith.truncf %9 : vector<64x16xf32> to vector<64x16xbf16>
    %c1_9 = arith.constant 1 : index
    %c0_10 = arith.constant 0 : index
    %c0_11 = arith.constant 0 : index
    %11 = vector.load %arg2[%c1_9, %c0_10, %c0_11] : memref<9x16x8xbf16, #tpu.memory_space<vmem>>, vector<1x16x8xbf16>
    %12 = vector.shape_cast %11 : vector<1x16x8xbf16> to vector<16x8xbf16>
    %cst_12 = arith.constant dense<0.000000e+00> : vector<64x8xf32>
    %13 = tpu.matmul %10, %12, %cst_12 {dimension_numbers = #tpu.dot_dimension_numbers<[1], [0], [0], [1], [0, 0, 1, 1], [], []>} : vector<64x16xbf16>, vector<16x8xbf16>, vector<64x8xf32> -> vector<64x8xf32>
    %14 = arith.addf %6, %13 : vector<64x8xf32>
    %c0_13 = arith.constant 0 : index
    %c0_14 = arith.constant 0 : index
    %c2 = arith.constant 2 : index
    %c0_15 = arith.constant 0 : index
    %15 = vector.load %arg1[%c0_13, %c0_14, %c2, %c0_15] : memref<1x10x10x16xf32, #tpu.memory_space<vmem>>, vector<1x8x8x16xf32>
    %16 = vector.shape_cast %15 : vector<1x8x8x16xf32> to vector<8x8x16xf32>
    %17 = vector.shape_cast %16 : vector<8x8x16xf32> to vector<64x16xf32>
    %18 = arith.truncf %17 : vector<64x16xf32> to vector<64x16xbf16>
    %c2_16 = arith.constant 2 : index
    %c0_17 = arith.constant 0 : index
    %c0_18 = arith.constant 0 : index
    %19 = vector.load %arg2[%c2_16, %c0_17, %c0_18] : memref<9x16x8xbf16, #tpu.memory_space<vmem>>, vector<1x16x8xbf16>
    %20 = vector.shape_cast %19 : vector<1x16x8xbf16> to vector<16x8xbf16>
    %cst_19 = arith.constant dense<0.000000e+00> : vector<64x8xf32>
    %21 = tpu.matmul %18, %20, %cst_19 {dimension_numbers = #tpu.dot_dimension_numbers<[1], [0], [0], [1], [0, 0, 1, 1], [], []>} : vector<64x16xbf16>, vector<16x8xbf16>, vector<64x8xf32> -> vector<64x8xf32>
    %22 = arith.addf %14, %21 : vector<64x8xf32>
    %c0_20 = arith.constant 0 : index
    %c1_21 = arith.constant 1 : index
    %c0_22 = arith.constant 0 : index
    %c0_23 = arith.constant 0 : index
    %23 = vector.load %arg1[%c0_20, %c1_21, %c0_22, %c0_23] : memref<1x10x10x16xf32, #tpu.memory_space<vmem>>, vector<1x8x8x16xf32>
    %24 = vector.shape_cast %23 : vector<1x8x8x16xf32> to vector<8x8x16xf32>
    %25 = vector.shape_cast %24 : vector<8x8x16xf32> to vector<64x16xf32>
    %26 = arith.truncf %25 : vector<64x16xf32> to vector<64x16xbf16>
    %c3 = arith.constant 3 : index
    %c0_24 = arith.constant 0 : index
    %c0_25 = arith.constant 0 : index
    %27 = vector.load %arg2[%c3, %c0_24, %c0_25] : memref<9x16x8xbf16, #tpu.memory_space<vmem>>, vector<1x16x8xbf16>
    %28 = vector.shape_cast %27 : vector<1x16x8xbf16> to vector<16x8xbf16>
    %cst_26 = arith.constant dense<0.000000e+00> : vector<64x8xf32>
    %29 = tpu.matmul %26, %28, %cst_26 {dimension_numbers = #tpu.dot_dimension_numbers<[1], [0], [0], [1], [0, 0, 1, 1], [], []>} : vector<64x16xbf16>, vector<16x8xbf16>, vector<64x8xf32> -> vector<64x8xf32>
    %30 = arith.addf %22, %29 : vector<64x8xf32>
    %c0_27 = arith.constant 0 : index
    %c1_28 = arith.constant 1 : index
    %c1_29 = arith.constant 1 : index
    %c0_30 = arith.constant 0 : index
    %31 = vector.load %arg1[%c0_27, %c1_28, %c1_29, %c0_30] : memref<1x10x10x16xf32, #tpu.memory_space<vmem>>, vector<1x8x8x16xf32>
    %32 = vector.shape_cast %31 : vector<1x8x8x16xf32> to vector<8x8x16xf32>
    %33 = vector.shape_cast %32 : vector<8x8x16xf32> to vector<64x16xf32>
    %34 = arith.truncf %33 : vector<64x16xf32> to vector<64x16xbf16>
    %c4 = arith.constant 4 : index
    %c0_31 = arith.constant 0 : index
    %c0_32 = arith.constant 0 : index
    %35 = vector.load %arg2[%c4, %c0_31, %c0_32] : memref<9x16x8xbf16, #tpu.memory_space<vmem>>, vector<1x16x8xbf16>
    %36 = vector.shape_cast %35 : vector<1x16x8xbf16> to vector<16x8xbf16>
    %cst_33 = arith.constant dense<0.000000e+00> : vector<64x8xf32>
    %37 = tpu.matmul %34, %36, %cst_33 {dimension_numbers = #tpu.dot_dimension_numbers<[1], [0], [0], [1], [0, 0, 1, 1], [], []>} : vector<64x16xbf16>, vector<16x8xbf16>, vector<64x8xf32> -> vector<64x8xf32>
    %38 = arith.addf %30, %37 : vector<64x8xf32>
    %c0_34 = arith.constant 0 : index
    %c1_35 = arith.constant 1 : index
    %c2_36 = arith.constant 2 : index
    %c0_37 = arith.constant 0 : index
    %39 = vector.load %arg1[%c0_34, %c1_35, %c2_36, %c0_37] : memref<1x10x10x16xf32, #tpu.memory_space<vmem>>, vector<1x8x8x16xf32>
    %40 = vector.shape_cast %39 : vector<1x8x8x16xf32> to vector<8x8x16xf32>
    %41 = vector.shape_cast %40 : vector<8x8x16xf32> to vector<64x16xf32>
    %42 = arith.truncf %41 : vector<64x16xf32> to vector<64x16xbf16>
    %c5 = arith.constant 5 : index
    %c0_38 = arith.constant 0 : index
    %c0_39 = arith.constant 0 : index
    %43 = vector.load %arg2[%c5, %c0_38, %c0_39] : memref<9x16x8xbf16, #tpu.memory_space<vmem>>, vector<1x16x8xbf16>
    %44 = vector.shape_cast %43 : vector<1x16x8xbf16> to vector<16x8xbf16>
    %cst_40 = arith.constant dense<0.000000e+00> : vector<64x8xf32>
    %45 = tpu.matmul %42, %44, %cst_40 {dimension_numbers = #tpu.dot_dimension_numbers<[1], [0], [0], [1], [0, 0, 1, 1], [], []>} : vector<64x16xbf16>, vector<16x8xbf16>, vector<64x8xf32> -> vector<64x8xf32>
    %46 = arith.addf %38, %45 : vector<64x8xf32>
    %c0_41 = arith.constant 0 : index
    %c2_42 = arith.constant 2 : index
    %c0_43 = arith.constant 0 : index
    %c0_44 = arith.constant 0 : index
    %47 = vector.load %arg1[%c0_41, %c2_42, %c0_43, %c0_44] : memref<1x10x10x16xf32, #tpu.memory_space<vmem>>, vector<1x8x8x16xf32>
    %48 = vector.shape_cast %47 : vector<1x8x8x16xf32> to vector<8x8x16xf32>
    %49 = vector.shape_cast %48 : vector<8x8x16xf32> to vector<64x16xf32>
    %50 = arith.truncf %49 : vector<64x16xf32> to vector<64x16xbf16>
    %c6 = arith.constant 6 : index
    %c0_45 = arith.constant 0 : index
    %c0_46 = arith.constant 0 : index
    %51 = vector.load %arg2[%c6, %c0_45, %c0_46] : memref<9x16x8xbf16, #tpu.memory_space<vmem>>, vector<1x16x8xbf16>
    %52 = vector.shape_cast %51 : vector<1x16x8xbf16> to vector<16x8xbf16>
    %cst_47 = arith.constant dense<0.000000e+00> : vector<64x8xf32>
    %53 = tpu.matmul %50, %52, %cst_47 {dimension_numbers = #tpu.dot_dimension_numbers<[1], [0], [0], [1], [0, 0, 1, 1], [], []>} : vector<64x16xbf16>, vector<16x8xbf16>, vector<64x8xf32> -> vector<64x8xf32>
    %54 = arith.addf %46, %53 : vector<64x8xf32>
    %c0_48 = arith.constant 0 : index
    %c2_49 = arith.constant 2 : index
    %c1_50 = arith.constant 1 : index
    %c0_51 = arith.constant 0 : index
    %55 = vector.load %arg1[%c0_48, %c2_49, %c1_50, %c0_51] : memref<1x10x10x16xf32, #tpu.memory_space<vmem>>, vector<1x8x8x16xf32>
    %56 = vector.shape_cast %55 : vector<1x8x8x16xf32> to vector<8x8x16xf32>
    %57 = vector.shape_cast %56 : vector<8x8x16xf32> to vector<64x16xf32>
    %58 = arith.truncf %57 : vector<64x16xf32> to vector<64x16xbf16>
    %c7 = arith.constant 7 : index
    %c0_52 = arith.constant 0 : index
    %c0_53 = arith.constant 0 : index
    %59 = vector.load %arg2[%c7, %c0_52, %c0_53] : memref<9x16x8xbf16, #tpu.memory_space<vmem>>, vector<1x16x8xbf16>
    %60 = vector.shape_cast %59 : vector<1x16x8xbf16> to vector<16x8xbf16>
    %cst_54 = arith.constant dense<0.000000e+00> : vector<64x8xf32>
    %61 = tpu.matmul %58, %60, %cst_54 {dimension_numbers = #tpu.dot_dimension_numbers<[1], [0], [0], [1], [0, 0, 1, 1], [], []>} : vector<64x16xbf16>, vector<16x8xbf16>, vector<64x8xf32> -> vector<64x8xf32>
    %62 = arith.addf %54, %61 : vector<64x8xf32>
    %c0_55 = arith.constant 0 : index
    %c2_56 = arith.constant 2 : index
    %c2_57 = arith.constant 2 : index
    %c0_58 = arith.constant 0 : index
    %63 = vector.load %arg1[%c0_55, %c2_56, %c2_57, %c0_58] : memref<1x10x10x16xf32, #tpu.memory_space<vmem>>, vector<1x8x8x16xf32>
    %64 = vector.shape_cast %63 : vector<1x8x8x16xf32> to vector<8x8x16xf32>
    %65 = vector.shape_cast %64 : vector<8x8x16xf32> to vector<64x16xf32>
    %66 = arith.truncf %65 : vector<64x16xf32> to vector<64x16xbf16>
    %c8 = arith.constant 8 : index
    %c0_59 = arith.constant 0 : index
    %c0_60 = arith.constant 0 : index
    %67 = vector.load %arg2[%c8, %c0_59, %c0_60] : memref<9x16x8xbf16, #tpu.memory_space<vmem>>, vector<1x16x8xbf16>
    %68 = vector.shape_cast %67 : vector<1x16x8xbf16> to vector<16x8xbf16>
    %cst_61 = arith.constant dense<0.000000e+00> : vector<64x8xf32>
    %69 = tpu.matmul %66, %68, %cst_61 {dimension_numbers = #tpu.dot_dimension_numbers<[1], [0], [0], [1], [0, 0, 1, 1], [], []>} : vector<64x16xbf16>, vector<16x8xbf16>, vector<64x8xf32> -> vector<64x8xf32>
    %70 = arith.addf %62, %69 : vector<64x8xf32>
    %71 = vector.shape_cast %70 : vector<64x8xf32> to vector<8x8x8xf32>
    %c0_62 = arith.constant 0 : index
    %c0_63 = arith.constant 0 : index
    %c0_64 = arith.constant 0 : index
    %c0_65 = arith.constant 0 : index
    %72 = vector.load %arg3[%c0_62, %c0_63, %c0_64, %c0_65] : memref<1x8x8x8xf32, #tpu.memory_space<vmem>>, vector<1x8x8x8xf32>
    %73 = vector.shape_cast %72 : vector<1x8x8x8xf32> to vector<8x8x8xf32>
    %74 = vector.shape_cast %71 : vector<8x8x8xf32> to vector<1x8x8x8xf32>
    tpu.vector_store %arg3[%c0_62, %c0_63, %c0_64, %c0_65], %74 {strides = array<i32>} : memref<1x8x8x8xf32, #tpu.memory_space<vmem>>, vector<1x8x8x8xf32>,
    return
  }
  func.func @transform_0(%arg0: i32) -> (i32, i32, i32, i32) {
    %c0_i32 = arith.constant 0 : i32
    %c0_i32_0 = arith.constant 0 : i32
    %c0_i32_1 = arith.constant 0 : i32
    %c0_i32_2 = arith.constant 0 : i32
    return %arg0, %c0_i32, %c0_i32_0, %c0_i32_1 : i32, i32, i32, i32
  }
  func.func @transform_1(%arg0: i32) -> (i32, i32, i32) {
    %c0_i32 = arith.constant 0 : i32
    %c0_i32_0 = arith.constant 0 : i32
    %c0_i32_1 = arith.constant 0 : i32
    %c0_i32_2 = arith.constant 0 : i32
    return %c0_i32, %c0_i32_0, %c0_i32_1 : i32, i32, i32
  }
  func.func @transform_2(%arg0: i32) -> (i32, i32, i32, i32) {
    %c0_i32 = arith.constant 0 : i32
    %c0_i32_0 = arith.constant 0 : i32
    %c0_i32_1 = arith.constant 0 : i32
    %c0_i32_2 = arith.constant 0 : i32
    return %arg0, %c0_i32, %c0_i32_0, %c0_i32_1 : i32, i32, i32, i32
  }
}

module attributes {stable_mosaic.version = 11 : i64} {
  func.func @_dense_matmul_kernel(%arg0: i32, %arg1: memref<64x16xf32, #tpu.memory_space<vmem>>, %arg2: memref<64x8xf32, #tpu.memory_space<vmem>>, %arg3: memref<24x16xbf16, #tpu.memory_space<vmem>>, %arg4: memref<1x24xf32, #tpu.memory_space<vmem>>, %arg5: memref<1x24xf32, #tpu.memory_space<vmem>>, %arg6: memref<1x16xf32, #tpu.memory_space<vmem>>, %arg7: memref<1x16xf32, #tpu.memory_space<vmem>>, %arg8: memref<64x16xf32, #tpu.memory_space<vmem>>) attributes {dimension_semantics = [#tpu.dimension_semantics<parallel>], iteration_bounds = array<i64: 2>, scalar_prefetch = 0 : i64, scratch_operands = 0 : i64, tpu.core_type = #tpu.core_type<tc>, window_params = [{transform_indices = @transform_0, window_bounds = array<i64: 64, 16>}, {transform_indices = @transform_1, window_bounds = array<i64: 64, 8>}, {pipeline_mode = #tpu.pipeline_mode<synchronous>, transform_indices = @transform_2, window_bounds = array<i64: 24, 16>}, {pipeline_mode = #tpu.pipeline_mode<synchronous>, transform_indices = @transform_3, window_bounds = array<i64: 1, 24>}, {pipeline_mode = #tpu.pipeline_mode<synchronous>, transform_indices = @transform_4, window_bounds = array<i64: 1, 24>}, {pipeline_mode = #tpu.pipeline_mode<synchronous>, transform_indices = @transform_5, window_bounds = array<i64: 1, 16>}, {pipeline_mode = #tpu.pipeline_mode<synchronous>, transform_indices = @transform_6, window_bounds = array<i64: 1, 16>}, {transform_indices = @transform_7, window_bounds = array<i64: 64, 16>}]} {
    %c0 = arith.constant 0 : index
    %c0_0 = arith.constant 0 : index
    %0 = vector.load %arg1[%c0, %c0_0] : memref<64x16xf32, #tpu.memory_space<vmem>>, vector<64x16xf32>
    %c0_1 = arith.constant 0 : index
    %c0_2 = arith.constant 0 : index
    %1 = vector.load %arg4[%c0_1, %c0_2] : memref<1x24xf32, #tpu.memory_space<vmem>>, vector<1x16xf32>
    %2 = vector.broadcast %1 : vector<1x16xf32> to vector<64x16xf32>
    %3 = arith.mulf %0, %2 : vector<64x16xf32>
    %c0_3 = arith.constant 0 : index
    %c0_4 = arith.constant 0 : index
    %4 = vector.load %arg5[%c0_3, %c0_4] : memref<1x24xf32, #tpu.memory_space<vmem>>, vector<1x16xf32>
    %5 = vector.broadcast %4 : vector<1x16xf32> to vector<64x16xf32>
    %6 = arith.addf %3, %5 : vector<64x16xf32>
    %cst = arith.constant 0.000000e+00 : f32
    %7 = vector.broadcast %cst : f32 to vector<64x16xf32>
    %8 = arith.maximumf %6, %7 : vector<64x16xf32>
    %9 = arith.truncf %8 : vector<64x16xf32> to vector<64x16xbf16>
    %c0_5 = arith.constant 0 : index
    %c0_6 = arith.constant 0 : index
    %10 = vector.load %arg3[%c0_5, %c0_6] : memref<24x16xbf16, #tpu.memory_space<vmem>>, vector<16x16xbf16>
    %cst_7 = arith.constant dense<0.000000e+00> : vector<64x16xf32>
    %11 = tpu.matmul %9, %10, %cst_7 {dimension_numbers = #tpu.dot_dimension_numbers<[1], [0], [0], [1], [0, 0, 1, 1], [], []>} : vector<64x16xbf16>, vector<16x16xbf16>, vector<64x16xf32> -> vector<64x16xf32>
    %c0_8 = arith.constant 0 : index
    %c0_9 = arith.constant 0 : index
    %12 = vector.load %arg2[%c0_8, %c0_9] : memref<64x8xf32, #tpu.memory_space<vmem>>, vector<64x8xf32>
    %c0_10 = arith.constant 0 : index
    %c16 = arith.constant 16 : index
    %13 = vector.load %arg4[%c0_10, %c16] : memref<1x24xf32, #tpu.memory_space<vmem>>, vector<1x8xf32>
    %14 = vector.broadcast %13 : vector<1x8xf32> to vector<64x8xf32>
    %15 = arith.mulf %12, %14 : vector<64x8xf32>
    %c0_11 = arith.constant 0 : index
    %c16_12 = arith.constant 16 : index
    %16 = vector.load %arg5[%c0_11, %c16_12] : memref<1x24xf32, #tpu.memory_space<vmem>>, vector<1x8xf32>
    %17 = vector.broadcast %16 : vector<1x8xf32> to vector<64x8xf32>
    %18 = arith.addf %15, %17 : vector<64x8xf32>
    %cst_13 = arith.constant 0.000000e+00 : f32
    %19 = vector.broadcast %cst_13 : f32 to vector<64x8xf32>
    %20 = arith.maximumf %18, %19 : vector<64x8xf32>
    %21 = arith.truncf %20 : vector<64x8xf32> to vector<64x8xbf16>
    %c16_14 = arith.constant 16 : index
    %c0_15 = arith.constant 0 : index
    %22 = vector.load %arg3[%c16_14, %c0_15] : memref<24x16xbf16, #tpu.memory_space<vmem>>, vector<8x16xbf16>
    %cst_16 = arith.constant dense<0.000000e+00> : vector<64x16xf32>
    %23 = tpu.matmul %21, %22, %cst_16 {dimension_numbers = #tpu.dot_dimension_numbers<[1], [0], [0], [1], [0, 0, 1, 1], [], []>} : vector<64x8xbf16>, vector<8x16xbf16>, vector<64x16xf32> -> vector<64x16xf32>
    %24 = arith.addf %11, %23 : vector<64x16xf32>
    %c0_17 = arith.constant 0 : index
    %c0_18 = arith.constant 0 : index
    %25 = vector.load %arg6[%c0_17, %c0_18] : memref<1x16xf32, #tpu.memory_space<vmem>>, vector<1x16xf32>
    %26 = vector.broadcast %25 : vector<1x16xf32> to vector<64x16xf32>
    %27 = arith.mulf %24, %26 : vector<64x16xf32>
    %c0_19 = arith.constant 0 : index
    %c0_20 = arith.constant 0 : index
    %28 = vector.load %arg7[%c0_19, %c0_20] : memref<1x16xf32, #tpu.memory_space<vmem>>, vector<1x16xf32>
    %29 = vector.broadcast %28 : vector<1x16xf32> to vector<64x16xf32>
    %30 = arith.addf %27, %29 : vector<64x16xf32>
    %cst_21 = arith.constant 0.000000e+00 : f32
    %31 = vector.broadcast %cst_21 : f32 to vector<64x16xf32>
    %32 = arith.maximumf %30, %31 : vector<64x16xf32>
    %c0_22 = arith.constant 0 : index
    %c0_23 = arith.constant 0 : index
    %33 = vector.load %arg8[%c0_22, %c0_23] : memref<64x16xf32, #tpu.memory_space<vmem>>, vector<64x16xf32>
    tpu.vector_store %arg8[%c0_22, %c0_23], %32 {strides = array<i32>} : memref<64x16xf32, #tpu.memory_space<vmem>>, vector<64x16xf32>,
    return
  }
  func.func @transform_0(%arg0: i32) -> (i32, i32) {
    %c0_i32 = arith.constant 0 : i32
    %c0_i32_0 = arith.constant 0 : i32
    return %arg0, %c0_i32 : i32, i32
  }
  func.func @transform_1(%arg0: i32) -> (i32, i32) {
    %c0_i32 = arith.constant 0 : i32
    %c0_i32_0 = arith.constant 0 : i32
    return %arg0, %c0_i32 : i32, i32
  }
  func.func @transform_2(%arg0: i32) -> (i32, i32) {
    %c0_i32 = arith.constant 0 : i32
    %c0_i32_0 = arith.constant 0 : i32
    %c0_i32_1 = arith.constant 0 : i32
    return %c0_i32, %c0_i32_0 : i32, i32
  }
  func.func @transform_3(%arg0: i32) -> (i32, i32) {
    %c0_i32 = arith.constant 0 : i32
    %c0_i32_0 = arith.constant 0 : i32
    %c0_i32_1 = arith.constant 0 : i32
    return %c0_i32, %c0_i32_0 : i32, i32
  }
  func.func @transform_4(%arg0: i32) -> (i32, i32) {
    %c0_i32 = arith.constant 0 : i32
    %c0_i32_0 = arith.constant 0 : i32
    %c0_i32_1 = arith.constant 0 : i32
    return %c0_i32, %c0_i32_0 : i32, i32
  }
  func.func @transform_5(%arg0: i32) -> (i32, i32) {
    %c0_i32 = arith.constant 0 : i32
    %c0_i32_0 = arith.constant 0 : i32
    %c0_i32_1 = arith.constant 0 : i32
    return %c0_i32, %c0_i32_0 : i32, i32
  }
  func.func @transform_6(%arg0: i32) -> (i32, i32) {
    %c0_i32 = arith.constant 0 : i32
    %c0_i32_0 = arith.constant 0 : i32
    %c0_i32_1 = arith.constant 0 : i32
    return %c0_i32, %c0_i32_0 : i32, i32
  }
  func.func @transform_7(%arg0: i32) -> (i32, i32) {
    %c0_i32 = arith.constant 0 : i32
    %c0_i32_0 = arith.constant 0 : i32
    return %arg0, %c0_i32 : i32, i32
  }
}

module attributes {stable_mosaic.version = 11 : i64} {
  func.func @_dense_matmul_kernel(%arg0: i32, %arg1: memref<64x16xf32, #tpu.memory_space<vmem>>, %arg2: memref<64x8xf32, #tpu.memory_space<vmem>>, %arg3: memref<64x8xf32, #tpu.memory_space<vmem>>, %arg4: memref<32x16xbf16, #tpu.memory_space<vmem>>, %arg5: memref<1x32xf32, #tpu.memory_space<vmem>>, %arg6: memref<1x32xf32, #tpu.memory_space<vmem>>, %arg7: memref<64x16xf32, #tpu.memory_space<vmem>>) attributes {dimension_semantics = [#tpu.dimension_semantics<parallel>], iteration_bounds = array<i64: 2>, scalar_prefetch = 0 : i64, scratch_operands = 0 : i64, tpu.core_type = #tpu.core_type<tc>, window_params = [{transform_indices = @transform_0, window_bounds = array<i64: 64, 16>}, {transform_indices = @transform_1, window_bounds = array<i64: 64, 8>}, {transform_indices = @transform_2, window_bounds = array<i64: 64, 8>}, {pipeline_mode = #tpu.pipeline_mode<synchronous>, transform_indices = @transform_3, window_bounds = array<i64: 32, 16>}, {pipeline_mode = #tpu.pipeline_mode<synchronous>, transform_indices = @transform_4, window_bounds = array<i64: 1, 32>}, {pipeline_mode = #tpu.pipeline_mode<synchronous>, transform_indices = @transform_5, window_bounds = array<i64: 1, 32>}, {transform_indices = @transform_6, window_bounds = array<i64: 64, 16>}]} {
    %c0 = arith.constant 0 : index
    %c0_0 = arith.constant 0 : index
    %0 = vector.load %arg1[%c0, %c0_0] : memref<64x16xf32, #tpu.memory_space<vmem>>, vector<64x16xf32>
    %c0_1 = arith.constant 0 : index
    %c0_2 = arith.constant 0 : index
    %1 = vector.load %arg5[%c0_1, %c0_2] : memref<1x32xf32, #tpu.memory_space<vmem>>, vector<1x16xf32>
    %2 = vector.broadcast %1 : vector<1x16xf32> to vector<64x16xf32>
    %3 = arith.mulf %0, %2 : vector<64x16xf32>
    %c0_3 = arith.constant 0 : index
    %c0_4 = arith.constant 0 : index
    %4 = vector.load %arg6[%c0_3, %c0_4] : memref<1x32xf32, #tpu.memory_space<vmem>>, vector<1x16xf32>
    %5 = vector.broadcast %4 : vector<1x16xf32> to vector<64x16xf32>
    %6 = arith.addf %3, %5 : vector<64x16xf32>
    %cst = arith.constant 0.000000e+00 : f32
    %7 = vector.broadcast %cst : f32 to vector<64x16xf32>
    %8 = arith.maximumf %6, %7 : vector<64x16xf32>
    %9 = arith.truncf %8 : vector<64x16xf32> to vector<64x16xbf16>
    %c0_5 = arith.constant 0 : index
    %c0_6 = arith.constant 0 : index
    %10 = vector.load %arg4[%c0_5, %c0_6] : memref<32x16xbf16, #tpu.memory_space<vmem>>, vector<16x16xbf16>
    %cst_7 = arith.constant dense<0.000000e+00> : vector<64x16xf32>
    %11 = tpu.matmul %9, %10, %cst_7 {dimension_numbers = #tpu.dot_dimension_numbers<[1], [0], [0], [1], [0, 0, 1, 1], [], []>} : vector<64x16xbf16>, vector<16x16xbf16>, vector<64x16xf32> -> vector<64x16xf32>
    %c0_8 = arith.constant 0 : index
    %c0_9 = arith.constant 0 : index
    %12 = vector.load %arg2[%c0_8, %c0_9] : memref<64x8xf32, #tpu.memory_space<vmem>>, vector<64x8xf32>
    %c0_10 = arith.constant 0 : index
    %c16 = arith.constant 16 : index
    %13 = vector.load %arg5[%c0_10, %c16] : memref<1x32xf32, #tpu.memory_space<vmem>>, vector<1x8xf32>
    %14 = vector.broadcast %13 : vector<1x8xf32> to vector<64x8xf32>
    %15 = arith.mulf %12, %14 : vector<64x8xf32>
    %c0_11 = arith.constant 0 : index
    %c16_12 = arith.constant 16 : index
    %16 = vector.load %arg6[%c0_11, %c16_12] : memref<1x32xf32, #tpu.memory_space<vmem>>, vector<1x8xf32>
    %17 = vector.broadcast %16 : vector<1x8xf32> to vector<64x8xf32>
    %18 = arith.addf %15, %17 : vector<64x8xf32>
    %cst_13 = arith.constant 0.000000e+00 : f32
    %19 = vector.broadcast %cst_13 : f32 to vector<64x8xf32>
    %20 = arith.maximumf %18, %19 : vector<64x8xf32>
    %21 = arith.truncf %20 : vector<64x8xf32> to vector<64x8xbf16>
    %c16_14 = arith.constant 16 : index
    %c0_15 = arith.constant 0 : index
    %22 = vector.load %arg4[%c16_14, %c0_15] : memref<32x16xbf16, #tpu.memory_space<vmem>>, vector<8x16xbf16>
    %cst_16 = arith.constant dense<0.000000e+00> : vector<64x16xf32>
    %23 = tpu.matmul %21, %22, %cst_16 {dimension_numbers = #tpu.dot_dimension_numbers<[1], [0], [0], [1], [0, 0, 1, 1], [], []>} : vector<64x8xbf16>, vector<8x16xbf16>, vector<64x16xf32> -> vector<64x16xf32>
    %24 = arith.addf %11, %23 : vector<64x16xf32>
    %c0_17 = arith.constant 0 : index
    %c0_18 = arith.constant 0 : index
    %25 = vector.load %arg3[%c0_17, %c0_18] : memref<64x8xf32, #tpu.memory_space<vmem>>, vector<64x8xf32>
    %c0_19 = arith.constant 0 : index
    %c24 = arith.constant 24 : index
    %26 = vector.load %arg5[%c0_19, %c24] : memref<1x32xf32, #tpu.memory_space<vmem>>, vector<1x8xf32>
    %27 = vector.broadcast %26 : vector<1x8xf32> to vector<64x8xf32>
    %28 = arith.mulf %25, %27 : vector<64x8xf32>
    %c0_20 = arith.constant 0 : index
    %c24_21 = arith.constant 24 : index
    %29 = vector.load %arg6[%c0_20, %c24_21] : memref<1x32xf32, #tpu.memory_space<vmem>>, vector<1x8xf32>
    %30 = vector.broadcast %29 : vector<1x8xf32> to vector<64x8xf32>
    %31 = arith.addf %28, %30 : vector<64x8xf32>
    %cst_22 = arith.constant 0.000000e+00 : f32
    %32 = vector.broadcast %cst_22 : f32 to vector<64x8xf32>
    %33 = arith.maximumf %31, %32 : vector<64x8xf32>
    %34 = arith.truncf %33 : vector<64x8xf32> to vector<64x8xbf16>
    %c24_23 = arith.constant 24 : index
    %c0_24 = arith.constant 0 : index
    %35 = vector.load %arg4[%c24_23, %c0_24] : memref<32x16xbf16, #tpu.memory_space<vmem>>, vector<8x16xbf16>
    %cst_25 = arith.constant dense<0.000000e+00> : vector<64x16xf32>
    %36 = tpu.matmul %34, %35, %cst_25 {dimension_numbers = #tpu.dot_dimension_numbers<[1], [0], [0], [1], [0, 0, 1, 1], [], []>} : vector<64x8xbf16>, vector<8x16xbf16>, vector<64x16xf32> -> vector<64x16xf32>
    %37 = arith.addf %24, %36 : vector<64x16xf32>
    %c0_26 = arith.constant 0 : index
    %c0_27 = arith.constant 0 : index
    %38 = vector.load %arg7[%c0_26, %c0_27] : memref<64x16xf32, #tpu.memory_space<vmem>>, vector<64x16xf32>
    tpu.vector_store %arg7[%c0_26, %c0_27], %37 {strides = array<i32>} : memref<64x16xf32, #tpu.memory_space<vmem>>, vector<64x16xf32>,
    return
  }
  func.func @transform_0(%arg0: i32) -> (i32, i32) {
    %c0_i32 = arith.constant 0 : i32
    %c0_i32_0 = arith.constant 0 : i32
    return %arg0, %c0_i32 : i32, i32
  }
  func.func @transform_1(%arg0: i32) -> (i32, i32) {
    %c0_i32 = arith.constant 0 : i32
    %c0_i32_0 = arith.constant 0 : i32
    return %arg0, %c0_i32 : i32, i32
  }
  func.func @transform_2(%arg0: i32) -> (i32, i32) {
    %c0_i32 = arith.constant 0 : i32
    %c0_i32_0 = arith.constant 0 : i32
    return %arg0, %c0_i32 : i32, i32
  }
  func.func @transform_3(%arg0: i32) -> (i32, i32) {
    %c0_i32 = arith.constant 0 : i32
    %c0_i32_0 = arith.constant 0 : i32
    %c0_i32_1 = arith.constant 0 : i32
    return %c0_i32, %c0_i32_0 : i32, i32
  }
  func.func @transform_4(%arg0: i32) -> (i32, i32) {
    %c0_i32 = arith.constant 0 : i32
    %c0_i32_0 = arith.constant 0 : i32
    %c0_i32_1 = arith.constant 0 : i32
    return %c0_i32, %c0_i32_0 : i32, i32
  }
  func.func @transform_5(%arg0: i32) -> (i32, i32) {
    %c0_i32 = arith.constant 0 : i32
    %c0_i32_0 = arith.constant 0 : i32
    %c0_i32_1 = arith.constant 0 : i32
    return %c0_i32, %c0_i32_0 : i32, i32
  }
  func.func @transform_6(%arg0: i32) -> (i32, i32) {
    %c0_i32 = arith.constant 0 : i32
    %c0_i32_0 = arith.constant 0 : i32
    return %arg0, %c0_i32 : i32, i32
  }
}

module attributes {stable_mosaic.version = 11 : i64} {
  func.func @_pool2x_kernel(%arg0: i32, %arg1: memref<1x4x4x16xf32, #tpu.memory_space<vmem>>, %arg2: memref<1x4x4x16xf32, #tpu.memory_space<vmem>>, %arg3: memref<1x4x4x16xf32, #tpu.memory_space<vmem>>, %arg4: memref<1x4x4x16xf32, #tpu.memory_space<vmem>>, %arg5: memref<1x4x4x16xf32, #tpu.memory_space<vmem>>) attributes {dimension_semantics = [#tpu.dimension_semantics<parallel>], iteration_bounds = array<i64: 2>, scalar_prefetch = 0 : i64, scratch_operands = 0 : i64, tpu.core_type = #tpu.core_type<tc>, window_params = [{transform_indices = @transform_0, window_bounds = array<i64: 1, 4, 4, 16>}, {transform_indices = @transform_1, window_bounds = array<i64: 1, 4, 4, 16>}, {transform_indices = @transform_2, window_bounds = array<i64: 1, 4, 4, 16>}, {transform_indices = @transform_3, window_bounds = array<i64: 1, 4, 4, 16>}, {transform_indices = @transform_4, window_bounds = array<i64: 1, 4, 4, 16>}]} {
    %c0 = arith.constant 0 : index
    %c0_0 = arith.constant 0 : index
    %c0_1 = arith.constant 0 : index
    %c0_2 = arith.constant 0 : index
    %0 = vector.load %arg1[%c0, %c0_0, %c0_1, %c0_2] : memref<1x4x4x16xf32, #tpu.memory_space<vmem>>, vector<1x4x4x16xf32>
    %1 = vector.shape_cast %0 : vector<1x4x4x16xf32> to vector<4x4x16xf32>
    %c0_3 = arith.constant 0 : index
    %c0_4 = arith.constant 0 : index
    %c0_5 = arith.constant 0 : index
    %c0_6 = arith.constant 0 : index
    %2 = vector.load %arg2[%c0_3, %c0_4, %c0_5, %c0_6] : memref<1x4x4x16xf32, #tpu.memory_space<vmem>>, vector<1x4x4x16xf32>
    %3 = vector.shape_cast %2 : vector<1x4x4x16xf32> to vector<4x4x16xf32>
    %4 = arith.addf %1, %3 : vector<4x4x16xf32>
    %c0_7 = arith.constant 0 : index
    %c0_8 = arith.constant 0 : index
    %c0_9 = arith.constant 0 : index
    %c0_10 = arith.constant 0 : index
    %5 = vector.load %arg3[%c0_7, %c0_8, %c0_9, %c0_10] : memref<1x4x4x16xf32, #tpu.memory_space<vmem>>, vector<1x4x4x16xf32>
    %6 = vector.shape_cast %5 : vector<1x4x4x16xf32> to vector<4x4x16xf32>
    %7 = arith.addf %4, %6 : vector<4x4x16xf32>
    %c0_11 = arith.constant 0 : index
    %c0_12 = arith.constant 0 : index
    %c0_13 = arith.constant 0 : index
    %c0_14 = arith.constant 0 : index
    %8 = vector.load %arg4[%c0_11, %c0_12, %c0_13, %c0_14] : memref<1x4x4x16xf32, #tpu.memory_space<vmem>>, vector<1x4x4x16xf32>
    %9 = vector.shape_cast %8 : vector<1x4x4x16xf32> to vector<4x4x16xf32>
    %10 = arith.addf %7, %9 : vector<4x4x16xf32>
    %cst = arith.constant 2.500000e-01 : f32
    %11 = vector.broadcast %cst : f32 to vector<4x4x16xf32>
    %12 = arith.mulf %10, %11 : vector<4x4x16xf32>
    %c0_15 = arith.constant 0 : index
    %c0_16 = arith.constant 0 : index
    %c0_17 = arith.constant 0 : index
    %c0_18 = arith.constant 0 : index
    %13 = vector.load %arg5[%c0_15, %c0_16, %c0_17, %c0_18] : memref<1x4x4x16xf32, #tpu.memory_space<vmem>>, vector<1x4x4x16xf32>
    %14 = vector.shape_cast %13 : vector<1x4x4x16xf32> to vector<4x4x16xf32>
    %15 = vector.shape_cast %12 : vector<4x4x16xf32> to vector<1x4x4x16xf32>
    tpu.vector_store %arg5[%c0_15, %c0_16, %c0_17, %c0_18], %15 {strides = array<i32>} : memref<1x4x4x16xf32, #tpu.memory_space<vmem>>, vector<1x4x4x16xf32>,
    return
  }
  func.func @transform_0(%arg0: i32) -> (i32, i32, i32, i32) {
    %c0_i32 = arith.constant 0 : i32
    %c0_i32_0 = arith.constant 0 : i32
    %c0_i32_1 = arith.constant 0 : i32
    %c0_i32_2 = arith.constant 0 : i32
    return %arg0, %c0_i32, %c0_i32_0, %c0_i32_1 : i32, i32, i32, i32
  }
  func.func @transform_1(%arg0: i32) -> (i32, i32, i32, i32) {
    %c0_i32 = arith.constant 0 : i32
    %c0_i32_0 = arith.constant 0 : i32
    %c0_i32_1 = arith.constant 0 : i32
    %c0_i32_2 = arith.constant 0 : i32
    return %arg0, %c0_i32, %c0_i32_0, %c0_i32_1 : i32, i32, i32, i32
  }
  func.func @transform_2(%arg0: i32) -> (i32, i32, i32, i32) {
    %c0_i32 = arith.constant 0 : i32
    %c0_i32_0 = arith.constant 0 : i32
    %c0_i32_1 = arith.constant 0 : i32
    %c0_i32_2 = arith.constant 0 : i32
    return %arg0, %c0_i32, %c0_i32_0, %c0_i32_1 : i32, i32, i32, i32
  }
  func.func @transform_3(%arg0: i32) -> (i32, i32, i32, i32) {
    %c0_i32 = arith.constant 0 : i32
    %c0_i32_0 = arith.constant 0 : i32
    %c0_i32_1 = arith.constant 0 : i32
    %c0_i32_2 = arith.constant 0 : i32
    return %arg0, %c0_i32, %c0_i32_0, %c0_i32_1 : i32, i32, i32, i32
  }
  func.func @transform_4(%arg0: i32) -> (i32, i32, i32, i32) {
    %c0_i32 = arith.constant 0 : i32
    %c0_i32_0 = arith.constant 0 : i32
    %c0_i32_1 = arith.constant 0 : i32
    %c0_i32_2 = arith.constant 0 : i32
    return %arg0, %c0_i32, %c0_i32_0, %c0_i32_1 : i32, i32, i32, i32
  }
}

module attributes {stable_mosaic.version = 11 : i64} {
  func.func @_dense_matmul_kernel(%arg0: i32, %arg1: memref<32x16xf32, #tpu.memory_space<vmem>>, %arg2: memref<16x16xbf16, #tpu.memory_space<vmem>>, %arg3: memref<1x16xf32, #tpu.memory_space<vmem>>, %arg4: memref<1x16xf32, #tpu.memory_space<vmem>>, %arg5: memref<1x16xf32, #tpu.memory_space<vmem>>, %arg6: memref<1x16xf32, #tpu.memory_space<vmem>>, %arg7: memref<32x16xf32, #tpu.memory_space<vmem>>) attributes {dimension_semantics = [#tpu.dimension_semantics<parallel>], iteration_bounds = array<i64: 1>, scalar_prefetch = 0 : i64, scratch_operands = 0 : i64, tpu.core_type = #tpu.core_type<tc>, window_params = [{transform_indices = @transform_0, window_bounds = array<i64: 32, 16>}, {pipeline_mode = #tpu.pipeline_mode<synchronous>, transform_indices = @transform_1, window_bounds = array<i64: 16, 16>}, {pipeline_mode = #tpu.pipeline_mode<synchronous>, transform_indices = @transform_2, window_bounds = array<i64: 1, 16>}, {pipeline_mode = #tpu.pipeline_mode<synchronous>, transform_indices = @transform_3, window_bounds = array<i64: 1, 16>}, {pipeline_mode = #tpu.pipeline_mode<synchronous>, transform_indices = @transform_4, window_bounds = array<i64: 1, 16>}, {pipeline_mode = #tpu.pipeline_mode<synchronous>, transform_indices = @transform_5, window_bounds = array<i64: 1, 16>}, {transform_indices = @transform_6, window_bounds = array<i64: 32, 16>}]} {
    %c0 = arith.constant 0 : index
    %c0_0 = arith.constant 0 : index
    %0 = vector.load %arg1[%c0, %c0_0] : memref<32x16xf32, #tpu.memory_space<vmem>>, vector<32x16xf32>
    %c0_1 = arith.constant 0 : index
    %c0_2 = arith.constant 0 : index
    %1 = vector.load %arg3[%c0_1, %c0_2] : memref<1x16xf32, #tpu.memory_space<vmem>>, vector<1x16xf32>
    %2 = vector.broadcast %1 : vector<1x16xf32> to vector<32x16xf32>
    %3 = arith.mulf %0, %2 : vector<32x16xf32>
    %c0_3 = arith.constant 0 : index
    %c0_4 = arith.constant 0 : index
    %4 = vector.load %arg4[%c0_3, %c0_4] : memref<1x16xf32, #tpu.memory_space<vmem>>, vector<1x16xf32>
    %5 = vector.broadcast %4 : vector<1x16xf32> to vector<32x16xf32>
    %6 = arith.addf %3, %5 : vector<32x16xf32>
    %cst = arith.constant 0.000000e+00 : f32
    %7 = vector.broadcast %cst : f32 to vector<32x16xf32>
    %8 = arith.maximumf %6, %7 : vector<32x16xf32>
    %9 = arith.truncf %8 : vector<32x16xf32> to vector<32x16xbf16>
    %c0_5 = arith.constant 0 : index
    %c0_6 = arith.constant 0 : index
    %10 = vector.load %arg2[%c0_5, %c0_6] : memref<16x16xbf16, #tpu.memory_space<vmem>>, vector<16x16xbf16>
    %cst_7 = arith.constant dense<0.000000e+00> : vector<32x16xf32>
    %11 = tpu.matmul %9, %10, %cst_7 {dimension_numbers = #tpu.dot_dimension_numbers<[1], [0], [0], [1], [0, 0, 1, 1], [], []>} : vector<32x16xbf16>, vector<16x16xbf16>, vector<32x16xf32> -> vector<32x16xf32>
    %c0_8 = arith.constant 0 : index
    %c0_9 = arith.constant 0 : index
    %12 = vector.load %arg5[%c0_8, %c0_9] : memref<1x16xf32, #tpu.memory_space<vmem>>, vector<1x16xf32>
    %13 = vector.broadcast %12 : vector<1x16xf32> to vector<32x16xf32>
    %14 = arith.mulf %11, %13 : vector<32x16xf32>
    %c0_10 = arith.constant 0 : index
    %c0_11 = arith.constant 0 : index
    %15 = vector.load %arg6[%c0_10, %c0_11] : memref<1x16xf32, #tpu.memory_space<vmem>>, vector<1x16xf32>
    %16 = vector.broadcast %15 : vector<1x16xf32> to vector<32x16xf32>
    %17 = arith.addf %14, %16 : vector<32x16xf32>
    %cst_12 = arith.constant 0.000000e+00 : f32
    %18 = vector.broadcast %cst_12 : f32 to vector<32x16xf32>
    %19 = arith.maximumf %17, %18 : vector<32x16xf32>
    %c0_13 = arith.constant 0 : index
    %c0_14 = arith.constant 0 : index
    %20 = vector.load %arg7[%c0_13, %c0_14] : memref<32x16xf32, #tpu.memory_space<vmem>>, vector<32x16xf32>
    tpu.vector_store %arg7[%c0_13, %c0_14], %19 {strides = array<i32>} : memref<32x16xf32, #tpu.memory_space<vmem>>, vector<32x16xf32>,
    return
  }
  func.func @transform_0(%arg0: i32) -> (i32, i32) {
    %c0_i32 = arith.constant 0 : i32
    %c0_i32_0 = arith.constant 0 : i32
    return %arg0, %c0_i32 : i32, i32
  }
  func.func @transform_1(%arg0: i32) -> (i32, i32) {
    %c0_i32 = arith.constant 0 : i32
    %c0_i32_0 = arith.constant 0 : i32
    %c0_i32_1 = arith.constant 0 : i32
    return %c0_i32, %c0_i32_0 : i32, i32
  }
  func.func @transform_2(%arg0: i32) -> (i32, i32) {
    %c0_i32 = arith.constant 0 : i32
    %c0_i32_0 = arith.constant 0 : i32
    %c0_i32_1 = arith.constant 0 : i32
    return %c0_i32, %c0_i32_0 : i32, i32
  }
  func.func @transform_3(%arg0: i32) -> (i32, i32) {
    %c0_i32 = arith.constant 0 : i32
    %c0_i32_0 = arith.constant 0 : i32
    %c0_i32_1 = arith.constant 0 : i32
    return %c0_i32, %c0_i32_0 : i32, i32
  }
  func.func @transform_4(%arg0: i32) -> (i32, i32) {
    %c0_i32 = arith.constant 0 : i32
    %c0_i32_0 = arith.constant 0 : i32
    %c0_i32_1 = arith.constant 0 : i32
    return %c0_i32, %c0_i32_0 : i32, i32
  }
  func.func @transform_5(%arg0: i32) -> (i32, i32) {
    %c0_i32 = arith.constant 0 : i32
    %c0_i32_0 = arith.constant 0 : i32
    %c0_i32_1 = arith.constant 0 : i32
    return %c0_i32, %c0_i32_0 : i32, i32
  }
  func.func @transform_6(%arg0: i32) -> (i32, i32) {
    %c0_i32 = arith.constant 0 : i32
    %c0_i32_0 = arith.constant 0 : i32
    return %arg0, %c0_i32 : i32, i32
  }
}

module attributes {stable_mosaic.version = 11 : i64} {
  func.func @_conv3x3_kernel(%arg0: i32, %arg1: memref<1x6x6x16xf32, #tpu.memory_space<vmem>>, %arg2: memref<9x16x8xbf16, #tpu.memory_space<vmem>>, %arg3: memref<1x4x4x8xf32, #tpu.memory_space<vmem>>) attributes {dimension_semantics = [#tpu.dimension_semantics<parallel>], iteration_bounds = array<i64: 2>, scalar_prefetch = 0 : i64, scratch_operands = 0 : i64, tpu.core_type = #tpu.core_type<tc>, window_params = [{transform_indices = @transform_0, window_bounds = array<i64: 1, 6, 6, 16>}, {pipeline_mode = #tpu.pipeline_mode<synchronous>, transform_indices = @transform_1, window_bounds = array<i64: 9, 16, 8>}, {transform_indices = @transform_2, window_bounds = array<i64: 1, 4, 4, 8>}]} {
    %c0 = arith.constant 0 : index
    %c0_0 = arith.constant 0 : index
    %c0_1 = arith.constant 0 : index
    %c0_2 = arith.constant 0 : index
    %0 = vector.load %arg1[%c0, %c0_0, %c0_1, %c0_2] : memref<1x6x6x16xf32, #tpu.memory_space<vmem>>, vector<1x4x4x16xf32>
    %1 = vector.shape_cast %0 : vector<1x4x4x16xf32> to vector<4x4x16xf32>
    %2 = vector.shape_cast %1 : vector<4x4x16xf32> to vector<16x16xf32>
    %3 = arith.truncf %2 : vector<16x16xf32> to vector<16x16xbf16>
    %c0_3 = arith.constant 0 : index
    %c0_4 = arith.constant 0 : index
    %c0_5 = arith.constant 0 : index
    %4 = vector.load %arg2[%c0_3, %c0_4, %c0_5] : memref<9x16x8xbf16, #tpu.memory_space<vmem>>, vector<1x16x8xbf16>
    %5 = vector.shape_cast %4 : vector<1x16x8xbf16> to vector<16x8xbf16>
    %cst = arith.constant dense<0.000000e+00> : vector<16x8xf32>
    %6 = tpu.matmul %3, %5, %cst {dimension_numbers = #tpu.dot_dimension_numbers<[1], [0], [0], [1], [0, 0, 1, 1], [], []>} : vector<16x16xbf16>, vector<16x8xbf16>, vector<16x8xf32> -> vector<16x8xf32>
    %c0_6 = arith.constant 0 : index
    %c0_7 = arith.constant 0 : index
    %c1 = arith.constant 1 : index
    %c0_8 = arith.constant 0 : index
    %7 = vector.load %arg1[%c0_6, %c0_7, %c1, %c0_8] : memref<1x6x6x16xf32, #tpu.memory_space<vmem>>, vector<1x4x4x16xf32>
    %8 = vector.shape_cast %7 : vector<1x4x4x16xf32> to vector<4x4x16xf32>
    %9 = vector.shape_cast %8 : vector<4x4x16xf32> to vector<16x16xf32>
    %10 = arith.truncf %9 : vector<16x16xf32> to vector<16x16xbf16>
    %c1_9 = arith.constant 1 : index
    %c0_10 = arith.constant 0 : index
    %c0_11 = arith.constant 0 : index
    %11 = vector.load %arg2[%c1_9, %c0_10, %c0_11] : memref<9x16x8xbf16, #tpu.memory_space<vmem>>, vector<1x16x8xbf16>
    %12 = vector.shape_cast %11 : vector<1x16x8xbf16> to vector<16x8xbf16>
    %cst_12 = arith.constant dense<0.000000e+00> : vector<16x8xf32>
    %13 = tpu.matmul %10, %12, %cst_12 {dimension_numbers = #tpu.dot_dimension_numbers<[1], [0], [0], [1], [0, 0, 1, 1], [], []>} : vector<16x16xbf16>, vector<16x8xbf16>, vector<16x8xf32> -> vector<16x8xf32>
    %14 = arith.addf %6, %13 : vector<16x8xf32>
    %c0_13 = arith.constant 0 : index
    %c0_14 = arith.constant 0 : index
    %c2 = arith.constant 2 : index
    %c0_15 = arith.constant 0 : index
    %15 = vector.load %arg1[%c0_13, %c0_14, %c2, %c0_15] : memref<1x6x6x16xf32, #tpu.memory_space<vmem>>, vector<1x4x4x16xf32>
    %16 = vector.shape_cast %15 : vector<1x4x4x16xf32> to vector<4x4x16xf32>
    %17 = vector.shape_cast %16 : vector<4x4x16xf32> to vector<16x16xf32>
    %18 = arith.truncf %17 : vector<16x16xf32> to vector<16x16xbf16>
    %c2_16 = arith.constant 2 : index
    %c0_17 = arith.constant 0 : index
    %c0_18 = arith.constant 0 : index
    %19 = vector.load %arg2[%c2_16, %c0_17, %c0_18] : memref<9x16x8xbf16, #tpu.memory_space<vmem>>, vector<1x16x8xbf16>
    %20 = vector.shape_cast %19 : vector<1x16x8xbf16> to vector<16x8xbf16>
    %cst_19 = arith.constant dense<0.000000e+00> : vector<16x8xf32>
    %21 = tpu.matmul %18, %20, %cst_19 {dimension_numbers = #tpu.dot_dimension_numbers<[1], [0], [0], [1], [0, 0, 1, 1], [], []>} : vector<16x16xbf16>, vector<16x8xbf16>, vector<16x8xf32> -> vector<16x8xf32>
    %22 = arith.addf %14, %21 : vector<16x8xf32>
    %c0_20 = arith.constant 0 : index
    %c1_21 = arith.constant 1 : index
    %c0_22 = arith.constant 0 : index
    %c0_23 = arith.constant 0 : index
    %23 = vector.load %arg1[%c0_20, %c1_21, %c0_22, %c0_23] : memref<1x6x6x16xf32, #tpu.memory_space<vmem>>, vector<1x4x4x16xf32>
    %24 = vector.shape_cast %23 : vector<1x4x4x16xf32> to vector<4x4x16xf32>
    %25 = vector.shape_cast %24 : vector<4x4x16xf32> to vector<16x16xf32>
    %26 = arith.truncf %25 : vector<16x16xf32> to vector<16x16xbf16>
    %c3 = arith.constant 3 : index
    %c0_24 = arith.constant 0 : index
    %c0_25 = arith.constant 0 : index
    %27 = vector.load %arg2[%c3, %c0_24, %c0_25] : memref<9x16x8xbf16, #tpu.memory_space<vmem>>, vector<1x16x8xbf16>
    %28 = vector.shape_cast %27 : vector<1x16x8xbf16> to vector<16x8xbf16>
    %cst_26 = arith.constant dense<0.000000e+00> : vector<16x8xf32>
    %29 = tpu.matmul %26, %28, %cst_26 {dimension_numbers = #tpu.dot_dimension_numbers<[1], [0], [0], [1], [0, 0, 1, 1], [], []>} : vector<16x16xbf16>, vector<16x8xbf16>, vector<16x8xf32> -> vector<16x8xf32>
    %30 = arith.addf %22, %29 : vector<16x8xf32>
    %c0_27 = arith.constant 0 : index
    %c1_28 = arith.constant 1 : index
    %c1_29 = arith.constant 1 : index
    %c0_30 = arith.constant 0 : index
    %31 = vector.load %arg1[%c0_27, %c1_28, %c1_29, %c0_30] : memref<1x6x6x16xf32, #tpu.memory_space<vmem>>, vector<1x4x4x16xf32>
    %32 = vector.shape_cast %31 : vector<1x4x4x16xf32> to vector<4x4x16xf32>
    %33 = vector.shape_cast %32 : vector<4x4x16xf32> to vector<16x16xf32>
    %34 = arith.truncf %33 : vector<16x16xf32> to vector<16x16xbf16>
    %c4 = arith.constant 4 : index
    %c0_31 = arith.constant 0 : index
    %c0_32 = arith.constant 0 : index
    %35 = vector.load %arg2[%c4, %c0_31, %c0_32] : memref<9x16x8xbf16, #tpu.memory_space<vmem>>, vector<1x16x8xbf16>
    %36 = vector.shape_cast %35 : vector<1x16x8xbf16> to vector<16x8xbf16>
    %cst_33 = arith.constant dense<0.000000e+00> : vector<16x8xf32>
    %37 = tpu.matmul %34, %36, %cst_33 {dimension_numbers = #tpu.dot_dimension_numbers<[1], [0], [0], [1], [0, 0, 1, 1], [], []>} : vector<16x16xbf16>, vector<16x8xbf16>, vector<16x8xf32> -> vector<16x8xf32>
    %38 = arith.addf %30, %37 : vector<16x8xf32>
    %c0_34 = arith.constant 0 : index
    %c1_35 = arith.constant 1 : index
    %c2_36 = arith.constant 2 : index
    %c0_37 = arith.constant 0 : index
    %39 = vector.load %arg1[%c0_34, %c1_35, %c2_36, %c0_37] : memref<1x6x6x16xf32, #tpu.memory_space<vmem>>, vector<1x4x4x16xf32>
    %40 = vector.shape_cast %39 : vector<1x4x4x16xf32> to vector<4x4x16xf32>
    %41 = vector.shape_cast %40 : vector<4x4x16xf32> to vector<16x16xf32>
    %42 = arith.truncf %41 : vector<16x16xf32> to vector<16x16xbf16>
    %c5 = arith.constant 5 : index
    %c0_38 = arith.constant 0 : index
    %c0_39 = arith.constant 0 : index
    %43 = vector.load %arg2[%c5, %c0_38, %c0_39] : memref<9x16x8xbf16, #tpu.memory_space<vmem>>, vector<1x16x8xbf16>
    %44 = vector.shape_cast %43 : vector<1x16x8xbf16> to vector<16x8xbf16>
    %cst_40 = arith.constant dense<0.000000e+00> : vector<16x8xf32>
    %45 = tpu.matmul %42, %44, %cst_40 {dimension_numbers = #tpu.dot_dimension_numbers<[1], [0], [0], [1], [0, 0, 1, 1], [], []>} : vector<16x16xbf16>, vector<16x8xbf16>, vector<16x8xf32> -> vector<16x8xf32>
    %46 = arith.addf %38, %45 : vector<16x8xf32>
    %c0_41 = arith.constant 0 : index
    %c2_42 = arith.constant 2 : index
    %c0_43 = arith.constant 0 : index
    %c0_44 = arith.constant 0 : index
    %47 = vector.load %arg1[%c0_41, %c2_42, %c0_43, %c0_44] : memref<1x6x6x16xf32, #tpu.memory_space<vmem>>, vector<1x4x4x16xf32>
    %48 = vector.shape_cast %47 : vector<1x4x4x16xf32> to vector<4x4x16xf32>
    %49 = vector.shape_cast %48 : vector<4x4x16xf32> to vector<16x16xf32>
    %50 = arith.truncf %49 : vector<16x16xf32> to vector<16x16xbf16>
    %c6 = arith.constant 6 : index
    %c0_45 = arith.constant 0 : index
    %c0_46 = arith.constant 0 : index
    %51 = vector.load %arg2[%c6, %c0_45, %c0_46] : memref<9x16x8xbf16, #tpu.memory_space<vmem>>, vector<1x16x8xbf16>
    %52 = vector.shape_cast %51 : vector<1x16x8xbf16> to vector<16x8xbf16>
    %cst_47 = arith.constant dense<0.000000e+00> : vector<16x8xf32>
    %53 = tpu.matmul %50, %52, %cst_47 {dimension_numbers = #tpu.dot_dimension_numbers<[1], [0], [0], [1], [0, 0, 1, 1], [], []>} : vector<16x16xbf16>, vector<16x8xbf16>, vector<16x8xf32> -> vector<16x8xf32>
    %54 = arith.addf %46, %53 : vector<16x8xf32>
    %c0_48 = arith.constant 0 : index
    %c2_49 = arith.constant 2 : index
    %c1_50 = arith.constant 1 : index
    %c0_51 = arith.constant 0 : index
    %55 = vector.load %arg1[%c0_48, %c2_49, %c1_50, %c0_51] : memref<1x6x6x16xf32, #tpu.memory_space<vmem>>, vector<1x4x4x16xf32>
    %56 = vector.shape_cast %55 : vector<1x4x4x16xf32> to vector<4x4x16xf32>
    %57 = vector.shape_cast %56 : vector<4x4x16xf32> to vector<16x16xf32>
    %58 = arith.truncf %57 : vector<16x16xf32> to vector<16x16xbf16>
    %c7 = arith.constant 7 : index
    %c0_52 = arith.constant 0 : index
    %c0_53 = arith.constant 0 : index
    %59 = vector.load %arg2[%c7, %c0_52, %c0_53] : memref<9x16x8xbf16, #tpu.memory_space<vmem>>, vector<1x16x8xbf16>
    %60 = vector.shape_cast %59 : vector<1x16x8xbf16> to vector<16x8xbf16>
    %cst_54 = arith.constant dense<0.000000e+00> : vector<16x8xf32>
    %61 = tpu.matmul %58, %60, %cst_54 {dimension_numbers = #tpu.dot_dimension_numbers<[1], [0], [0], [1], [0, 0, 1, 1], [], []>} : vector<16x16xbf16>, vector<16x8xbf16>, vector<16x8xf32> -> vector<16x8xf32>
    %62 = arith.addf %54, %61 : vector<16x8xf32>
    %c0_55 = arith.constant 0 : index
    %c2_56 = arith.constant 2 : index
    %c2_57 = arith.constant 2 : index
    %c0_58 = arith.constant 0 : index
    %63 = vector.load %arg1[%c0_55, %c2_56, %c2_57, %c0_58] : memref<1x6x6x16xf32, #tpu.memory_space<vmem>>, vector<1x4x4x16xf32>
    %64 = vector.shape_cast %63 : vector<1x4x4x16xf32> to vector<4x4x16xf32>
    %65 = vector.shape_cast %64 : vector<4x4x16xf32> to vector<16x16xf32>
    %66 = arith.truncf %65 : vector<16x16xf32> to vector<16x16xbf16>
    %c8 = arith.constant 8 : index
    %c0_59 = arith.constant 0 : index
    %c0_60 = arith.constant 0 : index
    %67 = vector.load %arg2[%c8, %c0_59, %c0_60] : memref<9x16x8xbf16, #tpu.memory_space<vmem>>, vector<1x16x8xbf16>
    %68 = vector.shape_cast %67 : vector<1x16x8xbf16> to vector<16x8xbf16>
    %cst_61 = arith.constant dense<0.000000e+00> : vector<16x8xf32>
    %69 = tpu.matmul %66, %68, %cst_61 {dimension_numbers = #tpu.dot_dimension_numbers<[1], [0], [0], [1], [0, 0, 1, 1], [], []>} : vector<16x16xbf16>, vector<16x8xbf16>, vector<16x8xf32> -> vector<16x8xf32>
    %70 = arith.addf %62, %69 : vector<16x8xf32>
    %71 = vector.shape_cast %70 : vector<16x8xf32> to vector<4x4x8xf32>
    %c0_62 = arith.constant 0 : index
    %c0_63 = arith.constant 0 : index
    %c0_64 = arith.constant 0 : index
    %c0_65 = arith.constant 0 : index
    %72 = vector.load %arg3[%c0_62, %c0_63, %c0_64, %c0_65] : memref<1x4x4x8xf32, #tpu.memory_space<vmem>>, vector<1x4x4x8xf32>
    %73 = vector.shape_cast %72 : vector<1x4x4x8xf32> to vector<4x4x8xf32>
    %74 = vector.shape_cast %71 : vector<4x4x8xf32> to vector<1x4x4x8xf32>
    tpu.vector_store %arg3[%c0_62, %c0_63, %c0_64, %c0_65], %74 {strides = array<i32>} : memref<1x4x4x8xf32, #tpu.memory_space<vmem>>, vector<1x4x4x8xf32>,
    return
  }
  func.func @transform_0(%arg0: i32) -> (i32, i32, i32, i32) {
    %c0_i32 = arith.constant 0 : i32
    %c0_i32_0 = arith.constant 0 : i32
    %c0_i32_1 = arith.constant 0 : i32
    %c0_i32_2 = arith.constant 0 : i32
    return %arg0, %c0_i32, %c0_i32_0, %c0_i32_1 : i32, i32, i32, i32
  }
  func.func @transform_1(%arg0: i32) -> (i32, i32, i32) {
    %c0_i32 = arith.constant 0 : i32
    %c0_i32_0 = arith.constant 0 : i32
    %c0_i32_1 = arith.constant 0 : i32
    %c0_i32_2 = arith.constant 0 : i32
    return %c0_i32, %c0_i32_0, %c0_i32_1 : i32, i32, i32
  }
  func.func @transform_2(%arg0: i32) -> (i32, i32, i32, i32) {
    %c0_i32 = arith.constant 0 : i32
    %c0_i32_0 = arith.constant 0 : i32
    %c0_i32_1 = arith.constant 0 : i32
    %c0_i32_2 = arith.constant 0 : i32
    return %arg0, %c0_i32, %c0_i32_0, %c0_i32_1 : i32, i32, i32, i32
  }
}

module attributes {stable_mosaic.version = 11 : i64} {
  func.func @_dense_matmul_kernel(%arg0: i32, %arg1: memref<32x16xf32, #tpu.memory_space<vmem>>, %arg2: memref<32x8xf32, #tpu.memory_space<vmem>>, %arg3: memref<32x8xf32, #tpu.memory_space<vmem>>, %arg4: memref<32x16xbf16, #tpu.memory_space<vmem>>, %arg5: memref<1x32xf32, #tpu.memory_space<vmem>>, %arg6: memref<1x32xf32, #tpu.memory_space<vmem>>, %arg7: memref<32x16xf32, #tpu.memory_space<vmem>>) attributes {dimension_semantics = [#tpu.dimension_semantics<parallel>], iteration_bounds = array<i64: 1>, scalar_prefetch = 0 : i64, scratch_operands = 0 : i64, tpu.core_type = #tpu.core_type<tc>, window_params = [{transform_indices = @transform_0, window_bounds = array<i64: 32, 16>}, {transform_indices = @transform_1, window_bounds = array<i64: 32, 8>}, {transform_indices = @transform_2, window_bounds = array<i64: 32, 8>}, {pipeline_mode = #tpu.pipeline_mode<synchronous>, transform_indices = @transform_3, window_bounds = array<i64: 32, 16>}, {pipeline_mode = #tpu.pipeline_mode<synchronous>, transform_indices = @transform_4, window_bounds = array<i64: 1, 32>}, {pipeline_mode = #tpu.pipeline_mode<synchronous>, transform_indices = @transform_5, window_bounds = array<i64: 1, 32>}, {transform_indices = @transform_6, window_bounds = array<i64: 32, 16>}]} {
    %c0 = arith.constant 0 : index
    %c0_0 = arith.constant 0 : index
    %0 = vector.load %arg1[%c0, %c0_0] : memref<32x16xf32, #tpu.memory_space<vmem>>, vector<32x16xf32>
    %c0_1 = arith.constant 0 : index
    %c0_2 = arith.constant 0 : index
    %1 = vector.load %arg5[%c0_1, %c0_2] : memref<1x32xf32, #tpu.memory_space<vmem>>, vector<1x16xf32>
    %2 = vector.broadcast %1 : vector<1x16xf32> to vector<32x16xf32>
    %3 = arith.mulf %0, %2 : vector<32x16xf32>
    %c0_3 = arith.constant 0 : index
    %c0_4 = arith.constant 0 : index
    %4 = vector.load %arg6[%c0_3, %c0_4] : memref<1x32xf32, #tpu.memory_space<vmem>>, vector<1x16xf32>
    %5 = vector.broadcast %4 : vector<1x16xf32> to vector<32x16xf32>
    %6 = arith.addf %3, %5 : vector<32x16xf32>
    %cst = arith.constant 0.000000e+00 : f32
    %7 = vector.broadcast %cst : f32 to vector<32x16xf32>
    %8 = arith.maximumf %6, %7 : vector<32x16xf32>
    %9 = arith.truncf %8 : vector<32x16xf32> to vector<32x16xbf16>
    %c0_5 = arith.constant 0 : index
    %c0_6 = arith.constant 0 : index
    %10 = vector.load %arg4[%c0_5, %c0_6] : memref<32x16xbf16, #tpu.memory_space<vmem>>, vector<16x16xbf16>
    %cst_7 = arith.constant dense<0.000000e+00> : vector<32x16xf32>
    %11 = tpu.matmul %9, %10, %cst_7 {dimension_numbers = #tpu.dot_dimension_numbers<[1], [0], [0], [1], [0, 0, 1, 1], [], []>} : vector<32x16xbf16>, vector<16x16xbf16>, vector<32x16xf32> -> vector<32x16xf32>
    %c0_8 = arith.constant 0 : index
    %c0_9 = arith.constant 0 : index
    %12 = vector.load %arg2[%c0_8, %c0_9] : memref<32x8xf32, #tpu.memory_space<vmem>>, vector<32x8xf32>
    %c0_10 = arith.constant 0 : index
    %c16 = arith.constant 16 : index
    %13 = vector.load %arg5[%c0_10, %c16] : memref<1x32xf32, #tpu.memory_space<vmem>>, vector<1x8xf32>
    %14 = vector.broadcast %13 : vector<1x8xf32> to vector<32x8xf32>
    %15 = arith.mulf %12, %14 : vector<32x8xf32>
    %c0_11 = arith.constant 0 : index
    %c16_12 = arith.constant 16 : index
    %16 = vector.load %arg6[%c0_11, %c16_12] : memref<1x32xf32, #tpu.memory_space<vmem>>, vector<1x8xf32>
    %17 = vector.broadcast %16 : vector<1x8xf32> to vector<32x8xf32>
    %18 = arith.addf %15, %17 : vector<32x8xf32>
    %cst_13 = arith.constant 0.000000e+00 : f32
    %19 = vector.broadcast %cst_13 : f32 to vector<32x8xf32>
    %20 = arith.maximumf %18, %19 : vector<32x8xf32>
    %21 = arith.truncf %20 : vector<32x8xf32> to vector<32x8xbf16>
    %c16_14 = arith.constant 16 : index
    %c0_15 = arith.constant 0 : index
    %22 = vector.load %arg4[%c16_14, %c0_15] : memref<32x16xbf16, #tpu.memory_space<vmem>>, vector<8x16xbf16>
    %cst_16 = arith.constant dense<0.000000e+00> : vector<32x16xf32>
    %23 = tpu.matmul %21, %22, %cst_16 {dimension_numbers = #tpu.dot_dimension_numbers<[1], [0], [0], [1], [0, 0, 1, 1], [], []>} : vector<32x8xbf16>, vector<8x16xbf16>, vector<32x16xf32> -> vector<32x16xf32>
    %24 = arith.addf %11, %23 : vector<32x16xf32>
    %c0_17 = arith.constant 0 : index
    %c0_18 = arith.constant 0 : index
    %25 = vector.load %arg3[%c0_17, %c0_18] : memref<32x8xf32, #tpu.memory_space<vmem>>, vector<32x8xf32>
    %c0_19 = arith.constant 0 : index
    %c24 = arith.constant 24 : index
    %26 = vector.load %arg5[%c0_19, %c24] : memref<1x32xf32, #tpu.memory_space<vmem>>, vector<1x8xf32>
    %27 = vector.broadcast %26 : vector<1x8xf32> to vector<32x8xf32>
    %28 = arith.mulf %25, %27 : vector<32x8xf32>
    %c0_20 = arith.constant 0 : index
    %c24_21 = arith.constant 24 : index
    %29 = vector.load %arg6[%c0_20, %c24_21] : memref<1x32xf32, #tpu.memory_space<vmem>>, vector<1x8xf32>
    %30 = vector.broadcast %29 : vector<1x8xf32> to vector<32x8xf32>
    %31 = arith.addf %28, %30 : vector<32x8xf32>
    %cst_22 = arith.constant 0.000000e+00 : f32
    %32 = vector.broadcast %cst_22 : f32 to vector<32x8xf32>
    %33 = arith.maximumf %31, %32 : vector<32x8xf32>
    %34 = arith.truncf %33 : vector<32x8xf32> to vector<32x8xbf16>
    %c24_23 = arith.constant 24 : index
    %c0_24 = arith.constant 0 : index
    %35 = vector.load %arg4[%c24_23, %c0_24] : memref<32x16xbf16, #tpu.memory_space<vmem>>, vector<8x16xbf16>
    %cst_25 = arith.constant dense<0.000000e+00> : vector<32x16xf32>
    %36 = tpu.matmul %34, %35, %cst_25 {dimension_numbers = #tpu.dot_dimension_numbers<[1], [0], [0], [1], [0, 0, 1, 1], [], []>} : vector<32x8xbf16>, vector<8x16xbf16>, vector<32x16xf32> -> vector<32x16xf32>
    %37 = arith.addf %24, %36 : vector<32x16xf32>
    %c0_26 = arith.constant 0 : index
    %c0_27 = arith.constant 0 : index
    %38 = vector.load %arg7[%c0_26, %c0_27] : memref<32x16xf32, #tpu.memory_space<vmem>>, vector<32x16xf32>
    tpu.vector_store %arg7[%c0_26, %c0_27], %37 {strides = array<i32>} : memref<32x16xf32, #tpu.memory_space<vmem>>, vector<32x16xf32>,
    return
  }
  func.func @transform_0(%arg0: i32) -> (i32, i32) {
    %c0_i32 = arith.constant 0 : i32
    %c0_i32_0 = arith.constant 0 : i32
    return %arg0, %c0_i32 : i32, i32
  }
  func.func @transform_1(%arg0: i32) -> (i32, i32) {
    %c0_i32 = arith.constant 0 : i32
    %c0_i32_0 = arith.constant 0 : i32
    return %arg0, %c0_i32 : i32, i32
  }
  func.func @transform_2(%arg0: i32) -> (i32, i32) {
    %c0_i32 = arith.constant 0 : i32
    %c0_i32_0 = arith.constant 0 : i32
    return %arg0, %c0_i32 : i32, i32
  }
  func.func @transform_3(%arg0: i32) -> (i32, i32) {
    %c0_i32 = arith.constant 0 : i32
    %c0_i32_0 = arith.constant 0 : i32
    %c0_i32_1 = arith.constant 0 : i32
    return %c0_i32, %c0_i32_0 : i32, i32
  }
  func.func @transform_4(%arg0: i32) -> (i32, i32) {
    %c0_i32 = arith.constant 0 : i32
    %c0_i32_0 = arith.constant 0 : i32
    %c0_i32_1 = arith.constant 0 : i32
    return %c0_i32, %c0_i32_0 : i32, i32
  }
  func.func @transform_5(%arg0: i32) -> (i32, i32) {
    %c0_i32 = arith.constant 0 : i32
    %c0_i32_0 = arith.constant 0 : i32
    %c0_i32_1 = arith.constant 0 : i32
    return %c0_i32, %c0_i32_0 : i32, i32
  }
  func.func @transform_6(%arg0: i32) -> (i32, i32) {
    %c0_i32 = arith.constant 0 : i32
    %c0_i32_0 = arith.constant 0 : i32
    return %arg0, %c0_i32 : i32, i32
  }
}

module attributes {stable_mosaic.version = 11 : i64} {
  func.func @_dense_matmul_kernel(%arg0: i32, %arg1: memref<32x16xf32, #tpu.memory_space<vmem>>, %arg2: memref<32x8xf32, #tpu.memory_space<vmem>>, %arg3: memref<24x16xbf16, #tpu.memory_space<vmem>>, %arg4: memref<1x24xf32, #tpu.memory_space<vmem>>, %arg5: memref<1x24xf32, #tpu.memory_space<vmem>>, %arg6: memref<1x16xf32, #tpu.memory_space<vmem>>, %arg7: memref<1x16xf32, #tpu.memory_space<vmem>>, %arg8: memref<32x16xf32, #tpu.memory_space<vmem>>) attributes {dimension_semantics = [#tpu.dimension_semantics<parallel>], iteration_bounds = array<i64: 1>, scalar_prefetch = 0 : i64, scratch_operands = 0 : i64, tpu.core_type = #tpu.core_type<tc>, window_params = [{transform_indices = @transform_0, window_bounds = array<i64: 32, 16>}, {transform_indices = @transform_1, window_bounds = array<i64: 32, 8>}, {pipeline_mode = #tpu.pipeline_mode<synchronous>, transform_indices = @transform_2, window_bounds = array<i64: 24, 16>}, {pipeline_mode = #tpu.pipeline_mode<synchronous>, transform_indices = @transform_3, window_bounds = array<i64: 1, 24>}, {pipeline_mode = #tpu.pipeline_mode<synchronous>, transform_indices = @transform_4, window_bounds = array<i64: 1, 24>}, {pipeline_mode = #tpu.pipeline_mode<synchronous>, transform_indices = @transform_5, window_bounds = array<i64: 1, 16>}, {pipeline_mode = #tpu.pipeline_mode<synchronous>, transform_indices = @transform_6, window_bounds = array<i64: 1, 16>}, {transform_indices = @transform_7, window_bounds = array<i64: 32, 16>}]} {
    %c0 = arith.constant 0 : index
    %c0_0 = arith.constant 0 : index
    %0 = vector.load %arg1[%c0, %c0_0] : memref<32x16xf32, #tpu.memory_space<vmem>>, vector<32x16xf32>
    %c0_1 = arith.constant 0 : index
    %c0_2 = arith.constant 0 : index
    %1 = vector.load %arg4[%c0_1, %c0_2] : memref<1x24xf32, #tpu.memory_space<vmem>>, vector<1x16xf32>
    %2 = vector.broadcast %1 : vector<1x16xf32> to vector<32x16xf32>
    %3 = arith.mulf %0, %2 : vector<32x16xf32>
    %c0_3 = arith.constant 0 : index
    %c0_4 = arith.constant 0 : index
    %4 = vector.load %arg5[%c0_3, %c0_4] : memref<1x24xf32, #tpu.memory_space<vmem>>, vector<1x16xf32>
    %5 = vector.broadcast %4 : vector<1x16xf32> to vector<32x16xf32>
    %6 = arith.addf %3, %5 : vector<32x16xf32>
    %cst = arith.constant 0.000000e+00 : f32
    %7 = vector.broadcast %cst : f32 to vector<32x16xf32>
    %8 = arith.maximumf %6, %7 : vector<32x16xf32>
    %9 = arith.truncf %8 : vector<32x16xf32> to vector<32x16xbf16>
    %c0_5 = arith.constant 0 : index
    %c0_6 = arith.constant 0 : index
    %10 = vector.load %arg3[%c0_5, %c0_6] : memref<24x16xbf16, #tpu.memory_space<vmem>>, vector<16x16xbf16>
    %cst_7 = arith.constant dense<0.000000e+00> : vector<32x16xf32>
    %11 = tpu.matmul %9, %10, %cst_7 {dimension_numbers = #tpu.dot_dimension_numbers<[1], [0], [0], [1], [0, 0, 1, 1], [], []>} : vector<32x16xbf16>, vector<16x16xbf16>, vector<32x16xf32> -> vector<32x16xf32>
    %c0_8 = arith.constant 0 : index
    %c0_9 = arith.constant 0 : index
    %12 = vector.load %arg2[%c0_8, %c0_9] : memref<32x8xf32, #tpu.memory_space<vmem>>, vector<32x8xf32>
    %c0_10 = arith.constant 0 : index
    %c16 = arith.constant 16 : index
    %13 = vector.load %arg4[%c0_10, %c16] : memref<1x24xf32, #tpu.memory_space<vmem>>, vector<1x8xf32>
    %14 = vector.broadcast %13 : vector<1x8xf32> to vector<32x8xf32>
    %15 = arith.mulf %12, %14 : vector<32x8xf32>
    %c0_11 = arith.constant 0 : index
    %c16_12 = arith.constant 16 : index
    %16 = vector.load %arg5[%c0_11, %c16_12] : memref<1x24xf32, #tpu.memory_space<vmem>>, vector<1x8xf32>
    %17 = vector.broadcast %16 : vector<1x8xf32> to vector<32x8xf32>
    %18 = arith.addf %15, %17 : vector<32x8xf32>
    %cst_13 = arith.constant 0.000000e+00 : f32
    %19 = vector.broadcast %cst_13 : f32 to vector<32x8xf32>
    %20 = arith.maximumf %18, %19 : vector<32x8xf32>
    %21 = arith.truncf %20 : vector<32x8xf32> to vector<32x8xbf16>
    %c16_14 = arith.constant 16 : index
    %c0_15 = arith.constant 0 : index
    %22 = vector.load %arg3[%c16_14, %c0_15] : memref<24x16xbf16, #tpu.memory_space<vmem>>, vector<8x16xbf16>
    %cst_16 = arith.constant dense<0.000000e+00> : vector<32x16xf32>
    %23 = tpu.matmul %21, %22, %cst_16 {dimension_numbers = #tpu.dot_dimension_numbers<[1], [0], [0], [1], [0, 0, 1, 1], [], []>} : vector<32x8xbf16>, vector<8x16xbf16>, vector<32x16xf32> -> vector<32x16xf32>
    %24 = arith.addf %11, %23 : vector<32x16xf32>
    %c0_17 = arith.constant 0 : index
    %c0_18 = arith.constant 0 : index
    %25 = vector.load %arg6[%c0_17, %c0_18] : memref<1x16xf32, #tpu.memory_space<vmem>>, vector<1x16xf32>
    %26 = vector.broadcast %25 : vector<1x16xf32> to vector<32x16xf32>
    %27 = arith.mulf %24, %26 : vector<32x16xf32>
    %c0_19 = arith.constant 0 : index
    %c0_20 = arith.constant 0 : index
    %28 = vector.load %arg7[%c0_19, %c0_20] : memref<1x16xf32, #tpu.memory_space<vmem>>, vector<1x16xf32>
    %29 = vector.broadcast %28 : vector<1x16xf32> to vector<32x16xf32>
    %30 = arith.addf %27, %29 : vector<32x16xf32>
    %cst_21 = arith.constant 0.000000e+00 : f32
    %31 = vector.broadcast %cst_21 : f32 to vector<32x16xf32>
    %32 = arith.maximumf %30, %31 : vector<32x16xf32>
    %c0_22 = arith.constant 0 : index
    %c0_23 = arith.constant 0 : index
    %33 = vector.load %arg8[%c0_22, %c0_23] : memref<32x16xf32, #tpu.memory_space<vmem>>, vector<32x16xf32>
    tpu.vector_store %arg8[%c0_22, %c0_23], %32 {strides = array<i32>} : memref<32x16xf32, #tpu.memory_space<vmem>>, vector<32x16xf32>,
    return
  }
  func.func @transform_0(%arg0: i32) -> (i32, i32) {
    %c0_i32 = arith.constant 0 : i32
    %c0_i32_0 = arith.constant 0 : i32
    return %arg0, %c0_i32 : i32, i32
  }
  func.func @transform_1(%arg0: i32) -> (i32, i32) {
    %c0_i32 = arith.constant 0 : i32
    %c0_i32_0 = arith.constant 0 : i32
    return %arg0, %c0_i32 : i32, i32
  }
  func.func @transform_2(%arg0: i32) -> (i32, i32) {
    %c0_i32 = arith.constant 0 : i32
    %c0_i32_0 = arith.constant 0 : i32
    %c0_i32_1 = arith.constant 0 : i32
    return %c0_i32, %c0_i32_0 : i32, i32
  }
  func.func @transform_3(%arg0: i32) -> (i32, i32) {
    %c0_i32 = arith.constant 0 : i32
    %c0_i32_0 = arith.constant 0 : i32
    %c0_i32_1 = arith.constant 0 : i32
    return %c0_i32, %c0_i32_0 : i32, i32
  }
  func.func @transform_4(%arg0: i32) -> (i32, i32) {
    %c0_i32 = arith.constant 0 : i32
    %c0_i32_0 = arith.constant 0 : i32
    %c0_i32_1 = arith.constant 0 : i32
    return %c0_i32, %c0_i32_0 : i32, i32
  }
  func.func @transform_5(%arg0: i32) -> (i32, i32) {
    %c0_i32 = arith.constant 0 : i32
    %c0_i32_0 = arith.constant 0 : i32
    %c0_i32_1 = arith.constant 0 : i32
    return %c0_i32, %c0_i32_0 : i32, i32
  }
  func.func @transform_6(%arg0: i32) -> (i32, i32) {
    %c0_i32 = arith.constant 0 : i32
    %c0_i32_0 = arith.constant 0 : i32
    %c0_i32_1 = arith.constant 0 : i32
    return %c0_i32, %c0_i32_0 : i32, i32
  }
  func.func @transform_7(%arg0: i32) -> (i32, i32) {
    %c0_i32 = arith.constant 0 : i32
    %c0_i32_0 = arith.constant 0 : i32
    return %arg0, %c0_i32 : i32, i32
  }
}

module attributes {stable_mosaic.version = 11 : i64} {
  func.func @_pool2x_kernel(%arg0: i32, %arg1: memref<1x2x2x16xf32, #tpu.memory_space<vmem>>, %arg2: memref<1x2x2x16xf32, #tpu.memory_space<vmem>>, %arg3: memref<1x2x2x16xf32, #tpu.memory_space<vmem>>, %arg4: memref<1x2x2x16xf32, #tpu.memory_space<vmem>>, %arg5: memref<1x2x2x16xf32, #tpu.memory_space<vmem>>) attributes {dimension_semantics = [#tpu.dimension_semantics<parallel>], iteration_bounds = array<i64: 2>, scalar_prefetch = 0 : i64, scratch_operands = 0 : i64, tpu.core_type = #tpu.core_type<tc>, window_params = [{transform_indices = @transform_0, window_bounds = array<i64: 1, 2, 2, 16>}, {transform_indices = @transform_1, window_bounds = array<i64: 1, 2, 2, 16>}, {transform_indices = @transform_2, window_bounds = array<i64: 1, 2, 2, 16>}, {transform_indices = @transform_3, window_bounds = array<i64: 1, 2, 2, 16>}, {transform_indices = @transform_4, window_bounds = array<i64: 1, 2, 2, 16>}]} {
    %c0 = arith.constant 0 : index
    %c0_0 = arith.constant 0 : index
    %c0_1 = arith.constant 0 : index
    %c0_2 = arith.constant 0 : index
    %0 = vector.load %arg1[%c0, %c0_0, %c0_1, %c0_2] : memref<1x2x2x16xf32, #tpu.memory_space<vmem>>, vector<1x2x2x16xf32>
    %1 = vector.shape_cast %0 : vector<1x2x2x16xf32> to vector<2x2x16xf32>
    %c0_3 = arith.constant 0 : index
    %c0_4 = arith.constant 0 : index
    %c0_5 = arith.constant 0 : index
    %c0_6 = arith.constant 0 : index
    %2 = vector.load %arg2[%c0_3, %c0_4, %c0_5, %c0_6] : memref<1x2x2x16xf32, #tpu.memory_space<vmem>>, vector<1x2x2x16xf32>
    %3 = vector.shape_cast %2 : vector<1x2x2x16xf32> to vector<2x2x16xf32>
    %4 = arith.addf %1, %3 : vector<2x2x16xf32>
    %c0_7 = arith.constant 0 : index
    %c0_8 = arith.constant 0 : index
    %c0_9 = arith.constant 0 : index
    %c0_10 = arith.constant 0 : index
    %5 = vector.load %arg3[%c0_7, %c0_8, %c0_9, %c0_10] : memref<1x2x2x16xf32, #tpu.memory_space<vmem>>, vector<1x2x2x16xf32>
    %6 = vector.shape_cast %5 : vector<1x2x2x16xf32> to vector<2x2x16xf32>
    %7 = arith.addf %4, %6 : vector<2x2x16xf32>
    %c0_11 = arith.constant 0 : index
    %c0_12 = arith.constant 0 : index
    %c0_13 = arith.constant 0 : index
    %c0_14 = arith.constant 0 : index
    %8 = vector.load %arg4[%c0_11, %c0_12, %c0_13, %c0_14] : memref<1x2x2x16xf32, #tpu.memory_space<vmem>>, vector<1x2x2x16xf32>
    %9 = vector.shape_cast %8 : vector<1x2x2x16xf32> to vector<2x2x16xf32>
    %10 = arith.addf %7, %9 : vector<2x2x16xf32>
    %cst = arith.constant 2.500000e-01 : f32
    %11 = vector.broadcast %cst : f32 to vector<2x2x16xf32>
    %12 = arith.mulf %10, %11 : vector<2x2x16xf32>
    %c0_15 = arith.constant 0 : index
    %c0_16 = arith.constant 0 : index
    %c0_17 = arith.constant 0 : index
    %c0_18 = arith.constant 0 : index
    %13 = vector.load %arg5[%c0_15, %c0_16, %c0_17, %c0_18] : memref<1x2x2x16xf32, #tpu.memory_space<vmem>>, vector<1x2x2x16xf32>
    %14 = vector.shape_cast %13 : vector<1x2x2x16xf32> to vector<2x2x16xf32>
    %15 = vector.shape_cast %12 : vector<2x2x16xf32> to vector<1x2x2x16xf32>
    tpu.vector_store %arg5[%c0_15, %c0_16, %c0_17, %c0_18], %15 {strides = array<i32>} : memref<1x2x2x16xf32, #tpu.memory_space<vmem>>, vector<1x2x2x16xf32>,
    return
  }
  func.func @transform_0(%arg0: i32) -> (i32, i32, i32, i32) {
    %c0_i32 = arith.constant 0 : i32
    %c0_i32_0 = arith.constant 0 : i32
    %c0_i32_1 = arith.constant 0 : i32
    %c0_i32_2 = arith.constant 0 : i32
    return %arg0, %c0_i32, %c0_i32_0, %c0_i32_1 : i32, i32, i32, i32
  }
  func.func @transform_1(%arg0: i32) -> (i32, i32, i32, i32) {
    %c0_i32 = arith.constant 0 : i32
    %c0_i32_0 = arith.constant 0 : i32
    %c0_i32_1 = arith.constant 0 : i32
    %c0_i32_2 = arith.constant 0 : i32
    return %arg0, %c0_i32, %c0_i32_0, %c0_i32_1 : i32, i32, i32, i32
  }
  func.func @transform_2(%arg0: i32) -> (i32, i32, i32, i32) {
    %c0_i32 = arith.constant 0 : i32
    %c0_i32_0 = arith.constant 0 : i32
    %c0_i32_1 = arith.constant 0 : i32
    %c0_i32_2 = arith.constant 0 : i32
    return %arg0, %c0_i32, %c0_i32_0, %c0_i32_1 : i32, i32, i32, i32
  }
  func.func @transform_3(%arg0: i32) -> (i32, i32, i32, i32) {
    %c0_i32 = arith.constant 0 : i32
    %c0_i32_0 = arith.constant 0 : i32
    %c0_i32_1 = arith.constant 0 : i32
    %c0_i32_2 = arith.constant 0 : i32
    return %arg0, %c0_i32, %c0_i32_0, %c0_i32_1 : i32, i32, i32, i32
  }
  func.func @transform_4(%arg0: i32) -> (i32, i32, i32, i32) {
    %c0_i32 = arith.constant 0 : i32
    %c0_i32_0 = arith.constant 0 : i32
    %c0_i32_1 = arith.constant 0 : i32
    %c0_i32_2 = arith.constant 0 : i32
    return %arg0, %c0_i32, %c0_i32_0, %c0_i32_1 : i32, i32, i32, i32
  }
}

module attributes {stable_mosaic.version = 11 : i64} {
  func.func @_dense_matmul_kernel(%arg0: i32, %arg1: memref<8x16xf32, #tpu.memory_space<vmem>>, %arg2: memref<16x16xbf16, #tpu.memory_space<vmem>>, %arg3: memref<1x16xf32, #tpu.memory_space<vmem>>, %arg4: memref<1x16xf32, #tpu.memory_space<vmem>>, %arg5: memref<1x16xf32, #tpu.memory_space<vmem>>, %arg6: memref<1x16xf32, #tpu.memory_space<vmem>>, %arg7: memref<8x16xf32, #tpu.memory_space<vmem>>) attributes {dimension_semantics = [#tpu.dimension_semantics<parallel>], iteration_bounds = array<i64: 1>, scalar_prefetch = 0 : i64, scratch_operands = 0 : i64, tpu.core_type = #tpu.core_type<tc>, window_params = [{transform_indices = @transform_0, window_bounds = array<i64: 8, 16>}, {pipeline_mode = #tpu.pipeline_mode<synchronous>, transform_indices = @transform_1, window_bounds = array<i64: 16, 16>}, {pipeline_mode = #tpu.pipeline_mode<synchronous>, transform_indices = @transform_2, window_bounds = array<i64: 1, 16>}, {pipeline_mode = #tpu.pipeline_mode<synchronous>, transform_indices = @transform_3, window_bounds = array<i64: 1, 16>}, {pipeline_mode = #tpu.pipeline_mode<synchronous>, transform_indices = @transform_4, window_bounds = array<i64: 1, 16>}, {pipeline_mode = #tpu.pipeline_mode<synchronous>, transform_indices = @transform_5, window_bounds = array<i64: 1, 16>}, {transform_indices = @transform_6, window_bounds = array<i64: 8, 16>}]} {
    %c0 = arith.constant 0 : index
    %c0_0 = arith.constant 0 : index
    %0 = vector.load %arg1[%c0, %c0_0] : memref<8x16xf32, #tpu.memory_space<vmem>>, vector<8x16xf32>
    %c0_1 = arith.constant 0 : index
    %c0_2 = arith.constant 0 : index
    %1 = vector.load %arg3[%c0_1, %c0_2] : memref<1x16xf32, #tpu.memory_space<vmem>>, vector<1x16xf32>
    %2 = vector.broadcast %1 : vector<1x16xf32> to vector<8x16xf32>
    %3 = arith.mulf %0, %2 : vector<8x16xf32>
    %c0_3 = arith.constant 0 : index
    %c0_4 = arith.constant 0 : index
    %4 = vector.load %arg4[%c0_3, %c0_4] : memref<1x16xf32, #tpu.memory_space<vmem>>, vector<1x16xf32>
    %5 = vector.broadcast %4 : vector<1x16xf32> to vector<8x16xf32>
    %6 = arith.addf %3, %5 : vector<8x16xf32>
    %cst = arith.constant 0.000000e+00 : f32
    %7 = vector.broadcast %cst : f32 to vector<8x16xf32>
    %8 = arith.maximumf %6, %7 : vector<8x16xf32>
    %9 = arith.truncf %8 : vector<8x16xf32> to vector<8x16xbf16>
    %c0_5 = arith.constant 0 : index
    %c0_6 = arith.constant 0 : index
    %10 = vector.load %arg2[%c0_5, %c0_6] : memref<16x16xbf16, #tpu.memory_space<vmem>>, vector<16x16xbf16>
    %cst_7 = arith.constant dense<0.000000e+00> : vector<8x16xf32>
    %11 = tpu.matmul %9, %10, %cst_7 {dimension_numbers = #tpu.dot_dimension_numbers<[1], [0], [0], [1], [0, 0, 1, 1], [], []>} : vector<8x16xbf16>, vector<16x16xbf16>, vector<8x16xf32> -> vector<8x16xf32>
    %c0_8 = arith.constant 0 : index
    %c0_9 = arith.constant 0 : index
    %12 = vector.load %arg5[%c0_8, %c0_9] : memref<1x16xf32, #tpu.memory_space<vmem>>, vector<1x16xf32>
    %13 = vector.broadcast %12 : vector<1x16xf32> to vector<8x16xf32>
    %14 = arith.mulf %11, %13 : vector<8x16xf32>
    %c0_10 = arith.constant 0 : index
    %c0_11 = arith.constant 0 : index
    %15 = vector.load %arg6[%c0_10, %c0_11] : memref<1x16xf32, #tpu.memory_space<vmem>>, vector<1x16xf32>
    %16 = vector.broadcast %15 : vector<1x16xf32> to vector<8x16xf32>
    %17 = arith.addf %14, %16 : vector<8x16xf32>
    %cst_12 = arith.constant 0.000000e+00 : f32
    %18 = vector.broadcast %cst_12 : f32 to vector<8x16xf32>
    %19 = arith.maximumf %17, %18 : vector<8x16xf32>
    %c0_13 = arith.constant 0 : index
    %c0_14 = arith.constant 0 : index
    %20 = vector.load %arg7[%c0_13, %c0_14] : memref<8x16xf32, #tpu.memory_space<vmem>>, vector<8x16xf32>
    tpu.vector_store %arg7[%c0_13, %c0_14], %19 {strides = array<i32>} : memref<8x16xf32, #tpu.memory_space<vmem>>, vector<8x16xf32>,
    return
  }
  func.func @transform_0(%arg0: i32) -> (i32, i32) {
    %c0_i32 = arith.constant 0 : i32
    %c0_i32_0 = arith.constant 0 : i32
    return %arg0, %c0_i32 : i32, i32
  }
  func.func @transform_1(%arg0: i32) -> (i32, i32) {
    %c0_i32 = arith.constant 0 : i32
    %c0_i32_0 = arith.constant 0 : i32
    %c0_i32_1 = arith.constant 0 : i32
    return %c0_i32, %c0_i32_0 : i32, i32
  }
  func.func @transform_2(%arg0: i32) -> (i32, i32) {
    %c0_i32 = arith.constant 0 : i32
    %c0_i32_0 = arith.constant 0 : i32
    %c0_i32_1 = arith.constant 0 : i32
    return %c0_i32, %c0_i32_0 : i32, i32
  }
  func.func @transform_3(%arg0: i32) -> (i32, i32) {
    %c0_i32 = arith.constant 0 : i32
    %c0_i32_0 = arith.constant 0 : i32
    %c0_i32_1 = arith.constant 0 : i32
    return %c0_i32, %c0_i32_0 : i32, i32
  }
  func.func @transform_4(%arg0: i32) -> (i32, i32) {
    %c0_i32 = arith.constant 0 : i32
    %c0_i32_0 = arith.constant 0 : i32
    %c0_i32_1 = arith.constant 0 : i32
    return %c0_i32, %c0_i32_0 : i32, i32
  }
  func.func @transform_5(%arg0: i32) -> (i32, i32) {
    %c0_i32 = arith.constant 0 : i32
    %c0_i32_0 = arith.constant 0 : i32
    %c0_i32_1 = arith.constant 0 : i32
    return %c0_i32, %c0_i32_0 : i32, i32
  }
  func.func @transform_6(%arg0: i32) -> (i32, i32) {
    %c0_i32 = arith.constant 0 : i32
    %c0_i32_0 = arith.constant 0 : i32
    return %arg0, %c0_i32 : i32, i32
  }
}

module attributes {stable_mosaic.version = 11 : i64} {
  func.func @_dense_matmul_kernel(%arg0: i32, %arg1: memref<8x144xf32, #tpu.memory_space<vmem>>, %arg2: memref<144x8xbf16, #tpu.memory_space<vmem>>, %arg3: memref<8x8xf32, #tpu.memory_space<vmem>>) attributes {dimension_semantics = [#tpu.dimension_semantics<parallel>], iteration_bounds = array<i64: 1>, scalar_prefetch = 0 : i64, scratch_operands = 0 : i64, tpu.core_type = #tpu.core_type<tc>, window_params = [{transform_indices = @transform_0, window_bounds = array<i64: 8, 144>}, {pipeline_mode = #tpu.pipeline_mode<synchronous>, transform_indices = @transform_1, window_bounds = array<i64: 144, 8>}, {transform_indices = @transform_2, window_bounds = array<i64: 8, 8>}]} {
    %c0 = arith.constant 0 : index
    %c0_0 = arith.constant 0 : index
    %0 = vector.load %arg1[%c0, %c0_0] : memref<8x144xf32, #tpu.memory_space<vmem>>, vector<8x144xf32>
    %1 = arith.truncf %0 : vector<8x144xf32> to vector<8x144xbf16>
    %c0_1 = arith.constant 0 : index
    %c0_2 = arith.constant 0 : index
    %2 = vector.load %arg2[%c0_1, %c0_2] : memref<144x8xbf16, #tpu.memory_space<vmem>>, vector<144x8xbf16>
    %cst = arith.constant dense<0.000000e+00> : vector<8x8xf32>
    %3 = tpu.matmul %1, %2, %cst {dimension_numbers = #tpu.dot_dimension_numbers<[1], [0], [0], [1], [0, 0, 1, 1], [], []>} : vector<8x144xbf16>, vector<144x8xbf16>, vector<8x8xf32> -> vector<8x8xf32>
    %c0_3 = arith.constant 0 : index
    %c0_4 = arith.constant 0 : index
    %4 = vector.load %arg3[%c0_3, %c0_4] : memref<8x8xf32, #tpu.memory_space<vmem>>, vector<8x8xf32>
    tpu.vector_store %arg3[%c0_3, %c0_4], %3 {strides = array<i32>} : memref<8x8xf32, #tpu.memory_space<vmem>>, vector<8x8xf32>,
    return
  }
  func.func @transform_0(%arg0: i32) -> (i32, i32) {
    %c0_i32 = arith.constant 0 : i32
    %c0_i32_0 = arith.constant 0 : i32
    return %arg0, %c0_i32 : i32, i32
  }
  func.func @transform_1(%arg0: i32) -> (i32, i32) {
    %c0_i32 = arith.constant 0 : i32
    %c0_i32_0 = arith.constant 0 : i32
    %c0_i32_1 = arith.constant 0 : i32
    return %c0_i32, %c0_i32_0 : i32, i32
  }
  func.func @transform_2(%arg0: i32) -> (i32, i32) {
    %c0_i32 = arith.constant 0 : i32
    %c0_i32_0 = arith.constant 0 : i32
    return %arg0, %c0_i32 : i32, i32
  }
}

module attributes {stable_mosaic.version = 11 : i64} {
  func.func @_dense_matmul_kernel(%arg0: i32, %arg1: memref<8x16xf32, #tpu.memory_space<vmem>>, %arg2: memref<8x8xf32, #tpu.memory_space<vmem>>, %arg3: memref<24x16xbf16, #tpu.memory_space<vmem>>, %arg4: memref<1x24xf32, #tpu.memory_space<vmem>>, %arg5: memref<1x24xf32, #tpu.memory_space<vmem>>, %arg6: memref<1x16xf32, #tpu.memory_space<vmem>>, %arg7: memref<1x16xf32, #tpu.memory_space<vmem>>, %arg8: memref<8x16xf32, #tpu.memory_space<vmem>>) attributes {dimension_semantics = [#tpu.dimension_semantics<parallel>], iteration_bounds = array<i64: 1>, scalar_prefetch = 0 : i64, scratch_operands = 0 : i64, tpu.core_type = #tpu.core_type<tc>, window_params = [{transform_indices = @transform_0, window_bounds = array<i64: 8, 16>}, {transform_indices = @transform_1, window_bounds = array<i64: 8, 8>}, {pipeline_mode = #tpu.pipeline_mode<synchronous>, transform_indices = @transform_2, window_bounds = array<i64: 24, 16>}, {pipeline_mode = #tpu.pipeline_mode<synchronous>, transform_indices = @transform_3, window_bounds = array<i64: 1, 24>}, {pipeline_mode = #tpu.pipeline_mode<synchronous>, transform_indices = @transform_4, window_bounds = array<i64: 1, 24>}, {pipeline_mode = #tpu.pipeline_mode<synchronous>, transform_indices = @transform_5, window_bounds = array<i64: 1, 16>}, {pipeline_mode = #tpu.pipeline_mode<synchronous>, transform_indices = @transform_6, window_bounds = array<i64: 1, 16>}, {transform_indices = @transform_7, window_bounds = array<i64: 8, 16>}]} {
    %c0 = arith.constant 0 : index
    %c0_0 = arith.constant 0 : index
    %0 = vector.load %arg1[%c0, %c0_0] : memref<8x16xf32, #tpu.memory_space<vmem>>, vector<8x16xf32>
    %c0_1 = arith.constant 0 : index
    %c0_2 = arith.constant 0 : index
    %1 = vector.load %arg4[%c0_1, %c0_2] : memref<1x24xf32, #tpu.memory_space<vmem>>, vector<1x16xf32>
    %2 = vector.broadcast %1 : vector<1x16xf32> to vector<8x16xf32>
    %3 = arith.mulf %0, %2 : vector<8x16xf32>
    %c0_3 = arith.constant 0 : index
    %c0_4 = arith.constant 0 : index
    %4 = vector.load %arg5[%c0_3, %c0_4] : memref<1x24xf32, #tpu.memory_space<vmem>>, vector<1x16xf32>
    %5 = vector.broadcast %4 : vector<1x16xf32> to vector<8x16xf32>
    %6 = arith.addf %3, %5 : vector<8x16xf32>
    %cst = arith.constant 0.000000e+00 : f32
    %7 = vector.broadcast %cst : f32 to vector<8x16xf32>
    %8 = arith.maximumf %6, %7 : vector<8x16xf32>
    %9 = arith.truncf %8 : vector<8x16xf32> to vector<8x16xbf16>
    %c0_5 = arith.constant 0 : index
    %c0_6 = arith.constant 0 : index
    %10 = vector.load %arg3[%c0_5, %c0_6] : memref<24x16xbf16, #tpu.memory_space<vmem>>, vector<16x16xbf16>
    %cst_7 = arith.constant dense<0.000000e+00> : vector<8x16xf32>
    %11 = tpu.matmul %9, %10, %cst_7 {dimension_numbers = #tpu.dot_dimension_numbers<[1], [0], [0], [1], [0, 0, 1, 1], [], []>} : vector<8x16xbf16>, vector<16x16xbf16>, vector<8x16xf32> -> vector<8x16xf32>
    %c0_8 = arith.constant 0 : index
    %c0_9 = arith.constant 0 : index
    %12 = vector.load %arg2[%c0_8, %c0_9] : memref<8x8xf32, #tpu.memory_space<vmem>>, vector<8x8xf32>
    %c0_10 = arith.constant 0 : index
    %c16 = arith.constant 16 : index
    %13 = vector.load %arg4[%c0_10, %c16] : memref<1x24xf32, #tpu.memory_space<vmem>>, vector<1x8xf32>
    %14 = vector.broadcast %13 : vector<1x8xf32> to vector<8x8xf32>
    %15 = arith.mulf %12, %14 : vector<8x8xf32>
    %c0_11 = arith.constant 0 : index
    %c16_12 = arith.constant 16 : index
    %16 = vector.load %arg5[%c0_11, %c16_12] : memref<1x24xf32, #tpu.memory_space<vmem>>, vector<1x8xf32>
    %17 = vector.broadcast %16 : vector<1x8xf32> to vector<8x8xf32>
    %18 = arith.addf %15, %17 : vector<8x8xf32>
    %cst_13 = arith.constant 0.000000e+00 : f32
    %19 = vector.broadcast %cst_13 : f32 to vector<8x8xf32>
    %20 = arith.maximumf %18, %19 : vector<8x8xf32>
    %21 = arith.truncf %20 : vector<8x8xf32> to vector<8x8xbf16>
    %c16_14 = arith.constant 16 : index
    %c0_15 = arith.constant 0 : index
    %22 = vector.load %arg3[%c16_14, %c0_15] : memref<24x16xbf16, #tpu.memory_space<vmem>>, vector<8x16xbf16>
    %cst_16 = arith.constant dense<0.000000e+00> : vector<8x16xf32>
    %23 = tpu.matmul %21, %22, %cst_16 {dimension_numbers = #tpu.dot_dimension_numbers<[1], [0], [0], [1], [0, 0, 1, 1], [], []>} : vector<8x8xbf16>, vector<8x16xbf16>, vector<8x16xf32> -> vector<8x16xf32>
    %24 = arith.addf %11, %23 : vector<8x16xf32>
    %c0_17 = arith.constant 0 : index
    %c0_18 = arith.constant 0 : index
    %25 = vector.load %arg6[%c0_17, %c0_18] : memref<1x16xf32, #tpu.memory_space<vmem>>, vector<1x16xf32>
    %26 = vector.broadcast %25 : vector<1x16xf32> to vector<8x16xf32>
    %27 = arith.mulf %24, %26 : vector<8x16xf32>
    %c0_19 = arith.constant 0 : index
    %c0_20 = arith.constant 0 : index
    %28 = vector.load %arg7[%c0_19, %c0_20] : memref<1x16xf32, #tpu.memory_space<vmem>>, vector<1x16xf32>
    %29 = vector.broadcast %28 : vector<1x16xf32> to vector<8x16xf32>
    %30 = arith.addf %27, %29 : vector<8x16xf32>
    %cst_21 = arith.constant 0.000000e+00 : f32
    %31 = vector.broadcast %cst_21 : f32 to vector<8x16xf32>
    %32 = arith.maximumf %30, %31 : vector<8x16xf32>
    %c0_22 = arith.constant 0 : index
    %c0_23 = arith.constant 0 : index
    %33 = vector.load %arg8[%c0_22, %c0_23] : memref<8x16xf32, #tpu.memory_space<vmem>>, vector<8x16xf32>
    tpu.vector_store %arg8[%c0_22, %c0_23], %32 {strides = array<i32>} : memref<8x16xf32, #tpu.memory_space<vmem>>, vector<8x16xf32>,
    return
  }
  func.func @transform_0(%arg0: i32) -> (i32, i32) {
    %c0_i32 = arith.constant 0 : i32
    %c0_i32_0 = arith.constant 0 : i32
    return %arg0, %c0_i32 : i32, i32
  }
  func.func @transform_1(%arg0: i32) -> (i32, i32) {
    %c0_i32 = arith.constant 0 : i32
    %c0_i32_0 = arith.constant 0 : i32
    return %arg0, %c0_i32 : i32, i32
  }
  func.func @transform_2(%arg0: i32) -> (i32, i32) {
    %c0_i32 = arith.constant 0 : i32
    %c0_i32_0 = arith.constant 0 : i32
    %c0_i32_1 = arith.constant 0 : i32
    return %c0_i32, %c0_i32_0 : i32, i32
  }
  func.func @transform_3(%arg0: i32) -> (i32, i32) {
    %c0_i32 = arith.constant 0 : i32
    %c0_i32_0 = arith.constant 0 : i32
    %c0_i32_1 = arith.constant 0 : i32
    return %c0_i32, %c0_i32_0 : i32, i32
  }
  func.func @transform_4(%arg0: i32) -> (i32, i32) {
    %c0_i32 = arith.constant 0 : i32
    %c0_i32_0 = arith.constant 0 : i32
    %c0_i32_1 = arith.constant 0 : i32
    return %c0_i32, %c0_i32_0 : i32, i32
  }
  func.func @transform_5(%arg0: i32) -> (i32, i32) {
    %c0_i32 = arith.constant 0 : i32
    %c0_i32_0 = arith.constant 0 : i32
    %c0_i32_1 = arith.constant 0 : i32
    return %c0_i32, %c0_i32_0 : i32, i32
  }
  func.func @transform_6(%arg0: i32) -> (i32, i32) {
    %c0_i32 = arith.constant 0 : i32
    %c0_i32_0 = arith.constant 0 : i32
    %c0_i32_1 = arith.constant 0 : i32
    return %c0_i32, %c0_i32_0 : i32, i32
  }
  func.func @transform_7(%arg0: i32) -> (i32, i32) {
    %c0_i32 = arith.constant 0 : i32
    %c0_i32_0 = arith.constant 0 : i32
    return %arg0, %c0_i32 : i32, i32
  }
}

module attributes {stable_mosaic.version = 11 : i64} {
  func.func @_dense_matmul_kernel(%arg0: i32, %arg1: memref<8x16xf32, #tpu.memory_space<vmem>>, %arg2: memref<8x8xf32, #tpu.memory_space<vmem>>, %arg3: memref<8x8xf32, #tpu.memory_space<vmem>>, %arg4: memref<32x16xbf16, #tpu.memory_space<vmem>>, %arg5: memref<1x32xf32, #tpu.memory_space<vmem>>, %arg6: memref<1x32xf32, #tpu.memory_space<vmem>>, %arg7: memref<8x16xf32, #tpu.memory_space<vmem>>) attributes {dimension_semantics = [#tpu.dimension_semantics<parallel>], iteration_bounds = array<i64: 1>, scalar_prefetch = 0 : i64, scratch_operands = 0 : i64, tpu.core_type = #tpu.core_type<tc>, window_params = [{transform_indices = @transform_0, window_bounds = array<i64: 8, 16>}, {transform_indices = @transform_1, window_bounds = array<i64: 8, 8>}, {transform_indices = @transform_2, window_bounds = array<i64: 8, 8>}, {pipeline_mode = #tpu.pipeline_mode<synchronous>, transform_indices = @transform_3, window_bounds = array<i64: 32, 16>}, {pipeline_mode = #tpu.pipeline_mode<synchronous>, transform_indices = @transform_4, window_bounds = array<i64: 1, 32>}, {pipeline_mode = #tpu.pipeline_mode<synchronous>, transform_indices = @transform_5, window_bounds = array<i64: 1, 32>}, {transform_indices = @transform_6, window_bounds = array<i64: 8, 16>}]} {
    %c0 = arith.constant 0 : index
    %c0_0 = arith.constant 0 : index
    %0 = vector.load %arg1[%c0, %c0_0] : memref<8x16xf32, #tpu.memory_space<vmem>>, vector<8x16xf32>
    %c0_1 = arith.constant 0 : index
    %c0_2 = arith.constant 0 : index
    %1 = vector.load %arg5[%c0_1, %c0_2] : memref<1x32xf32, #tpu.memory_space<vmem>>, vector<1x16xf32>
    %2 = vector.broadcast %1 : vector<1x16xf32> to vector<8x16xf32>
    %3 = arith.mulf %0, %2 : vector<8x16xf32>
    %c0_3 = arith.constant 0 : index
    %c0_4 = arith.constant 0 : index
    %4 = vector.load %arg6[%c0_3, %c0_4] : memref<1x32xf32, #tpu.memory_space<vmem>>, vector<1x16xf32>
    %5 = vector.broadcast %4 : vector<1x16xf32> to vector<8x16xf32>
    %6 = arith.addf %3, %5 : vector<8x16xf32>
    %cst = arith.constant 0.000000e+00 : f32
    %7 = vector.broadcast %cst : f32 to vector<8x16xf32>
    %8 = arith.maximumf %6, %7 : vector<8x16xf32>
    %9 = arith.truncf %8 : vector<8x16xf32> to vector<8x16xbf16>
    %c0_5 = arith.constant 0 : index
    %c0_6 = arith.constant 0 : index
    %10 = vector.load %arg4[%c0_5, %c0_6] : memref<32x16xbf16, #tpu.memory_space<vmem>>, vector<16x16xbf16>
    %cst_7 = arith.constant dense<0.000000e+00> : vector<8x16xf32>
    %11 = tpu.matmul %9, %10, %cst_7 {dimension_numbers = #tpu.dot_dimension_numbers<[1], [0], [0], [1], [0, 0, 1, 1], [], []>} : vector<8x16xbf16>, vector<16x16xbf16>, vector<8x16xf32> -> vector<8x16xf32>
    %c0_8 = arith.constant 0 : index
    %c0_9 = arith.constant 0 : index
    %12 = vector.load %arg2[%c0_8, %c0_9] : memref<8x8xf32, #tpu.memory_space<vmem>>, vector<8x8xf32>
    %c0_10 = arith.constant 0 : index
    %c16 = arith.constant 16 : index
    %13 = vector.load %arg5[%c0_10, %c16] : memref<1x32xf32, #tpu.memory_space<vmem>>, vector<1x8xf32>
    %14 = vector.broadcast %13 : vector<1x8xf32> to vector<8x8xf32>
    %15 = arith.mulf %12, %14 : vector<8x8xf32>
    %c0_11 = arith.constant 0 : index
    %c16_12 = arith.constant 16 : index
    %16 = vector.load %arg6[%c0_11, %c16_12] : memref<1x32xf32, #tpu.memory_space<vmem>>, vector<1x8xf32>
    %17 = vector.broadcast %16 : vector<1x8xf32> to vector<8x8xf32>
    %18 = arith.addf %15, %17 : vector<8x8xf32>
    %cst_13 = arith.constant 0.000000e+00 : f32
    %19 = vector.broadcast %cst_13 : f32 to vector<8x8xf32>
    %20 = arith.maximumf %18, %19 : vector<8x8xf32>
    %21 = arith.truncf %20 : vector<8x8xf32> to vector<8x8xbf16>
    %c16_14 = arith.constant 16 : index
    %c0_15 = arith.constant 0 : index
    %22 = vector.load %arg4[%c16_14, %c0_15] : memref<32x16xbf16, #tpu.memory_space<vmem>>, vector<8x16xbf16>
    %cst_16 = arith.constant dense<0.000000e+00> : vector<8x16xf32>
    %23 = tpu.matmul %21, %22, %cst_16 {dimension_numbers = #tpu.dot_dimension_numbers<[1], [0], [0], [1], [0, 0, 1, 1], [], []>} : vector<8x8xbf16>, vector<8x16xbf16>, vector<8x16xf32> -> vector<8x16xf32>
    %24 = arith.addf %11, %23 : vector<8x16xf32>
    %c0_17 = arith.constant 0 : index
    %c0_18 = arith.constant 0 : index
    %25 = vector.load %arg3[%c0_17, %c0_18] : memref<8x8xf32, #tpu.memory_space<vmem>>, vector<8x8xf32>
    %c0_19 = arith.constant 0 : index
    %c24 = arith.constant 24 : index
    %26 = vector.load %arg5[%c0_19, %c24] : memref<1x32xf32, #tpu.memory_space<vmem>>, vector<1x8xf32>
    %27 = vector.broadcast %26 : vector<1x8xf32> to vector<8x8xf32>
    %28 = arith.mulf %25, %27 : vector<8x8xf32>
    %c0_20 = arith.constant 0 : index
    %c24_21 = arith.constant 24 : index
    %29 = vector.load %arg6[%c0_20, %c24_21] : memref<1x32xf32, #tpu.memory_space<vmem>>, vector<1x8xf32>
    %30 = vector.broadcast %29 : vector<1x8xf32> to vector<8x8xf32>
    %31 = arith.addf %28, %30 : vector<8x8xf32>
    %cst_22 = arith.constant 0.000000e+00 : f32
    %32 = vector.broadcast %cst_22 : f32 to vector<8x8xf32>
    %33 = arith.maximumf %31, %32 : vector<8x8xf32>
    %34 = arith.truncf %33 : vector<8x8xf32> to vector<8x8xbf16>
    %c24_23 = arith.constant 24 : index
    %c0_24 = arith.constant 0 : index
    %35 = vector.load %arg4[%c24_23, %c0_24] : memref<32x16xbf16, #tpu.memory_space<vmem>>, vector<8x16xbf16>
    %cst_25 = arith.constant dense<0.000000e+00> : vector<8x16xf32>
    %36 = tpu.matmul %34, %35, %cst_25 {dimension_numbers = #tpu.dot_dimension_numbers<[1], [0], [0], [1], [0, 0, 1, 1], [], []>} : vector<8x8xbf16>, vector<8x16xbf16>, vector<8x16xf32> -> vector<8x16xf32>
    %37 = arith.addf %24, %36 : vector<8x16xf32>
    %c0_26 = arith.constant 0 : index
    %c0_27 = arith.constant 0 : index
    %38 = vector.load %arg7[%c0_26, %c0_27] : memref<8x16xf32, #tpu.memory_space<vmem>>, vector<8x16xf32>
    tpu.vector_store %arg7[%c0_26, %c0_27], %37 {strides = array<i32>} : memref<8x16xf32, #tpu.memory_space<vmem>>, vector<8x16xf32>,
    return
  }
  func.func @transform_0(%arg0: i32) -> (i32, i32) {
    %c0_i32 = arith.constant 0 : i32
    %c0_i32_0 = arith.constant 0 : i32
    return %arg0, %c0_i32 : i32, i32
  }
  func.func @transform_1(%arg0: i32) -> (i32, i32) {
    %c0_i32 = arith.constant 0 : i32
    %c0_i32_0 = arith.constant 0 : i32
    return %arg0, %c0_i32 : i32, i32
  }
  func.func @transform_2(%arg0: i32) -> (i32, i32) {
    %c0_i32 = arith.constant 0 : i32
    %c0_i32_0 = arith.constant 0 : i32
    return %arg0, %c0_i32 : i32, i32
  }
  func.func @transform_3(%arg0: i32) -> (i32, i32) {
    %c0_i32 = arith.constant 0 : i32
    %c0_i32_0 = arith.constant 0 : i32
    %c0_i32_1 = arith.constant 0 : i32
    return %c0_i32, %c0_i32_0 : i32, i32
  }
  func.func @transform_4(%arg0: i32) -> (i32, i32) {
    %c0_i32 = arith.constant 0 : i32
    %c0_i32_0 = arith.constant 0 : i32
    %c0_i32_1 = arith.constant 0 : i32
    return %c0_i32, %c0_i32_0 : i32, i32
  }
  func.func @transform_5(%arg0: i32) -> (i32, i32) {
    %c0_i32 = arith.constant 0 : i32
    %c0_i32_0 = arith.constant 0 : i32
    %c0_i32_1 = arith.constant 0 : i32
    return %c0_i32, %c0_i32_0 : i32, i32
  }
  func.func @transform_6(%arg0: i32) -> (i32, i32) {
    %c0_i32 = arith.constant 0 : i32
    %c0_i32_0 = arith.constant 0 : i32
    return %arg0, %c0_i32 : i32, i32
  }
}

module attributes {stable_mosaic.version = 11 : i64} {
  func.func @_pool2x_kernel(%arg0: i32, %arg1: memref<1x1x1x16xf32, #tpu.memory_space<vmem>>, %arg2: memref<1x1x1x16xf32, #tpu.memory_space<vmem>>, %arg3: memref<1x1x1x16xf32, #tpu.memory_space<vmem>>, %arg4: memref<1x1x1x16xf32, #tpu.memory_space<vmem>>, %arg5: memref<1x1x1x16xf32, #tpu.memory_space<vmem>>) attributes {dimension_semantics = [#tpu.dimension_semantics<parallel>], iteration_bounds = array<i64: 2>, scalar_prefetch = 0 : i64, scratch_operands = 0 : i64, tpu.core_type = #tpu.core_type<tc>, window_params = [{transform_indices = @transform_0, window_bounds = array<i64: 1, 1, 1, 16>}, {transform_indices = @transform_1, window_bounds = array<i64: 1, 1, 1, 16>}, {transform_indices = @transform_2, window_bounds = array<i64: 1, 1, 1, 16>}, {transform_indices = @transform_3, window_bounds = array<i64: 1, 1, 1, 16>}, {transform_indices = @transform_4, window_bounds = array<i64: 1, 1, 1, 16>}]} {
    %c0 = arith.constant 0 : index
    %c0_0 = arith.constant 0 : index
    %c0_1 = arith.constant 0 : index
    %c0_2 = arith.constant 0 : index
    %0 = vector.load %arg1[%c0, %c0_0, %c0_1, %c0_2] : memref<1x1x1x16xf32, #tpu.memory_space<vmem>>, vector<1x1x1x16xf32>
    %1 = vector.shape_cast %0 : vector<1x1x1x16xf32> to vector<1x1x16xf32>
    %c0_3 = arith.constant 0 : index
    %c0_4 = arith.constant 0 : index
    %c0_5 = arith.constant 0 : index
    %c0_6 = arith.constant 0 : index
    %2 = vector.load %arg2[%c0_3, %c0_4, %c0_5, %c0_6] : memref<1x1x1x16xf32, #tpu.memory_space<vmem>>, vector<1x1x1x16xf32>
    %3 = vector.shape_cast %2 : vector<1x1x1x16xf32> to vector<1x1x16xf32>
    %4 = arith.addf %1, %3 : vector<1x1x16xf32>
    %c0_7 = arith.constant 0 : index
    %c0_8 = arith.constant 0 : index
    %c0_9 = arith.constant 0 : index
    %c0_10 = arith.constant 0 : index
    %5 = vector.load %arg3[%c0_7, %c0_8, %c0_9, %c0_10] : memref<1x1x1x16xf32, #tpu.memory_space<vmem>>, vector<1x1x1x16xf32>
    %6 = vector.shape_cast %5 : vector<1x1x1x16xf32> to vector<1x1x16xf32>
    %7 = arith.addf %4, %6 : vector<1x1x16xf32>
    %c0_11 = arith.constant 0 : index
    %c0_12 = arith.constant 0 : index
    %c0_13 = arith.constant 0 : index
    %c0_14 = arith.constant 0 : index
    %8 = vector.load %arg4[%c0_11, %c0_12, %c0_13, %c0_14] : memref<1x1x1x16xf32, #tpu.memory_space<vmem>>, vector<1x1x1x16xf32>
    %9 = vector.shape_cast %8 : vector<1x1x1x16xf32> to vector<1x1x16xf32>
    %10 = arith.addf %7, %9 : vector<1x1x16xf32>
    %cst = arith.constant 2.500000e-01 : f32
    %11 = vector.broadcast %cst : f32 to vector<1x1x16xf32>
    %12 = arith.mulf %10, %11 : vector<1x1x16xf32>
    %c0_15 = arith.constant 0 : index
    %c0_16 = arith.constant 0 : index
    %c0_17 = arith.constant 0 : index
    %c0_18 = arith.constant 0 : index
    %13 = vector.load %arg5[%c0_15, %c0_16, %c0_17, %c0_18] : memref<1x1x1x16xf32, #tpu.memory_space<vmem>>, vector<1x1x1x16xf32>
    %14 = vector.shape_cast %13 : vector<1x1x1x16xf32> to vector<1x1x16xf32>
    %15 = vector.shape_cast %12 : vector<1x1x16xf32> to vector<1x1x1x16xf32>
    tpu.vector_store %arg5[%c0_15, %c0_16, %c0_17, %c0_18], %15 {strides = array<i32>} : memref<1x1x1x16xf32, #tpu.memory_space<vmem>>, vector<1x1x1x16xf32>,
    return
  }
  func.func @transform_0(%arg0: i32) -> (i32, i32, i32, i32) {
    %c0_i32 = arith.constant 0 : i32
    %c0_i32_0 = arith.constant 0 : i32
    %c0_i32_1 = arith.constant 0 : i32
    %c0_i32_2 = arith.constant 0 : i32
    return %arg0, %c0_i32, %c0_i32_0, %c0_i32_1 : i32, i32, i32, i32
  }
  func.func @transform_1(%arg0: i32) -> (i32, i32, i32, i32) {
    %c0_i32 = arith.constant 0 : i32
    %c0_i32_0 = arith.constant 0 : i32
    %c0_i32_1 = arith.constant 0 : i32
    %c0_i32_2 = arith.constant 0 : i32
    return %arg0, %c0_i32, %c0_i32_0, %c0_i32_1 : i32, i32, i32, i32
  }
  func.func @transform_2(%arg0: i32) -> (i32, i32, i32, i32) {
    %c0_i32 = arith.constant 0 : i32
    %c0_i32_0 = arith.constant 0 : i32
    %c0_i32_1 = arith.constant 0 : i32
    %c0_i32_2 = arith.constant 0 : i32
    return %arg0, %c0_i32, %c0_i32_0, %c0_i32_1 : i32, i32, i32, i32
  }
  func.func @transform_3(%arg0: i32) -> (i32, i32, i32, i32) {
    %c0_i32 = arith.constant 0 : i32
    %c0_i32_0 = arith.constant 0 : i32
    %c0_i32_1 = arith.constant 0 : i32
    %c0_i32_2 = arith.constant 0 : i32
    return %arg0, %c0_i32, %c0_i32_0, %c0_i32_1 : i32, i32, i32, i32
  }
  func.func @transform_4(%arg0: i32) -> (i32, i32, i32, i32) {
    %c0_i32 = arith.constant 0 : i32
    %c0_i32_0 = arith.constant 0 : i32
    %c0_i32_1 = arith.constant 0 : i32
    %c0_i32_2 = arith.constant 0 : i32
    return %arg0, %c0_i32, %c0_i32_0, %c0_i32_1 : i32, i32, i32, i32
  }
}

module attributes {stable_mosaic.version = 11 : i64} {
  func.func @_head_kernel(%arg0: i32, %arg1: memref<8x1x1x16xf32, #tpu.memory_space<vmem>>, %arg2: memref<8x1x1x8xf32, #tpu.memory_space<vmem>>, %arg3: memref<8x1x1x8xf32, #tpu.memory_space<vmem>>, %arg4: memref<32x512xbf16, #tpu.memory_space<vmem>>, %arg5: memref<1x512xf32, #tpu.memory_space<vmem>>, %arg6: memref<512x16xbf16, #tpu.memory_space<vmem>>, %arg7: memref<1x16xf32, #tpu.memory_space<vmem>>, %arg8: memref<8x16xf32, #tpu.memory_space<vmem>>) attributes {dimension_semantics = [#tpu.dimension_semantics<arbitrary>], iteration_bounds = array<i64: 1>, scalar_prefetch = 0 : i64, scratch_operands = 0 : i64, tpu.core_type = #tpu.core_type<tc>, window_params = [{pipeline_mode = #tpu.pipeline_mode<synchronous>, transform_indices = @transform_0, window_bounds = array<i64: 8, 1, 1, 16>}, {pipeline_mode = #tpu.pipeline_mode<synchronous>, transform_indices = @transform_1, window_bounds = array<i64: 8, 1, 1, 8>}, {pipeline_mode = #tpu.pipeline_mode<synchronous>, transform_indices = @transform_2, window_bounds = array<i64: 8, 1, 1, 8>}, {pipeline_mode = #tpu.pipeline_mode<synchronous>, transform_indices = @transform_3, window_bounds = array<i64: 32, 512>}, {pipeline_mode = #tpu.pipeline_mode<synchronous>, transform_indices = @transform_4, window_bounds = array<i64: 1, 512>}, {pipeline_mode = #tpu.pipeline_mode<synchronous>, transform_indices = @transform_5, window_bounds = array<i64: 512, 16>}, {pipeline_mode = #tpu.pipeline_mode<synchronous>, transform_indices = @transform_6, window_bounds = array<i64: 1, 16>}, {pipeline_mode = #tpu.pipeline_mode<synchronous>, transform_indices = @transform_7, window_bounds = array<i64: 8, 16>}]} {
    %c0 = arith.constant 0 : index
    %c0_0 = arith.constant 0 : index
    %c0_1 = arith.constant 0 : index
    %c0_2 = arith.constant 0 : index
    %0 = vector.load %arg1[%c0, %c0_0, %c0_1, %c0_2] : memref<8x1x1x16xf32, #tpu.memory_space<vmem>>, vector<8x1x1x16xf32>
    %cst = arith.constant 0.000000e+00 : f32
    %1 = vector.broadcast %cst : f32 to vector<8x1x1x16xf32>
    %2 = arith.maximumf %0, %1 : vector<8x1x1x16xf32>
    %cst_3 = arith.constant dense<0.000000e+00> : vector<8x1x16xf32>
    %3 = vector.multi_reduction <add>, %2, %cst_3 [2] : vector<8x1x1x16xf32> to vector<8x1x16xf32>
    %cst_4 = arith.constant dense<0.000000e+00> : vector<8x16xf32>
    %4 = vector.multi_reduction <add>, %3, %cst_4 [1] : vector<8x1x16xf32> to vector<8x16xf32>
    %cst_5 = arith.constant 1.000000e+00 : f32
    %5 = vector.broadcast %cst_5 : f32 to vector<8x16xf32>
    %6 = arith.mulf %4, %5 : vector<8x16xf32>
    %7 = arith.truncf %6 : vector<8x16xf32> to vector<8x16xbf16>
    %c0_6 = arith.constant 0 : index
    %c0_7 = arith.constant 0 : index
    %8 = vector.load %arg4[%c0_6, %c0_7] : memref<32x512xbf16, #tpu.memory_space<vmem>>, vector<16x512xbf16>
    %cst_8 = arith.constant dense<0.000000e+00> : vector<8x512xf32>
    %9 = tpu.matmul %7, %8, %cst_8 {dimension_numbers = #tpu.dot_dimension_numbers<[1], [0], [0], [1], [0, 0, 1, 1], [], []>} : vector<8x16xbf16>, vector<16x512xbf16>, vector<8x512xf32> -> vector<8x512xf32>
    %c0_9 = arith.constant 0 : index
    %c0_10 = arith.constant 0 : index
    %c0_11 = arith.constant 0 : index
    %c0_12 = arith.constant 0 : index
    %10 = vector.load %arg2[%c0_9, %c0_10, %c0_11, %c0_12] : memref<8x1x1x8xf32, #tpu.memory_space<vmem>>, vector<8x1x1x8xf32>
    %cst_13 = arith.constant 0.000000e+00 : f32
    %11 = vector.broadcast %cst_13 : f32 to vector<8x1x1x8xf32>
    %12 = arith.maximumf %10, %11 : vector<8x1x1x8xf32>
    %cst_14 = arith.constant dense<0.000000e+00> : vector<8x1x8xf32>
    %13 = vector.multi_reduction <add>, %12, %cst_14 [2] : vector<8x1x1x8xf32> to vector<8x1x8xf32>
    %cst_15 = arith.constant dense<0.000000e+00> : vector<8x8xf32>
    %14 = vector.multi_reduction <add>, %13, %cst_15 [1] : vector<8x1x8xf32> to vector<8x8xf32>
    %cst_16 = arith.constant 1.000000e+00 : f32
    %15 = vector.broadcast %cst_16 : f32 to vector<8x8xf32>
    %16 = arith.mulf %14, %15 : vector<8x8xf32>
    %17 = arith.truncf %16 : vector<8x8xf32> to vector<8x8xbf16>
    %c16 = arith.constant 16 : index
    %c0_17 = arith.constant 0 : index
    %18 = vector.load %arg4[%c16, %c0_17] : memref<32x512xbf16, #tpu.memory_space<vmem>>, vector<8x512xbf16>
    %cst_18 = arith.constant dense<0.000000e+00> : vector<8x512xf32>
    %19 = tpu.matmul %17, %18, %cst_18 {dimension_numbers = #tpu.dot_dimension_numbers<[1], [0], [0], [1], [0, 0, 1, 1], [], []>} : vector<8x8xbf16>, vector<8x512xbf16>, vector<8x512xf32> -> vector<8x512xf32>
    %20 = arith.addf %9, %19 : vector<8x512xf32>
    %c0_19 = arith.constant 0 : index
    %c0_20 = arith.constant 0 : index
    %c0_21 = arith.constant 0 : index
    %c0_22 = arith.constant 0 : index
    %21 = vector.load %arg3[%c0_19, %c0_20, %c0_21, %c0_22] : memref<8x1x1x8xf32, #tpu.memory_space<vmem>>, vector<8x1x1x8xf32>
    %cst_23 = arith.constant 0.000000e+00 : f32
    %22 = vector.broadcast %cst_23 : f32 to vector<8x1x1x8xf32>
    %23 = arith.maximumf %21, %22 : vector<8x1x1x8xf32>
    %cst_24 = arith.constant dense<0.000000e+00> : vector<8x1x8xf32>
    %24 = vector.multi_reduction <add>, %23, %cst_24 [2] : vector<8x1x1x8xf32> to vector<8x1x8xf32>
    %cst_25 = arith.constant dense<0.000000e+00> : vector<8x8xf32>
    %25 = vector.multi_reduction <add>, %24, %cst_25 [1] : vector<8x1x8xf32> to vector<8x8xf32>
    %cst_26 = arith.constant 1.000000e+00 : f32
    %26 = vector.broadcast %cst_26 : f32 to vector<8x8xf32>
    %27 = arith.mulf %25, %26 : vector<8x8xf32>
    %28 = arith.truncf %27 : vector<8x8xf32> to vector<8x8xbf16>
    %c24 = arith.constant 24 : index
    %c0_27 = arith.constant 0 : index
    %29 = vector.load %arg4[%c24, %c0_27] : memref<32x512xbf16, #tpu.memory_space<vmem>>, vector<8x512xbf16>
    %cst_28 = arith.constant dense<0.000000e+00> : vector<8x512xf32>
    %30 = tpu.matmul %28, %29, %cst_28 {dimension_numbers = #tpu.dot_dimension_numbers<[1], [0], [0], [1], [0, 0, 1, 1], [], []>} : vector<8x8xbf16>, vector<8x512xbf16>, vector<8x512xf32> -> vector<8x512xf32>
    %31 = arith.addf %20, %30 : vector<8x512xf32>
    %c0_29 = arith.constant 0 : index
    %c0_30 = arith.constant 0 : index
    %32 = vector.load %arg5[%c0_29, %c0_30] : memref<1x512xf32, #tpu.memory_space<vmem>>, vector<1x512xf32>
    %33 = vector.broadcast %32 : vector<1x512xf32> to vector<8x512xf32>
    %34 = arith.addf %31, %33 : vector<8x512xf32>
    %cst_31 = arith.constant 0.000000e+00 : f32
    %35 = vector.broadcast %cst_31 : f32 to vector<8x512xf32>
    %36 = arith.maximumf %34, %35 : vector<8x512xf32>
    %37 = arith.truncf %36 : vector<8x512xf32> to vector<8x512xbf16>
    %c0_32 = arith.constant 0 : index
    %c0_33 = arith.constant 0 : index
    %38 = vector.load %arg6[%c0_32, %c0_33] : memref<512x16xbf16, #tpu.memory_space<vmem>>, vector<512x16xbf16>
    %cst_34 = arith.constant dense<0.000000e+00> : vector<8x16xf32>
    %39 = tpu.matmul %37, %38, %cst_34 {dimension_numbers = #tpu.dot_dimension_numbers<[1], [0], [0], [1], [0, 0, 1, 1], [], []>} : vector<8x512xbf16>, vector<512x16xbf16>, vector<8x16xf32> -> vector<8x16xf32>
    %c0_35 = arith.constant 0 : index
    %c0_36 = arith.constant 0 : index
    %40 = vector.load %arg7[%c0_35, %c0_36] : memref<1x16xf32, #tpu.memory_space<vmem>>, vector<1x16xf32>
    %41 = vector.broadcast %40 : vector<1x16xf32> to vector<8x16xf32>
    %42 = arith.addf %39, %41 : vector<8x16xf32>
    %c0_37 = arith.constant 0 : index
    %c0_38 = arith.constant 0 : index
    %43 = vector.load %arg8[%c0_37, %c0_38] : memref<8x16xf32, #tpu.memory_space<vmem>>, vector<8x16xf32>
    tpu.vector_store %arg8[%c0_37, %c0_38], %42 {strides = array<i32>} : memref<8x16xf32, #tpu.memory_space<vmem>>, vector<8x16xf32>,
    return
  }
  func.func @transform_0(%arg0: i32) -> (i32, i32, i32, i32) {
    %c0_i32 = arith.constant 0 : i32
    %c0_i32_0 = arith.constant 0 : i32
    %c0_i32_1 = arith.constant 0 : i32
    %c0_i32_2 = arith.constant 0 : i32
    %c0_i32_3 = arith.constant 0 : i32
    return %c0_i32, %c0_i32_0, %c0_i32_1, %c0_i32_2 : i32, i32, i32, i32
  }
  func.func @transform_1(%arg0: i32) -> (i32, i32, i32, i32) {
    %c0_i32 = arith.constant 0 : i32
    %c0_i32_0 = arith.constant 0 : i32
    %c0_i32_1 = arith.constant 0 : i32
    %c0_i32_2 = arith.constant 0 : i32
    %c0_i32_3 = arith.constant 0 : i32
    return %c0_i32, %c0_i32_0, %c0_i32_1, %c0_i32_2 : i32, i32, i32, i32
  }
  func.func @transform_2(%arg0: i32) -> (i32, i32, i32, i32) {
    %c0_i32 = arith.constant 0 : i32
    %c0_i32_0 = arith.constant 0 : i32
    %c0_i32_1 = arith.constant 0 : i32
    %c0_i32_2 = arith.constant 0 : i32
    %c0_i32_3 = arith.constant 0 : i32
    return %c0_i32, %c0_i32_0, %c0_i32_1, %c0_i32_2 : i32, i32, i32, i32
  }
  func.func @transform_3(%arg0: i32) -> (i32, i32) {
    %c0_i32 = arith.constant 0 : i32
    %c0_i32_0 = arith.constant 0 : i32
    %c0_i32_1 = arith.constant 0 : i32
    return %c0_i32, %c0_i32_0 : i32, i32
  }
  func.func @transform_4(%arg0: i32) -> (i32, i32) {
    %c0_i32 = arith.constant 0 : i32
    %c0_i32_0 = arith.constant 0 : i32
    %c0_i32_1 = arith.constant 0 : i32
    return %c0_i32, %c0_i32_0 : i32, i32
  }
  func.func @transform_5(%arg0: i32) -> (i32, i32) {
    %c0_i32 = arith.constant 0 : i32
    %c0_i32_0 = arith.constant 0 : i32
    %c0_i32_1 = arith.constant 0 : i32
    return %c0_i32, %c0_i32_0 : i32, i32
  }
  func.func @transform_6(%arg0: i32) -> (i32, i32) {
    %c0_i32 = arith.constant 0 : i32
    %c0_i32_0 = arith.constant 0 : i32
    %c0_i32_1 = arith.constant 0 : i32
    return %c0_i32, %c0_i32_0 : i32, i32
  }
  func.func @transform_7(%arg0: i32) -> (i32, i32) {
    %c0_i32 = arith.constant 0 : i32
    %c0_i32_0 = arith.constant 0 : i32
    %c0_i32_1 = arith.constant 0 : i32
    return %c0_i32, %c0_i32_0 : i32, i32
  }
}

</mosaic_0001>

<llo_original>
// kernel: densenet_forward.25
$region0: #{densenet_forward.25}
  #allocation0 [shape = 'u32[]', space=smem, size = 0x4, offset = 0x4, fixed_abs, tag = 'smem constant byte address 0x4 - core index']
  #allocation1 [shape = 'u32[144,128]{1,0:T(1,128)}', space=vmem, size = 0x12000, scoped, tag = 'internal scratch']
  %s0 = inlined_call_operand.vmem [shape: f32[512,49], index: 0, kind: input, shape index: {}]
  %s1 = inlined_call_operand.vmem [shape: bf16[49,16], index: 1, kind: input, shape index: {}]
  %s2 = inlined_call_operand.vmem [shape: f32[1,16], index: 2, kind: input, shape index: {}]
  %s3 = inlined_call_operand.vmem [shape: f32[1,16], index: 3, kind: input, shape index: {}]
  %s4 = inlined_call_operand.vmem [shape: f32[512,16], index: 4, kind: output, shape index: {}]
  %s5 = sld [smem:[#allocation0]]
  $region49: #{densenet_forward.25} parent=0
    _
  %s7 = ssub.s32 1, %s5
  %s8 = scalar_select 0, %s7, %s5
  loop: start=0, step=1, limit=4
  $region2: #{densenet_forward.25} parent=0 // loop_pre_header
    _
  $region3: #{densenet_forward.25} parent=0 // loop_header
    %s10 = sphi 0, %s14
    %p11 = scmp.ge.s32.totalorder %s10, 4
    %s20 = sphi 0, %s22
    %s23 = sphi 0, %s20
    %s24 = sphi 0, %s23
    %s40 = sphi 0, %s24
    %s44 = sphi 0, %s44
    %s46 = sphi 0, %s44
    %s47 = sphi 0, %s46
    %s61 = sphi 0, %s47
    %s65 = sphi 0, %s65
    %s67 = sphi 0, %s65
    %s68 = sphi 0, %s67
    %s82 = sphi 0, %s68
    %s86 = sphi 0, %s86
    %s88 = sphi 0, %s86
    %s89 = sphi 0, %s88
    %s103 = sphi 0, %s89
    %s109 = sphi 0, %s111
    %s112 = sphi 0, %s109
    %s113 = sphi 0, %s112
    %s129 = sphi 0, %s113
  $region4: #{densenet_forward.25} parent=0 // loop_header_branch
    %13 = sbr.rel (%p11) target = $region8
  $region5: #{densenet_forward.25} parent=0 // loop_body
    %s15 = ssub.s32 %s10, 1
    %s16 = ssub.s32 %s10, 2
    %s17 = sadd.s32 %s10, 1
    %s18 = ssub.s32 %s10, %s17
    %p19 = scmp.eq.s32.totalorder %s18, 0
    %s21 = sadd.s32 %s20, 1
    %s22 = scalar_select %p19, %s20, %s21
    %p25 = pneg %p19
    %p26 = scmp.eq.s32.totalorder %s10, 1
    %p27 = por %p25, %p26
    %p28 = scmp.ne.s32.totalorder %s20, %s23
    %p29 = scmp.eq.s32.totalorder %s10, 0
    %p30 = por %p28, %p29
    %p31 = scmp.ne.s32.totalorder %s20, %s23
    %p32 = scmp.eq.s32.totalorder %s15, 1
    %p33 = por %p31, %p32
    %p34 = scmp.ne.s32.totalorder %s23, %s24
    %p35 = scmp.eq.s32.totalorder %s15, 0
    %p36 = por %p34, %p35
    %p37 = scmp.ne.s32.totalorder %s23, %s24
    %p38 = scmp.eq.s32.totalorder %s16, 1
    %p39 = por %p37, %p38
    %p41 = scmp.ne.s32.totalorder %s24, %s40
    %p42 = scmp.eq.s32.totalorder %s16, 0
    %p43 = por %p41, %p42
    %s45 = sadd.s32 %s44, 1
    %p48 = scmp.eq.s32.totalorder %s10, 1
    %p49 = scmp.ne.s32.totalorder %s44, %s46
    %p50 = scmp.eq.s32.totalorder %s10, 0
    %p51 = por %p49, %p50
    %p52 = scmp.ne.s32.totalorder %s44, %s46
    %p53 = scmp.eq.s32.totalorder %s15, 1
    %p54 = por %p52, %p53
    %p55 = scmp.ne.s32.totalorder %s46, %s47
    %p56 = scmp.eq.s32.totalorder %s15, 0
    %p57 = por %p55, %p56
    %p58 = scmp.ne.s32.totalorder %s46, %s47
    %p59 = scmp.eq.s32.totalorder %s16, 1
    %p60 = por %p58, %p59
    %p62 = scmp.ne.s32.totalorder %s47, %s61
    %p63 = scmp.eq.s32.totalorder %s16, 0
    %p64 = por %p62, %p63
    %s66 = sadd.s32 %s65, 1
    %p69 = scmp.eq.s32.totalorder %s10, 1
    %p70 = scmp.ne.s32.totalorder %s65, %s67
    %p71 = scmp.eq.s32.totalorder %s10, 0
    %p72 = por %p70, %p71
    %p73 = scmp.ne.s32.totalorder %s65, %s67
    %p74 = scmp.eq.s32.totalorder %s15, 1
    %p75 = por %p73, %p74
    %p76 = scmp.ne.s32.totalorder %s67, %s68
    %p77 = scmp.eq.s32.totalorder %s15, 0
    %p78 = por %p76, %p77
    %p79 = scmp.ne.s32.totalorder %s67, %s68
    %p80 = scmp.eq.s32.totalorder %s16, 1
    %p81 = por %p79, %p80
    %p83 = scmp.ne.s32.totalorder %s68, %s82
    %p84 = scmp.eq.s32.totalorder %s16, 0
    %p85 = por %p83, %p84
    %s87 = sadd.s32 %s86, 1
    %p90 = scmp.eq.s32.totalorder %s10, 1
    %p91 = scmp.ne.s32.totalorder %s86, %s88
    %p92 = scmp.eq.s32.totalorder %s10, 0
    %p93 = por %p91, %p92
    %p94 = scmp.ne.s32.totalorder %s86, %s88
    %p95 = scmp.eq.s32.totalorder %s15, 1
    %p96 = por %p94, %p95
    %p97 = scmp.ne.s32.totalorder %s88, %s89
    %p98 = scmp.eq.s32.totalorder %s15, 0
    %p99 = por %p97, %p98
    %p100 = scmp.ne.s32.totalorder %s88, %s89
    %p101 = scmp.eq.s32.totalorder %s16, 1
    %p102 = por %p100, %p101
    %p104 = scmp.ne.s32.totalorder %s89, %s103
    %p105 = scmp.eq.s32.totalorder %s16, 0
    %p106 = por %p104, %p105
    %s107 = ssub.s32 %s10, %s17
    %p108 = scmp.eq.s32.totalorder %s107, 0
    %s110 = sadd.s32 %s109, 1
    %s111 = scalar_select %p108, %s109, %s110
    %p114 = pneg %p108
    %p115 = scmp.eq.s32.totalorder %s10, 1
    %p116 = por %p114, %p115
    %p117 = scmp.ne.s32.totalorder %s109, %s112
    %p118 = scmp.eq.s32.totalorder %s10, 0
    %p119 = por %p117, %p118
    %p120 = scmp.ne.s32.totalorder %s109, %s112
    %p121 = scmp.eq.s32.totalorder %s15, 1
    %p122 = por %p120, %p121
    %p123 = scmp.ne.s32.totalorder %s112, %s113
    %p124 = scmp.eq.s32.totalorder %s15, 0
    %p125 = por %p123, %p124
    %p126 = scmp.ne.s32.totalorder %s112, %s113
    %p127 = scmp.eq.s32.totalorder %s16, 1
    %p128 = por %p126, %p127
    %p130 = scmp.ne.s32.totalorder %s113, %s129
    %p131 = scmp.eq.s32.totalorder %s16, 0
    %p132 = por %p130, %p131
    %p133 = scmp.le.s32.totalorder 1, %s10
    %p134 = scmp.lt.s32.totalorder %s10, 3
    %p135 = pnand %p133, %p134
    %p136 = pneg %p135
    // Predicated region
    $region9: #{densenet_forward.25} parent=5 // pred_check
      _
    $region10: #{densenet_forward.25} parent=5 // pred_check_branch
      %138 = sbr.rel (%p135) target = $region12
    $region11: #{densenet_forward.25} parent=5 // pred_region
      %s139 = ssub.s32 %s10, 1
      // Predicated region
      $region13: #{densenet_forward.25} parent=11 // pred_check
        %p140 = pneg %p57
      $region14: #{densenet_forward.25} parent=11 // pred_check_branch
        %142 = sbr.rel (%p140) target = $region16
      $region15: #{densenet_forward.25} parent=11 // pred_region
        _
      $region16: #{densenet_forward.25} parent=11 // pred_fallthru
        _
      // Predicated region
      $region17: #{densenet_forward.25} parent=11 // pred_check
        %p143 = pneg %p78
      $region18: #{densenet_forward.25} parent=11 // pred_check_branch
        %145 = sbr.rel (%p143) target = $region20
      $region19: #{densenet_forward.25} parent=11 // pred_region
        _
      $region20: #{densenet_forward.25} parent=11 // pred_fallthru
        _
      // Predicated region
      $region21: #{densenet_forward.25} parent=11 // pred_check
        %p146 = pneg %p99
      $region22: #{densenet_forward.25} parent=11 // pred_check_branch
        %148 = sbr.rel (%p146) target = $region24
      $region23: #{densenet_forward.25} parent=11 // pred_region
        _
      $region24: #{densenet_forward.25} parent=11 // pred_fallthru
        _
    $region12: #{densenet_forward.25} parent=5 // pred_fallthru
      _
    %p149 = scmp.lt.s32.totalorder %s10, 2
    // Predicated region
    $region25: #{densenet_forward.25} parent=5 // pred_check
      %p150 = pneg %p149
    $region26: #{densenet_forward.25} parent=5 // pred_check_branch
      %152 = sbr.rel (%p150) target = $region28
    $region27: #{densenet_forward.25} parent=5 // pred_region
      // Predicated region
      $region29: #{densenet_forward.25} parent=27 // pred_check
        %p153 = pneg %p30
      $region30: #{densenet_forward.25} parent=27 // pred_check_branch
        %155 = sbr.rel (%p153) target = $region32
      $region31: #{densenet_forward.25} parent=27 // pred_region
        %s156 = smul.u32 32, %s10
        %p157 = scmp.lt.s32.totalorder %s156, 63
        %s158 = scalar_select %p157, %s156, 63
        %s159 = smul.addr %s158, 8
        %s160 = scalar_lea.vmem %s0, %s159
        %s161 = smul.u32 32, %s10
      $region32: #{densenet_forward.25} parent=27 // pred_fallthru
        _
    $region28: #{densenet_forward.25} parent=5 // pred_fallthru
      _
    %p162 = scmp.le.s32.totalorder 1, %s10
    %p163 = scmp.lt.s32.totalorder %s10, 3
    %p164 = pnand %p162, %p163
    %p165 = pneg %p164
    // Predicated region
    $region33: #{densenet_forward.25} parent=5 // pred_check
      _
    $region34: #{densenet_forward.25} parent=5 // pred_check_branch
      %167 = sbr.rel (%p164) target = $region36
    $region35: #{densenet_forward.25} parent=5 // pred_region
      %s168 = ssub.s32 %s10, 1
      %s169 = smul.u32 32, %s15
      %p170 = scmp.lt.s32.totalorder %s169, 63
      %s171 = scalar_select %p170, %s169, 63
      %s172 = smul.addr %s171, 8
      %s173 = scalar_lea.vmem %s0, %s172
      %p174 = pneg %p36
      %p175 = pneg %p33
      %p176 = pneg %p57
      %p177 = pneg %p54
      %p178 = pneg %p78
      %p179 = pneg %p75
      %p180 = pneg %p99
      %p181 = pneg %p96
      %p182 = pneg %p125
      %p183 = pneg %p122
      %s184 = smul.u32 32, %s15
      %p185 = scmp.lt.s32.totalorder %s184, 63
      %s186 = scalar_select %p185, %s184, 63
      %s187 = smul.addr %s186, 8
      %s188 = scalar_lea.vmem %s4, %s187
      %s189 = smul.u32 32, %s15
      %p190 = scmp.lt.s32.totalorder %s189, 63
      %s191 = scalar_select %p190, %s189, 63
      %s192 = smul.addr %s191, 8
      %s193 = scalar_lea.vmem %s0, %s192
      %s194 = smul.u32 32, %s15
      %s195 = smul.u32 32, %s15
      %p196 = scmp.lt.s32.totalorder %s195, 63
      %s197 = scalar_select %p196, %s195, 63
      %s198 = smul.addr %s197, 8
      %s199 = scalar_lea.vmem %s4, %s198
      %s200 = smul.u32 32, %s15
      %v202 = vld [vmem:[%s193] sm:$0xff]
      %v203 = vld [vmem:[%s193 + $0x8] sm:$0xff]
      %v204 = vld [vmem:[%s193 + $0x10] sm:$0xff]
      %v205 = vld [vmem:[%s193 + $0x18] sm:$0xff]
      %v206 = vld [vmem:[%s193 + $0x20] sm:$0xff]
      %v207 = vld [vmem:[%s193 + $0x28] sm:$0xff]
      %v208 = vld [vmem:[%s193 + $0x30] sm:$0xff]
      %v209 = vld [vmem:[%s193 + $0x38] sm:$0xff]
      %v210 = vld [vmem:[%s193 + $0x40] sm:$0xff]
      %v211 = vld [vmem:[%s193 + $0x48] sm:$0xff]
      %v212 = vld [vmem:[%s193 + $0x50] sm:$0xff]
      %v213 = vld [vmem:[%s193 + $0x58] sm:$0xff]
      %v214 = vld [vmem:[%s193 + $0x60] sm:$0xff]
      %v215 = vld [vmem:[%s193 + $0x68] sm:$0xff]
      %v216 = vld [vmem:[%s193 + $0x70] sm:$0xff]
      %v217 = vld [vmem:[%s193 + $0x78] sm:$0xff]
      %v218 = vld [vmem:[%s193 + $0x80] sm:$0xff]
      %v219 = vld [vmem:[%s193 + $0x88] sm:$0xff]
      %v220 = vld [vmem:[%s193 + $0x90] sm:$0xff]
      %v221 = vld [vmem:[%s193 + $0x98] sm:$0xff]
      %v222 = vld [vmem:[%s193 + $0xa0] sm:$0xff]
      %v223 = vld [vmem:[%s193 + $0xa8] sm:$0xff]
      %v224 = vld [vmem:[%s193 + $0xb0] sm:$0xff]
      %v225 = vld [vmem:[%s193 + $0xb8] sm:$0xff]
      %v226 = vld [vmem:[%s193 + $0xc0] sm:$0xff]
      %v227 = vld [vmem:[%s193 + $0xc8] sm:$0xff]
      %v228 = vld [vmem:[%s193 + $0xd0] sm:$0xff]
      %v229 = vld [vmem:[%s193 + $0xd8] sm:$0xff]
      %v230 = vld [vmem:[%s193 + $0xe0] sm:$0xff]
      %v231 = vld [vmem:[%s193 + $0xe8] sm:$0xff]
      %v232 = vld [vmem:[%s193 + $0xf0] sm:$0xff]
      %v233 = vld [vmem:[%s193 + $0xf8] sm:$0xff]
      %v234 = vpack.c.bf16 %v203, %v202
      %v235 = vpack.c.bf16 %v205, %v204
      %v236 = vpack.c.bf16 %v207, %v206
      %v237 = vpack.c.bf16 %v209, %v208
      %v238 = vpack.c.bf16 %v211, %v210
      %v239 = vpack.c.bf16 %v213, %v212
      %v240 = vpack.c.bf16 %v215, %v214
      %v241 = vpack.c.bf16 %v217, %v216
      %v242 = vpack.c.bf16 %v219, %v218
      %v243 = vpack.c.bf16 %v221, %v220
      %v244 = vpack.c.bf16 %v223, %v222
      %v245 = vpack.c.bf16 %v225, %v224
      %v246 = vpack.c.bf16 %v227, %v226
      %v247 = vpack.c.bf16 %v229, %v228
      %v248 = vpack.c.bf16 %v231, %v230
      %v249 = vpack.c.bf16 %v233, %v232
      %v250 = vld [vmem:[%s1] sm:$0xf]
      %v251 = vld [vmem:[%s1 + $0x4] sm:$0xf]
      %v252 = vld [vmem:[%s1 + $0x8] sm:$0xf]
      %v253 = vld [vmem:[%s1 + $0xc] sm:$0xf]
      %v254 = vld [vmem:[%s1 + $0x10] sm:$0xf]
      %v255 = vld [vmem:[%s1 + $0x14] sm:$0xf]
      %v256 = vld [vmem:[%s1 + $0x18] sm:$0x1]
      %v264 = vunpack.c.l.b16 %v250
      %v265 = vunpack.c.l.b16 %v251
      %v266 = vunpack.c.l.b16 %v252
      %v267 = vunpack.c.l.b16 %v253
      %v268 = vunpack.c.l.b16 %v254
      %v269 = vunpack.c.l.b16 %v255
      %v270 = vunpack.c.l.b16 %v256
      %v271 = vpack.c.b16 %v265, %v264
      %v272 = vpack.c.b16 %v267, %v266
      %v273 = vpack.c.b16 %v269, %v268
      %v274 = vpack.c.b16 %v270, %v270
      %vm278 = vcmask 400384
      %v280 = vsel %vm278, %v234, 0
      %v283 = vsel %vm278, %v235, 0
      %v286 = vsel %vm278, %v236, 0
      %v289 = vsel %vm278, %v237, 0
      %v292 = vsel %vm278, %v238, 0
      %v295 = vsel %vm278, %v239, 0
      %v298 = vsel %vm278, %v240, 0
      %v301 = vsel %vm278, %v241, 0
      %v304 = vsel %vm278, %v242, 0
      %v307 = vsel %vm278, %v243, 0
      %v310 = vsel %vm278, %v244, 0
      %v313 = vsel %vm278, %v245, 0
      %v316 = vsel %vm278, %v246, 0
      %v319 = vsel %vm278, %v247, 0
      %v322 = vsel %vm278, %v248, 0
      %v325 = vsel %vm278, %v249, 0
      %vm327 = vcmask 1040384
      %v328 = vsel 0, 4294967295, 65535
      %v329 = vsel %vm327, %v328, 0
      %v331 = vand.u32 %v274, %v329
      %333 = vmatprep.subr.bf16.mxu0 0
      %334 = vmatpush1.bf16.msra.mxu0 %v271
      %335 = vmatprep.subr.bf16.mxu0 0
      %336 = vmatpush1.bf16.msra.mxu0 %v272
      %337 = vmatprep.subr.bf16.mxu0 0
      %338 = vmatpush1.bf16.msra.mxu0 %v273
      %339 = vmatprep.subr.bf16.mxu0 0
      %340 = vmatpush1.bf16.msra.mxu0 %v331
      %341 = vmatprep.subr.bf16.mxu0 0
      %342 = vmatpush1.bf16.msra.mxu0 0
      %343 = vmatprep.subr.bf16.mxu0 0
      %344 = vmatpush1.bf16.msra.mxu0 0
      %345 = vmatprep.subr.bf16.mxu0 0
      %346 = vmatpush1.bf16.msra.mxu0 0
      %347 = vmatprep.subr.bf16.mxu0 0
      %348 = vmatpush1.bf16.msra.mxu0 0
      %349 = vmatprep.subr.bf16.mxu0 0
      %350 = vmatpush1.bf16.msra.mxu0 0
      %351 = vmatprep.subr.bf16.mxu0 0
      %352 = vmatpush1.bf16.msra.mxu0 0
      %353 = vmatprep.subr.bf16.mxu0 0
      %354 = vmatpush1.bf16.msra.mxu0 0
      %355 = vmatprep.subr.bf16.mxu0 0
      %356 = vmatpush1.bf16.msra.mxu0 0
      %357 = vmatprep.subr.bf16.mxu0 0
      %358 = vmatpush1.bf16.msra.mxu0 0
      %359 = vmatprep.subr.bf16.mxu0 0
      %360 = vmatpush1.bf16.msra.mxu0 0
      %361 = vmatprep.subr.bf16.mxu0 0
      %362 = vmatpush1.bf16.msra.mxu0 0
      %363 = vmatprep.subr.bf16.mxu0 0
      %364 = vmatpush1.bf16.msra.mxu0 0
      %365 = vmatprep.mubr.bf16.mxu0 0
      %366 = vmatmul.mubr.bf16.gmra.mrb[0].mxu0 %v280
      %v367 = vpop.f32.mrb[0].mxu0
      %v368 = vadd.f32 0.0, %v367
      %v369 = vpop.f32.mrb[0].mxu0
      %v370 = vpop.f32.mrb[0].mxu0
      %v371 = vadd.f32 0.0, %v370
      %v372 = vpop.f32.mrb[0].mxu0
      %373 = vmatprep.mubr.bf16.mxu0 0
      %374 = vmatmul.mubr.bf16.gmra.mrb[0].mxu0 %v283
      %v375 = vpop.f32.mrb[0].mxu0
      %v376 = vadd.f32 0.0, %v375
      %v377 = vpop.f32.mrb[0].mxu0
      %v378 = vpop.f32.mrb[0].mxu0
      %v379 = vadd.f32 0.0, %v378
      %v380 = vpop.f32.mrb[0].mxu0
      %381 = vmatprep.mubr.bf16.mxu0 0
      %382 = vmatmul.mubr.bf16.gmra.mrb[0].mxu0 %v286
      %v383 = vpop.f32.mrb[0].mxu0
      %v384 = vadd.f32 0.0, %v383
      %v385 = vpop.f32.mrb[0].mxu0
      %v386 = vpop.f32.mrb[0].mxu0
      %v387 = vadd.f32 0.0, %v386
      %v388 = vpop.f32.mrb[0].mxu0
      %389 = vmatprep.mubr.bf16.mxu0 0
      %390 = vmatmul.mubr.bf16.gmra.mrb[0].mxu0 %v289
      %v391 = vpop.f32.mrb[0].mxu0
      %v392 = vadd.f32 0.0, %v391
      %v393 = vpop.f32.mrb[0].mxu0
      %v394 = vpop.f32.mrb[0].mxu0
      %v395 = vadd.f32 0.0, %v394
      %v396 = vpop.f32.mrb[0].mxu0
      %397 = vmatprep.mubr.bf16.mxu0 0
      %398 = vmatmul.mubr.bf16.gmra.mrb[0].mxu0 %v292
      %v399 = vpop.f32.mrb[0].mxu0
      %v400 = vadd.f32 0.0, %v399
      %v401 = vpop.f32.mrb[0].mxu0
      %v402 = vpop.f32.mrb[0].mxu0
      %v403 = vadd.f32 0.0, %v402
      %v404 = vpop.f32.mrb[0].mxu0
      %405 = vmatprep.mubr.bf16.mxu0 0
      %406 = vmatmul.mubr.bf16.gmra.mrb[0].mxu0 %v295
      %v407 = vpop.f32.mrb[0].mxu0
      %v408 = vadd.f32 0.0, %v407
      %v409 = vpop.f32.mrb[0].mxu0
      %v410 = vpop.f32.mrb[0].mxu0
      %v411 = vadd.f32 0.0, %v410
      %v412 = vpop.f32.mrb[0].mxu0
      %413 = vmatprep.mubr.bf16.mxu0 0
      %414 = vmatmul.mubr.bf16.gmra.mrb[0].mxu0 %v298
      %v415 = vpop.f32.mrb[0].mxu0
      %v416 = vadd.f32 0.0, %v415
      %v417 = vpop.f32.mrb[0].mxu0
      %v418 = vpop.f32.mrb[0].mxu0
      %v419 = vadd.f32 0.0, %v418
      %v420 = vpop.f32.mrb[0].mxu0
      %421 = vmatprep.mubr.bf16.mxu0 0
      %422 = vmatmul.mubr.bf16.gmra.mrb[0].mxu0 %v301
      %v423 = vpop.f32.mrb[0].mxu0
      %v424 = vadd.f32 0.0, %v423
      %v425 = vpop.f32.mrb[0].mxu0
      %v426 = vpop.f32.mrb[0].mxu0
      %v427 = vadd.f32 0.0, %v426
      %v428 = vpop.f32.mrb[0].mxu0
      %429 = vmatprep.mubr.bf16.mxu0 0
      %430 = vmatmul.mubr.bf16.gmra.mrb[0].mxu0 %v304
      %v431 = vpop.f32.mrb[0].mxu0
      %v432 = vadd.f32 0.0, %v431
      %v433 = vpop.f32.mrb[0].mxu0
      %v434 = vpop.f32.mrb[0].mxu0
      %v435 = vadd.f32 0.0, %v434
      %v436 = vpop.f32.mrb[0].mxu0
      %437 = vmatprep.mubr.bf16.mxu0 0
      %438 = vmatmul.mubr.bf16.gmra.mrb[0].mxu0 %v307
      %v439 = vpop.f32.mrb[0].mxu0
      %v440 = vadd.f32 0.0, %v439
      %v441 = vpop.f32.mrb[0].mxu0
      %v442 = vpop.f32.mrb[0].mxu0
      %v443 = vadd.f32 0.0, %v442
      %v444 = vpop.f32.mrb[0].mxu0
      %445 = vmatprep.mubr.bf16.mxu0 0
      %446 = vmatmul.mubr.bf16.gmra.mrb[0].mxu0 %v310
      %v447 = vpop.f32.mrb[0].mxu0
      %v448 = vadd.f32 0.0, %v447
      %v449 = vpop.f32.mrb[0].mxu0
      %v450 = vpop.f32.mrb[0].mxu0
      %v451 = vadd.f32 0.0, %v450
      %v452 = vpop.f32.mrb[0].mxu0
      %453 = vmatprep.mubr.bf16.mxu0 0
      %454 = vmatmul.mubr.bf16.gmra.mrb[0].mxu0 %v313
      %v455 = vpop.f32.mrb[0].mxu0
      %v456 = vadd.f32 0.0, %v455
      %v457 = vpop.f32.mrb[0].mxu0
      %v458 = vpop.f32.mrb[0].mxu0
      %v459 = vadd.f32 0.0, %v458
      %v460 = vpop.f32.mrb[0].mxu0
      %461 = vmatprep.mubr.bf16.mxu0 0
      %462 = vmatmul.mubr.bf16.gmra.mrb[0].mxu0 %v316
      %v463 = vpop.f32.mrb[0].mxu0
      %v464 = vadd.f32 0.0, %v463
      %v465 = vpop.f32.mrb[0].mxu0
      %v466 = vpop.f32.mrb[0].mxu0
      %v467 = vadd.f32 0.0, %v466
      %v468 = vpop.f32.mrb[0].mxu0
      %469 = vmatprep.mubr.bf16.mxu0 0
      %470 = vmatmul.mubr.bf16.gmra.mrb[0].mxu0 %v319
      %v471 = vpop.f32.mrb[0].mxu0
      %v472 = vadd.f32 0.0, %v471
      %v473 = vpop.f32.mrb[0].mxu0
      %v474 = vpop.f32.mrb[0].mxu0
      %v475 = vadd.f32 0.0, %v474
      %v476 = vpop.f32.mrb[0].mxu0
      %477 = vmatprep.mubr.bf16.mxu0 0
      %478 = vmatmul.mubr.bf16.gmra.mrb[0].mxu0 %v322
      %v479 = vpop.f32.mrb[0].mxu0
      %v480 = vadd.f32 0.0, %v479
      %v481 = vpop.f32.mrb[0].mxu0
      %v482 = vpop.f32.mrb[0].mxu0
      %v483 = vadd.f32 0.0, %v482
      %v484 = vpop.f32.mrb[0].mxu0
      %485 = vmatprep.mubr.bf16.mxu0 0
      %486 = vmatmul.mubr.bf16.gmra.mrb[0].mxu0 %v325
      %v487 = vpop.f32.mrb[0].mxu0
      %v488 = vadd.f32 0.0, %v487
      %v489 = vpop.f32.mrb[0].mxu0
      %v490 = vpop.f32.mrb[0].mxu0
      %v491 = vadd.f32 0.0, %v490
      %v492 = vpop.f32.mrb[0].mxu0
      %493 = vdwg.mxu0
      %v494 = vld [vmem:[%s2] sm:$0x1]
      %v496 = vlaneseq
      %v497 = vshrl.u32 %v496, 7
      %v498 = vsub.s32 0, %v497
      %v499 = vrot.slane %v494, %v498
      %v501 = vmul.f32 %v368, %v499
      %v502 = vmul.f32 %v371, %v499
      %v503 = vmul.f32 %v376, %v499
      %v504 = vmul.f32 %v379, %v499
      %v505 = vmul.f32 %v384, %v499
      %v506 = vmul.f32 %v387, %v499
      %v507 = vmul.f32 %v392, %v499
      %v508 = vmul.f32 %v395, %v499
      %v509 = vmul.f32 %v400, %v499
      %v510 = vmul.f32 %v403, %v499
      %v511 = vmul.f32 %v408, %v499
      %v512 = vmul.f32 %v411, %v499
      %v513 = vmul.f32 %v416, %v499
      %v514 = vmul.f32 %v419, %v499
      %v515 = vmul.f32 %v424, %v499
      %v516 = vmul.f32 %v427, %v499
      %v517 = vmul.f32 %v432, %v499
      %v518 = vmul.f32 %v435, %v499
      %v519 = vmul.f32 %v440, %v499
      %v520 = vmul.f32 %v443, %v499
      %v521 = vmul.f32 %v448, %v499
      %v522 = vmul.f32 %v451, %v499
      %v523 = vmul.f32 %v456, %v499
      %v524 = vmul.f32 %v459, %v499
      %v525 = vmul.f32 %v464, %v499
      %v526 = vmul.f32 %v467, %v499
      %v527 = vmul.f32 %v472, %v499
      %v528 = vmul.f32 %v475, %v499
      %v529 = vmul.f32 %v480, %v499
      %v530 = vmul.f32 %v483, %v499
      %v531 = vmul.f32 %v488, %v499
      %v532 = vmul.f32 %v491, %v499
      %v533 = vld [vmem:[%s3] sm:$0x1]
      %v535 = vlaneseq
      %v536 = vshrl.u32 %v535, 7
      %v537 = vsub.s32 0, %v536
      %v538 = vrot.slane %v533, %v537
      %v540 = vadd.f32 %v501, %v538
      %v541 = vadd.f32 %v502, %v538
      %v542 = vadd.f32 %v503, %v538
      %v543 = vadd.f32 %v504, %v538
      %v544 = vadd.f32 %v505, %v538
      %v545 = vadd.f32 %v506, %v538
      %v546 = vadd.f32 %v507, %v538
      %v547 = vadd.f32 %v508, %v538
      %v548 = vadd.f32 %v509, %v538
      %v549 = vadd.f32 %v510, %v538
      %v550 = vadd.f32 %v511, %v538
      %v551 = vadd.f32 %v512, %v538
      %v552 = vadd.f32 %v513, %v538
      %v553 = vadd.f32 %v514, %v538
      %v554 = vadd.f32 %v515, %v538
      %v555 = vadd.f32 %v516, %v538
      %v556 = vadd.f32 %v517, %v538
      %v557 = vadd.f32 %v518, %v538
      %v558 = vadd.f32 %v519, %v538
      %v559 = vadd.f32 %v520, %v538
      %v560 = vadd.f32 %v521, %v538
      %v561 = vadd.f32 %v522, %v538
      %v562 = vadd.f32 %v523, %v538
      %v563 = vadd.f32 %v524, %v538
      %v564 = vadd.f32 %v525, %v538
      %v565 = vadd.f32 %v526, %v538
      %v566 = vadd.f32 %v527, %v538
      %v567 = vadd.f32 %v528, %v538
      %v568 = vadd.f32 %v529, %v538
      %v569 = vadd.f32 %v530, %v538
      %v570 = vadd.f32 %v531, %v538
      %v571 = vadd.f32 %v532, %v538
      %v572 = vmax.f32 %v540, 0.0
      %v573 = vmax.f32 %v541, 0.0
      %v574 = vmax.f32 %v542, 0.0
      %v575 = vmax.f32 %v543, 0.0
      %v576 = vmax.f32 %v544, 0.0
      %v577 = vmax.f32 %v545, 0.0
      %v578 = vmax.f32 %v546, 0.0
      %v579 = vmax.f32 %v547, 0.0
      %v580 = vmax.f32 %v548, 0.0
      %v581 = vmax.f32 %v549, 0.0
      %v582 = vmax.f32 %v550, 0.0
      %v583 = vmax.f32 %v551, 0.0
      %v584 = vmax.f32 %v552, 0.0
      %v585 = vmax.f32 %v553, 0.0
      %v586 = vmax.f32 %v554, 0.0
      %v587 = vmax.f32 %v555, 0.0
      %v588 = vmax.f32 %v556, 0.0
      %v589 = vmax.f32 %v557, 0.0
      %v590 = vmax.f32 %v558, 0.0
      %v591 = vmax.f32 %v559, 0.0
      %v592 = vmax.f32 %v560, 0.0
      %v593 = vmax.f32 %v561, 0.0
      %v594 = vmax.f32 %v562, 0.0
      %v595 = vmax.f32 %v563, 0.0
      %v596 = vmax.f32 %v564, 0.0
      %v597 = vmax.f32 %v565, 0.0
      %v598 = vmax.f32 %v566, 0.0
      %v599 = vmax.f32 %v567, 0.0
      %v600 = vmax.f32 %v568, 0.0
      %v601 = vmax.f32 %v569, 0.0
      %v602 = vmax.f32 %v570, 0.0
      %v603 = vmax.f32 %v571, 0.0
      %vm604 = vcmask 130048
      %605 = vst.msk [vmem:[%s199] sm:$0xff] %vm604, %v572
      %606 = vst.msk [vmem:[%s199 + $0x8] sm:$0xff] %vm604, %v573
      %607 = vst.msk [vmem:[%s199 + $0x10] sm:$0xff] %vm604, %v574
      %608 = vst.msk [vmem:[%s199 + $0x18] sm:$0xff] %vm604, %v575
      %609 = vst.msk [vmem:[%s199 + $0x20] sm:$0xff] %vm604, %v576
      %610 = vst.msk [vmem:[%s199 + $0x28] sm:$0xff] %vm604, %v577
      %611 = vst.msk [vmem:[%s199 + $0x30] sm:$0xff] %vm604, %v578
      %612 = vst.msk [vmem:[%s199 + $0x38] sm:$0xff] %vm604, %v579
      %613 = vst.msk [vmem:[%s199 + $0x40] sm:$0xff] %vm604, %v580
      %614 = vst.msk [vmem:[%s199 + $0x48] sm:$0xff] %vm604, %v581
      %615 = vst.msk [vmem:[%s199 + $0x50] sm:$0xff] %vm604, %v582
      %616 = vst.msk [vmem:[%s199 + $0x58] sm:$0xff] %vm604, %v583
      %617 = vst.msk [vmem:[%s199 + $0x60] sm:$0xff] %vm604, %v584
      %618 = vst.msk [vmem:[%s199 + $0x68] sm:$0xff] %vm604, %v585
      %619 = vst.msk [vmem:[%s199 + $0x70] sm:$0xff] %vm604, %v586
      %620 = vst.msk [vmem:[%s199 + $0x78] sm:$0xff] %vm604, %v587
      %621 = vst.msk [vmem:[%s199 + $0x80] sm:$0xff] %vm604, %v588
      %622 = vst.msk [vmem:[%s199 + $0x88] sm:$0xff] %vm604, %v589
      %623 = vst.msk [vmem:[%s199 + $0x90] sm:$0xff] %vm604, %v590
      %624 = vst.msk [vmem:[%s199 + $0x98] sm:$0xff] %vm604, %v591
      %625 = vst.msk [vmem:[%s199 + $0xa0] sm:$0xff] %vm604, %v592
      %626 = vst.msk [vmem:[%s199 + $0xa8] sm:$0xff] %vm604, %v593
      %627 = vst.msk [vmem:[%s199 + $0xb0] sm:$0xff] %vm604, %v594
      %628 = vst.msk [vmem:[%s199 + $0xb8] sm:$0xff] %vm604, %v595
      %629 = vst.msk [vmem:[%s199 + $0xc0] sm:$0xff] %vm604, %v596
      %630 = vst.msk [vmem:[%s199 + $0xc8] sm:$0xff] %vm604, %v597
      %631 = vst.msk [vmem:[%s199 + $0xd0] sm:$0xff] %vm604, %v598
      %632 = vst.msk [vmem:[%s199 + $0xd8] sm:$0xff] %vm604, %v599
      %633 = vst.msk [vmem:[%s199 + $0xe0] sm:$0xff] %vm604, %v600
      %634 = vst.msk [vmem:[%s199 + $0xe8] sm:$0xff] %vm604, %v601
      %635 = vst.msk [vmem:[%s199 + $0xf0] sm:$0xff] %vm604, %v602
      %636 = vst.msk [vmem:[%s199 + $0xf8] sm:$0xff] %vm604, %v603
      %s637 = smul.u32 32, %s15
      %p638 = scmp.lt.s32.totalorder %s637, 63
      %s639 = scalar_select %p638, %s637, 63
      %s640 = smul.addr %s639, 8
      %s641 = scalar_lea.vmem %s4, %s640
      // Predicated region
      $region37: #{densenet_forward.25} parent=35 // pred_check
        %p642 = pneg %p122
      $region38: #{densenet_forward.25} parent=35 // pred_check_branch
        %644 = sbr.rel (%p642) target = $region40
      $region39: #{densenet_forward.25} parent=35 // pred_region
        %s645 = smul.u32 32, %s15
      $region40: #{densenet_forward.25} parent=35 // pred_fallthru
        _
    $region36: #{densenet_forward.25} parent=5 // pred_fallthru
      _
    %p646 = scmp.le.s32.totalorder 2, %s10
    // Predicated region
    $region41: #{densenet_forward.25} parent=5 // pred_check
      %p647 = pneg %p646
    $region42: #{densenet_forward.25} parent=5 // pred_check_branch
      %649 = sbr.rel (%p647) target = $region44
    $region43: #{densenet_forward.25} parent=5 // pred_region
      %s650 = ssub.s32 %s10, 2
      // Predicated region
      $region45: #{densenet_forward.25} parent=43 // pred_check
        %p651 = pneg %p128
      $region46: #{densenet_forward.25} parent=43 // pred_check_branch
        %653 = sbr.rel (%p651) target = $region48
      $region47: #{densenet_forward.25} parent=43 // pred_region
        %s654 = smul.u32 32, %s16
        %p655 = scmp.lt.s32.totalorder %s654, 63
        %s656 = scalar_select %p655, %s654, 63
        %s657 = smul.addr %s656, 8
        %s658 = scalar_lea.vmem %s4, %s657
      $region48: #{densenet_forward.25} parent=43 // pred_fallthru
        _
    $region44: #{densenet_forward.25} parent=5 // pred_fallthru
      _
  $region6: #{densenet_forward.25} parent=0 // loop_footer
    %s14 = sadd.s32 1, %s10
  $region7: #{densenet_forward.25} parent=0 // loop_footer_branch
    %9 = sbr.rel target = $region3
  $region8: #{densenet_forward.25} parent=0 // loop_exit
    _

// kernel: densenet_forward.26
$region0: #{densenet_forward.26}
  #allocation0 [shape = 'u32[]', space=smem, size = 0x4, offset = 0x4, fixed_abs, tag = 'smem constant byte address 0x4 - core index']
  #allocation1 [shape = 'u32[144,128]{1,0:T(1,128)}', space=vmem, size = 0x12000, scoped, tag = 'internal scratch']
  %s0 = inlined_call_operand.vmem [shape: f32[2,9,9,16], index: 0, kind: input, shape index: {}]
  %s1 = inlined_call_operand.vmem [shape: f32[2,9,9,16], index: 1, kind: input, shape index: {}]
  %s2 = inlined_call_operand.vmem [shape: f32[2,9,9,16], index: 2, kind: input, shape index: {}]
  %s3 = inlined_call_operand.vmem [shape: f32[2,9,9,16], index: 3, kind: input, shape index: {}]
  %s4 = inlined_call_operand.vmem [shape: f32[2,8,8,16], index: 4, kind: output, shape index: {}]
  %s5 = sld [smem:[#allocation0]]
  $region49: #{densenet_forward.26} parent=0
    _
  %s7 = ssub.s32 1, %s5
  %s8 = scalar_select 0, %s7, %s5
  loop: start=0, step=1, limit=4
  $region2: #{densenet_forward.26} parent=0 // loop_pre_header
    _
  $region3: #{densenet_forward.26} parent=0 // loop_header
    %s10 = sphi 0, %s14
    %p11 = scmp.ge.s32.totalorder %s10, 4
    %s20 = sphi 0, %s22
    %s23 = sphi 0, %s20
    %s24 = sphi 0, %s23
    %s40 = sphi 0, %s24
    %s46 = sphi 0, %s48
    %s49 = sphi 0, %s46
    %s50 = sphi 0, %s49
    %s66 = sphi 0, %s50
    %s72 = sphi 0, %s74
    %s75 = sphi 0, %s72
    %s76 = sphi 0, %s75
    %s92 = sphi 0, %s76
    %s98 = sphi 0, %s100
    %s101 = sphi 0, %s98
    %s102 = sphi 0, %s101
    %s118 = sphi 0, %s102
    %s124 = sphi 0, %s126
    %s127 = sphi 0, %s124
    %s128 = sphi 0, %s127
    %s144 = sphi 0, %s128
  $region4: #{densenet_forward.26} parent=0 // loop_header_branch
    %13 = sbr.rel (%p11) target = $region8
  $region5: #{densenet_forward.26} parent=0 // loop_body
    %s15 = ssub.s32 %s10, 1
    %s16 = ssub.s32 %s10, 2
    %s17 = sadd.s32 %s10, 1
    %s18 = ssub.s32 %s10, %s17
    %p19 = scmp.eq.s32.totalorder %s18, 0
    %s21 = sadd.s32 %s20, 1
    %s22 = scalar_select %p19, %s20, %s21
    %p25 = pneg %p19
    %p26 = scmp.eq.s32.totalorder %s10, 1
    %p27 = por %p25, %p26
    %p28 = scmp.ne.s32.totalorder %s20, %s23
    %p29 = scmp.eq.s32.totalorder %s10, 0
    %p30 = por %p28, %p29
    %p31 = scmp.ne.s32.totalorder %s20, %s23
    %p32 = scmp.eq.s32.totalorder %s15, 1
    %p33 = por %p31, %p32
    %p34 = scmp.ne.s32.totalorder %s23, %s24
    %p35 = scmp.eq.s32.totalorder %s15, 0
    %p36 = por %p34, %p35
    %p37 = scmp.ne.s32.totalorder %s23, %s24
    %p38 = scmp.eq.s32.totalorder %s16, 1
    %p39 = por %p37, %p38
    %p41 = scmp.ne.s32.totalorder %s24, %s40
    %p42 = scmp.eq.s32.totalorder %s16, 0
    %p43 = por %p41, %p42
    %s44 = ssub.s32 %s10, %s17
    %p45 = scmp.eq.s32.totalorder %s44, 0
    %s47 = sadd.s32 %s46, 1
    %s48 = scalar_select %p45, %s46, %s47
    %p51 = pneg %p45
    %p52 = scmp.eq.s32.totalorder %s10, 1
    %p53 = por %p51, %p52
    %p54 = scmp.ne.s32.totalorder %s46, %s49
    %p55 = scmp.eq.s32.totalorder %s10, 0
    %p56 = por %p54, %p55
    %p57 = scmp.ne.s32.totalorder %s46, %s49
    %p58 = scmp.eq.s32.totalorder %s15, 1
    %p59 = por %p57, %p58
    %p60 = scmp.ne.s32.totalorder %s49, %s50
    %p61 = scmp.eq.s32.totalorder %s15, 0
    %p62 = por %p60, %p61
    %p63 = scmp.ne.s32.totalorder %s49, %s50
    %p64 = scmp.eq.s32.totalorder %s16, 1
    %p65 = por %p63, %p64
    %p67 = scmp.ne.s32.totalorder %s50, %s66
    %p68 = scmp.eq.s32.totalorder %s16, 0
    %p69 = por %p67, %p68
    %s70 = ssub.s32 %s10, %s17
    %p71 = scmp.eq.s32.totalorder %s70, 0
    %s73 = sadd.s32 %s72, 1
    %s74 = scalar_select %p71, %s72, %s73
    %p77 = pneg %p71
    %p78 = scmp.eq.s32.totalorder %s10, 1
    %p79 = por %p77, %p78
    %p80 = scmp.ne.s32.totalorder %s72, %s75
    %p81 = scmp.eq.s32.totalorder %s10, 0
    %p82 = por %p80, %p81
    %p83 = scmp.ne.s32.totalorder %s72, %s75
    %p84 = scmp.eq.s32.totalorder %s15, 1
    %p85 = por %p83, %p84
    %p86 = scmp.ne.s32.totalorder %s75, %s76
    %p87 = scmp.eq.s32.totalorder %s15, 0
    %p88 = por %p86, %p87
    %p89 = scmp.ne.s32.totalorder %s75, %s76
    %p90 = scmp.eq.s32.totalorder %s16, 1
    %p91 = por %p89, %p90
    %p93 = scmp.ne.s32.totalorder %s76, %s92
    %p94 = scmp.eq.s32.totalorder %s16, 0
    %p95 = por %p93, %p94
    %s96 = ssub.s32 %s10, %s17
    %p97 = scmp.eq.s32.totalorder %s96, 0
    %s99 = sadd.s32 %s98, 1
    %s100 = scalar_select %p97, %s98, %s99
    %p103 = pneg %p97
    %p104 = scmp.eq.s32.totalorder %s10, 1
    %p105 = por %p103, %p104
    %p106 = scmp.ne.s32.totalorder %s98, %s101
    %p107 = scmp.eq.s32.totalorder %s10, 0
    %p108 = por %p106, %p107
    %p109 = scmp.ne.s32.totalorder %s98, %s101
    %p110 = scmp.eq.s32.totalorder %s15, 1
    %p111 = por %p109, %p110
    %p112 = scmp.ne.s32.totalorder %s101, %s102
    %p113 = scmp.eq.s32.totalorder %s15, 0
    %p114 = por %p112, %p113
    %p115 = scmp.ne.s32.totalorder %s101, %s102
    %p116 = scmp.eq.s32.totalorder %s16, 1
    %p117 = por %p115, %p116
    %p119 = scmp.ne.s32.totalorder %s102, %s118
    %p120 = scmp.eq.s32.totalorder %s16, 0
    %p121 = por %p119, %p120
    %s122 = ssub.s32 %s10, %s17
    %p123 = scmp.eq.s32.totalorder %s122, 0
    %s125 = sadd.s32 %s124, 1
    %s126 = scalar_select %p123, %s124, %s125
    %p129 = pneg %p123
    %p130 = scmp.eq.s32.totalorder %s10, 1
    %p131 = por %p129, %p130
    %p132 = scmp.ne.s32.totalorder %s124, %s127
    %p133 = scmp.eq.s32.totalorder %s10, 0
    %p134 = por %p132, %p133
    %p135 = scmp.ne.s32.totalorder %s124, %s127
    %p136 = scmp.eq.s32.totalorder %s15, 1
    %p137 = por %p135, %p136
    %p138 = scmp.ne.s32.totalorder %s127, %s128
    %p139 = scmp.eq.s32.totalorder %s15, 0
    %p140 = por %p138, %p139
    %p141 = scmp.ne.s32.totalorder %s127, %s128
    %p142 = scmp.eq.s32.totalorder %s16, 1
    %p143 = por %p141, %p142
    %p145 = scmp.ne.s32.totalorder %s128, %s144
    %p146 = scmp.eq.s32.totalorder %s16, 0
    %p147 = por %p145, %p146
    %p148 = scmp.le.s32.totalorder 1, %s10
    %p149 = scmp.lt.s32.totalorder %s10, 3
    %p150 = pnand %p148, %p149
    %p151 = pneg %p150
    // Predicated region
    $region9: #{densenet_forward.26} parent=5 // pred_check
      _
    $region10: #{densenet_forward.26} parent=5 // pred_check_branch
      %153 = sbr.rel (%p150) target = $region12
    $region11: #{densenet_forward.26} parent=5 // pred_region
      %s154 = ssub.s32 %s10, 1
    $region12: #{densenet_forward.26} parent=5 // pred_fallthru
      _
    %p155 = scmp.lt.s32.totalorder %s10, 2
    // Predicated region
    $region13: #{densenet_forward.26} parent=5 // pred_check
      %p156 = pneg %p155
    $region14: #{densenet_forward.26} parent=5 // pred_check_branch
      %158 = sbr.rel (%p156) target = $region16
    $region15: #{densenet_forward.26} parent=5 // pred_region
      // Predicated region
      $region17: #{densenet_forward.26} parent=15 // pred_check
        %p159 = pneg %p30
      $region18: #{densenet_forward.26} parent=15 // pred_check_branch
        %161 = sbr.rel (%p159) target = $region20
      $region19: #{densenet_forward.26} parent=15 // pred_region
        %p162 = scmp.lt.s32.totalorder %s10, 1
        %s163 = scalar_select %p162, %s10, 1
        %s164 = smul.addr %s163, 18
        %s165 = smul.addr %s164, 8
        %s166 = scalar_lea.vmem %s0, %s165
      $region20: #{densenet_forward.26} parent=15 // pred_fallthru
        _
      // Predicated region
      $region21: #{densenet_forward.26} parent=15 // pred_check
        %p167 = pneg %p56
      $region22: #{densenet_forward.26} parent=15 // pred_check_branch
        %169 = sbr.rel (%p167) target = $region24
      $region23: #{densenet_forward.26} parent=15 // pred_region
        %p170 = scmp.lt.s32.totalorder %s10, 1
        %s171 = scalar_select %p170, %s10, 1
        %s172 = smul.addr %s171, 18
        %s173 = smul.addr %s172, 8
        %s174 = scalar_lea.vmem %s1, %s173
      $region24: #{densenet_forward.26} parent=15 // pred_fallthru
        _
      // Predicated region
      $region25: #{densenet_forward.26} parent=15 // pred_check
        %p175 = pneg %p82
      $region26: #{densenet_forward.26} parent=15 // pred_check_branch
        %177 = sbr.rel (%p175) target = $region28
      $region27: #{densenet_forward.26} parent=15 // pred_region
        %p178 = scmp.lt.s32.totalorder %s10, 1
        %s179 = scalar_select %p178, %s10, 1
        %s180 = smul.addr %s179, 18
        %s181 = smul.addr %s180, 8
        %s182 = scalar_lea.vmem %s2, %s181
      $region28: #{densenet_forward.26} parent=15 // pred_fallthru
        _
      // Predicated region
      $region29: #{densenet_forward.26} parent=15 // pred_check
        %p183 = pneg %p108
      $region30: #{densenet_forward.26} parent=15 // pred_check_branch
        %185 = sbr.rel (%p183) target = $region32
      $region31: #{densenet_forward.26} parent=15 // pred_region
        %p186 = scmp.lt.s32.totalorder %s10, 1
        %s187 = scalar_select %p186, %s10, 1
        %s188 = smul.addr %s187, 18
        %s189 = smul.addr %s188, 8
        %s190 = scalar_lea.vmem %s3, %s189
      $region32: #{densenet_forward.26} parent=15 // pred_fallthru
        _
    $region16: #{densenet_forward.26} parent=5 // pred_fallthru
      _
    %p191 = scmp.le.s32.totalorder 1, %s10
    %p192 = scmp.lt.s32.totalorder %s10, 3
    %p193 = pnand %p191, %p192
    %p194 = pneg %p193
    // Predicated region
    $region33: #{densenet_forward.26} parent=5 // pred_check
      _
    $region34: #{densenet_forward.26} parent=5 // pred_check_branch
      %196 = sbr.rel (%p193) target = $region36
    $region35: #{densenet_forward.26} parent=5 // pred_region
      %s197 = ssub.s32 %s10, 1
      %p198 = scmp.lt.s32.totalorder %s15, 1
      %s199 = scalar_select %p198, %s15, 1
      %s200 = smul.addr %s199, 18
      %s201 = smul.addr %s200, 8
      %s202 = scalar_lea.vmem %s0, %s201
      %p203 = pneg %p36
      %p204 = pneg %p33
      %p205 = scmp.lt.s32.totalorder %s15, 1
      %s206 = scalar_select %p205, %s15, 1
      %s207 = smul.addr %s206, 18
      %s208 = smul.addr %s207, 8
      %s209 = scalar_lea.vmem %s1, %s208
      %p210 = pneg %p62
      %p211 = pneg %p59
      %p212 = scmp.lt.s32.totalorder %s15, 1
      %s213 = scalar_select %p212, %s15, 1
      %s214 = smul.addr %s213, 18
      %s215 = smul.addr %s214, 8
      %s216 = scalar_lea.vmem %s2, %s215
      %p217 = pneg %p88
      %p218 = pneg %p85
      %p219 = scmp.lt.s32.totalorder %s15, 1
      %s220 = scalar_select %p219, %s15, 1
      %s221 = smul.addr %s220, 18
      %s222 = smul.addr %s221, 8
      %s223 = scalar_lea.vmem %s3, %s222
      %p224 = pneg %p114
      %p225 = pneg %p111
      %p226 = pneg %p140
      %p227 = pneg %p137
      %p228 = scmp.lt.s32.totalorder %s15, 1
      %s229 = scalar_select %p228, %s15, 1
      %s230 = smul.addr %s229, 8
      %s231 = smul.addr %s230, 8
      %s232 = scalar_lea.vmem %s4, %s231
      %p233 = scmp.lt.s32.totalorder %s15, 1
      %s234 = scalar_select %p233, %s15, 1
      %s235 = smul.addr %s234, 18
      %s236 = smul.addr %s235, 8
      %s237 = scalar_lea.vmem %s0, %s236
      %p238 = scmp.lt.s32.totalorder %s15, 1
      %s239 = scalar_select %p238, %s15, 1
      %s240 = smul.addr %s239, 18
      %s241 = smul.addr %s240, 8
      %s242 = scalar_lea.vmem %s1, %s241
      %p243 = scmp.lt.s32.totalorder %s15, 1
      %s244 = scalar_select %p243, %s15, 1
      %s245 = smul.addr %s244, 18
      %s246 = smul.addr %s245, 8
      %s247 = scalar_lea.vmem %s2, %s246
      %p248 = scmp.lt.s32.totalorder %s15, 1
      %s249 = scalar_select %p248, %s15, 1
      %s250 = smul.addr %s249, 18
      %s251 = smul.addr %s250, 8
      %s252 = scalar_lea.vmem %s3, %s251
      %p253 = scmp.lt.s32.totalorder %s15, 1
      %s254 = scalar_select %p253, %s15, 1
      %s255 = smul.addr %s254, 8
      %s256 = smul.addr %s255, 8
      %s257 = scalar_lea.vmem %s4, %s256
      %v258 = vld [vmem:[%s237] sm:$0xff]
      %v259 = vld [vmem:[%s237 + $0x10] sm:$0xff]
      %v260 = vld [vmem:[%s237 + $0x20] sm:$0xff]
      %v261 = vld [vmem:[%s237 + $0x30] sm:$0xff]
      %v262 = vld [vmem:[%s237 + $0x40] sm:$0xff]
      %v263 = vld [vmem:[%s237 + $0x50] sm:$0xff]
      %v264 = vld [vmem:[%s237 + $0x60] sm:$0xff]
      %v265 = vld [vmem:[%s237 + $0x70] sm:$0xff]
      %v266 = vld [vmem:[%s242] sm:$0xff]
      %v267 = vld [vmem:[%s242 + $0x10] sm:$0xff]
      %v268 = vld [vmem:[%s242 + $0x20] sm:$0xff]
      %v269 = vld [vmem:[%s242 + $0x30] sm:$0xff]
      %v270 = vld [vmem:[%s242 + $0x40] sm:$0xff]
      %v271 = vld [vmem:[%s242 + $0x50] sm:$0xff]
      %v272 = vld [vmem:[%s242 + $0x60] sm:$0xff]
      %v273 = vld [vmem:[%s242 + $0x70] sm:$0xff]
      %v274 = vmax.f32 %v258, %v266
      %v275 = vmax.f32 %v259, %v267
      %v276 = vmax.f32 %v260, %v268
      %v277 = vmax.f32 %v261, %v269
      %v278 = vmax.f32 %v262, %v270
      %v279 = vmax.f32 %v263, %v271
      %v280 = vmax.f32 %v264, %v272
      %v281 = vmax.f32 %v265, %v273
      %v282 = vld [vmem:[%s237 + $0x1] sm:$0xff]
      %v283 = vld [vmem:[%s237 + $0x11] sm:$0xff]
      %v284 = vld [vmem:[%s237 + $0x21] sm:$0xff]
      %v285 = vld [vmem:[%s237 + $0x31] sm:$0xff]
      %v286 = vld [vmem:[%s237 + $0x41] sm:$0xff]
      %v287 = vld [vmem:[%s237 + $0x51] sm:$0xff]
      %v288 = vld [vmem:[%s237 + $0x61] sm:$0xff]
      %v289 = vld [vmem:[%s237 + $0x71] sm:$0xff]
      %v290 = vmax.f32 %v274, %v282
      %v291 = vmax.f32 %v275, %v283
      %v292 = vmax.f32 %v276, %v284
      %v293 = vmax.f32 %v277, %v285
      %v294 = vmax.f32 %v278, %v286
      %v295 = vmax.f32 %v279, %v287
      %v296 = vmax.f32 %v280, %v288
      %v297 = vmax.f32 %v281, %v289
      %v298 = vld [vmem:[%s247] sm:$0xff]
      %v299 = vld [vmem:[%s247 + $0x10] sm:$0xff]
      %v300 = vld [vmem:[%s247 + $0x20] sm:$0xff]
      %v301 = vld [vmem:[%s247 + $0x30] sm:$0xff]
      %v302 = vld [vmem:[%s247 + $0x40] sm:$0xff]
      %v303 = vld [vmem:[%s247 + $0x50] sm:$0xff]
      %v304 = vld [vmem:[%s247 + $0x60] sm:$0xff]
      %v305 = vld [vmem:[%s247 + $0x70] sm:$0xff]
      %v306 = vmax.f32 %v290, %v298
      %v307 = vmax.f32 %v291, %v299
      %v308 = vmax.f32 %v292, %v300
      %v309 = vmax.f32 %v293, %v301
      %v310 = vmax.f32 %v294, %v302
      %v311 = vmax.f32 %v295, %v303
      %v312 = vmax.f32 %v296, %v304
      %v313 = vmax.f32 %v297, %v305
      %v314 = vld [vmem:[%s252] sm:$0xff]
      %v315 = vld [vmem:[%s252 + $0x10] sm:$0xff]
      %v316 = vld [vmem:[%s252 + $0x20] sm:$0xff]
      %v317 = vld [vmem:[%s252 + $0x30] sm:$0xff]
      %v318 = vld [vmem:[%s252 + $0x40] sm:$0xff]
      %v319 = vld [vmem:[%s252 + $0x50] sm:$0xff]
      %v320 = vld [vmem:[%s252 + $0x60] sm:$0xff]
      %v321 = vld [vmem:[%s252 + $0x70] sm:$0xff]
      %v322 = vmax.f32 %v306, %v314
      %v323 = vmax.f32 %v307, %v315
      %v324 = vmax.f32 %v308, %v316
      %v325 = vmax.f32 %v309, %v317
      %v326 = vmax.f32 %v310, %v318
      %v327 = vmax.f32 %v311, %v319
      %v328 = vmax.f32 %v312, %v320
      %v329 = vmax.f32 %v313, %v321
      %v330 = vld [vmem:[%s247 + $0x1] sm:$0xff]
      %v331 = vld [vmem:[%s247 + $0x11] sm:$0xff]
      %v332 = vld [vmem:[%s247 + $0x21] sm:$0xff]
      %v333 = vld [vmem:[%s247 + $0x31] sm:$0xff]
      %v334 = vld [vmem:[%s247 + $0x41] sm:$0xff]
      %v335 = vld [vmem:[%s247 + $0x51] sm:$0xff]
      %v336 = vld [vmem:[%s247 + $0x61] sm:$0xff]
      %v337 = vld [vmem:[%s247 + $0x71] sm:$0xff]
      %v338 = vmax.f32 %v322, %v330
      %v339 = vmax.f32 %v323, %v331
      %v340 = vmax.f32 %v324, %v332
      %v341 = vmax.f32 %v325, %v333
      %v342 = vmax.f32 %v326, %v334
      %v343 = vmax.f32 %v327, %v335
      %v344 = vmax.f32 %v328, %v336
      %v345 = vmax.f32 %v329, %v337
      %s346 = scalar_lea.vmem %s237, 16
      %v347 = vld [vmem:[%s346] sm:$0xff]
      %v348 = vld [vmem:[%s346 + $0x10] sm:$0xff]
      %v349 = vld [vmem:[%s346 + $0x20] sm:$0xff]
      %v350 = vld [vmem:[%s346 + $0x30] sm:$0xff]
      %v351 = vld [vmem:[%s346 + $0x40] sm:$0xff]
      %v352 = vld [vmem:[%s346 + $0x50] sm:$0xff]
      %v353 = vld [vmem:[%s346 + $0x60] sm:$0xff]
      %v354 = vld [vmem:[%s346 + $0x70] sm:$0xff]
      %v355 = vmax.f32 %v338, %v347
      %v356 = vmax.f32 %v339, %v348
      %v357 = vmax.f32 %v340, %v349
      %v358 = vmax.f32 %v341, %v350
      %v359 = vmax.f32 %v342, %v351
      %v360 = vmax.f32 %v343, %v352
      %v361 = vmax.f32 %v344, %v353
      %v362 = vmax.f32 %v345, %v354
      %s363 = scalar_lea.vmem %s242, 16
      %v364 = vld [vmem:[%s363] sm:$0xff]
      %v365 = vld [vmem:[%s363 + $0x10] sm:$0xff]
      %v366 = vld [vmem:[%s363 + $0x20] sm:$0xff]
      %v367 = vld [vmem:[%s363 + $0x30] sm:$0xff]
      %v368 = vld [vmem:[%s363 + $0x40] sm:$0xff]
      %v369 = vld [vmem:[%s363 + $0x50] sm:$0xff]
      %v370 = vld [vmem:[%s363 + $0x60] sm:$0xff]
      %v371 = vld [vmem:[%s363 + $0x70] sm:$0xff]
      %v372 = vmax.f32 %v355, %v364
      %v373 = vmax.f32 %v356, %v365
      %v374 = vmax.f32 %v357, %v366
      %v375 = vmax.f32 %v358, %v367
      %v376 = vmax.f32 %v359, %v368
      %v377 = vmax.f32 %v360, %v369
      %v378 = vmax.f32 %v361, %v370
      %v379 = vmax.f32 %v362, %v371
      %v380 = vld [vmem:[%s346 + $0x1] sm:$0xff]
      %v381 = vld [vmem:[%s346 + $0x11] sm:$0xff]
      %v382 = vld [vmem:[%s346 + $0x21] sm:$0xff]
      %v383 = vld [vmem:[%s346 + $0x31] sm:$0xff]
      %v384 = vld [vmem:[%s346 + $0x41] sm:$0xff]
      %v385 = vld [vmem:[%s346 + $0x51] sm:$0xff]
      %v386 = vld [vmem:[%s346 + $0x61] sm:$0xff]
      %v387 = vld [vmem:[%s346 + $0x71] sm:$0xff]
      %v388 = vmax.f32 %v372, %v380
      %v389 = vmax.f32 %v373, %v381
      %v390 = vmax.f32 %v374, %v382
      %v391 = vmax.f32 %v375, %v383
      %v392 = vmax.f32 %v376, %v384
      %v393 = vmax.f32 %v377, %v385
      %v394 = vmax.f32 %v378, %v386
      %v395 = vmax.f32 %v379, %v387
      %vm396 = vcmask 130048
      %397 = vst.msk [vmem:[%s257] sm:$0xff] %vm396, %v388
      %398 = vst.msk [vmem:[%s257 + $0x8] sm:$0xff] %vm396, %v389
      %399 = vst.msk [vmem:[%s257 + $0x10] sm:$0xff] %vm396, %v390
      %400 = vst.msk [vmem:[%s257 + $0x18] sm:$0xff] %vm396, %v391
      %401 = vst.msk [vmem:[%s257 + $0x20] sm:$0xff] %vm396, %v392
      %402 = vst.msk [vmem:[%s257 + $0x28] sm:$0xff] %vm396, %v393
      %403 = vst.msk [vmem:[%s257 + $0x30] sm:$0xff] %vm396, %v394
      %404 = vst.msk [vmem:[%s257 + $0x38] sm:$0xff] %vm396, %v395
      %p405 = scmp.lt.s32.totalorder %s15, 1
      %s406 = scalar_select %p405, %s15, 1
      %s407 = smul.addr %s406, 8
      %s408 = smul.addr %s407, 8
      %s409 = scalar_lea.vmem %s4, %s408
      // Predicated region
      $region37: #{densenet_forward.26} parent=35 // pred_check
        %p410 = pneg %p137
      $region38: #{densenet_forward.26} parent=35 // pred_check_branch
        %412 = sbr.rel (%p410) target = $region40
      $region39: #{densenet_forward.26} parent=35 // pred_region
        _
      $region40: #{densenet_forward.26} parent=35 // pred_fallthru
        _
    $region36: #{densenet_forward.26} parent=5 // pred_fallthru
      _
    %p413 = scmp.le.s32.totalorder 2, %s10
    // Predicated region
    $region41: #{densenet_forward.26} parent=5 // pred_check
      %p414 = pneg %p413
    $region42: #{densenet_forward.26} parent=5 // pred_check_branch
      %416 = sbr.rel (%p414) target = $region44
    $region43: #{densenet_forward.26} parent=5 // pred_region
      %s417 = ssub.s32 %s10, 2
      // Predicated region
      $region45: #{densenet_forward.26} parent=43 // pred_check
        %p418 = pneg %p143
      $region46: #{densenet_forward.26} parent=43 // pred_check_branch
        %420 = sbr.rel (%p418) target = $region48
      $region47: #{densenet_forward.26} parent=43 // pred_region
        %p421 = scmp.lt.s32.totalorder %s16, 1
        %s422 = scalar_select %p421, %s16, 1
        %s423 = smul.addr %s422, 8
        %s424 = smul.addr %s423, 8
        %s425 = scalar_lea.vmem %s4, %s424
      $region48: #{densenet_forward.26} parent=43 // pred_fallthru
        _
    $region44: #{densenet_forward.26} parent=5 // pred_fallthru
      _
  $region6: #{densenet_forward.26} parent=0 // loop_footer
    %s14 = sadd.s32 1, %s10
  $region7: #{densenet_forward.26} parent=0 // loop_footer_branch
    %9 = sbr.rel target = $region3
  $region8: #{densenet_forward.26} parent=0 // loop_exit
    _

// kernel: densenet_forward.27
$region0: #{densenet_forward.27}
  #allocation0 [shape = 'u32[]', space=smem, size = 0x4, offset = 0x4, fixed_abs, tag = 'smem constant byte address 0x4 - core index']
  #allocation1 [shape = 'u32[144,128]{1,0:T(1,128)}', space=vmem, size = 0x12000, scoped, tag = 'internal scratch']
  %s0 = inlined_call_operand.vmem [shape: f32[128,16], index: 0, kind: input, shape index: {}]
  %s1 = inlined_call_operand.vmem [shape: bf16[16,16], index: 1, kind: input, shape index: {}]
  %s2 = inlined_call_operand.vmem [shape: f32[1,16], index: 2, kind: input, shape index: {}]
  %s3 = inlined_call_operand.vmem [shape: f32[1,16], index: 3, kind: input, shape index: {}]
  %s4 = inlined_call_operand.vmem [shape: f32[1,16], index: 4, kind: input, shape index: {}]
  %s5 = inlined_call_operand.vmem [shape: f32[1,16], index: 5, kind: input, shape index: {}]
  %s6 = inlined_call_operand.vmem [shape: f32[128,16], index: 6, kind: output, shape index: {}]
  %s7 = sld [smem:[#allocation0]]
  $region57: #{densenet_forward.27} parent=0
    _
  %s9 = ssub.s32 1, %s7
  %s10 = scalar_select 0, %s9, %s7
  loop: start=0, step=1, limit=4
  $region2: #{densenet_forward.27} parent=0 // loop_pre_header
    _
  $region3: #{densenet_forward.27} parent=0 // loop_header
    %s12 = sphi 0, %s16
    %p13 = scmp.ge.s32.totalorder %s12, 4
    %s22 = sphi 0, %s24
    %s25 = sphi 0, %s22
    %s26 = sphi 0, %s25
    %s42 = sphi 0, %s26
    %s46 = sphi 0, %s46
    %s48 = sphi 0, %s46
    %s49 = sphi 0, %s48
    %s63 = sphi 0, %s49
    %s67 = sphi 0, %s67
    %s69 = sphi 0, %s67
    %s70 = sphi 0, %s69
    %s84 = sphi 0, %s70
    %s88 = sphi 0, %s88
    %s90 = sphi 0, %s88
    %s91 = sphi 0, %s90
    %s105 = sphi 0, %s91
    %s109 = sphi 0, %s109
    %s111 = sphi 0, %s109
    %s112 = sphi 0, %s111
    %s126 = sphi 0, %s112
    %s130 = sphi 0, %s130
    %s132 = sphi 0, %s130
    %s133 = sphi 0, %s132
    %s147 = sphi 0, %s133
    %s153 = sphi 0, %s155
    %s156 = sphi 0, %s153
    %s157 = sphi 0, %s156
    %s173 = sphi 0, %s157
  $region4: #{densenet_forward.27} parent=0 // loop_header_branch
    %15 = sbr.rel (%p13) target = $region8
  $region5: #{densenet_forward.27} parent=0 // loop_body
    %s17 = ssub.s32 %s12, 1
    %s18 = ssub.s32 %s12, 2
    %s19 = sadd.s32 %s12, 1
    %s20 = ssub.s32 %s12, %s19
    %p21 = scmp.eq.s32.totalorder %s20, 0
    %s23 = sadd.s32 %s22, 1
    %s24 = scalar_select %p21, %s22, %s23
    %p27 = pneg %p21
    %p28 = scmp.eq.s32.totalorder %s12, 1
    %p29 = por %p27, %p28
    %p30 = scmp.ne.s32.totalorder %s22, %s25
    %p31 = scmp.eq.s32.totalorder %s12, 0
    %p32 = por %p30, %p31
    %p33 = scmp.ne.s32.totalorder %s22, %s25
    %p34 = scmp.eq.s32.totalorder %s17, 1
    %p35 = por %p33, %p34
    %p36 = scmp.ne.s32.totalorder %s25, %s26
    %p37 = scmp.eq.s32.totalorder %s17, 0
    %p38 = por %p36, %p37
    %p39 = scmp.ne.s32.totalorder %s25, %s26
    %p40 = scmp.eq.s32.totalorder %s18, 1
    %p41 = por %p39, %p40
    %p43 = scmp.ne.s32.totalorder %s26, %s42
    %p44 = scmp.eq.s32.totalorder %s18, 0
    %p45 = por %p43, %p44
    %s47 = sadd.s32 %s46, 1
    %p50 = scmp.eq.s32.totalorder %s12, 1
    %p51 = scmp.ne.s32.totalorder %s46, %s48
    %p52 = scmp.eq.s32.totalorder %s12, 0
    %p53 = por %p51, %p52
    %p54 = scmp.ne.s32.totalorder %s46, %s48
    %p55 = scmp.eq.s32.totalorder %s17, 1
    %p56 = por %p54, %p55
    %p57 = scmp.ne.s32.totalorder %s48, %s49
    %p58 = scmp.eq.s32.totalorder %s17, 0
    %p59 = por %p57, %p58
    %p60 = scmp.ne.s32.totalorder %s48, %s49
    %p61 = scmp.eq.s32.totalorder %s18, 1
    %p62 = por %p60, %p61
    %p64 = scmp.ne.s32.totalorder %s49, %s63
    %p65 = scmp.eq.s32.totalorder %s18, 0
    %p66 = por %p64, %p65
    %s68 = sadd.s32 %s67, 1
    %p71 = scmp.eq.s32.totalorder %s12, 1
    %p72 = scmp.ne.s32.totalorder %s67, %s69
    %p73 = scmp.eq.s32.totalorder %s12, 0
    %p74 = por %p72, %p73
    %p75 = scmp.ne.s32.totalorder %s67, %s69
    %p76 = scmp.eq.s32.totalorder %s17, 1
    %p77 = por %p75, %p76
    %p78 = scmp.ne.s32.totalorder %s69, %s70
    %p79 = scmp.eq.s32.totalorder %s17, 0
    %p80 = por %p78, %p79
    %p81 = scmp.ne.s32.totalorder %s69, %s70
    %p82 = scmp.eq.s32.totalorder %s18, 1
    %p83 = por %p81, %p82
    %p85 = scmp.ne.s32.totalorder %s70, %s84
    %p86 = scmp.eq.s32.totalorder %s18, 0
    %p87 = por %p85, %p86
    %s89 = sadd.s32 %s88, 1
    %p92 = scmp.eq.s32.totalorder %s12, 1
    %p93 = scmp.ne.s32.totalorder %s88, %s90
    %p94 = scmp.eq.s32.totalorder %s12, 0
    %p95 = por %p93, %p94
    %p96 = scmp.ne.s32.totalorder %s88, %s90
    %p97 = scmp.eq.s32.totalorder %s17, 1
    %p98 = por %p96, %p97
    %p99 = scmp.ne.s32.totalorder %s90, %s91
    %p100 = scmp.eq.s32.totalorder %s17, 0
    %p101 = por %p99, %p100
    %p102 = scmp.ne.s32.totalorder %s90, %s91
    %p103 = scmp.eq.s32.totalorder %s18, 1
    %p104 = por %p102, %p103
    %p106 = scmp.ne.s32.totalorder %s91, %s105
    %p107 = scmp.eq.s32.totalorder %s18, 0
    %p108 = por %p106, %p107
    %s110 = sadd.s32 %s109, 1
    %p113 = scmp.eq.s32.totalorder %s12, 1
    %p114 = scmp.ne.s32.totalorder %s109, %s111
    %p115 = scmp.eq.s32.totalorder %s12, 0
    %p116 = por %p114, %p115
    %p117 = scmp.ne.s32.totalorder %s109, %s111
    %p118 = scmp.eq.s32.totalorder %s17, 1
    %p119 = por %p117, %p118
    %p120 = scmp.ne.s32.totalorder %s111, %s112
    %p121 = scmp.eq.s32.totalorder %s17, 0
    %p122 = por %p120, %p121
    %p123 = scmp.ne.s32.totalorder %s111, %s112
    %p124 = scmp.eq.s32.totalorder %s18, 1
    %p125 = por %p123, %p124
    %p127 = scmp.ne.s32.totalorder %s112, %s126
    %p128 = scmp.eq.s32.totalorder %s18, 0
    %p129 = por %p127, %p128
    %s131 = sadd.s32 %s130, 1
    %p134 = scmp.eq.s32.totalorder %s12, 1
    %p135 = scmp.ne.s32.totalorder %s130, %s132
    %p136 = scmp.eq.s32.totalorder %s12, 0
    %p137 = por %p135, %p136
    %p138 = scmp.ne.s32.totalorder %s130, %s132
    %p139 = scmp.eq.s32.totalorder %s17, 1
    %p140 = por %p138, %p139
    %p141 = scmp.ne.s32.totalorder %s132, %s133
    %p142 = scmp.eq.s32.totalorder %s17, 0
    %p143 = por %p141, %p142
    %p144 = scmp.ne.s32.totalorder %s132, %s133
    %p145 = scmp.eq.s32.totalorder %s18, 1
    %p146 = por %p144, %p145
    %p148 = scmp.ne.s32.totalorder %s133, %s147
    %p149 = scmp.eq.s32.totalorder %s18, 0
    %p150 = por %p148, %p149
    %s151 = ssub.s32 %s12, %s19
    %p152 = scmp.eq.s32.totalorder %s151, 0
    %s154 = sadd.s32 %s153, 1
    %s155 = scalar_select %p152, %s153, %s154
    %p158 = pneg %p152
    %p159 = scmp.eq.s32.totalorder %s12, 1
    %p160 = por %p158, %p159
    %p161 = scmp.ne.s32.totalorder %s153, %s156
    %p162 = scmp.eq.s32.totalorder %s12, 0
    %p163 = por %p161, %p162
    %p164 = scmp.ne.s32.totalorder %s153, %s156
    %p165 = scmp.eq.s32.totalorder %s17, 1
    %p166 = por %p164, %p165
    %p167 = scmp.ne.s32.totalorder %s156, %s157
    %p168 = scmp.eq.s32.totalorder %s17, 0
    %p169 = por %p167, %p168
    %p170 = scmp.ne.s32.totalorder %s156, %s157
    %p171 = scmp.eq.s32.totalorder %s18, 1
    %p172 = por %p170, %p171
    %p174 = scmp.ne.s32.totalorder %s157, %s173
    %p175 = scmp.eq.s32.totalorder %s18, 0
    %p176 = por %p174, %p175
    %p177 = scmp.le.s32.totalorder 1, %s12
    %p178 = scmp.lt.s32.totalorder %s12, 3
    %p179 = pnand %p177, %p178
    %p180 = pneg %p179
    // Predicated region
    $region9: #{densenet_forward.27} parent=5 // pred_check
      _
    $region10: #{densenet_forward.27} parent=5 // pred_check_branch
      %182 = sbr.rel (%p179) target = $region12
    $region11: #{densenet_forward.27} parent=5 // pred_region
      %s183 = ssub.s32 %s12, 1
      // Predicated region
      $region13: #{densenet_forward.27} parent=11 // pred_check
        %p184 = pneg %p59
      $region14: #{densenet_forward.27} parent=11 // pred_check_branch
        %186 = sbr.rel (%p184) target = $region16
      $region15: #{densenet_forward.27} parent=11 // pred_region
        _
      $region16: #{densenet_forward.27} parent=11 // pred_fallthru
        _
      // Predicated region
      $region17: #{densenet_forward.27} parent=11 // pred_check
        %p187 = pneg %p80
      $region18: #{densenet_forward.27} parent=11 // pred_check_branch
        %189 = sbr.rel (%p187) target = $region20
      $region19: #{densenet_forward.27} parent=11 // pred_region
        _
      $region20: #{densenet_forward.27} parent=11 // pred_fallthru
        _
      // Predicated region
      $region21: #{densenet_forward.27} parent=11 // pred_check
        %p190 = pneg %p101
      $region22: #{densenet_forward.27} parent=11 // pred_check_branch
        %192 = sbr.rel (%p190) target = $region24
      $region23: #{densenet_forward.27} parent=11 // pred_region
        _
      $region24: #{densenet_forward.27} parent=11 // pred_fallthru
        _
      // Predicated region
      $region25: #{densenet_forward.27} parent=11 // pred_check
        %p193 = pneg %p122
      $region26: #{densenet_forward.27} parent=11 // pred_check_branch
        %195 = sbr.rel (%p193) target = $region28
      $region27: #{densenet_forward.27} parent=11 // pred_region
        _
      $region28: #{densenet_forward.27} parent=11 // pred_fallthru
        _
      // Predicated region
      $region29: #{densenet_forward.27} parent=11 // pred_check
        %p196 = pneg %p143
      $region30: #{densenet_forward.27} parent=11 // pred_check_branch
        %198 = sbr.rel (%p196) target = $region32
      $region31: #{densenet_forward.27} parent=11 // pred_region
        _
      $region32: #{densenet_forward.27} parent=11 // pred_fallthru
        _
    $region12: #{densenet_forward.27} parent=5 // pred_fallthru
      _
    %p199 = scmp.lt.s32.totalorder %s12, 2
    // Predicated region
    $region33: #{densenet_forward.27} parent=5 // pred_check
      %p200 = pneg %p199
    $region34: #{densenet_forward.27} parent=5 // pred_check_branch
      %202 = sbr.rel (%p200) target = $region36
    $region35: #{densenet_forward.27} parent=5 // pred_region
      // Predicated region
      $region37: #{densenet_forward.27} parent=35 // pred_check
        %p203 = pneg %p32
      $region38: #{densenet_forward.27} parent=35 // pred_check_branch
        %205 = sbr.rel (%p203) target = $region40
      $region39: #{densenet_forward.27} parent=35 // pred_region
        %s206 = smul.u32 8, %s12
        %p207 = scmp.lt.s32.totalorder %s206, 15
        %s208 = scalar_select %p207, %s206, 15
        %s209 = smul.addr %s208, 8
        %s210 = scalar_lea.vmem %s0, %s209
        %s211 = smul.u32 8, %s12
      $region40: #{densenet_forward.27} parent=35 // pred_fallthru
        _
    $region36: #{densenet_forward.27} parent=5 // pred_fallthru
      _
    %p212 = scmp.le.s32.totalorder 1, %s12
    %p213 = scmp.lt.s32.totalorder %s12, 3
    %p214 = pnand %p212, %p213
    %p215 = pneg %p214
    // Predicated region
    $region41: #{densenet_forward.27} parent=5 // pred_check
      _
    $region42: #{densenet_forward.27} parent=5 // pred_check_branch
      %217 = sbr.rel (%p214) target = $region44
    $region43: #{densenet_forward.27} parent=5 // pred_region
      %s218 = ssub.s32 %s12, 1
      %s219 = smul.u32 8, %s17
      %p220 = scmp.lt.s32.totalorder %s219, 15
      %s221 = scalar_select %p220, %s219, 15
      %s222 = smul.addr %s221, 8
      %s223 = scalar_lea.vmem %s0, %s222
      %p224 = pneg %p38
      %p225 = pneg %p35
      %p226 = pneg %p59
      %p227 = pneg %p56
      %p228 = pneg %p80
      %p229 = pneg %p77
      %p230 = pneg %p101
      %p231 = pneg %p98
      %p232 = pneg %p122
      %p233 = pneg %p119
      %p234 = pneg %p143
      %p235 = pneg %p140
      %p236 = pneg %p169
      %p237 = pneg %p166
      %s238 = smul.u32 8, %s17
      %p239 = scmp.lt.s32.totalorder %s238, 15
      %s240 = scalar_select %p239, %s238, 15
      %s241 = smul.addr %s240, 8
      %s242 = scalar_lea.vmem %s6, %s241
      %s243 = smul.u32 8, %s17
      %p244 = scmp.lt.s32.totalorder %s243, 15
      %s245 = scalar_select %p244, %s243, 15
      %s246 = smul.addr %s245, 8
      %s247 = scalar_lea.vmem %s0, %s246
      %s248 = smul.u32 8, %s17
      %s249 = smul.u32 8, %s17
      %p250 = scmp.lt.s32.totalorder %s249, 15
      %s251 = scalar_select %p250, %s249, 15
      %s252 = smul.addr %s251, 8
      %s253 = scalar_lea.vmem %s6, %s252
      %s254 = smul.u32 8, %s17
      %v256 = vld [vmem:[%s247] sm:$0xff]
      %v257 = vld [vmem:[%s247 + $0x8] sm:$0xff]
      %v258 = vld [vmem:[%s247 + $0x10] sm:$0xff]
      %v259 = vld [vmem:[%s247 + $0x18] sm:$0xff]
      %v260 = vld [vmem:[%s247 + $0x20] sm:$0xff]
      %v261 = vld [vmem:[%s247 + $0x28] sm:$0xff]
      %v262 = vld [vmem:[%s247 + $0x30] sm:$0xff]
      %v263 = vld [vmem:[%s247 + $0x38] sm:$0xff]
      %v264 = vld [vmem:[%s2] sm:$0x1]
      %v266 = vlaneseq
      %v267 = vshrl.u32 %v266, 7
      %v268 = vsub.s32 0, %v267
      %v269 = vrot.slane %v264, %v268
      %v271 = vmul.f32 %v256, %v269
      %v272 = vmul.f32 %v257, %v269
      %v273 = vmul.f32 %v258, %v269
      %v274 = vmul.f32 %v259, %v269
      %v275 = vmul.f32 %v260, %v269
      %v276 = vmul.f32 %v261, %v269
      %v277 = vmul.f32 %v262, %v269
      %v278 = vmul.f32 %v263, %v269
      %v279 = vld [vmem:[%s3] sm:$0x1]
      %v281 = vlaneseq
      %v282 = vshrl.u32 %v281, 7
      %v283 = vsub.s32 0, %v282
      %v284 = vrot.slane %v279, %v283
      %v286 = vadd.f32 %v271, %v284
      %v287 = vadd.f32 %v272, %v284
      %v288 = vadd.f32 %v273, %v284
      %v289 = vadd.f32 %v274, %v284
      %v290 = vadd.f32 %v275, %v284
      %v291 = vadd.f32 %v276, %v284
      %v292 = vadd.f32 %v277, %v284
      %v293 = vadd.f32 %v278, %v284
      %v294 = vmax.f32 %v286, 0.0
      %v295 = vmax.f32 %v287, 0.0
      %v296 = vmax.f32 %v288, 0.0
      %v297 = vmax.f32 %v289, 0.0
      %v298 = vmax.f32 %v290, 0.0
      %v299 = vmax.f32 %v291, 0.0
      %v300 = vmax.f32 %v292, 0.0
      %v301 = vmax.f32 %v293, 0.0
      %v302 = vpack.c.bf16 %v295, %v294
      %v303 = vpack.c.bf16 %v297, %v296
      %v304 = vpack.c.bf16 %v299, %v298
      %v305 = vpack.c.bf16 %v301, %v300
      %v306 = vld [vmem:[%s1] sm:$0xf]
      %v307 = vld [vmem:[%s1 + $0x4] sm:$0xf]
      %v310 = vunpack.c.l.b16 %v306
      %v311 = vunpack.c.l.b16 %v307
      %v312 = vpack.c.b16 %v311, %v310
      %vm314 = vcmask 130048
      %v316 = vsel %vm314, %v302, 0
      %v319 = vsel %vm314, %v303, 0
      %v322 = vsel %vm314, %v304, 0
      %v325 = vsel %vm314, %v305, 0
      %327 = vmatprep.subr.bf16.mxu0 0
      %328 = vmatpush1.bf16.msra.mxu0 %v312
      %329 = vmatprep.subr.bf16.mxu0 0
      %330 = vmatpush1.bf16.msra.mxu0 0
      %331 = vmatprep.subr.bf16.mxu0 0
      %332 = vmatpush1.bf16.msra.mxu0 0
      %333 = vmatprep.subr.bf16.mxu0 0
      %334 = vmatpush1.bf16.msra.mxu0 0
      %335 = vmatprep.subr.bf16.mxu0 0
      %336 = vmatpush1.bf16.msra.mxu0 0
      %337 = vmatprep.subr.bf16.mxu0 0
      %338 = vmatpush1.bf16.msra.mxu0 0
      %339 = vmatprep.subr.bf16.mxu0 0
      %340 = vmatpush1.bf16.msra.mxu0 0
      %341 = vmatprep.subr.bf16.mxu0 0
      %342 = vmatpush1.bf16.msra.mxu0 0
      %343 = vmatprep.subr.bf16.mxu0 0
      %344 = vmatpush1.bf16.msra.mxu0 0
      %345 = vmatprep.subr.bf16.mxu0 0
      %346 = vmatpush1.bf16.msra.mxu0 0
      %347 = vmatprep.subr.bf16.mxu0 0
      %348 = vmatpush1.bf16.msra.mxu0 0
      %349 = vmatprep.subr.bf16.mxu0 0
      %350 = vmatpush1.bf16.msra.mxu0 0
      %351 = vmatprep.subr.bf16.mxu0 0
      %352 = vmatpush1.bf16.msra.mxu0 0
      %353 = vmatprep.subr.bf16.mxu0 0
      %354 = vmatpush1.bf16.msra.mxu0 0
      %355 = vmatprep.subr.bf16.mxu0 0
      %356 = vmatpush1.bf16.msra.mxu0 0
      %357 = vmatprep.subr.bf16.mxu0 0
      %358 = vmatpush1.bf16.msra.mxu0 0
      %359 = vmatprep.mubr.bf16.mxu0 0
      %360 = vmatmul.mubr.bf16.gmra.mrb[0].mxu0 %v316
      %v361 = vpop.f32.mrb[0].mxu0
      %v362 = vadd.f32 0.0, %v361
      %v363 = vpop.f32.mrb[0].mxu0
      %v364 = vpop.f32.mrb[0].mxu0
      %v365 = vadd.f32 0.0, %v364
      %v366 = vpop.f32.mrb[0].mxu0
      %367 = vmatprep.mubr.bf16.mxu0 0
      %368 = vmatmul.mubr.bf16.gmra.mrb[0].mxu0 %v319
      %v369 = vpop.f32.mrb[0].mxu0
      %v370 = vadd.f32 0.0, %v369
      %v371 = vpop.f32.mrb[0].mxu0
      %v372 = vpop.f32.mrb[0].mxu0
      %v373 = vadd.f32 0.0, %v372
      %v374 = vpop.f32.mrb[0].mxu0
      %375 = vmatprep.mubr.bf16.mxu0 0
      %376 = vmatmul.mubr.bf16.gmra.mrb[0].mxu0 %v322
      %v377 = vpop.f32.mrb[0].mxu0
      %v378 = vadd.f32 0.0, %v377
      %v379 = vpop.f32.mrb[0].mxu0
      %v380 = vpop.f32.mrb[0].mxu0
      %v381 = vadd.f32 0.0, %v380
      %v382 = vpop.f32.mrb[0].mxu0
      %383 = vmatprep.mubr.bf16.mxu0 0
      %384 = vmatmul.mubr.bf16.gmra.mrb[0].mxu0 %v325
      %v385 = vpop.f32.mrb[0].mxu0
      %v386 = vadd.f32 0.0, %v385
      %v387 = vpop.f32.mrb[0].mxu0
      %v388 = vpop.f32.mrb[0].mxu0
      %v389 = vadd.f32 0.0, %v388
      %v390 = vpop.f32.mrb[0].mxu0
      %391 = vdwg.mxu0
      %v392 = vld [vmem:[%s4] sm:$0x1]
      %v394 = vlaneseq
      %v395 = vshrl.u32 %v394, 7
      %v396 = vsub.s32 0, %v395
      %v397 = vrot.slane %v392, %v396
      %v399 = vmul.f32 %v362, %v397
      %v400 = vmul.f32 %v365, %v397
      %v401 = vmul.f32 %v370, %v397
      %v402 = vmul.f32 %v373, %v397
      %v403 = vmul.f32 %v378, %v397
      %v404 = vmul.f32 %v381, %v397
      %v405 = vmul.f32 %v386, %v397
      %v406 = vmul.f32 %v389, %v397
      %v407 = vld [vmem:[%s5] sm:$0x1]
      %v409 = vlaneseq
      %v410 = vshrl.u32 %v409, 7
      %v411 = vsub.s32 0, %v410
      %v412 = vrot.slane %v407, %v411
      %v414 = vadd.f32 %v399, %v412
      %v415 = vadd.f32 %v400, %v412
      %v416 = vadd.f32 %v401, %v412
      %v417 = vadd.f32 %v402, %v412
      %v418 = vadd.f32 %v403, %v412
      %v419 = vadd.f32 %v404, %v412
      %v420 = vadd.f32 %v405, %v412
      %v421 = vadd.f32 %v406, %v412
      %v422 = vmax.f32 %v414, 0.0
      %v423 = vmax.f32 %v415, 0.0
      %v424 = vmax.f32 %v416, 0.0
      %v425 = vmax.f32 %v417, 0.0
      %v426 = vmax.f32 %v418, 0.0
      %v427 = vmax.f32 %v419, 0.0
      %v428 = vmax.f32 %v420, 0.0
      %v429 = vmax.f32 %v421, 0.0
      %430 = vst.msk [vmem:[%s253] sm:$0xff] %vm314, %v422
      %431 = vst.msk [vmem:[%s253 + $0x8] sm:$0xff] %vm314, %v423
      %432 = vst.msk [vmem:[%s253 + $0x10] sm:$0xff] %vm314, %v424
      %433 = vst.msk [vmem:[%s253 + $0x18] sm:$0xff] %vm314, %v425
      %434 = vst.msk [vmem:[%s253 + $0x20] sm:$0xff] %vm314, %v426
      %435 = vst.msk [vmem:[%s253 + $0x28] sm:$0xff] %vm314, %v427
      %436 = vst.msk [vmem:[%s253 + $0x30] sm:$0xff] %vm314, %v428
      %437 = vst.msk [vmem:[%s253 + $0x38] sm:$0xff] %vm314, %v429
      %s438 = smul.u32 8, %s17
      %p439 = scmp.lt.s32.totalorder %s438, 15
      %s440 = scalar_select %p439, %s438, 15
      %s441 = smul.addr %s440, 8
      %s442 = scalar_lea.vmem %s6, %s441
      // Predicated region
      $region45: #{densenet_forward.27} parent=43 // pred_check
        %p443 = pneg %p166
      $region46: #{densenet_forward.27} parent=43 // pred_check_branch
        %445 = sbr.rel (%p443) target = $region48
      $region47: #{densenet_forward.27} parent=43 // pred_region
        %s446 = smul.u32 8, %s17
      $region48: #{densenet_forward.27} parent=43 // pred_fallthru
        _
    $region44: #{densenet_forward.27} parent=5 // pred_fallthru
      _
    %p447 = scmp.le.s32.totalorder 2, %s12
    // Predicated region
    $region49: #{densenet_forward.27} parent=5 // pred_check
      %p448 = pneg %p447
    $region50: #{densenet_forward.27} parent=5 // pred_check_branch
      %450 = sbr.rel (%p448) target = $region52
    $region51: #{densenet_forward.27} parent=5 // pred_region
      %s451 = ssub.s32 %s12, 2
      // Predicated region
      $region53: #{densenet_forward.27} parent=51 // pred_check
        %p452 = pneg %p172
      $region54: #{densenet_forward.27} parent=51 // pred_check_branch
        %454 = sbr.rel (%p452) target = $region56
      $region55: #{densenet_forward.27} parent=51 // pred_region
        %s455 = smul.u32 8, %s18
        %p456 = scmp.lt.s32.totalorder %s455, 15
        %s457 = scalar_select %p456, %s455, 15
        %s458 = smul.addr %s457, 8
        %s459 = scalar_lea.vmem %s6, %s458
      $region56: #{densenet_forward.27} parent=51 // pred_fallthru
        _
    $region52: #{densenet_forward.27} parent=5 // pred_fallthru
      _
  $region6: #{densenet_forward.27} parent=0 // loop_footer
    %s16 = sadd.s32 1, %s12
  $region7: #{densenet_forward.27} parent=0 // loop_footer_branch
    %11 = sbr.rel target = $region3
  $region8: #{densenet_forward.27} parent=0 // loop_exit
    _

// kernel: densenet_forward.29
$region0: #{densenet_forward.29}
  #allocation0 [shape = 'u32[]', space=smem, size = 0x4, offset = 0x4, fixed_abs, tag = 'smem constant byte address 0x4 - core index']
  #allocation1 [shape = 'u32[144,128]{1,0:T(1,128)}', space=vmem, size = 0x12000, scoped, tag = 'internal scratch']
  %s0 = inlined_call_operand.vmem [shape: f32[128,16], index: 0, kind: input, shape index: {}]
  %s1 = inlined_call_operand.vmem [shape: f32[128,8], index: 1, kind: input, shape index: {}]
  %s2 = inlined_call_operand.vmem [shape: bf16[24,16], index: 2, kind: input, shape index: {}]
  %s3 = inlined_call_operand.vmem [shape: f32[1,24], index: 3, kind: input, shape index: {}]
  %s4 = inlined_call_operand.vmem [shape: f32[1,24], index: 4, kind: input, shape index: {}]
  %s5 = inlined_call_operand.vmem [shape: f32[1,16], index: 5, kind: input, shape index: {}]
  %s6 = inlined_call_operand.vmem [shape: f32[1,16], index: 6, kind: input, shape index: {}]
  %s7 = inlined_call_operand.vmem [shape: f32[128,16], index: 7, kind: output, shape index: {}]
  %s8 = sld [smem:[#allocation0]]
  $region61: #{densenet_forward.29} parent=0
    _
  %s10 = ssub.s32 1, %s8
  %s11 = scalar_select 0, %s10, %s8
  loop: start=0, step=1, limit=4
  $region2: #{densenet_forward.29} parent=0 // loop_pre_header
    _
  $region3: #{densenet_forward.29} parent=0 // loop_header
    %s13 = sphi 0, %s17
    %p14 = scmp.ge.s32.totalorder %s13, 4
    %s23 = sphi 0, %s25
    %s26 = sphi 0, %s23
    %s27 = sphi 0, %s26
    %s43 = sphi 0, %s27
    %s49 = sphi 0, %s51
    %s52 = sphi 0, %s49
    %s53 = sphi 0, %s52
    %s69 = sphi 0, %s53
    %s73 = sphi 0, %s73
    %s75 = sphi 0, %s73
    %s76 = sphi 0, %s75
    %s90 = sphi 0, %s76
    %s94 = sphi 0, %s94
    %s96 = sphi 0, %s94
    %s97 = sphi 0, %s96
    %s111 = sphi 0, %s97
    %s115 = sphi 0, %s115
    %s117 = sphi 0, %s115
    %s118 = sphi 0, %s117
    %s132 = sphi 0, %s118
    %s136 = sphi 0, %s136
    %s138 = sphi 0, %s136
    %s139 = sphi 0, %s138
    %s153 = sphi 0, %s139
    %s157 = sphi 0, %s157
    %s159 = sphi 0, %s157
    %s160 = sphi 0, %s159
    %s174 = sphi 0, %s160
    %s180 = sphi 0, %s182
    %s183 = sphi 0, %s180
    %s184 = sphi 0, %s183
    %s200 = sphi 0, %s184
  $region4: #{densenet_forward.29} parent=0 // loop_header_branch
    %16 = sbr.rel (%p14) target = $region8
  $region5: #{densenet_forward.29} parent=0 // loop_body
    %s18 = ssub.s32 %s13, 1
    %s19 = ssub.s32 %s13, 2
    %s20 = sadd.s32 %s13, 1
    %s21 = ssub.s32 %s13, %s20
    %p22 = scmp.eq.s32.totalorder %s21, 0
    %s24 = sadd.s32 %s23, 1
    %s25 = scalar_select %p22, %s23, %s24
    %p28 = pneg %p22
    %p29 = scmp.eq.s32.totalorder %s13, 1
    %p30 = por %p28, %p29
    %p31 = scmp.ne.s32.totalorder %s23, %s26
    %p32 = scmp.eq.s32.totalorder %s13, 0
    %p33 = por %p31, %p32
    %p34 = scmp.ne.s32.totalorder %s23, %s26
    %p35 = scmp.eq.s32.totalorder %s18, 1
    %p36 = por %p34, %p35
    %p37 = scmp.ne.s32.totalorder %s26, %s27
    %p38 = scmp.eq.s32.totalorder %s18, 0
    %p39 = por %p37, %p38
    %p40 = scmp.ne.s32.totalorder %s26, %s27
    %p41 = scmp.eq.s32.totalorder %s19, 1
    %p42 = por %p40, %p41
    %p44 = scmp.ne.s32.totalorder %s27, %s43
    %p45 = scmp.eq.s32.totalorder %s19, 0
    %p46 = por %p44, %p45
    %s47 = ssub.s32 %s13, %s20
    %p48 = scmp.eq.s32.totalorder %s47, 0
    %s50 = sadd.s32 %s49, 1
    %s51 = scalar_select %p48, %s49, %s50
    %p54 = pneg %p48
    %p55 = scmp.eq.s32.totalorder %s13, 1
    %p56 = por %p54, %p55
    %p57 = scmp.ne.s32.totalorder %s49, %s52
    %p58 = scmp.eq.s32.totalorder %s13, 0
    %p59 = por %p57, %p58
    %p60 = scmp.ne.s32.totalorder %s49, %s52
    %p61 = scmp.eq.s32.totalorder %s18, 1
    %p62 = por %p60, %p61
    %p63 = scmp.ne.s32.totalorder %s52, %s53
    %p64 = scmp.eq.s32.totalorder %s18, 0
    %p65 = por %p63, %p64
    %p66 = scmp.ne.s32.totalorder %s52, %s53
    %p67 = scmp.eq.s32.totalorder %s19, 1
    %p68 = por %p66, %p67
    %p70 = scmp.ne.s32.totalorder %s53, %s69
    %p71 = scmp.eq.s32.totalorder %s19, 0
    %p72 = por %p70, %p71
    %s74 = sadd.s32 %s73, 1
    %p77 = scmp.eq.s32.totalorder %s13, 1
    %p78 = scmp.ne.s32.totalorder %s73, %s75
    %p79 = scmp.eq.s32.totalorder %s13, 0
    %p80 = por %p78, %p79
    %p81 = scmp.ne.s32.totalorder %s73, %s75
    %p82 = scmp.eq.s32.totalorder %s18, 1
    %p83 = por %p81, %p82
    %p84 = scmp.ne.s32.totalorder %s75, %s76
    %p85 = scmp.eq.s32.totalorder %s18, 0
    %p86 = por %p84, %p85
    %p87 = scmp.ne.s32.totalorder %s75, %s76
    %p88 = scmp.eq.s32.totalorder %s19, 1
    %p89 = por %p87, %p88
    %p91 = scmp.ne.s32.totalorder %s76, %s90
    %p92 = scmp.eq.s32.totalorder %s19, 0
    %p93 = por %p91, %p92
    %s95 = sadd.s32 %s94, 1
    %p98 = scmp.eq.s32.totalorder %s13, 1
    %p99 = scmp.ne.s32.totalorder %s94, %s96
    %p100 = scmp.eq.s32.totalorder %s13, 0
    %p101 = por %p99, %p100
    %p102 = scmp.ne.s32.totalorder %s94, %s96
    %p103 = scmp.eq.s32.totalorder %s18, 1
    %p104 = por %p102, %p103
    %p105 = scmp.ne.s32.totalorder %s96, %s97
    %p106 = scmp.eq.s32.totalorder %s18, 0
    %p107 = por %p105, %p106
    %p108 = scmp.ne.s32.totalorder %s96, %s97
    %p109 = scmp.eq.s32.totalorder %s19, 1
    %p110 = por %p108, %p109
    %p112 = scmp.ne.s32.totalorder %s97, %s111
    %p113 = scmp.eq.s32.totalorder %s19, 0
    %p114 = por %p112, %p113
    %s116 = sadd.s32 %s115, 1
    %p119 = scmp.eq.s32.totalorder %s13, 1
    %p120 = scmp.ne.s32.totalorder %s115, %s117
    %p121 = scmp.eq.s32.totalorder %s13, 0
    %p122 = por %p120, %p121
    %p123 = scmp.ne.s32.totalorder %s115, %s117
    %p124 = scmp.eq.s32.totalorder %s18, 1
    %p125 = por %p123, %p124
    %p126 = scmp.ne.s32.totalorder %s117, %s118
    %p127 = scmp.eq.s32.totalorder %s18, 0
    %p128 = por %p126, %p127
    %p129 = scmp.ne.s32.totalorder %s117, %s118
    %p130 = scmp.eq.s32.totalorder %s19, 1
    %p131 = por %p129, %p130
    %p133 = scmp.ne.s32.totalorder %s118, %s132
    %p134 = scmp.eq.s32.totalorder %s19, 0
    %p135 = por %p133, %p134
    %s137 = sadd.s32 %s136, 1
    %p140 = scmp.eq.s32.totalorder %s13, 1
    %p141 = scmp.ne.s32.totalorder %s136, %s138
    %p142 = scmp.eq.s32.totalorder %s13, 0
    %p143 = por %p141, %p142
    %p144 = scmp.ne.s32.totalorder %s136, %s138
    %p145 = scmp.eq.s32.totalorder %s18, 1
    %p146 = por %p144, %p145
    %p147 = scmp.ne.s32.totalorder %s138, %s139
    %p148 = scmp.eq.s32.totalorder %s18, 0
    %p149 = por %p147, %p148
    %p150 = scmp.ne.s32.totalorder %s138, %s139
    %p151 = scmp.eq.s32.totalorder %s19, 1
    %p152 = por %p150, %p151
    %p154 = scmp.ne.s32.totalorder %s139, %s153
    %p155 = scmp.eq.s32.totalorder %s19, 0
    %p156 = por %p154, %p155
    %s158 = sadd.s32 %s157, 1
    %p161 = scmp.eq.s32.totalorder %s13, 1
    %p162 = scmp.ne.s32.totalorder %s157, %s159
    %p163 = scmp.eq.s32.totalorder %s13, 0
    %p164 = por %p162, %p163
    %p165 = scmp.ne.s32.totalorder %s157, %s159
    %p166 = scmp.eq.s32.totalorder %s18, 1
    %p167 = por %p165, %p166
    %p168 = scmp.ne.s32.totalorder %s159, %s160
    %p169 = scmp.eq.s32.totalorder %s18, 0
    %p170 = por %p168, %p169
    %p171 = scmp.ne.s32.totalorder %s159, %s160
    %p172 = scmp.eq.s32.totalorder %s19, 1
    %p173 = por %p171, %p172
    %p175 = scmp.ne.s32.totalorder %s160, %s174
    %p176 = scmp.eq.s32.totalorder %s19, 0
    %p177 = por %p175, %p176
    %s178 = ssub.s32 %s13, %s20
    %p179 = scmp.eq.s32.totalorder %s178, 0
    %s181 = sadd.s32 %s180, 1
    %s182 = scalar_select %p179, %s180, %s181
    %p185 = pneg %p179
    %p186 = scmp.eq.s32.totalorder %s13, 1
    %p187 = por %p185, %p186
    %p188 = scmp.ne.s32.totalorder %s180, %s183
    %p189 = scmp.eq.s32.totalorder %s13, 0
    %p190 = por %p188, %p189
    %p191 = scmp.ne.s32.totalorder %s180, %s183
    %p192 = scmp.eq.s32.totalorder %s18, 1
    %p193 = por %p191, %p192
    %p194 = scmp.ne.s32.totalorder %s183, %s184
    %p195 = scmp.eq.s32.totalorder %s18, 0
    %p196 = por %p194, %p195
    %p197 = scmp.ne.s32.totalorder %s183, %s184
    %p198 = scmp.eq.s32.totalorder %s19, 1
    %p199 = por %p197, %p198
    %p201 = scmp.ne.s32.totalorder %s184, %s200
    %p202 = scmp.eq.s32.totalorder %s19, 0
    %p203 = por %p201, %p202
    %p204 = scmp.le.s32.totalorder 1, %s13
    %p205 = scmp.lt.s32.totalorder %s13, 3
    %p206 = pnand %p204, %p205
    %p207 = pneg %p206
    // Predicated region
    $region9: #{densenet_forward.29} parent=5 // pred_check
      _
    $region10: #{densenet_forward.29} parent=5 // pred_check_branch
      %209 = sbr.rel (%p206) target = $region12
    $region11: #{densenet_forward.29} parent=5 // pred_region
      %s210 = ssub.s32 %s13, 1
      // Predicated region
      $region13: #{densenet_forward.29} parent=11 // pred_check
        %p211 = pneg %p86
      $region14: #{densenet_forward.29} parent=11 // pred_check_branch
        %213 = sbr.rel (%p211) target = $region16
      $region15: #{densenet_forward.29} parent=11 // pred_region
        _
      $region16: #{densenet_forward.29} parent=11 // pred_fallthru
        _
      // Predicated region
      $region17: #{densenet_forward.29} parent=11 // pred_check
        %p214 = pneg %p107
      $region18: #{densenet_forward.29} parent=11 // pred_check_branch
        %216 = sbr.rel (%p214) target = $region20
      $region19: #{densenet_forward.29} parent=11 // pred_region
        _
      $region20: #{densenet_forward.29} parent=11 // pred_fallthru
        _
      // Predicated region
      $region21: #{densenet_forward.29} parent=11 // pred_check
        %p217 = pneg %p128
      $region22: #{densenet_forward.29} parent=11 // pred_check_branch
        %219 = sbr.rel (%p217) target = $region24
      $region23: #{densenet_forward.29} parent=11 // pred_region
        _
      $region24: #{densenet_forward.29} parent=11 // pred_fallthru
        _
      // Predicated region
      $region25: #{densenet_forward.29} parent=11 // pred_check
        %p220 = pneg %p149
      $region26: #{densenet_forward.29} parent=11 // pred_check_branch
        %222 = sbr.rel (%p220) target = $region28
      $region27: #{densenet_forward.29} parent=11 // pred_region
        _
      $region28: #{densenet_forward.29} parent=11 // pred_fallthru
        _
      // Predicated region
      $region29: #{densenet_forward.29} parent=11 // pred_check
        %p223 = pneg %p170
      $region30: #{densenet_forward.29} parent=11 // pred_check_branch
        %225 = sbr.rel (%p223) target = $region32
      $region31: #{densenet_forward.29} parent=11 // pred_region
        _
      $region32: #{densenet_forward.29} parent=11 // pred_fallthru
        _
    $region12: #{densenet_forward.29} parent=5 // pred_fallthru
      _
    %p226 = scmp.lt.s32.totalorder %s13, 2
    // Predicated region
    $region33: #{densenet_forward.29} parent=5 // pred_check
      %p227 = pneg %p226
    $region34: #{densenet_forward.29} parent=5 // pred_check_branch
      %229 = sbr.rel (%p227) target = $region36
    $region35: #{densenet_forward.29} parent=5 // pred_region
      // Predicated region
      $region37: #{densenet_forward.29} parent=35 // pred_check
        %p230 = pneg %p33
      $region38: #{densenet_forward.29} parent=35 // pred_check_branch
        %232 = sbr.rel (%p230) target = $region40
      $region39: #{densenet_forward.29} parent=35 // pred_region
        %s233 = smul.u32 8, %s13
        %p234 = scmp.lt.s32.totalorder %s233, 15
        %s235 = scalar_select %p234, %s233, 15
        %s236 = smul.addr %s235, 8
        %s237 = scalar_lea.vmem %s0, %s236
        %s238 = smul.u32 8, %s13
      $region40: #{densenet_forward.29} parent=35 // pred_fallthru
        _
      // Predicated region
      $region41: #{densenet_forward.29} parent=35 // pred_check
        %p239 = pneg %p59
      $region42: #{densenet_forward.29} parent=35 // pred_check_branch
        %241 = sbr.rel (%p239) target = $region44
      $region43: #{densenet_forward.29} parent=35 // pred_region
        %s242 = smul.u32 8, %s13
        %p243 = scmp.lt.s32.totalorder %s242, 15
        %s244 = scalar_select %p243, %s242, 15
        %s245 = smul.addr %s244, 8
        %s246 = scalar_lea.vmem %s1, %s245
        %s247 = smul.u32 8, %s13
      $region44: #{densenet_forward.29} parent=35 // pred_fallthru
        _
    $region36: #{densenet_forward.29} parent=5 // pred_fallthru
      _
    %p248 = scmp.le.s32.totalorder 1, %s13
    %p249 = scmp.lt.s32.totalorder %s13, 3
    %p250 = pnand %p248, %p249
    %p251 = pneg %p250
    // Predicated region
    $region45: #{densenet_forward.29} parent=5 // pred_check
      _
    $region46: #{densenet_forward.29} parent=5 // pred_check_branch
      %253 = sbr.rel (%p250) target = $region48
    $region47: #{densenet_forward.29} parent=5 // pred_region
      %s254 = ssub.s32 %s13, 1
      %s255 = smul.u32 8, %s18
      %p256 = scmp.lt.s32.totalorder %s255, 15
      %s257 = scalar_select %p256, %s255, 15
      %s258 = smul.addr %s257, 8
      %s259 = scalar_lea.vmem %s0, %s258
      %p260 = pneg %p39
      %p261 = pneg %p36
      %s262 = smul.u32 8, %s18
      %p263 = scmp.lt.s32.totalorder %s262, 15
      %s264 = scalar_select %p263, %s262, 15
      %s265 = smul.addr %s264, 8
      %s266 = scalar_lea.vmem %s1, %s265
      %p267 = pneg %p65
      %p268 = pneg %p62
      %p269 = pneg %p86
      %p270 = pneg %p83
      %p271 = pneg %p107
      %p272 = pneg %p104
      %p273 = pneg %p128
      %p274 = pneg %p125
      %p275 = pneg %p149
      %p276 = pneg %p146
      %p277 = pneg %p170
      %p278 = pneg %p167
      %p279 = pneg %p196
      %p280 = pneg %p193
      %s281 = smul.u32 8, %s18
      %p282 = scmp.lt.s32.totalorder %s281, 15
      %s283 = scalar_select %p282, %s281, 15
      %s284 = smul.addr %s283, 8
      %s285 = scalar_lea.vmem %s7, %s284
      %s286 = smul.u32 8, %s18
      %p287 = scmp.lt.s32.totalorder %s286, 15
      %s288 = scalar_select %p287, %s286, 15
      %s289 = smul.addr %s288, 8
      %s290 = scalar_lea.vmem %s0, %s289
      %s291 = smul.u32 8, %s18
      %s292 = smul.u32 8, %s18
      %p293 = scmp.lt.s32.totalorder %s292, 15
      %s294 = scalar_select %p293, %s292, 15
      %s295 = smul.addr %s294, 8
      %s296 = scalar_lea.vmem %s1, %s295
      %s297 = smul.u32 8, %s18
      %s298 = smul.u32 8, %s18
      %p299 = scmp.lt.s32.totalorder %s298, 15
      %s300 = scalar_select %p299, %s298, 15
      %s301 = smul.addr %s300, 8
      %s302 = scalar_lea.vmem %s7, %s301
      %s303 = smul.u32 8, %s18
      %v305 = vld [vmem:[%s290] sm:$0xff]
      %v306 = vld [vmem:[%s290 + $0x8] sm:$0xff]
      %v307 = vld [vmem:[%s290 + $0x10] sm:$0xff]
      %v308 = vld [vmem:[%s290 + $0x18] sm:$0xff]
      %v309 = vld [vmem:[%s290 + $0x20] sm:$0xff]
      %v310 = vld [vmem:[%s290 + $0x28] sm:$0xff]
      %v311 = vld [vmem:[%s290 + $0x30] sm:$0xff]
      %v312 = vld [vmem:[%s290 + $0x38] sm:$0xff]
      %v313 = vld [vmem:[%s3] sm:$0x1]
      %v315 = vlaneseq
      %v316 = vshrl.u32 %v315, 7
      %v317 = vsub.s32 0, %v316
      %v318 = vrot.slane %v313, %v317
      %v320 = vmul.f32 %v305, %v318
      %v321 = vmul.f32 %v306, %v318
      %v322 = vmul.f32 %v307, %v318
      %v323 = vmul.f32 %v308, %v318
      %v324 = vmul.f32 %v309, %v318
      %v325 = vmul.f32 %v310, %v318
      %v326 = vmul.f32 %v311, %v318
      %v327 = vmul.f32 %v312, %v318
      %v328 = vld [vmem:[%s4] sm:$0x1]
      %v330 = vlaneseq
      %v331 = vshrl.u32 %v330, 7
      %v332 = vsub.s32 0, %v331
      %v333 = vrot.slane %v328, %v332
      %v335 = vadd.f32 %v320, %v333
      %v336 = vadd.f32 %v321, %v333
      %v337 = vadd.f32 %v322, %v333
      %v338 = vadd.f32 %v323, %v333
      %v339 = vadd.f32 %v324, %v333
      %v340 = vadd.f32 %v325, %v333
      %v341 = vadd.f32 %v326, %v333
      %v342 = vadd.f32 %v327, %v333
      %v343 = vmax.f32 %v335, 0.0
      %v344 = vmax.f32 %v336, 0.0
      %v345 = vmax.f32 %v337, 0.0
      %v346 = vmax.f32 %v338, 0.0
      %v347 = vmax.f32 %v339, 0.0
      %v348 = vmax.f32 %v340, 0.0
      %v349 = vmax.f32 %v341, 0.0
      %v350 = vmax.f32 %v342, 0.0
      %v351 = vpack.c.bf16 %v344, %v343
      %v352 = vpack.c.bf16 %v346, %v345
      %v353 = vpack.c.bf16 %v348, %v347
      %v354 = vpack.c.bf16 %v350, %v349
      %v355 = vld [vmem:[%s2] sm:$0xf]
      %v356 = vld [vmem:[%s2 + $0x4] sm:$0xf]
      %v357 = vld [vmem:[%s296] sm:$0xff]
      %v358 = vld [vmem:[%s296 + $0x8] sm:$0xff]
      %v359 = vld [vmem:[%s296 + $0x10] sm:$0xff]
      %v360 = vld [vmem:[%s296 + $0x18] sm:$0xff]
      %v361 = vld [vmem:[%s296 + $0x20] sm:$0xff]
      %v362 = vld [vmem:[%s296 + $0x28] sm:$0xff]
      %v363 = vld [vmem:[%s296 + $0x30] sm:$0xff]
      %v364 = vld [vmem:[%s296 + $0x38] sm:$0xff]
      %365 = vrot.lane.b32.xlu0 %v318, 112
      %v366 = vpop.permute.xlu0 %365
      %v368 = vmul.f32 %v357, %v366
      %v369 = vmul.f32 %v358, %v366
      %v370 = vmul.f32 %v359, %v366
      %v371 = vmul.f32 %v360, %v366
      %v372 = vmul.f32 %v361, %v366
      %v373 = vmul.f32 %v362, %v366
      %v374 = vmul.f32 %v363, %v366
      %v375 = vmul.f32 %v364, %v366
      %376 = vrot.lane.b32.xlu0 %v333, 112
      %v377 = vpop.permute.xlu0 %376
      %v379 = vadd.f32 %v368, %v377
      %v380 = vadd.f32 %v369, %v377
      %v381 = vadd.f32 %v370, %v377
      %v382 = vadd.f32 %v371, %v377
      %v383 = vadd.f32 %v372, %v377
      %v384 = vadd.f32 %v373, %v377
      %v385 = vadd.f32 %v374, %v377
      %v386 = vadd.f32 %v375, %v377
      %v387 = vmax.f32 %v379, 0.0
      %v388 = vmax.f32 %v380, 0.0
      %v389 = vmax.f32 %v381, 0.0
      %v390 = vmax.f32 %v382, 0.0
      %v391 = vmax.f32 %v383, 0.0
      %v392 = vmax.f32 %v384, 0.0
      %v393 = vmax.f32 %v385, 0.0
      %v394 = vmax.f32 %v386, 0.0
      %v395 = vpack.c.bf16 %v388, %v387
      %v396 = vpack.c.bf16 %v390, %v389
      %v397 = vpack.c.bf16 %v392, %v391
      %v398 = vpack.c.bf16 %v394, %v393
      %v399 = vld [vmem:[%s2 + $0x8] sm:$0xf]
      %vm400 = vcmask 64512
      %v402 = vsel %vm400, %v395, 0
      %v405 = vsel %vm400, %v396, 0
      %v408 = vsel %vm400, %v397, 0
      %v411 = vsel %vm400, %v398, 0
      %vm413 = vcmask 1043456
      %v415 = vsel %vm413, %v399, 0
      %417 = vmatprep.subr.bf16.mxu0 0
      %418 = vmatpush1.bf16.msra.mxu0 %v415
      %419 = vmatprep.subr.bf16.mxu0 0
      %420 = vmatpush1.bf16.msra.mxu0 0
      %421 = vmatprep.subr.bf16.mxu0 0
      %422 = vmatpush1.bf16.msra.mxu0 0
      %423 = vmatprep.subr.bf16.mxu0 0
      %424 = vmatpush1.bf16.msra.mxu0 0
      %425 = vmatprep.subr.bf16.mxu0 0
      %426 = vmatpush1.bf16.msra.mxu0 0
      %427 = vmatprep.subr.bf16.mxu0 0
      %428 = vmatpush1.bf16.msra.mxu0 0
      %429 = vmatprep.subr.bf16.mxu0 0
      %430 = vmatpush1.bf16.msra.mxu0 0
      %431 = vmatprep.subr.bf16.mxu0 0
      %432 = vmatpush1.bf16.msra.mxu0 0
      %433 = vmatprep.subr.bf16.mxu0 0
      %434 = vmatpush1.bf16.msra.mxu0 0
      %435 = vmatprep.subr.bf16.mxu0 0
      %436 = vmatpush1.bf16.msra.mxu0 0
      %437 = vmatprep.subr.bf16.mxu0 0
      %438 = vmatpush1.bf16.msra.mxu0 0
      %439 = vmatprep.subr.bf16.mxu0 0
      %440 = vmatpush1.bf16.msra.mxu0 0
      %441 = vmatprep.subr.bf16.mxu0 0
      %442 = vmatpush1.bf16.msra.mxu0 0
      %443 = vmatprep.subr.bf16.mxu0 0
      %444 = vmatpush1.bf16.msra.mxu0 0
      %445 = vmatprep.subr.bf16.mxu0 0
      %446 = vmatpush1.bf16.msra.mxu0 0
      %447 = vmatprep.subr.bf16.mxu0 0
      %448 = vmatpush1.bf16.msra.mxu0 0
      %449 = vmatprep.mubr.bf16.mxu0 0
      %450 = vmatmul.mubr.bf16.gmra.mrb[0].mxu0 %v402
      %v451 = vpop.f32.mrb[0].mxu0
      %v452 = vadd.f32 0.0, %v451
      %v453 = vpop.f32.mrb[0].mxu0
      %v454 = vpop.f32.mrb[0].mxu0
      %v455 = vadd.f32 0.0, %v454
      %v456 = vpop.f32.mrb[0].mxu0
      %457 = vmatprep.mubr.bf16.mxu0 0
      %458 = vmatmul.mubr.bf16.gmra.mrb[0].mxu0 %v405
      %v459 = vpop.f32.mrb[0].mxu0
      %v460 = vadd.f32 0.0, %v459
      %v461 = vpop.f32.mrb[0].mxu0
      %v462 = vpop.f32.mrb[0].mxu0
      %v463 = vadd.f32 0.0, %v462
      %v464 = vpop.f32.mrb[0].mxu0
      %465 = vmatprep.mubr.bf16.mxu0 0
      %466 = vmatmul.mubr.bf16.gmra.mrb[0].mxu0 %v408
      %v467 = vpop.f32.mrb[0].mxu0
      %v468 = vadd.f32 0.0, %v467
      %v469 = vpop.f32.mrb[0].mxu0
      %v470 = vpop.f32.mrb[0].mxu0
      %v471 = vadd.f32 0.0, %v470
      %v472 = vpop.f32.mrb[0].mxu0
      %473 = vmatprep.mubr.bf16.mxu0 0
      %474 = vmatmul.mubr.bf16.gmra.mrb[0].mxu0 %v411
      %v475 = vpop.f32.mrb[0].mxu0
      %v476 = vadd.f32 0.0, %v475
      %v477 = vpop.f32.mrb[0].mxu0
      %v478 = vpop.f32.mrb[0].mxu0
      %v479 = vadd.f32 0.0, %v478
      %v480 = vpop.f32.mrb[0].mxu0
      %481 = vdwg.mxu0
      %v484 = vunpack.c.l.b16 %v355
      %v485 = vunpack.c.l.b16 %v356
      %v486 = vpack.c.b16 %v485, %v484
      %vm488 = vcmask 130048
      %v490 = vsel %vm488, %v351, 0
      %v493 = vsel %vm488, %v352, 0
      %v496 = vsel %vm488, %v353, 0
      %v499 = vsel %vm488, %v354, 0
      %501 = vmatprep.subr.bf16.mxu0 0
      %502 = vmatpush1.bf16.msra.mxu0 %v486
      %503 = vmatprep.subr.bf16.mxu0 0
      %504 = vmatpush1.bf16.msra.mxu0 0
      %505 = vmatprep.subr.bf16.mxu0 0
      %506 = vmatpush1.bf16.msra.mxu0 0
      %507 = vmatprep.subr.bf16.mxu0 0
      %508 = vmatpush1.bf16.msra.mxu0 0
      %509 = vmatprep.subr.bf16.mxu0 0
      %510 = vmatpush1.bf16.msra.mxu0 0
      %511 = vmatprep.subr.bf16.mxu0 0
      %512 = vmatpush1.bf16.msra.mxu0 0
      %513 = vmatprep.subr.bf16.mxu0 0
      %514 = vmatpush1.bf16.msra.mxu0 0
      %515 = vmatprep.subr.bf16.mxu0 0
      %516 = vmatpush1.bf16.msra.mxu0 0
      %517 = vmatprep.subr.bf16.mxu0 0
      %518 = vmatpush1.bf16.msra.mxu0 0
      %519 = vmatprep.subr.bf16.mxu0 0
      %520 = vmatpush1.bf16.msra.mxu0 0
      %521 = vmatprep.subr.bf16.mxu0 0
      %522 = vmatpush1.bf16.msra.mxu0 0
      %523 = vmatprep.subr.bf16.mxu0 0
      %524 = vmatpush1.bf16.msra.mxu0 0
      %525 = vmatprep.subr.bf16.mxu0 0
      %526 = vmatpush1.bf16.msra.mxu0 0
      %527 = vmatprep.subr.bf16.mxu0 0
      %528 = vmatpush1.bf16.msra.mxu0 0
      %529 = vmatprep.subr.bf16.mxu0 0
      %530 = vmatpush1.bf16.msra.mxu0 0
      %531 = vmatprep.subr.bf16.mxu0 0
      %532 = vmatpush1.bf16.msra.mxu0 0
      %533 = vmatprep.mubr.bf16.mxu0 0
      %534 = vmatmul.mubr.bf16.gmra.mrb[0].mxu0 %v490
      %v535 = vpop.f32.mrb[0].mxu0
      %v536 = vadd.f32 %v452, %v535
      %v537 = vpop.f32.mrb[0].mxu0
      %v538 = vpop.f32.mrb[0].mxu0
      %v539 = vadd.f32 %v455, %v538
      %v540 = vpop.f32.mrb[0].mxu0
      %541 = vmatprep.mubr.bf16.mxu0 0
      %542 = vmatmul.mubr.bf16.gmra.mrb[0].mxu0 %v493
      %v543 = vpop.f32.mrb[0].mxu0
      %v544 = vadd.f32 %v460, %v543
      %v545 = vpop.f32.mrb[0].mxu0
      %v546 = vpop.f32.mrb[0].mxu0
      %v547 = vadd.f32 %v463, %v546
      %v548 = vpop.f32.mrb[0].mxu0
      %549 = vmatprep.mubr.bf16.mxu0 0
      %550 = vmatmul.mubr.bf16.gmra.mrb[0].mxu0 %v496
      %v551 = vpop.f32.mrb[0].mxu0
      %v552 = vadd.f32 %v468, %v551
      %v553 = vpop.f32.mrb[0].mxu0
      %v554 = vpop.f32.mrb[0].mxu0
      %v555 = vadd.f32 %v471, %v554
      %v556 = vpop.f32.mrb[0].mxu0
      %557 = vmatprep.mubr.bf16.mxu0 0
      %558 = vmatmul.mubr.bf16.gmra.mrb[0].mxu0 %v499
      %v559 = vpop.f32.mrb[0].mxu0
      %v560 = vadd.f32 %v476, %v559
      %v561 = vpop.f32.mrb[0].mxu0
      %v562 = vpop.f32.mrb[0].mxu0
      %v563 = vadd.f32 %v479, %v562
      %v564 = vpop.f32.mrb[0].mxu0
      %565 = vdwg.mxu0
      %v566 = vld [vmem:[%s5] sm:$0x1]
      %v568 = vlaneseq
      %v569 = vshrl.u32 %v568, 7
      %v570 = vsub.s32 0, %v569
      %v571 = vrot.slane %v566, %v570
      %v573 = vmul.f32 %v536, %v571
      %v574 = vmul.f32 %v539, %v571
      %v575 = vmul.f32 %v544, %v571
      %v576 = vmul.f32 %v547, %v571
      %v577 = vmul.f32 %v552, %v571
      %v578 = vmul.f32 %v555, %v571
      %v579 = vmul.f32 %v560, %v571
      %v580 = vmul.f32 %v563, %v571
      %v581 = vld [vmem:[%s6] sm:$0x1]
      %v583 = vlaneseq
      %v584 = vshrl.u32 %v583, 7
      %v585 = vsub.s32 0, %v584
      %v586 = vrot.slane %v581, %v585
      %v588 = vadd.f32 %v573, %v586
      %v589 = vadd.f32 %v574, %v586
      %v590 = vadd.f32 %v575, %v586
      %v591 = vadd.f32 %v576, %v586
      %v592 = vadd.f32 %v577, %v586
      %v593 = vadd.f32 %v578, %v586
      %v594 = vadd.f32 %v579, %v586
      %v595 = vadd.f32 %v580, %v586
      %v596 = vmax.f32 %v588, 0.0
      %v597 = vmax.f32 %v589, 0.0
      %v598 = vmax.f32 %v590, 0.0
      %v599 = vmax.f32 %v591, 0.0
      %v600 = vmax.f32 %v592, 0.0
      %v601 = vmax.f32 %v593, 0.0
      %v602 = vmax.f32 %v594, 0.0
      %v603 = vmax.f32 %v595, 0.0
      %604 = vst.msk [vmem:[%s302] sm:$0xff] %vm488, %v596
      %605 = vst.msk [vmem:[%s302 + $0x8] sm:$0xff] %vm488, %v597
      %606 = vst.msk [vmem:[%s302 + $0x10] sm:$0xff] %vm488, %v598
      %607 = vst.msk [vmem:[%s302 + $0x18] sm:$0xff] %vm488, %v599
      %608 = vst.msk [vmem:[%s302 + $0x20] sm:$0xff] %vm488, %v600
      %609 = vst.msk [vmem:[%s302 + $0x28] sm:$0xff] %vm488, %v601
      %610 = vst.msk [vmem:[%s302 + $0x30] sm:$0xff] %vm488, %v602
      %611 = vst.msk [vmem:[%s302 + $0x38] sm:$0xff] %vm488, %v603
      %s612 = smul.u32 8, %s18
      %p613 = scmp.lt.s32.totalorder %s612, 15
      %s614 = scalar_select %p613, %s612, 15
      %s615 = smul.addr %s614, 8
      %s616 = scalar_lea.vmem %s7, %s615
      // Predicated region
      $region49: #{densenet_forward.29} parent=47 // pred_check
        %p617 = pneg %p193
      $region50: #{densenet_forward.29} parent=47 // pred_check_branch
        %619 = sbr.rel (%p617) target = $region52
      $region51: #{densenet_forward.29} parent=47 // pred_region
        %s620 = smul.u32 8, %s18
      $region52: #{densenet_forward.29} parent=47 // pred_fallthru
        _
    $region48: #{densenet_forward.29} parent=5 // pred_fallthru
      _
    %p621 = scmp.le.s32.totalorder 2, %s13
    // Predicated region
    $region53: #{densenet_forward.29} parent=5 // pred_check
      %p622 = pneg %p621
    $region54: #{densenet_forward.29} parent=5 // pred_check_branch
      %624 = sbr.rel (%p622) target = $region56
    $region55: #{densenet_forward.29} parent=5 // pred_region
      %s625 = ssub.s32 %s13, 2
      // Predicated region
      $region57: #{densenet_forward.29} parent=55 // pred_check
        %p626 = pneg %p199
      $region58: #{densenet_forward.29} parent=55 // pred_check_branch
        %628 = sbr.rel (%p626) target = $region60
      $region59: #{densenet_forward.29} parent=55 // pred_region
        %s629 = smul.u32 8, %s19
        %p630 = scmp.lt.s32.totalorder %s629, 15
        %s631 = scalar_select %p630, %s629, 15
        %s632 = smul.addr %s631, 8
        %s633 = scalar_lea.vmem %s7, %s632
      $region60: #{densenet_forward.29} parent=55 // pred_fallthru
        _
    $region56: #{densenet_forward.29} parent=5 // pred_fallthru
      _
  $region6: #{densenet_forward.29} parent=0 // loop_footer
    %s17 = sadd.s32 1, %s13
  $region7: #{densenet_forward.29} parent=0 // loop_footer_branch
    %12 = sbr.rel target = $region3
  $region8: #{densenet_forward.29} parent=0 // loop_exit
    _

// kernel: densenet_forward.28
$region0: #{densenet_forward.28}
  #allocation0 [shape = 'u32[]', space=smem, size = 0x4, offset = 0x4, fixed_abs, tag = 'smem constant byte address 0x4 - core index']
  #allocation1 [shape = 'u32[144,128]{1,0:T(1,128)}', space=vmem, size = 0x12000, scoped, tag = 'internal scratch']
  %s0 = inlined_call_operand.vmem [shape: f32[2,10,10,16], index: 0, kind: input, shape index: {}]
  %s1 = inlined_call_operand.vmem [shape: bf16[9,16,8], index: 1, kind: input, shape index: {}]
  %s2 = inlined_call_operand.vmem [shape: f32[2,8,8,8], index: 2, kind: output, shape index: {}]
  %s3 = sld [smem:[#allocation0]]
  $region41: #{densenet_forward.28} parent=0
    _
  %s5 = ssub.s32 1, %s3
  %s6 = scalar_select 0, %s5, %s3
  loop: start=0, step=1, limit=4
  $region2: #{densenet_forward.28} parent=0 // loop_pre_header
    _
  $region3: #{densenet_forward.28} parent=0 // loop_header
    %s8 = sphi 0, %s12
    %p9 = scmp.ge.s32.totalorder %s8, 4
    %s18 = sphi 0, %s20
    %s21 = sphi 0, %s18
    %s22 = sphi 0, %s21
    %s38 = sphi 0, %s22
    %s42 = sphi 0, %s42
    %s44 = sphi 0, %s42
    %s45 = sphi 0, %s44
    %s59 = sphi 0, %s45
    %s65 = sphi 0, %s67
    %s68 = sphi 0, %s65
    %s69 = sphi 0, %s68
    %s85 = sphi 0, %s69
  $region4: #{densenet_forward.28} parent=0 // loop_header_branch
    %11 = sbr.rel (%p9) target = $region8
  $region5: #{densenet_forward.28} parent=0 // loop_body
    %s13 = ssub.s32 %s8, 1
    %s14 = ssub.s32 %s8, 2
    %s15 = sadd.s32 %s8, 1
    %s16 = ssub.s32 %s8, %s15
    %p17 = scmp.eq.s32.totalorder %s16, 0
    %s19 = sadd.s32 %s18, 1
    %s20 = scalar_select %p17, %s18, %s19
    %p23 = pneg %p17
    %p24 = scmp.eq.s32.totalorder %s8, 1
    %p25 = por %p23, %p24
    %p26 = scmp.ne.s32.totalorder %s18, %s21
    %p27 = scmp.eq.s32.totalorder %s8, 0
    %p28 = por %p26, %p27
    %p29 = scmp.ne.s32.totalorder %s18, %s21
    %p30 = scmp.eq.s32.totalorder %s13, 1
    %p31 = por %p29, %p30
    %p32 = scmp.ne.s32.totalorder %s21, %s22
    %p33 = scmp.eq.s32.totalorder %s13, 0
    %p34 = por %p32, %p33
    %p35 = scmp.ne.s32.totalorder %s21, %s22
    %p36 = scmp.eq.s32.totalorder %s14, 1
    %p37 = por %p35, %p36
    %p39 = scmp.ne.s32.totalorder %s22, %s38
    %p40 = scmp.eq.s32.totalorder %s14, 0
    %p41 = por %p39, %p40
    %s43 = sadd.s32 %s42, 1
    %p46 = scmp.eq.s32.totalorder %s8, 1
    %p47 = scmp.ne.s32.totalorder %s42, %s44
    %p48 = scmp.eq.s32.totalorder %s8, 0
    %p49 = por %p47, %p48
    %p50 = scmp.ne.s32.totalorder %s42, %s44
    %p51 = scmp.eq.s32.totalorder %s13, 1
    %p52 = por %p50, %p51
    %p53 = scmp.ne.s32.totalorder %s44, %s45
    %p54 = scmp.eq.s32.totalorder %s13, 0
    %p55 = por %p53, %p54
    %p56 = scmp.ne.s32.totalorder %s44, %s45
    %p57 = scmp.eq.s32.totalorder %s14, 1
    %p58 = por %p56, %p57
    %p60 = scmp.ne.s32.totalorder %s45, %s59
    %p61 = scmp.eq.s32.totalorder %s14, 0
    %p62 = por %p60, %p61
    %s63 = ssub.s32 %s8, %s15
    %p64 = scmp.eq.s32.totalorder %s63, 0
    %s66 = sadd.s32 %s65, 1
    %s67 = scalar_select %p64, %s65, %s66
    %p70 = pneg %p64
    %p71 = scmp.eq.s32.totalorder %s8, 1
    %p72 = por %p70, %p71
    %p73 = scmp.ne.s32.totalorder %s65, %s68
    %p74 = scmp.eq.s32.totalorder %s8, 0
    %p75 = por %p73, %p74
    %p76 = scmp.ne.s32.totalorder %s65, %s68
    %p77 = scmp.eq.s32.totalorder %s13, 1
    %p78 = por %p76, %p77
    %p79 = scmp.ne.s32.totalorder %s68, %s69
    %p80 = scmp.eq.s32.totalorder %s13, 0
    %p81 = por %p79, %p80
    %p82 = scmp.ne.s32.totalorder %s68, %s69
    %p83 = scmp.eq.s32.totalorder %s14, 1
    %p84 = por %p82, %p83
    %p86 = scmp.ne.s32.totalorder %s69, %s85
    %p87 = scmp.eq.s32.totalorder %s14, 0
    %p88 = por %p86, %p87
    %p89 = scmp.le.s32.totalorder 1, %s8
    %p90 = scmp.lt.s32.totalorder %s8, 3
    %p91 = pnand %p89, %p90
    %p92 = pneg %p91
    // Predicated region
    $region9: #{densenet_forward.28} parent=5 // pred_check
      _
    $region10: #{densenet_forward.28} parent=5 // pred_check_branch
      %94 = sbr.rel (%p91) target = $region12
    $region11: #{densenet_forward.28} parent=5 // pred_region
      %s95 = ssub.s32 %s8, 1
      // Predicated region
      $region13: #{densenet_forward.28} parent=11 // pred_check
        %p96 = pneg %p55
      $region14: #{densenet_forward.28} parent=11 // pred_check_branch
        %98 = sbr.rel (%p96) target = $region16
      $region15: #{densenet_forward.28} parent=11 // pred_region
        _
      $region16: #{densenet_forward.28} parent=11 // pred_fallthru
        _
    $region12: #{densenet_forward.28} parent=5 // pred_fallthru
      _
    %p99 = scmp.lt.s32.totalorder %s8, 2
    // Predicated region
    $region17: #{densenet_forward.28} parent=5 // pred_check
      %p100 = pneg %p99
    $region18: #{densenet_forward.28} parent=5 // pred_check_branch
      %102 = sbr.rel (%p100) target = $region20
    $region19: #{densenet_forward.28} parent=5 // pred_region
      // Predicated region
      $region21: #{densenet_forward.28} parent=19 // pred_check
        %p103 = pneg %p28
      $region22: #{densenet_forward.28} parent=19 // pred_check_branch
        %105 = sbr.rel (%p103) target = $region24
      $region23: #{densenet_forward.28} parent=19 // pred_region
        %p106 = scmp.lt.s32.totalorder %s8, 1
        %s107 = scalar_select %p106, %s8, 1
        %s108 = smul.addr %s107, 20
        %s109 = smul.addr %s108, 8
        %s110 = scalar_lea.vmem %s0, %s109
      $region24: #{densenet_forward.28} parent=19 // pred_fallthru
        _
    $region20: #{densenet_forward.28} parent=5 // pred_fallthru
      _
    %p111 = scmp.le.s32.totalorder 1, %s8
    %p112 = scmp.lt.s32.totalorder %s8, 3
    %p113 = pnand %p111, %p112
    %p114 = pneg %p113
    // Predicated region
    $region25: #{densenet_forward.28} parent=5 // pred_check
      _
    $region26: #{densenet_forward.28} parent=5 // pred_check_branch
      %116 = sbr.rel (%p113) target = $region28
    $region27: #{densenet_forward.28} parent=5 // pred_region
      %s117 = ssub.s32 %s8, 1
      %p118 = scmp.lt.s32.totalorder %s13, 1
      %s119 = scalar_select %p118, %s13, 1
      %s120 = smul.addr %s119, 20
      %s121 = smul.addr %s120, 8
      %s122 = scalar_lea.vmem %s0, %s121
      %p123 = pneg %p34
      %p124 = pneg %p31
      %p125 = pneg %p55
      %p126 = pneg %p52
      %p127 = pneg %p81
      %p128 = pneg %p78
      %p129 = scmp.lt.s32.totalorder %s13, 1
      %s130 = scalar_select %p129, %s13, 1
      %s131 = smul.addr %s130, 8
      %s132 = smul.addr %s131, 8
      %s133 = scalar_lea.vmem %s2, %s132
      %p134 = scmp.lt.s32.totalorder %s13, 1
      %s135 = scalar_select %p134, %s13, 1
      %s136 = smul.addr %s135, 20
      %s137 = smul.addr %s136, 8
      %s138 = scalar_lea.vmem %s0, %s137
      %p139 = scmp.lt.s32.totalorder %s13, 1
      %s140 = scalar_select %p139, %s13, 1
      %s141 = smul.addr %s140, 8
      %s142 = smul.addr %s141, 8
      %s143 = scalar_lea.vmem %s2, %s142
      %v145 = vld [vmem:[%s138] sm:$0xff]
      %v146 = vld [vmem:[%s138 + $0x10] sm:$0xff]
      %v147 = vld [vmem:[%s138 + $0x20] sm:$0xff]
      %v148 = vld [vmem:[%s138 + $0x30] sm:$0xff]
      %v149 = vld [vmem:[%s138 + $0x40] sm:$0xff]
      %v150 = vld [vmem:[%s138 + $0x50] sm:$0xff]
      %v151 = vld [vmem:[%s138 + $0x60] sm:$0xff]
      %v152 = vld [vmem:[%s138 + $0x70] sm:$0xff]
      %v153 = vpack.c.bf16 %v146, %v145
      %v154 = vpack.c.bf16 %v148, %v147
      %v155 = vpack.c.bf16 %v150, %v149
      %v156 = vpack.c.bf16 %v152, %v151
      %v157 = vld [vmem:[%s1] sm:$0xf]
      %v158 = vld [vmem:[%s1 + $0x4] sm:$0xf]
      %v159 = vld [vmem:[%s138 + $0x1] sm:$0xff]
      %v160 = vld [vmem:[%s138 + $0x11] sm:$0xff]
      %v161 = vld [vmem:[%s138 + $0x21] sm:$0xff]
      %v162 = vld [vmem:[%s138 + $0x31] sm:$0xff]
      %v163 = vld [vmem:[%s138 + $0x41] sm:$0xff]
      %v164 = vld [vmem:[%s138 + $0x51] sm:$0xff]
      %v165 = vld [vmem:[%s138 + $0x61] sm:$0xff]
      %v166 = vld [vmem:[%s138 + $0x71] sm:$0xff]
      %v167 = vpack.c.bf16 %v160, %v159
      %v168 = vpack.c.bf16 %v162, %v161
      %v169 = vpack.c.bf16 %v164, %v163
      %v170 = vpack.c.bf16 %v166, %v165
      %s171 = scalar_lea.vmem %s1, 8
      %v172 = vld [vmem:[%s171] sm:$0xf]
      %v173 = vld [vmem:[%s171 + $0x4] sm:$0xf]
      %v176 = vunpack.c.l.b16 %v172
      %v177 = vunpack.c.l.b16 %v173
      %v178 = vpack.c.b16 %v177, %v176
      %vm180 = vcmask 130048
      %v182 = vsel %vm180, %v167, 0
      %v185 = vsel %vm180, %v168, 0
      %v188 = vsel %vm180, %v169, 0
      %v191 = vsel %vm180, %v170, 0
      %193 = vmatprep.subr.bf16.mxu0 0
      %194 = vmatpush1.bf16.msra.mxu0 %v178
      %195 = vmatprep.subr.bf16.mxu0 0
      %196 = vmatpush1.bf16.msra.mxu0 0
      %197 = vmatprep.subr.bf16.mxu0 0
      %198 = vmatpush1.bf16.msra.mxu0 0
      %199 = vmatprep.subr.bf16.mxu0 0
      %200 = vmatpush1.bf16.msra.mxu0 0
      %201 = vmatprep.subr.bf16.mxu0 0
      %202 = vmatpush1.bf16.msra.mxu0 0
      %203 = vmatprep.subr.bf16.mxu0 0
      %204 = vmatpush1.bf16.msra.mxu0 0
      %205 = vmatprep.subr.bf16.mxu0 0
      %206 = vmatpush1.bf16.msra.mxu0 0
      %207 = vmatprep.subr.bf16.mxu0 0
      %208 = vmatpush1.bf16.msra.mxu0 0
      %209 = vmatprep.subr.bf16.mxu0 0
      %210 = vmatpush1.bf16.msra.mxu0 0
      %211 = vmatprep.subr.bf16.mxu0 0
      %212 = vmatpush1.bf16.msra.mxu0 0
      %213 = vmatprep.subr.bf16.mxu0 0
      %214 = vmatpush1.bf16.msra.mxu0 0
      %215 = vmatprep.subr.bf16.mxu0 0
      %216 = vmatpush1.bf16.msra.mxu0 0
      %217 = vmatprep.subr.bf16.mxu0 0
      %218 = vmatpush1.bf16.msra.mxu0 0
      %219 = vmatprep.subr.bf16.mxu0 0
      %220 = vmatpush1.bf16.msra.mxu0 0
      %221 = vmatprep.subr.bf16.mxu0 0
      %222 = vmatpush1.bf16.msra.mxu0 0
      %223 = vmatprep.subr.bf16.mxu0 0
      %224 = vmatpush1.bf16.msra.mxu0 0
      %225 = vmatprep.mubr.bf16.mxu0 0
      %226 = vmatmul.mubr.bf16.gmra.mrb[0].mxu0 %v182
      %v227 = vpop.f32.mrb[0].mxu0
      %v228 = vadd.f32 0.0, %v227
      %v229 = vpop.f32.mrb[0].mxu0
      %v230 = vpop.f32.mrb[0].mxu0
      %v231 = vadd.f32 0.0, %v230
      %v232 = vpop.f32.mrb[0].mxu0
      %233 = vmatprep.mubr.bf16.mxu0 0
      %234 = vmatmul.mubr.bf16.gmra.mrb[0].mxu0 %v185
      %v235 = vpop.f32.mrb[0].mxu0
      %v236 = vadd.f32 0.0, %v235
      %v237 = vpop.f32.mrb[0].mxu0
      %v238 = vpop.f32.mrb[0].mxu0
      %v239 = vadd.f32 0.0, %v238
      %v240 = vpop.f32.mrb[0].mxu0
      %241 = vmatprep.mubr.bf16.mxu0 0
      %242 = vmatmul.mubr.bf16.gmra.mrb[0].mxu0 %v188
      %v243 = vpop.f32.mrb[0].mxu0
      %v244 = vadd.f32 0.0, %v243
      %v245 = vpop.f32.mrb[0].mxu0
      %v246 = vpop.f32.mrb[0].mxu0
      %v247 = vadd.f32 0.0, %v246
      %v248 = vpop.f32.mrb[0].mxu0
      %249 = vmatprep.mubr.bf16.mxu0 0
      %250 = vmatmul.mubr.bf16.gmra.mrb[0].mxu0 %v191
      %v251 = vpop.f32.mrb[0].mxu0
      %v252 = vadd.f32 0.0, %v251
      %v253 = vpop.f32.mrb[0].mxu0
      %v254 = vpop.f32.mrb[0].mxu0
      %v255 = vadd.f32 0.0, %v254
      %v256 = vpop.f32.mrb[0].mxu0
      %257 = vdwg.mxu0
      %v260 = vunpack.c.l.b16 %v157
      %v261 = vunpack.c.l.b16 %v158
      %v262 = vpack.c.b16 %v261, %v260
      %v265 = vsel %vm180, %v153, 0
      %v268 = vsel %vm180, %v154, 0
      %v271 = vsel %vm180, %v155, 0
      %v274 = vsel %vm180, %v156, 0
      %276 = vmatprep.subr.bf16.mxu0 0
      %277 = vmatpush1.bf16.msra.mxu0 %v262
      %278 = vmatprep.subr.bf16.mxu0 0
      %279 = vmatpush1.bf16.msra.mxu0 0
      %280 = vmatprep.subr.bf16.mxu0 0
      %281 = vmatpush1.bf16.msra.mxu0 0
      %282 = vmatprep.subr.bf16.mxu0 0
      %283 = vmatpush1.bf16.msra.mxu0 0
      %284 = vmatprep.subr.bf16.mxu0 0
      %285 = vmatpush1.bf16.msra.mxu0 0
      %286 = vmatprep.subr.bf16.mxu0 0
      %287 = vmatpush1.bf16.msra.mxu0 0
      %288 = vmatprep.subr.bf16.mxu0 0
      %289 = vmatpush1.bf16.msra.mxu0 0
      %290 = vmatprep.subr.bf16.mxu0 0
      %291 = vmatpush1.bf16.msra.mxu0 0
      %292 = vmatprep.subr.bf16.mxu0 0
      %293 = vmatpush1.bf16.msra.mxu0 0
      %294 = vmatprep.subr.bf16.mxu0 0
      %295 = vmatpush1.bf16.msra.mxu0 0
      %296 = vmatprep.subr.bf16.mxu0 0
      %297 = vmatpush1.bf16.msra.mxu0 0
      %298 = vmatprep.subr.bf16.mxu0 0
      %299 = vmatpush1.bf16.msra.mxu0 0
      %300 = vmatprep.subr.bf16.mxu0 0
      %301 = vmatpush1.bf16.msra.mxu0 0
      %302 = vmatprep.subr.bf16.mxu0 0
      %303 = vmatpush1.bf16.msra.mxu0 0
      %304 = vmatprep.subr.bf16.mxu0 0
      %305 = vmatpush1.bf16.msra.mxu0 0
      %306 = vmatprep.subr.bf16.mxu0 0
      %307 = vmatpush1.bf16.msra.mxu0 0
      %308 = vmatprep.mubr.bf16.mxu0 0
      %309 = vmatmul.mubr.bf16.gmra.mrb[0].mxu0 %v265
      %v310 = vpop.f32.mrb[0].mxu0
      %v311 = vadd.f32 %v228, %v310
      %v312 = vpop.f32.mrb[0].mxu0
      %v313 = vpop.f32.mrb[0].mxu0
      %v314 = vadd.f32 %v231, %v313
      %v315 = vpop.f32.mrb[0].mxu0
      %316 = vmatprep.mubr.bf16.mxu0 0
      %317 = vmatmul.mubr.bf16.gmra.mrb[0].mxu0 %v268
      %v318 = vpop.f32.mrb[0].mxu0
      %v319 = vadd.f32 %v236, %v318
      %v320 = vpop.f32.mrb[0].mxu0
      %v321 = vpop.f32.mrb[0].mxu0
      %v322 = vadd.f32 %v239, %v321
      %v323 = vpop.f32.mrb[0].mxu0
      %324 = vmatprep.mubr.bf16.mxu0 0
      %325 = vmatmul.mubr.bf16.gmra.mrb[0].mxu0 %v271
      %v326 = vpop.f32.mrb[0].mxu0
      %v327 = vadd.f32 %v244, %v326
      %v328 = vpop.f32.mrb[0].mxu0
      %v329 = vpop.f32.mrb[0].mxu0
      %v330 = vadd.f32 %v247, %v329
      %v331 = vpop.f32.mrb[0].mxu0
      %332 = vmatprep.mubr.bf16.mxu0 0
      %333 = vmatmul.mubr.bf16.gmra.mrb[0].mxu0 %v274
      %v334 = vpop.f32.mrb[0].mxu0
      %v335 = vadd.f32 %v252, %v334
      %v336 = vpop.f32.mrb[0].mxu0
      %v337 = vpop.f32.mrb[0].mxu0
      %v338 = vadd.f32 %v255, %v337
      %v339 = vpop.f32.mrb[0].mxu0
      %340 = vdwg.mxu0
      %v341 = vld [vmem:[%s138 + $0x2] sm:$0xff]
      %v342 = vld [vmem:[%s138 + $0x12] sm:$0xff]
      %v343 = vld [vmem:[%s138 + $0x22] sm:$0xff]
      %v344 = vld [vmem:[%s138 + $0x32] sm:$0xff]
      %v345 = vld [vmem:[%s138 + $0x42] sm:$0xff]
      %v346 = vld [vmem:[%s138 + $0x52] sm:$0xff]
      %v347 = vld [vmem:[%s138 + $0x62] sm:$0xff]
      %v348 = vld [vmem:[%s138 + $0x72] sm:$0xff]
      %v349 = vpack.c.bf16 %v342, %v341
      %v350 = vpack.c.bf16 %v344, %v343
      %v351 = vpack.c.bf16 %v346, %v345
      %v352 = vpack.c.bf16 %v348, %v347
      %s353 = scalar_lea.vmem %s1, 16
      %v354 = vld [vmem:[%s353] sm:$0xf]
      %v355 = vld [vmem:[%s353 + $0x4] sm:$0xf]
      %v358 = vunpack.c.l.b16 %v354
      %v359 = vunpack.c.l.b16 %v355
      %v360 = vpack.c.b16 %v359, %v358
      %v363 = vsel %vm180, %v349, 0
      %v366 = vsel %vm180, %v350, 0
      %v369 = vsel %vm180, %v351, 0
      %v372 = vsel %vm180, %v352, 0
      %374 = vmatprep.subr.bf16.mxu0 0
      %375 = vmatpush1.bf16.msra.mxu0 %v360
      %376 = vmatprep.subr.bf16.mxu0 0
      %377 = vmatpush1.bf16.msra.mxu0 0
      %378 = vmatprep.subr.bf16.mxu0 0
      %379 = vmatpush1.bf16.msra.mxu0 0
      %380 = vmatprep.subr.bf16.mxu0 0
      %381 = vmatpush1.bf16.msra.mxu0 0
      %382 = vmatprep.subr.bf16.mxu0 0
      %383 = vmatpush1.bf16.msra.mxu0 0
      %384 = vmatprep.subr.bf16.mxu0 0
      %385 = vmatpush1.bf16.msra.mxu0 0
      %386 = vmatprep.subr.bf16.mxu0 0
      %387 = vmatpush1.bf16.msra.mxu0 0
      %388 = vmatprep.subr.bf16.mxu0 0
      %389 = vmatpush1.bf16.msra.mxu0 0
      %390 = vmatprep.subr.bf16.mxu0 0
      %391 = vmatpush1.bf16.msra.mxu0 0
      %392 = vmatprep.subr.bf16.mxu0 0
      %393 = vmatpush1.bf16.msra.mxu0 0
      %394 = vmatprep.subr.bf16.mxu0 0
      %395 = vmatpush1.bf16.msra.mxu0 0
      %396 = vmatprep.subr.bf16.mxu0 0
      %397 = vmatpush1.bf16.msra.mxu0 0
      %398 = vmatprep.subr.bf16.mxu0 0
      %399 = vmatpush1.bf16.msra.mxu0 0
      %400 = vmatprep.subr.bf16.mxu0 0
      %401 = vmatpush1.bf16.msra.mxu0 0
      %402 = vmatprep.subr.bf16.mxu0 0
      %403 = vmatpush1.bf16.msra.mxu0 0
      %404 = vmatprep.subr.bf16.mxu0 0
      %405 = vmatpush1.bf16.msra.mxu0 0
      %406 = vmatprep.mubr.bf16.mxu0 0
      %407 = vmatmul.mubr.bf16.gmra.mrb[0].mxu0 %v363
      %v408 = vpop.f32.mrb[0].mxu0
      %v409 = vadd.f32 0.0, %v408
      %v410 = vpop.f32.mrb[0].mxu0
      %v411 = vpop.f32.mrb[0].mxu0
      %v412 = vadd.f32 0.0, %v411
      %v413 = vpop.f32.mrb[0].mxu0
      %414 = vmatprep.mubr.bf16.mxu0 0
      %415 = vmatmul.mubr.bf16.gmra.mrb[0].mxu0 %v366
      %v416 = vpop.f32.mrb[0].mxu0
      %v417 = vadd.f32 0.0, %v416
      %v418 = vpop.f32.mrb[0].mxu0
      %v419 = vpop.f32.mrb[0].mxu0
      %v420 = vadd.f32 0.0, %v419
      %v421 = vpop.f32.mrb[0].mxu0
      %422 = vmatprep.mubr.bf16.mxu0 0
      %423 = vmatmul.mubr.bf16.gmra.mrb[0].mxu0 %v369
      %v424 = vpop.f32.mrb[0].mxu0
      %v425 = vadd.f32 0.0, %v424
      %v426 = vpop.f32.mrb[0].mxu0
      %v427 = vpop.f32.mrb[0].mxu0
      %v428 = vadd.f32 0.0, %v427
      %v429 = vpop.f32.mrb[0].mxu0
      %430 = vmatprep.mubr.bf16.mxu0 0
      %431 = vmatmul.mubr.bf16.gmra.mrb[0].mxu0 %v372
      %v432 = vpop.f32.mrb[0].mxu0
      %v433 = vadd.f32 0.0, %v432
      %v434 = vpop.f32.mrb[0].mxu0
      %v435 = vpop.f32.mrb[0].mxu0
      %v436 = vadd.f32 0.0, %v435
      %v437 = vpop.f32.mrb[0].mxu0
      %438 = vdwg.mxu0
      %v439 = vadd.f32 %v311, %v409
      %v440 = vadd.f32 %v314, %v412
      %v441 = vadd.f32 %v319, %v417
      %v442 = vadd.f32 %v322, %v420
      %v443 = vadd.f32 %v327, %v425
      %v444 = vadd.f32 %v330, %v428
      %v445 = vadd.f32 %v335, %v433
      %v446 = vadd.f32 %v338, %v436
      %s447 = scalar_lea.vmem %s138, 16
      %v448 = vld [vmem:[%s447] sm:$0xff]
      %v449 = vld [vmem:[%s447 + $0x10] sm:$0xff]
      %v450 = vld [vmem:[%s447 + $0x20] sm:$0xff]
      %v451 = vld [vmem:[%s447 + $0x30] sm:$0xff]
      %v452 = vld [vmem:[%s447 + $0x40] sm:$0xff]
      %v453 = vld [vmem:[%s447 + $0x50] sm:$0xff]
      %v454 = vld [vmem:[%s447 + $0x60] sm:$0xff]
      %v455 = vld [vmem:[%s447 + $0x70] sm:$0xff]
      %v456 = vpack.c.bf16 %v449, %v448
      %v457 = vpack.c.bf16 %v451, %v450
      %v458 = vpack.c.bf16 %v453, %v452
      %v459 = vpack.c.bf16 %v455, %v454
      %s460 = scalar_lea.vmem %s1, 24
      %v461 = vld [vmem:[%s460] sm:$0xf]
      %v462 = vld [vmem:[%s460 + $0x4] sm:$0xf]
      %v465 = vunpack.c.l.b16 %v461
      %v466 = vunpack.c.l.b16 %v462
      %v467 = vpack.c.b16 %v466, %v465
      %v470 = vsel %vm180, %v456, 0
      %v473 = vsel %vm180, %v457, 0
      %v476 = vsel %vm180, %v458, 0
      %v479 = vsel %vm180, %v459, 0
      %481 = vmatprep.subr.bf16.mxu0 0
      %482 = vmatpush1.bf16.msra.mxu0 %v467
      %483 = vmatprep.subr.bf16.mxu0 0
      %484 = vmatpush1.bf16.msra.mxu0 0
      %485 = vmatprep.subr.bf16.mxu0 0
      %486 = vmatpush1.bf16.msra.mxu0 0
      %487 = vmatprep.subr.bf16.mxu0 0
      %488 = vmatpush1.bf16.msra.mxu0 0
      %489 = vmatprep.subr.bf16.mxu0 0
      %490 = vmatpush1.bf16.msra.mxu0 0
      %491 = vmatprep.subr.bf16.mxu0 0
      %492 = vmatpush1.bf16.msra.mxu0 0
      %493 = vmatprep.subr.bf16.mxu0 0
      %494 = vmatpush1.bf16.msra.mxu0 0
      %495 = vmatprep.subr.bf16.mxu0 0
      %496 = vmatpush1.bf16.msra.mxu0 0
      %497 = vmatprep.subr.bf16.mxu0 0
      %498 = vmatpush1.bf16.msra.mxu0 0
      %499 = vmatprep.subr.bf16.mxu0 0
      %500 = vmatpush1.bf16.msra.mxu0 0
      %501 = vmatprep.subr.bf16.mxu0 0
      %502 = vmatpush1.bf16.msra.mxu0 0
      %503 = vmatprep.subr.bf16.mxu0 0
      %504 = vmatpush1.bf16.msra.mxu0 0
      %505 = vmatprep.subr.bf16.mxu0 0
      %506 = vmatpush1.bf16.msra.mxu0 0
      %507 = vmatprep.subr.bf16.mxu0 0
      %508 = vmatpush1.bf16.msra.mxu0 0
      %509 = vmatprep.subr.bf16.mxu0 0
      %510 = vmatpush1.bf16.msra.mxu0 0
      %511 = vmatprep.subr.bf16.mxu0 0
      %512 = vmatpush1.bf16.msra.mxu0 0
      %513 = vmatprep.mubr.bf16.mxu0 0
      %514 = vmatmul.mubr.bf16.gmra.mrb[0].mxu0 %v470
      %v515 = vpop.f32.mrb[0].mxu0
      %v516 = vadd.f32 0.0, %v515
      %v517 = vpop.f32.mrb[0].mxu0
      %v518 = vpop.f32.mrb[0].mxu0
      %v519 = vadd.f32 0.0, %v518
      %v520 = vpop.f32.mrb[0].mxu0
      %521 = vmatprep.mubr.bf16.mxu0 0
      %522 = vmatmul.mubr.bf16.gmra.mrb[0].mxu0 %v473
      %v523 = vpop.f32.mrb[0].mxu0
      %v524 = vadd.f32 0.0, %v523
      %v525 = vpop.f32.mrb[0].mxu0
      %v526 = vpop.f32.mrb[0].mxu0
      %v527 = vadd.f32 0.0, %v526
      %v528 = vpop.f32.mrb[0].mxu0
      %529 = vmatprep.mubr.bf16.mxu0 0
      %530 = vmatmul.mubr.bf16.gmra.mrb[0].mxu0 %v476
      %v531 = vpop.f32.mrb[0].mxu0
      %v532 = vadd.f32 0.0, %v531
      %v533 = vpop.f32.mrb[0].mxu0
      %v534 = vpop.f32.mrb[0].mxu0
      %v535 = vadd.f32 0.0, %v534
      %v536 = vpop.f32.mrb[0].mxu0
      %537 = vmatprep.mubr.bf16.mxu0 0
      %538 = vmatmul.mubr.bf16.gmra.mrb[0].mxu0 %v479
      %v539 = vpop.f32.mrb[0].mxu0
      %v540 = vadd.f32 0.0, %v539
      %v541 = vpop.f32.mrb[0].mxu0
      %v542 = vpop.f32.mrb[0].mxu0
      %v543 = vadd.f32 0.0, %v542
      %v544 = vpop.f32.mrb[0].mxu0
      %545 = vdwg.mxu0
      %v546 = vadd.f32 %v439, %v516
      %v547 = vadd.f32 %v440, %v519
      %v548 = vadd.f32 %v441, %v524
      %v549 = vadd.f32 %v442, %v527
      %v550 = vadd.f32 %v443, %v532
      %v551 = vadd.f32 %v444, %v535
      %v552 = vadd.f32 %v445, %v540
      %v553 = vadd.f32 %v446, %v543
      %v554 = vld [vmem:[%s447 + $0x1] sm:$0xff]
      %v555 = vld [vmem:[%s447 + $0x11] sm:$0xff]
      %v556 = vld [vmem:[%s447 + $0x21] sm:$0xff]
      %v557 = vld [vmem:[%s447 + $0x31] sm:$0xff]
      %v558 = vld [vmem:[%s447 + $0x41] sm:$0xff]
      %v559 = vld [vmem:[%s447 + $0x51] sm:$0xff]
      %v560 = vld [vmem:[%s447 + $0x61] sm:$0xff]
      %v561 = vld [vmem:[%s447 + $0x71] sm:$0xff]
      %v562 = vpack.c.bf16 %v555, %v554
      %v563 = vpack.c.bf16 %v557, %v556
      %v564 = vpack.c.bf16 %v559, %v558
      %v565 = vpack.c.bf16 %v561, %v560
      %s566 = scalar_lea.vmem %s1, 32
      %v567 = vld [vmem:[%s566] sm:$0xf]
      %v568 = vld [vmem:[%s566 + $0x4] sm:$0xf]
      %v571 = vunpack.c.l.b16 %v567
      %v572 = vunpack.c.l.b16 %v568
      %v573 = vpack.c.b16 %v572, %v571
      %v576 = vsel %vm180, %v562, 0
      %v579 = vsel %vm180, %v563, 0
      %v582 = vsel %vm180, %v564, 0
      %v585 = vsel %vm180, %v565, 0
      %587 = vmatprep.subr.bf16.mxu0 0
      %588 = vmatpush1.bf16.msra.mxu0 %v573
      %589 = vmatprep.subr.bf16.mxu0 0
      %590 = vmatpush1.bf16.msra.mxu0 0
      %591 = vmatprep.subr.bf16.mxu0 0
      %592 = vmatpush1.bf16.msra.mxu0 0
      %593 = vmatprep.subr.bf16.mxu0 0
      %594 = vmatpush1.bf16.msra.mxu0 0
      %595 = vmatprep.subr.bf16.mxu0 0
      %596 = vmatpush1.bf16.msra.mxu0 0
      %597 = vmatprep.subr.bf16.mxu0 0
      %598 = vmatpush1.bf16.msra.mxu0 0
      %599 = vmatprep.subr.bf16.mxu0 0
      %600 = vmatpush1.bf16.msra.mxu0 0
      %601 = vmatprep.subr.bf16.mxu0 0
      %602 = vmatpush1.bf16.msra.mxu0 0
      %603 = vmatprep.subr.bf16.mxu0 0
      %604 = vmatpush1.bf16.msra.mxu0 0
      %605 = vmatprep.subr.bf16.mxu0 0
      %606 = vmatpush1.bf16.msra.mxu0 0
      %607 = vmatprep.subr.bf16.mxu0 0
      %608 = vmatpush1.bf16.msra.mxu0 0
      %609 = vmatprep.subr.bf16.mxu0 0
      %610 = vmatpush1.bf16.msra.mxu0 0
      %611 = vmatprep.subr.bf16.mxu0 0
      %612 = vmatpush1.bf16.msra.mxu0 0
      %613 = vmatprep.subr.bf16.mxu0 0
      %614 = vmatpush1.bf16.msra.mxu0 0
      %615 = vmatprep.subr.bf16.mxu0 0
      %616 = vmatpush1.bf16.msra.mxu0 0
      %617 = vmatprep.subr.bf16.mxu0 0
      %618 = vmatpush1.bf16.msra.mxu0 0
      %619 = vmatprep.mubr.bf16.mxu0 0
      %620 = vmatmul.mubr.bf16.gmra.mrb[0].mxu0 %v576
      %v621 = vpop.f32.mrb[0].mxu0
      %v622 = vadd.f32 0.0, %v621
      %v623 = vpop.f32.mrb[0].mxu0
      %v624 = vpop.f32.mrb[0].mxu0
      %v625 = vadd.f32 0.0, %v624
      %v626 = vpop.f32.mrb[0].mxu0
      %627 = vmatprep.mubr.bf16.mxu0 0
      %628 = vmatmul.mubr.bf16.gmra.mrb[0].mxu0 %v579
      %v629 = vpop.f32.mrb[0].mxu0
      %v630 = vadd.f32 0.0, %v629
      %v631 = vpop.f32.mrb[0].mxu0
      %v632 = vpop.f32.mrb[0].mxu0
      %v633 = vadd.f32 0.0, %v632
      %v634 = vpop.f32.mrb[0].mxu0
      %635 = vmatprep.mubr.bf16.mxu0 0
      %636 = vmatmul.mubr.bf16.gmra.mrb[0].mxu0 %v582
      %v637 = vpop.f32.mrb[0].mxu0
      %v638 = vadd.f32 0.0, %v637
      %v639 = vpop.f32.mrb[0].mxu0
      %v640 = vpop.f32.mrb[0].mxu0
      %v641 = vadd.f32 0.0, %v640
      %v642 = vpop.f32.mrb[0].mxu0
      %643 = vmatprep.mubr.bf16.mxu0 0
      %644 = vmatmul.mubr.bf16.gmra.mrb[0].mxu0 %v585
      %v645 = vpop.f32.mrb[0].mxu0
      %v646 = vadd.f32 0.0, %v645
      %v647 = vpop.f32.mrb[0].mxu0
      %v648 = vpop.f32.mrb[0].mxu0
      %v649 = vadd.f32 0.0, %v648
      %v650 = vpop.f32.mrb[0].mxu0
      %651 = vdwg.mxu0
      %v652 = vadd.f32 %v546, %v622
      %v653 = vadd.f32 %v547, %v625
      %v654 = vadd.f32 %v548, %v630
      %v655 = vadd.f32 %v549, %v633
      %v656 = vadd.f32 %v550, %v638
      %v657 = vadd.f32 %v551, %v641
      %v658 = vadd.f32 %v552, %v646
      %v659 = vadd.f32 %v553, %v649
      %v660 = vld [vmem:[%s447 + $0x2] sm:$0xff]
      %v661 = vld [vmem:[%s447 + $0x12] sm:$0xff]
      %v662 = vld [vmem:[%s447 + $0x22] sm:$0xff]
      %v663 = vld [vmem:[%s447 + $0x32] sm:$0xff]
      %v664 = vld [vmem:[%s447 + $0x42] sm:$0xff]
      %v665 = vld [vmem:[%s447 + $0x52] sm:$0xff]
      %v666 = vld [vmem:[%s447 + $0x62] sm:$0xff]
      %v667 = vld [vmem:[%s447 + $0x72] sm:$0xff]
      %v668 = vpack.c.bf16 %v661, %v660
      %v669 = vpack.c.bf16 %v663, %v662
      %v670 = vpack.c.bf16 %v665, %v664
      %v671 = vpack.c.bf16 %v667, %v666
      %s672 = scalar_lea.vmem %s1, 40
      %v673 = vld [vmem:[%s672] sm:$0xf]
      %v674 = vld [vmem:[%s672 + $0x4] sm:$0xf]
      %v677 = vunpack.c.l.b16 %v673
      %v678 = vunpack.c.l.b16 %v674
      %v679 = vpack.c.b16 %v678, %v677
      %v682 = vsel %vm180, %v668, 0
      %v685 = vsel %vm180, %v669, 0
      %v688 = vsel %vm180, %v670, 0
      %v691 = vsel %vm180, %v671, 0
      %693 = vmatprep.subr.bf16.mxu0 0
      %694 = vmatpush1.bf16.msra.mxu0 %v679
      %695 = vmatprep.subr.bf16.mxu0 0
      %696 = vmatpush1.bf16.msra.mxu0 0
      %697 = vmatprep.subr.bf16.mxu0 0
      %698 = vmatpush1.bf16.msra.mxu0 0
      %699 = vmatprep.subr.bf16.mxu0 0
      %700 = vmatpush1.bf16.msra.mxu0 0
      %701 = vmatprep.subr.bf16.mxu0 0
      %702 = vmatpush1.bf16.msra.mxu0 0
      %703 = vmatprep.subr.bf16.mxu0 0
      %704 = vmatpush1.bf16.msra.mxu0 0
      %705 = vmatprep.subr.bf16.mxu0 0
      %706 = vmatpush1.bf16.msra.mxu0 0
      %707 = vmatprep.subr.bf16.mxu0 0
      %708 = vmatpush1.bf16.msra.mxu0 0
      %709 = vmatprep.subr.bf16.mxu0 0
      %710 = vmatpush1.bf16.msra.mxu0 0
      %711 = vmatprep.subr.bf16.mxu0 0
      %712 = vmatpush1.bf16.msra.mxu0 0
      %713 = vmatprep.subr.bf16.mxu0 0
      %714 = vmatpush1.bf16.msra.mxu0 0
      %715 = vmatprep.subr.bf16.mxu0 0
      %716 = vmatpush1.bf16.msra.mxu0 0
      %717 = vmatprep.subr.bf16.mxu0 0
      %718 = vmatpush1.bf16.msra.mxu0 0
      %719 = vmatprep.subr.bf16.mxu0 0
      %720 = vmatpush1.bf16.msra.mxu0 0
      %721 = vmatprep.subr.bf16.mxu0 0
      %722 = vmatpush1.bf16.msra.mxu0 0
      %723 = vmatprep.subr.bf16.mxu0 0
      %724 = vmatpush1.bf16.msra.mxu0 0
      %725 = vmatprep.mubr.bf16.mxu0 0
      %726 = vmatmul.mubr.bf16.gmra.mrb[0].mxu0 %v682
      %v727 = vpop.f32.mrb[0].mxu0
      %v728 = vadd.f32 0.0, %v727
      %v729 = vpop.f32.mrb[0].mxu0
      %v730 = vpop.f32.mrb[0].mxu0
      %v731 = vadd.f32 0.0, %v730
      %v732 = vpop.f32.mrb[0].mxu0
      %733 = vmatprep.mubr.bf16.mxu0 0
      %734 = vmatmul.mubr.bf16.gmra.mrb[0].mxu0 %v685
      %v735 = vpop.f32.mrb[0].mxu0
      %v736 = vadd.f32 0.0, %v735
      %v737 = vpop.f32.mrb[0].mxu0
      %v738 = vpop.f32.mrb[0].mxu0
      %v739 = vadd.f32 0.0, %v738
      %v740 = vpop.f32.mrb[0].mxu0
      %741 = vmatprep.mubr.bf16.mxu0 0
      %742 = vmatmul.mubr.bf16.gmra.mrb[0].mxu0 %v688
      %v743 = vpop.f32.mrb[0].mxu0
      %v744 = vadd.f32 0.0, %v743
      %v745 = vpop.f32.mrb[0].mxu0
      %v746 = vpop.f32.mrb[0].mxu0
      %v747 = vadd.f32 0.0, %v746
      %v748 = vpop.f32.mrb[0].mxu0
      %749 = vmatprep.mubr.bf16.mxu0 0
      %750 = vmatmul.mubr.bf16.gmra.mrb[0].mxu0 %v691
      %v751 = vpop.f32.mrb[0].mxu0
      %v752 = vadd.f32 0.0, %v751
      %v753 = vpop.f32.mrb[0].mxu0
      %v754 = vpop.f32.mrb[0].mxu0
      %v755 = vadd.f32 0.0, %v754
      %v756 = vpop.f32.mrb[0].mxu0
      %757 = vdwg.mxu0
      %v758 = vadd.f32 %v652, %v728
      %v759 = vadd.f32 %v653, %v731
      %v760 = vadd.f32 %v654, %v736
      %v761 = vadd.f32 %v655, %v739
      %v762 = vadd.f32 %v656, %v744
      %v763 = vadd.f32 %v657, %v747
      %v764 = vadd.f32 %v658, %v752
      %v765 = vadd.f32 %v659, %v755
      %s766 = scalar_lea.vmem %s138, 32
      %v767 = vld [vmem:[%s766] sm:$0xff]
      %v768 = vld [vmem:[%s766 + $0x10] sm:$0xff]
      %v769 = vld [vmem:[%s766 + $0x20] sm:$0xff]
      %v770 = vld [vmem:[%s766 + $0x30] sm:$0xff]
      %v771 = vld [vmem:[%s766 + $0x40] sm:$0xff]
      %v772 = vld [vmem:[%s766 + $0x50] sm:$0xff]
      %v773 = vld [vmem:[%s766 + $0x60] sm:$0xff]
      %v774 = vld [vmem:[%s766 + $0x70] sm:$0xff]
      %v775 = vpack.c.bf16 %v768, %v767
      %v776 = vpack.c.bf16 %v770, %v769
      %v777 = vpack.c.bf16 %v772, %v771
      %v778 = vpack.c.bf16 %v774, %v773
      %s779 = scalar_lea.vmem %s1, 48
      %v780 = vld [vmem:[%s779] sm:$0xf]
      %v781 = vld [vmem:[%s779 + $0x4] sm:$0xf]
      %v784 = vunpack.c.l.b16 %v780
      %v785 = vunpack.c.l.b16 %v781
      %v786 = vpack.c.b16 %v785, %v784
      %v789 = vsel %vm180, %v775, 0
      %v792 = vsel %vm180, %v776, 0
      %v795 = vsel %vm180, %v777, 0
      %v798 = vsel %vm180, %v778, 0
      %800 = vmatprep.subr.bf16.mxu0 0
      %801 = vmatpush1.bf16.msra.mxu0 %v786
      %802 = vmatprep.subr.bf16.mxu0 0
      %803 = vmatpush1.bf16.msra.mxu0 0
      %804 = vmatprep.subr.bf16.mxu0 0
      %805 = vmatpush1.bf16.msra.mxu0 0
      %806 = vmatprep.subr.bf16.mxu0 0
      %807 = vmatpush1.bf16.msra.mxu0 0
      %808 = vmatprep.subr.bf16.mxu0 0
      %809 = vmatpush1.bf16.msra.mxu0 0
      %810 = vmatprep.subr.bf16.mxu0 0
      %811 = vmatpush1.bf16.msra.mxu0 0
      %812 = vmatprep.subr.bf16.mxu0 0
      %813 = vmatpush1.bf16.msra.mxu0 0
      %814 = vmatprep.subr.bf16.mxu0 0
      %815 = vmatpush1.bf16.msra.mxu0 0
      %816 = vmatprep.subr.bf16.mxu0 0
      %817 = vmatpush1.bf16.msra.mxu0 0
      %818 = vmatprep.subr.bf16.mxu0 0
      %819 = vmatpush1.bf16.msra.mxu0 0
      %820 = vmatprep.subr.bf16.mxu0 0
      %821 = vmatpush1.bf16.msra.mxu0 0
      %822 = vmatprep.subr.bf16.mxu0 0
      %823 = vmatpush1.bf16.msra.mxu0 0
      %824 = vmatprep.subr.bf16.mxu0 0
      %825 = vmatpush1.bf16.msra.mxu0 0
      %826 = vmatprep.subr.bf16.mxu0 0
      %827 = vmatpush1.bf16.msra.mxu0 0
      %828 = vmatprep.subr.bf16.mxu0 0
      %829 = vmatpush1.bf16.msra.mxu0 0
      %830 = vmatprep.subr.bf16.mxu0 0
      %831 = vmatpush1.bf16.msra.mxu0 0
      %832 = vmatprep.mubr.bf16.mxu0 0
      %833 = vmatmul.mubr.bf16.gmra.mrb[0].mxu0 %v789
      %v834 = vpop.f32.mrb[0].mxu0
      %v835 = vadd.f32 0.0, %v834
      %v836 = vpop.f32.mrb[0].mxu0
      %v837 = vpop.f32.mrb[0].mxu0
      %v838 = vadd.f32 0.0, %v837
      %v839 = vpop.f32.mrb[0].mxu0
      %840 = vmatprep.mubr.bf16.mxu0 0
      %841 = vmatmul.mubr.bf16.gmra.mrb[0].mxu0 %v792
      %v842 = vpop.f32.mrb[0].mxu0
      %v843 = vadd.f32 0.0, %v842
      %v844 = vpop.f32.mrb[0].mxu0
      %v845 = vpop.f32.mrb[0].mxu0
      %v846 = vadd.f32 0.0, %v845
      %v847 = vpop.f32.mrb[0].mxu0
      %848 = vmatprep.mubr.bf16.mxu0 0
      %849 = vmatmul.mubr.bf16.gmra.mrb[0].mxu0 %v795
      %v850 = vpop.f32.mrb[0].mxu0
      %v851 = vadd.f32 0.0, %v850
      %v852 = vpop.f32.mrb[0].mxu0
      %v853 = vpop.f32.mrb[0].mxu0
      %v854 = vadd.f32 0.0, %v853
      %v855 = vpop.f32.mrb[0].mxu0
      %856 = vmatprep.mubr.bf16.mxu0 0
      %857 = vmatmul.mubr.bf16.gmra.mrb[0].mxu0 %v798
      %v858 = vpop.f32.mrb[0].mxu0
      %v859 = vadd.f32 0.0, %v858
      %v860 = vpop.f32.mrb[0].mxu0
      %v861 = vpop.f32.mrb[0].mxu0
      %v862 = vadd.f32 0.0, %v861
      %v863 = vpop.f32.mrb[0].mxu0
      %864 = vdwg.mxu0
      %v865 = vadd.f32 %v758, %v835
      %v866 = vadd.f32 %v759, %v838
      %v867 = vadd.f32 %v760, %v843
      %v868 = vadd.f32 %v761, %v846
      %v869 = vadd.f32 %v762, %v851
      %v870 = vadd.f32 %v763, %v854
      %v871 = vadd.f32 %v764, %v859
      %v872 = vadd.f32 %v765, %v862
      %v873 = vld [vmem:[%s766 + $0x1] sm:$0xff]
      %v874 = vld [vmem:[%s766 + $0x11] sm:$0xff]
      %v875 = vld [vmem:[%s766 + $0x21] sm:$0xff]
      %v876 = vld [vmem:[%s766 + $0x31] sm:$0xff]
      %v877 = vld [vmem:[%s766 + $0x41] sm:$0xff]
      %v878 = vld [vmem:[%s766 + $0x51] sm:$0xff]
      %v879 = vld [vmem:[%s766 + $0x61] sm:$0xff]
      %v880 = vld [vmem:[%s766 + $0x71] sm:$0xff]
      %v881 = vpack.c.bf16 %v874, %v873
      %v882 = vpack.c.bf16 %v876, %v875
      %v883 = vpack.c.bf16 %v878, %v877
      %v884 = vpack.c.bf16 %v880, %v879
      %s885 = scalar_lea.vmem %s1, 56
      %v886 = vld [vmem:[%s885] sm:$0xf]
      %v887 = vld [vmem:[%s885 + $0x4] sm:$0xf]
      %v890 = vunpack.c.l.b16 %v886
      %v891 = vunpack.c.l.b16 %v887
      %v892 = vpack.c.b16 %v891, %v890
      %v895 = vsel %vm180, %v881, 0
      %v898 = vsel %vm180, %v882, 0
      %v901 = vsel %vm180, %v883, 0
      %v904 = vsel %vm180, %v884, 0
      %906 = vmatprep.subr.bf16.mxu0 0
      %907 = vmatpush1.bf16.msra.mxu0 %v892
      %908 = vmatprep.subr.bf16.mxu0 0
      %909 = vmatpush1.bf16.msra.mxu0 0
      %910 = vmatprep.subr.bf16.mxu0 0
      %911 = vmatpush1.bf16.msra.mxu0 0
      %912 = vmatprep.subr.bf16.mxu0 0
      %913 = vmatpush1.bf16.msra.mxu0 0
      %914 = vmatprep.subr.bf16.mxu0 0
      %915 = vmatpush1.bf16.msra.mxu0 0
      %916 = vmatprep.subr.bf16.mxu0 0
      %917 = vmatpush1.bf16.msra.mxu0 0
      %918 = vmatprep.subr.bf16.mxu0 0
      %919 = vmatpush1.bf16.msra.mxu0 0
      %920 = vmatprep.subr.bf16.mxu0 0
      %921 = vmatpush1.bf16.msra.mxu0 0
      %922 = vmatprep.subr.bf16.mxu0 0
      %923 = vmatpush1.bf16.msra.mxu0 0
      %924 = vmatprep.subr.bf16.mxu0 0
      %925 = vmatpush1.bf16.msra.mxu0 0
      %926 = vmatprep.subr.bf16.mxu0 0
      %927 = vmatpush1.bf16.msra.mxu0 0
      %928 = vmatprep.subr.bf16.mxu0 0
      %929 = vmatpush1.bf16.msra.mxu0 0
      %930 = vmatprep.subr.bf16.mxu0 0
      %931 = vmatpush1.bf16.msra.mxu0 0
      %932 = vmatprep.subr.bf16.mxu0 0
      %933 = vmatpush1.bf16.msra.mxu0 0
      %934 = vmatprep.subr.bf16.mxu0 0
      %935 = vmatpush1.bf16.msra.mxu0 0
      %936 = vmatprep.subr.bf16.mxu0 0
      %937 = vmatpush1.bf16.msra.mxu0 0
      %938 = vmatprep.mubr.bf16.mxu0 0
      %939 = vmatmul.mubr.bf16.gmra.mrb[0].mxu0 %v895
      %v940 = vpop.f32.mrb[0].mxu0
      %v941 = vadd.f32 0.0, %v940
      %v942 = vpop.f32.mrb[0].mxu0
      %v943 = vpop.f32.mrb[0].mxu0
      %v944 = vadd.f32 0.0, %v943
      %v945 = vpop.f32.mrb[0].mxu0
      %946 = vmatprep.mubr.bf16.mxu0 0
      %947 = vmatmul.mubr.bf16.gmra.mrb[0].mxu0 %v898
      %v948 = vpop.f32.mrb[0].mxu0
      %v949 = vadd.f32 0.0, %v948
      %v950 = vpop.f32.mrb[0].mxu0
      %v951 = vpop.f32.mrb[0].mxu0
      %v952 = vadd.f32 0.0, %v951
      %v953 = vpop.f32.mrb[0].mxu0
      %954 = vmatprep.mubr.bf16.mxu0 0
      %955 = vmatmul.mubr.bf16.gmra.mrb[0].mxu0 %v901
      %v956 = vpop.f32.mrb[0].mxu0
      %v957 = vadd.f32 0.0, %v956
      %v958 = vpop.f32.mrb[0].mxu0
      %v959 = vpop.f32.mrb[0].mxu0
      %v960 = vadd.f32 0.0, %v959
      %v961 = vpop.f32.mrb[0].mxu0
      %962 = vmatprep.mubr.bf16.mxu0 0
      %963 = vmatmul.mubr.bf16.gmra.mrb[0].mxu0 %v904
      %v964 = vpop.f32.mrb[0].mxu0
      %v965 = vadd.f32 0.0, %v964
      %v966 = vpop.f32.mrb[0].mxu0
      %v967 = vpop.f32.mrb[0].mxu0
      %v968 = vadd.f32 0.0, %v967
      %v969 = vpop.f32.mrb[0].mxu0
      %970 = vdwg.mxu0
      %v971 = vadd.f32 %v865, %v941
      %v972 = vadd.f32 %v866, %v944
      %v973 = vadd.f32 %v867, %v949
      %v974 = vadd.f32 %v868, %v952
      %v975 = vadd.f32 %v869, %v957
      %v976 = vadd.f32 %v870, %v960
      %v977 = vadd.f32 %v871, %v965
      %v978 = vadd.f32 %v872, %v968
      %v979 = vld [vmem:[%s766 + $0x2] sm:$0xff]
      %v980 = vld [vmem:[%s766 + $0x12] sm:$0xff]
      %v981 = vld [vmem:[%s766 + $0x22] sm:$0xff]
      %v982 = vld [vmem:[%s766 + $0x32] sm:$0xff]
      %v983 = vld [vmem:[%s766 + $0x42] sm:$0xff]
      %v984 = vld [vmem:[%s766 + $0x52] sm:$0xff]
      %v985 = vld [vmem:[%s766 + $0x62] sm:$0xff]
      %v986 = vld [vmem:[%s766 + $0x72] sm:$0xff]
      %v987 = vpack.c.bf16 %v980, %v979
      %v988 = vpack.c.bf16 %v982, %v981
      %v989 = vpack.c.bf16 %v984, %v983
      %v990 = vpack.c.bf16 %v986, %v985
      %s991 = scalar_lea.vmem %s1, 64
      %v992 = vld [vmem:[%s991] sm:$0xf]
      %v993 = vld [vmem:[%s991 + $0x4] sm:$0xf]
      %v996 = vunpack.c.l.b16 %v992
      %v997 = vunpack.c.l.b16 %v993
      %v998 = vpack.c.b16 %v997, %v996
      %v1001 = vsel %vm180, %v987, 0
      %v1004 = vsel %vm180, %v988, 0
      %v1007 = vsel %vm180, %v989, 0
      %v1010 = vsel %vm180, %v990, 0
      %1012 = vmatprep.subr.bf16.mxu0 0
      %1013 = vmatpush1.bf16.msra.mxu0 %v998
      %1014 = vmatprep.subr.bf16.mxu0 0
      %1015 = vmatpush1.bf16.msra.mxu0 0
      %1016 = vmatprep.subr.bf16.mxu0 0
      %1017 = vmatpush1.bf16.msra.mxu0 0
      %1018 = vmatprep.subr.bf16.mxu0 0
      %1019 = vmatpush1.bf16.msra.mxu0 0
      %1020 = vmatprep.subr.bf16.mxu0 0
      %1021 = vmatpush1.bf16.msra.mxu0 0
      %1022 = vmatprep.subr.bf16.mxu0 0
      %1023 = vmatpush1.bf16.msra.mxu0 0
      %1024 = vmatprep.subr.bf16.mxu0 0
      %1025 = vmatpush1.bf16.msra.mxu0 0
      %1026 = vmatprep.subr.bf16.mxu0 0
      %1027 = vmatpush1.bf16.msra.mxu0 0
      %1028 = vmatprep.subr.bf16.mxu0 0
      %1029 = vmatpush1.bf16.msra.mxu0 0
      %1030 = vmatprep.subr.bf16.mxu0 0
      %1031 = vmatpush1.bf16.msra.mxu0 0
      %1032 = vmatprep.subr.bf16.mxu0 0
      %1033 = vmatpush1.bf16.msra.mxu0 0
      %1034 = vmatprep.subr.bf16.mxu0 0
      %1035 = vmatpush1.bf16.msra.mxu0 0
      %1036 = vmatprep.subr.bf16.mxu0 0
      %1037 = vmatpush1.bf16.msra.mxu0 0
      %1038 = vmatprep.subr.bf16.mxu0 0
      %1039 = vmatpush1.bf16.msra.mxu0 0
      %1040 = vmatprep.subr.bf16.mxu0 0
      %1041 = vmatpush1.bf16.msra.mxu0 0
      %1042 = vmatprep.subr.bf16.mxu0 0
      %1043 = vmatpush1.bf16.msra.mxu0 0
      %1044 = vmatprep.mubr.bf16.mxu0 0
      %1045 = vmatmul.mubr.bf16.gmra.mrb[0].mxu0 %v1001
      %v1046 = vpop.f32.mrb[0].mxu0
      %v1047 = vadd.f32 0.0, %v1046
      %v1048 = vpop.f32.mrb[0].mxu0
      %v1049 = vpop.f32.mrb[0].mxu0
      %v1050 = vadd.f32 0.0, %v1049
      %v1051 = vpop.f32.mrb[0].mxu0
      %1052 = vmatprep.mubr.bf16.mxu0 0
      %1053 = vmatmul.mubr.bf16.gmra.mrb[0].mxu0 %v1004
      %v1054 = vpop.f32.mrb[0].mxu0
      %v1055 = vadd.f32 0.0, %v1054
      %v1056 = vpop.f32.mrb[0].mxu0
      %v1057 = vpop.f32.mrb[0].mxu0
      %v1058 = vadd.f32 0.0, %v1057
      %v1059 = vpop.f32.mrb[0].mxu0
      %1060 = vmatprep.mubr.bf16.mxu0 0
      %1061 = vmatmul.mubr.bf16.gmra.mrb[0].mxu0 %v1007
      %v1062 = vpop.f32.mrb[0].mxu0
      %v1063 = vadd.f32 0.0, %v1062
      %v1064 = vpop.f32.mrb[0].mxu0
      %v1065 = vpop.f32.mrb[0].mxu0
      %v1066 = vadd.f32 0.0, %v1065
      %v1067 = vpop.f32.mrb[0].mxu0
      %1068 = vmatprep.mubr.bf16.mxu0 0
      %1069 = vmatmul.mubr.bf16.gmra.mrb[0].mxu0 %v1010
      %v1070 = vpop.f32.mrb[0].mxu0
      %v1071 = vadd.f32 0.0, %v1070
      %v1072 = vpop.f32.mrb[0].mxu0
      %v1073 = vpop.f32.mrb[0].mxu0
      %v1074 = vadd.f32 0.0, %v1073
      %v1075 = vpop.f32.mrb[0].mxu0
      %1076 = vdwg.mxu0
      %v1077 = vadd.f32 %v971, %v1047
      %v1078 = vadd.f32 %v972, %v1050
      %v1079 = vadd.f32 %v973, %v1055
      %v1080 = vadd.f32 %v974, %v1058
      %v1081 = vadd.f32 %v975, %v1063
      %v1082 = vadd.f32 %v976, %v1066
      %v1083 = vadd.f32 %v977, %v1071
      %v1084 = vadd.f32 %v978, %v1074
      %vm1085 = vcmask 64512
      %1086 = vst.msk [vmem:[%s143] sm:$0xff] %vm1085, %v1077
      %1087 = vst.msk [vmem:[%s143 + $0x8] sm:$0xff] %vm1085, %v1078
      %1088 = vst.msk [vmem:[%s143 + $0x10] sm:$0xff] %vm1085, %v1079
      %1089 = vst.msk [vmem:[%s143 + $0x18] sm:$0xff] %vm1085, %v1080
      %1090 = vst.msk [vmem:[%s143 + $0x20] sm:$0xff] %vm1085, %v1081
      %1091 = vst.msk [vmem:[%s143 + $0x28] sm:$0xff] %vm1085, %v1082
      %1092 = vst.msk [vmem:[%s143 + $0x30] sm:$0xff] %vm1085, %v1083
      %1093 = vst.msk [vmem:[%s143 + $0x38] sm:$0xff] %vm1085, %v1084
      %p1094 = scmp.lt.s32.totalorder %s13, 1
      %s1095 = scalar_select %p1094, %s13, 1
      %s1096 = smul.addr %s1095, 8
      %s1097 = smul.addr %s1096, 8
      %s1098 = scalar_lea.vmem %s2, %s1097
      // Predicated region
      $region29: #{densenet_forward.28} parent=27 // pred_check
        %p1099 = pneg %p78
      $region30: #{densenet_forward.28} parent=27 // pred_check_branch
        %1101 = sbr.rel (%p1099) target = $region32
      $region31: #{densenet_forward.28} parent=27 // pred_region
        _
      $region32: #{densenet_forward.28} parent=27 // pred_fallthru
        _
    $region28: #{densenet_forward.28} parent=5 // pred_fallthru
      _
    %p1102 = scmp.le.s32.totalorder 2, %s8
    // Predicated region
    $region33: #{densenet_forward.28} parent=5 // pred_check
      %p1103 = pneg %p1102
    $region34: #{densenet_forward.28} parent=5 // pred_check_branch
      %1105 = sbr.rel (%p1103) target = $region36
    $region35: #{densenet_forward.28} parent=5 // pred_region
      %s1106 = ssub.s32 %s8, 2
      // Predicated region
      $region37: #{densenet_forward.28} parent=35 // pred_check
        %p1107 = pneg %p84
      $region38: #{densenet_forward.28} parent=35 // pred_check_branch
        %1109 = sbr.rel (%p1107) target = $region40
      $region39: #{densenet_forward.28} parent=35 // pred_region
        %p1110 = scmp.lt.s32.totalorder %s14, 1
        %s1111 = scalar_select %p1110, %s14, 1
        %s1112 = smul.addr %s1111, 8
        %s1113 = smul.addr %s1112, 8
        %s1114 = scalar_lea.vmem %s2, %s1113
      $region40: #{densenet_forward.28} parent=35 // pred_fallthru
        _
    $region36: #{densenet_forward.28} parent=5 // pred_fallthru
      _
  $region6: #{densenet_forward.28} parent=0 // loop_footer
    %s12 = sadd.s32 1, %s8
  $region7: #{densenet_forward.28} parent=0 // loop_footer_branch
    %7 = sbr.rel target = $region3
  $region8: #{densenet_forward.28} parent=0 // loop_exit
    _

// kernel: densenet_forward.31
$region0: #{densenet_forward.31}
  #allocation0 [shape = 'u32[]', space=smem, size = 0x4, offset = 0x4, fixed_abs, tag = 'smem constant byte address 0x4 - core index']
  #allocation1 [shape = 'u32[144,128]{1,0:T(1,128)}', space=vmem, size = 0x12000, scoped, tag = 'internal scratch']
  %s0 = inlined_call_operand.vmem [shape: f32[128,16], index: 0, kind: input, shape index: {}]
  %s1 = inlined_call_operand.vmem [shape: f32[128,8], index: 1, kind: input, shape index: {}]
  %s2 = inlined_call_operand.vmem [shape: f32[128,8], index: 2, kind: input, shape index: {}]
  %s3 = inlined_call_operand.vmem [shape: bf16[32,16], index: 3, kind: input, shape index: {}]
  %s4 = inlined_call_operand.vmem [shape: f32[1,32], index: 4, kind: input, shape index: {}]
  %s5 = inlined_call_operand.vmem [shape: f32[1,32], index: 5, kind: input, shape index: {}]
  %s6 = inlined_call_operand.vmem [shape: f32[128,16], index: 6, kind: output, shape index: {}]
  %s7 = sld [smem:[#allocation0]]
  $region57: #{densenet_forward.31} parent=0
    _
  %s9 = ssub.s32 1, %s7
  %s10 = scalar_select 0, %s9, %s7
  loop: start=0, step=1, limit=4
  $region2: #{densenet_forward.31} parent=0 // loop_pre_header
    _
  $region3: #{densenet_forward.31} parent=0 // loop_header
    %s12 = sphi 0, %s16
    %p13 = scmp.ge.s32.totalorder %s12, 4
    %s22 = sphi 0, %s24
    %s25 = sphi 0, %s22
    %s26 = sphi 0, %s25
    %s42 = sphi 0, %s26
    %s48 = sphi 0, %s50
    %s51 = sphi 0, %s48
    %s52 = sphi 0, %s51
    %s68 = sphi 0, %s52
    %s74 = sphi 0, %s76
    %s77 = sphi 0, %s74
    %s78 = sphi 0, %s77
    %s94 = sphi 0, %s78
    %s98 = sphi 0, %s98
    %s100 = sphi 0, %s98
    %s101 = sphi 0, %s100
    %s115 = sphi 0, %s101
    %s119 = sphi 0, %s119
    %s121 = sphi 0, %s119
    %s122 = sphi 0, %s121
    %s136 = sphi 0, %s122
    %s140 = sphi 0, %s140
    %s142 = sphi 0, %s140
    %s143 = sphi 0, %s142
    %s157 = sphi 0, %s143
    %s163 = sphi 0, %s165
    %s166 = sphi 0, %s163
    %s167 = sphi 0, %s166
    %s183 = sphi 0, %s167
  $region4: #{densenet_forward.31} parent=0 // loop_header_branch
    %15 = sbr.rel (%p13) target = $region8
  $region5: #{densenet_forward.31} parent=0 // loop_body
    %s17 = ssub.s32 %s12, 1
    %s18 = ssub.s32 %s12, 2
    %s19 = sadd.s32 %s12, 1
    %s20 = ssub.s32 %s12, %s19
    %p21 = scmp.eq.s32.totalorder %s20, 0
    %s23 = sadd.s32 %s22, 1
    %s24 = scalar_select %p21, %s22, %s23
    %p27 = pneg %p21
    %p28 = scmp.eq.s32.totalorder %s12, 1
    %p29 = por %p27, %p28
    %p30 = scmp.ne.s32.totalorder %s22, %s25
    %p31 = scmp.eq.s32.totalorder %s12, 0
    %p32 = por %p30, %p31
    %p33 = scmp.ne.s32.totalorder %s22, %s25
    %p34 = scmp.eq.s32.totalorder %s17, 1
    %p35 = por %p33, %p34
    %p36 = scmp.ne.s32.totalorder %s25, %s26
    %p37 = scmp.eq.s32.totalorder %s17, 0
    %p38 = por %p36, %p37
    %p39 = scmp.ne.s32.totalorder %s25, %s26
    %p40 = scmp.eq.s32.totalorder %s18, 1
    %p41 = por %p39, %p40
    %p43 = scmp.ne.s32.totalorder %s26, %s42
    %p44 = scmp.eq.s32.totalorder %s18, 0
    %p45 = por %p43, %p44
    %s46 = ssub.s32 %s12, %s19
    %p47 = scmp.eq.s32.totalorder %s46, 0
    %s49 = sadd.s32 %s48, 1
    %s50 = scalar_select %p47, %s48, %s49
    %p53 = pneg %p47
    %p54 = scmp.eq.s32.totalorder %s12, 1
    %p55 = por %p53, %p54
    %p56 = scmp.ne.s32.totalorder %s48, %s51
    %p57 = scmp.eq.s32.totalorder %s12, 0
    %p58 = por %p56, %p57
    %p59 = scmp.ne.s32.totalorder %s48, %s51
    %p60 = scmp.eq.s32.totalorder %s17, 1
    %p61 = por %p59, %p60
    %p62 = scmp.ne.s32.totalorder %s51, %s52
    %p63 = scmp.eq.s32.totalorder %s17, 0
    %p64 = por %p62, %p63
    %p65 = scmp.ne.s32.totalorder %s51, %s52
    %p66 = scmp.eq.s32.totalorder %s18, 1
    %p67 = por %p65, %p66
    %p69 = scmp.ne.s32.totalorder %s52, %s68
    %p70 = scmp.eq.s32.totalorder %s18, 0
    %p71 = por %p69, %p70
    %s72 = ssub.s32 %s12, %s19
    %p73 = scmp.eq.s32.totalorder %s72, 0
    %s75 = sadd.s32 %s74, 1
    %s76 = scalar_select %p73, %s74, %s75
    %p79 = pneg %p73
    %p80 = scmp.eq.s32.totalorder %s12, 1
    %p81 = por %p79, %p80
    %p82 = scmp.ne.s32.totalorder %s74, %s77
    %p83 = scmp.eq.s32.totalorder %s12, 0
    %p84 = por %p82, %p83
    %p85 = scmp.ne.s32.totalorder %s74, %s77
    %p86 = scmp.eq.s32.totalorder %s17, 1
    %p87 = por %p85, %p86
    %p88 = scmp.ne.s32.totalorder %s77, %s78
    %p89 = scmp.eq.s32.totalorder %s17, 0
    %p90 = por %p88, %p89
    %p91 = scmp.ne.s32.totalorder %s77, %s78
    %p92 = scmp.eq.s32.totalorder %s18, 1
    %p93 = por %p91, %p92
    %p95 = scmp.ne.s32.totalorder %s78, %s94
    %p96 = scmp.eq.s32.totalorder %s18, 0
    %p97 = por %p95, %p96
    %s99 = sadd.s32 %s98, 1
    %p102 = scmp.eq.s32.totalorder %s12, 1
    %p103 = scmp.ne.s32.totalorder %s98, %s100
    %p104 = scmp.eq.s32.totalorder %s12, 0
    %p105 = por %p103, %p104
    %p106 = scmp.ne.s32.totalorder %s98, %s100
    %p107 = scmp.eq.s32.totalorder %s17, 1
    %p108 = por %p106, %p107
    %p109 = scmp.ne.s32.totalorder %s100, %s101
    %p110 = scmp.eq.s32.totalorder %s17, 0
    %p111 = por %p109, %p110
    %p112 = scmp.ne.s32.totalorder %s100, %s101
    %p113 = scmp.eq.s32.totalorder %s18, 1
    %p114 = por %p112, %p113
    %p116 = scmp.ne.s32.totalorder %s101, %s115
    %p117 = scmp.eq.s32.totalorder %s18, 0
    %p118 = por %p116, %p117
    %s120 = sadd.s32 %s119, 1
    %p123 = scmp.eq.s32.totalorder %s12, 1
    %p124 = scmp.ne.s32.totalorder %s119, %s121
    %p125 = scmp.eq.s32.totalorder %s12, 0
    %p126 = por %p124, %p125
    %p127 = scmp.ne.s32.totalorder %s119, %s121
    %p128 = scmp.eq.s32.totalorder %s17, 1
    %p129 = por %p127, %p128
    %p130 = scmp.ne.s32.totalorder %s121, %s122
    %p131 = scmp.eq.s32.totalorder %s17, 0
    %p132 = por %p130, %p131
    %p133 = scmp.ne.s32.totalorder %s121, %s122
    %p134 = scmp.eq.s32.totalorder %s18, 1
    %p135 = por %p133, %p134
    %p137 = scmp.ne.s32.totalorder %s122, %s136
    %p138 = scmp.eq.s32.totalorder %s18, 0
    %p139 = por %p137, %p138
    %s141 = sadd.s32 %s140, 1
    %p144 = scmp.eq.s32.totalorder %s12, 1
    %p145 = scmp.ne.s32.totalorder %s140, %s142
    %p146 = scmp.eq.s32.totalorder %s12, 0
    %p147 = por %p145, %p146
    %p148 = scmp.ne.s32.totalorder %s140, %s142
    %p149 = scmp.eq.s32.totalorder %s17, 1
    %p150 = por %p148, %p149
    %p151 = scmp.ne.s32.totalorder %s142, %s143
    %p152 = scmp.eq.s32.totalorder %s17, 0
    %p153 = por %p151, %p152
    %p154 = scmp.ne.s32.totalorder %s142, %s143
    %p155 = scmp.eq.s32.totalorder %s18, 1
    %p156 = por %p154, %p155
    %p158 = scmp.ne.s32.totalorder %s143, %s157
    %p159 = scmp.eq.s32.totalorder %s18, 0
    %p160 = por %p158, %p159
    %s161 = ssub.s32 %s12, %s19
    %p162 = scmp.eq.s32.totalorder %s161, 0
    %s164 = sadd.s32 %s163, 1
    %s165 = scalar_select %p162, %s163, %s164
    %p168 = pneg %p162
    %p169 = scmp.eq.s32.totalorder %s12, 1
    %p170 = por %p168, %p169
    %p171 = scmp.ne.s32.totalorder %s163, %s166
    %p172 = scmp.eq.s32.totalorder %s12, 0
    %p173 = por %p171, %p172
    %p174 = scmp.ne.s32.totalorder %s163, %s166
    %p175 = scmp.eq.s32.totalorder %s17, 1
    %p176 = por %p174, %p175
    %p177 = scmp.ne.s32.totalorder %s166, %s167
    %p178 = scmp.eq.s32.totalorder %s17, 0
    %p179 = por %p177, %p178
    %p180 = scmp.ne.s32.totalorder %s166, %s167
    %p181 = scmp.eq.s32.totalorder %s18, 1
    %p182 = por %p180, %p181
    %p184 = scmp.ne.s32.totalorder %s167, %s183
    %p185 = scmp.eq.s32.totalorder %s18, 0
    %p186 = por %p184, %p185
    %p187 = scmp.le.s32.totalorder 1, %s12
    %p188 = scmp.lt.s32.totalorder %s12, 3
    %p189 = pnand %p187, %p188
    %p190 = pneg %p189
    // Predicated region
    $region9: #{densenet_forward.31} parent=5 // pred_check
      _
    $region10: #{densenet_forward.31} parent=5 // pred_check_branch
      %192 = sbr.rel (%p189) target = $region12
    $region11: #{densenet_forward.31} parent=5 // pred_region
      %s193 = ssub.s32 %s12, 1
      // Predicated region
      $region13: #{densenet_forward.31} parent=11 // pred_check
        %p194 = pneg %p111
      $region14: #{densenet_forward.31} parent=11 // pred_check_branch
        %196 = sbr.rel (%p194) target = $region16
      $region15: #{densenet_forward.31} parent=11 // pred_region
        _
      $region16: #{densenet_forward.31} parent=11 // pred_fallthru
        _
      // Predicated region
      $region17: #{densenet_forward.31} parent=11 // pred_check
        %p197 = pneg %p132
      $region18: #{densenet_forward.31} parent=11 // pred_check_branch
        %199 = sbr.rel (%p197) target = $region20
      $region19: #{densenet_forward.31} parent=11 // pred_region
        _
      $region20: #{densenet_forward.31} parent=11 // pred_fallthru
        _
      // Predicated region
      $region21: #{densenet_forward.31} parent=11 // pred_check
        %p200 = pneg %p153
      $region22: #{densenet_forward.31} parent=11 // pred_check_branch
        %202 = sbr.rel (%p200) target = $region24
      $region23: #{densenet_forward.31} parent=11 // pred_region
        _
      $region24: #{densenet_forward.31} parent=11 // pred_fallthru
        _
    $region12: #{densenet_forward.31} parent=5 // pred_fallthru
      _
    %p203 = scmp.lt.s32.totalorder %s12, 2
    // Predicated region
    $region25: #{densenet_forward.31} parent=5 // pred_check
      %p204 = pneg %p203
    $region26: #{densenet_forward.31} parent=5 // pred_check_branch
      %206 = sbr.rel (%p204) target = $region28
    $region27: #{densenet_forward.31} parent=5 // pred_region
      // Predicated region
      $region29: #{densenet_forward.31} parent=27 // pred_check
        %p207 = pneg %p32
      $region30: #{densenet_forward.31} parent=27 // pred_check_branch
        %209 = sbr.rel (%p207) target = $region32
      $region31: #{densenet_forward.31} parent=27 // pred_region
        %s210 = smul.u32 8, %s12
        %p211 = scmp.lt.s32.totalorder %s210, 15
        %s212 = scalar_select %p211, %s210, 15
        %s213 = smul.addr %s212, 8
        %s214 = scalar_lea.vmem %s0, %s213
        %s215 = smul.u32 8, %s12
      $region32: #{densenet_forward.31} parent=27 // pred_fallthru
        _
      // Predicated region
      $region33: #{densenet_forward.31} parent=27 // pred_check
        %p216 = pneg %p58
      $region34: #{densenet_forward.31} parent=27 // pred_check_branch
        %218 = sbr.rel (%p216) target = $region36
      $region35: #{densenet_forward.31} parent=27 // pred_region
        %s219 = smul.u32 8, %s12
        %p220 = scmp.lt.s32.totalorder %s219, 15
        %s221 = scalar_select %p220, %s219, 15
        %s222 = smul.addr %s221, 8
        %s223 = scalar_lea.vmem %s1, %s222
        %s224 = smul.u32 8, %s12
      $region36: #{densenet_forward.31} parent=27 // pred_fallthru
        _
      // Predicated region
      $region37: #{densenet_forward.31} parent=27 // pred_check
        %p225 = pneg %p84
      $region38: #{densenet_forward.31} parent=27 // pred_check_branch
        %227 = sbr.rel (%p225) target = $region40
      $region39: #{densenet_forward.31} parent=27 // pred_region
        %s228 = smul.u32 8, %s12
        %p229 = scmp.lt.s32.totalorder %s228, 15
        %s230 = scalar_select %p229, %s228, 15
        %s231 = smul.addr %s230, 8
        %s232 = scalar_lea.vmem %s2, %s231
        %s233 = smul.u32 8, %s12
      $region40: #{densenet_forward.31} parent=27 // pred_fallthru
        _
    $region28: #{densenet_forward.31} parent=5 // pred_fallthru
      _
    %p234 = scmp.le.s32.totalorder 1, %s12
    %p235 = scmp.lt.s32.totalorder %s12, 3
    %p236 = pnand %p234, %p235
    %p237 = pneg %p236
    // Predicated region
    $region41: #{densenet_forward.31} parent=5 // pred_check
      _
    $region42: #{densenet_forward.31} parent=5 // pred_check_branch
      %239 = sbr.rel (%p236) target = $region44
    $region43: #{densenet_forward.31} parent=5 // pred_region
      %s240 = ssub.s32 %s12, 1
      %s241 = smul.u32 8, %s17
      %p242 = scmp.lt.s32.totalorder %s241, 15
      %s243 = scalar_select %p242, %s241, 15
      %s244 = smul.addr %s243, 8
      %s245 = scalar_lea.vmem %s0, %s244
      %p246 = pneg %p38
      %p247 = pneg %p35
      %s248 = smul.u32 8, %s17
      %p249 = scmp.lt.s32.totalorder %s248, 15
      %s250 = scalar_select %p249, %s248, 15
      %s251 = smul.addr %s250, 8
      %s252 = scalar_lea.vmem %s1, %s251
      %p253 = pneg %p64
      %p254 = pneg %p61
      %s255 = smul.u32 8, %s17
      %p256 = scmp.lt.s32.totalorder %s255, 15
      %s257 = scalar_select %p256, %s255, 15
      %s258 = smul.addr %s257, 8
      %s259 = scalar_lea.vmem %s2, %s258
      %p260 = pneg %p90
      %p261 = pneg %p87
      %p262 = pneg %p111
      %p263 = pneg %p108
      %p264 = pneg %p132
      %p265 = pneg %p129
      %p266 = pneg %p153
      %p267 = pneg %p150
      %p268 = pneg %p179
      %p269 = pneg %p176
      %s270 = smul.u32 8, %s17
      %p271 = scmp.lt.s32.totalorder %s270, 15
      %s272 = scalar_select %p271, %s270, 15
      %s273 = smul.addr %s272, 8
      %s274 = scalar_lea.vmem %s6, %s273
      %s275 = smul.u32 8, %s17
      %p276 = scmp.lt.s32.totalorder %s275, 15
      %s277 = scalar_select %p276, %s275, 15
      %s278 = smul.addr %s277, 8
      %s279 = scalar_lea.vmem %s0, %s278
      %s280 = smul.u32 8, %s17
      %s281 = smul.u32 8, %s17
      %p282 = scmp.lt.s32.totalorder %s281, 15
      %s283 = scalar_select %p282, %s281, 15
      %s284 = smul.addr %s283, 8
      %s285 = scalar_lea.vmem %s1, %s284
      %s286 = smul.u32 8, %s17
      %s287 = smul.u32 8, %s17
      %p288 = scmp.lt.s32.totalorder %s287, 15
      %s289 = scalar_select %p288, %s287, 15
      %s290 = smul.addr %s289, 8
      %s291 = scalar_lea.vmem %s2, %s290
      %s292 = smul.u32 8, %s17
      %s293 = smul.u32 8, %s17
      %p294 = scmp.lt.s32.totalorder %s293, 15
      %s295 = scalar_select %p294, %s293, 15
      %s296 = smul.addr %s295, 8
      %s297 = scalar_lea.vmem %s6, %s296
      %s298 = smul.u32 8, %s17
      %v300 = vld [vmem:[%s279] sm:$0xff]
      %v301 = vld [vmem:[%s279 + $0x8] sm:$0xff]
      %v302 = vld [vmem:[%s279 + $0x10] sm:$0xff]
      %v303 = vld [vmem:[%s279 + $0x18] sm:$0xff]
      %v304 = vld [vmem:[%s279 + $0x20] sm:$0xff]
      %v305 = vld [vmem:[%s279 + $0x28] sm:$0xff]
      %v306 = vld [vmem:[%s279 + $0x30] sm:$0xff]
      %v307 = vld [vmem:[%s279 + $0x38] sm:$0xff]
      %v308 = vld [vmem:[%s4] sm:$0x1]
      %v310 = vlaneseq
      %v311 = vshrl.u32 %v310, 7
      %v312 = vsub.s32 0, %v311
      %v313 = vrot.slane %v308, %v312
      %v315 = vmul.f32 %v300, %v313
      %v316 = vmul.f32 %v301, %v313
      %v317 = vmul.f32 %v302, %v313
      %v318 = vmul.f32 %v303, %v313
      %v319 = vmul.f32 %v304, %v313
      %v320 = vmul.f32 %v305, %v313
      %v321 = vmul.f32 %v306, %v313
      %v322 = vmul.f32 %v307, %v313
      %v323 = vld [vmem:[%s5] sm:$0x1]
      %v325 = vlaneseq
      %v326 = vshrl.u32 %v325, 7
      %v327 = vsub.s32 0, %v326
      %v328 = vrot.slane %v323, %v327
      %v330 = vadd.f32 %v315, %v328
      %v331 = vadd.f32 %v316, %v328
      %v332 = vadd.f32 %v317, %v328
      %v333 = vadd.f32 %v318, %v328
      %v334 = vadd.f32 %v319, %v328
      %v335 = vadd.f32 %v320, %v328
      %v336 = vadd.f32 %v321, %v328
      %v337 = vadd.f32 %v322, %v328
      %v338 = vmax.f32 %v330, 0.0
      %v339 = vmax.f32 %v331, 0.0
      %v340 = vmax.f32 %v332, 0.0
      %v341 = vmax.f32 %v333, 0.0
      %v342 = vmax.f32 %v334, 0.0
      %v343 = vmax.f32 %v335, 0.0
      %v344 = vmax.f32 %v336, 0.0
      %v345 = vmax.f32 %v337, 0.0
      %v346 = vpack.c.bf16 %v339, %v338
      %v347 = vpack.c.bf16 %v341, %v340
      %v348 = vpack.c.bf16 %v343, %v342
      %v349 = vpack.c.bf16 %v345, %v344
      %v350 = vld [vmem:[%s3] sm:$0xf]
      %v351 = vld [vmem:[%s3 + $0x4] sm:$0xf]
      %v352 = vld [vmem:[%s285] sm:$0xff]
      %v353 = vld [vmem:[%s285 + $0x8] sm:$0xff]
      %v354 = vld [vmem:[%s285 + $0x10] sm:$0xff]
      %v355 = vld [vmem:[%s285 + $0x18] sm:$0xff]
      %v356 = vld [vmem:[%s285 + $0x20] sm:$0xff]
      %v357 = vld [vmem:[%s285 + $0x28] sm:$0xff]
      %v358 = vld [vmem:[%s285 + $0x30] sm:$0xff]
      %v359 = vld [vmem:[%s285 + $0x38] sm:$0xff]
      %360 = vrot.lane.b32.xlu0 %v313, 112
      %v361 = vpop.permute.xlu0 %360
      %v363 = vmul.f32 %v352, %v361
      %v364 = vmul.f32 %v353, %v361
      %v365 = vmul.f32 %v354, %v361
      %v366 = vmul.f32 %v355, %v361
      %v367 = vmul.f32 %v356, %v361
      %v368 = vmul.f32 %v357, %v361
      %v369 = vmul.f32 %v358, %v361
      %v370 = vmul.f32 %v359, %v361
      %371 = vrot.lane.b32.xlu0 %v328, 112
      %v372 = vpop.permute.xlu0 %371
      %v374 = vadd.f32 %v363, %v372
      %v375 = vadd.f32 %v364, %v372
      %v376 = vadd.f32 %v365, %v372
      %v377 = vadd.f32 %v366, %v372
      %v378 = vadd.f32 %v367, %v372
      %v379 = vadd.f32 %v368, %v372
      %v380 = vadd.f32 %v369, %v372
      %v381 = vadd.f32 %v370, %v372
      %v382 = vmax.f32 %v374, 0.0
      %v383 = vmax.f32 %v375, 0.0
      %v384 = vmax.f32 %v376, 0.0
      %v385 = vmax.f32 %v377, 0.0
      %v386 = vmax.f32 %v378, 0.0
      %v387 = vmax.f32 %v379, 0.0
      %v388 = vmax.f32 %v380, 0.0
      %v389 = vmax.f32 %v381, 0.0
      %v390 = vpack.c.bf16 %v383, %v382
      %v391 = vpack.c.bf16 %v385, %v384
      %v392 = vpack.c.bf16 %v387, %v386
      %v393 = vpack.c.bf16 %v389, %v388
      %v394 = vld [vmem:[%s3 + $0x8] sm:$0xf]
      %vm395 = vcmask 64512
      %v397 = vsel %vm395, %v390, 0
      %v400 = vsel %vm395, %v391, 0
      %v403 = vsel %vm395, %v392, 0
      %v406 = vsel %vm395, %v393, 0
      %vm408 = vcmask 1043456
      %v410 = vsel %vm408, %v394, 0
      %412 = vmatprep.subr.bf16.mxu0 0
      %413 = vmatpush1.bf16.msra.mxu0 %v410
      %414 = vmatprep.subr.bf16.mxu0 0
      %415 = vmatpush1.bf16.msra.mxu0 0
      %416 = vmatprep.subr.bf16.mxu0 0
      %417 = vmatpush1.bf16.msra.mxu0 0
      %418 = vmatprep.subr.bf16.mxu0 0
      %419 = vmatpush1.bf16.msra.mxu0 0
      %420 = vmatprep.subr.bf16.mxu0 0
      %421 = vmatpush1.bf16.msra.mxu0 0
      %422 = vmatprep.subr.bf16.mxu0 0
      %423 = vmatpush1.bf16.msra.mxu0 0
      %424 = vmatprep.subr.bf16.mxu0 0
      %425 = vmatpush1.bf16.msra.mxu0 0
      %426 = vmatprep.subr.bf16.mxu0 0
      %427 = vmatpush1.bf16.msra.mxu0 0
      %428 = vmatprep.subr.bf16.mxu0 0
      %429 = vmatpush1.bf16.msra.mxu0 0
      %430 = vmatprep.subr.bf16.mxu0 0
      %431 = vmatpush1.bf16.msra.mxu0 0
      %432 = vmatprep.subr.bf16.mxu0 0
      %433 = vmatpush1.bf16.msra.mxu0 0
      %434 = vmatprep.subr.bf16.mxu0 0
      %435 = vmatpush1.bf16.msra.mxu0 0
      %436 = vmatprep.subr.bf16.mxu0 0
      %437 = vmatpush1.bf16.msra.mxu0 0
      %438 = vmatprep.subr.bf16.mxu0 0
      %439 = vmatpush1.bf16.msra.mxu0 0
      %440 = vmatprep.subr.bf16.mxu0 0
      %441 = vmatpush1.bf16.msra.mxu0 0
      %442 = vmatprep.subr.bf16.mxu0 0
      %443 = vmatpush1.bf16.msra.mxu0 0
      %444 = vmatprep.mubr.bf16.mxu0 0
      %445 = vmatmul.mubr.bf16.gmra.mrb[0].mxu0 %v397
      %v446 = vpop.f32.mrb[0].mxu0
      %v447 = vadd.f32 0.0, %v446
      %v448 = vpop.f32.mrb[0].mxu0
      %v449 = vpop.f32.mrb[0].mxu0
      %v450 = vadd.f32 0.0, %v449
      %v451 = vpop.f32.mrb[0].mxu0
      %452 = vmatprep.mubr.bf16.mxu0 0
      %453 = vmatmul.mubr.bf16.gmra.mrb[0].mxu0 %v400
      %v454 = vpop.f32.mrb[0].mxu0
      %v455 = vadd.f32 0.0, %v454
      %v456 = vpop.f32.mrb[0].mxu0
      %v457 = vpop.f32.mrb[0].mxu0
      %v458 = vadd.f32 0.0, %v457
      %v459 = vpop.f32.mrb[0].mxu0
      %460 = vmatprep.mubr.bf16.mxu0 0
      %461 = vmatmul.mubr.bf16.gmra.mrb[0].mxu0 %v403
      %v462 = vpop.f32.mrb[0].mxu0
      %v463 = vadd.f32 0.0, %v462
      %v464 = vpop.f32.mrb[0].mxu0
      %v465 = vpop.f32.mrb[0].mxu0
      %v466 = vadd.f32 0.0, %v465
      %v467 = vpop.f32.mrb[0].mxu0
      %468 = vmatprep.mubr.bf16.mxu0 0
      %469 = vmatmul.mubr.bf16.gmra.mrb[0].mxu0 %v406
      %v470 = vpop.f32.mrb[0].mxu0
      %v471 = vadd.f32 0.0, %v470
      %v472 = vpop.f32.mrb[0].mxu0
      %v473 = vpop.f32.mrb[0].mxu0
      %v474 = vadd.f32 0.0, %v473
      %v475 = vpop.f32.mrb[0].mxu0
      %476 = vdwg.mxu0
      %v479 = vunpack.c.l.b16 %v350
      %v480 = vunpack.c.l.b16 %v351
      %v481 = vpack.c.b16 %v480, %v479
      %vm483 = vcmask 130048
      %v485 = vsel %vm483, %v346, 0
      %v488 = vsel %vm483, %v347, 0
      %v491 = vsel %vm483, %v348, 0
      %v494 = vsel %vm483, %v349, 0
      %496 = vmatprep.subr.bf16.mxu0 0
      %497 = vmatpush1.bf16.msra.mxu0 %v481
      %498 = vmatprep.subr.bf16.mxu0 0
      %499 = vmatpush1.bf16.msra.mxu0 0
      %500 = vmatprep.subr.bf16.mxu0 0
      %501 = vmatpush1.bf16.msra.mxu0 0
      %502 = vmatprep.subr.bf16.mxu0 0
      %503 = vmatpush1.bf16.msra.mxu0 0
      %504 = vmatprep.subr.bf16.mxu0 0
      %505 = vmatpush1.bf16.msra.mxu0 0
      %506 = vmatprep.subr.bf16.mxu0 0
      %507 = vmatpush1.bf16.msra.mxu0 0
      %508 = vmatprep.subr.bf16.mxu0 0
      %509 = vmatpush1.bf16.msra.mxu0 0
      %510 = vmatprep.subr.bf16.mxu0 0
      %511 = vmatpush1.bf16.msra.mxu0 0
      %512 = vmatprep.subr.bf16.mxu0 0
      %513 = vmatpush1.bf16.msra.mxu0 0
      %514 = vmatprep.subr.bf16.mxu0 0
      %515 = vmatpush1.bf16.msra.mxu0 0
      %516 = vmatprep.subr.bf16.mxu0 0
      %517 = vmatpush1.bf16.msra.mxu0 0
      %518 = vmatprep.subr.bf16.mxu0 0
      %519 = vmatpush1.bf16.msra.mxu0 0
      %520 = vmatprep.subr.bf16.mxu0 0
      %521 = vmatpush1.bf16.msra.mxu0 0
      %522 = vmatprep.subr.bf16.mxu0 0
      %523 = vmatpush1.bf16.msra.mxu0 0
      %524 = vmatprep.subr.bf16.mxu0 0
      %525 = vmatpush1.bf16.msra.mxu0 0
      %526 = vmatprep.subr.bf16.mxu0 0
      %527 = vmatpush1.bf16.msra.mxu0 0
      %528 = vmatprep.mubr.bf16.mxu0 0
      %529 = vmatmul.mubr.bf16.gmra.mrb[0].mxu0 %v485
      %v530 = vpop.f32.mrb[0].mxu0
      %v531 = vadd.f32 %v447, %v530
      %v532 = vpop.f32.mrb[0].mxu0
      %v533 = vpop.f32.mrb[0].mxu0
      %v534 = vadd.f32 %v450, %v533
      %v535 = vpop.f32.mrb[0].mxu0
      %536 = vmatprep.mubr.bf16.mxu0 0
      %537 = vmatmul.mubr.bf16.gmra.mrb[0].mxu0 %v488
      %v538 = vpop.f32.mrb[0].mxu0
      %v539 = vadd.f32 %v455, %v538
      %v540 = vpop.f32.mrb[0].mxu0
      %v541 = vpop.f32.mrb[0].mxu0
      %v542 = vadd.f32 %v458, %v541
      %v543 = vpop.f32.mrb[0].mxu0
      %544 = vmatprep.mubr.bf16.mxu0 0
      %545 = vmatmul.mubr.bf16.gmra.mrb[0].mxu0 %v491
      %v546 = vpop.f32.mrb[0].mxu0
      %v547 = vadd.f32 %v463, %v546
      %v548 = vpop.f32.mrb[0].mxu0
      %v549 = vpop.f32.mrb[0].mxu0
      %v550 = vadd.f32 %v466, %v549
      %v551 = vpop.f32.mrb[0].mxu0
      %552 = vmatprep.mubr.bf16.mxu0 0
      %553 = vmatmul.mubr.bf16.gmra.mrb[0].mxu0 %v494
      %v554 = vpop.f32.mrb[0].mxu0
      %v555 = vadd.f32 %v471, %v554
      %v556 = vpop.f32.mrb[0].mxu0
      %v557 = vpop.f32.mrb[0].mxu0
      %v558 = vadd.f32 %v474, %v557
      %v559 = vpop.f32.mrb[0].mxu0
      %560 = vdwg.mxu0
      %v561 = vld [vmem:[%s291] sm:$0xff]
      %v562 = vld [vmem:[%s291 + $0x8] sm:$0xff]
      %v563 = vld [vmem:[%s291 + $0x10] sm:$0xff]
      %v564 = vld [vmem:[%s291 + $0x18] sm:$0xff]
      %v565 = vld [vmem:[%s291 + $0x20] sm:$0xff]
      %v566 = vld [vmem:[%s291 + $0x28] sm:$0xff]
      %v567 = vld [vmem:[%s291 + $0x30] sm:$0xff]
      %v568 = vld [vmem:[%s291 + $0x38] sm:$0xff]
      %569 = vrot.lane.b32.xlu0 %v313, 104
      %v570 = vpop.permute.xlu0 %569
      %v572 = vmul.f32 %v561, %v570
      %v573 = vmul.f32 %v562, %v570
      %v574 = vmul.f32 %v563, %v570
      %v575 = vmul.f32 %v564, %v570
      %v576 = vmul.f32 %v565, %v570
      %v577 = vmul.f32 %v566, %v570
      %v578 = vmul.f32 %v567, %v570
      %v579 = vmul.f32 %v568, %v570
      %580 = vrot.lane.b32.xlu0 %v328, 104
      %v581 = vpop.permute.xlu0 %580
      %v583 = vadd.f32 %v572, %v581
      %v584 = vadd.f32 %v573, %v581
      %v585 = vadd.f32 %v574, %v581
      %v586 = vadd.f32 %v575, %v581
      %v587 = vadd.f32 %v576, %v581
      %v588 = vadd.f32 %v577, %v581
      %v589 = vadd.f32 %v578, %v581
      %v590 = vadd.f32 %v579, %v581
      %v591 = vmax.f32 %v583, 0.0
      %v592 = vmax.f32 %v584, 0.0
      %v593 = vmax.f32 %v585, 0.0
      %v594 = vmax.f32 %v586, 0.0
      %v595 = vmax.f32 %v587, 0.0
      %v596 = vmax.f32 %v588, 0.0
      %v597 = vmax.f32 %v589, 0.0
      %v598 = vmax.f32 %v590, 0.0
      %v599 = vpack.c.bf16 %v592, %v591
      %v600 = vpack.c.bf16 %v594, %v593
      %v601 = vpack.c.bf16 %v596, %v595
      %v602 = vpack.c.bf16 %v598, %v597
      %v603 = vld [vmem:[%s3 + $0xc] sm:$0xf]
      %v605 = vsel %vm395, %v599, 0
      %v608 = vsel %vm395, %v600, 0
      %v611 = vsel %vm395, %v601, 0
      %v614 = vsel %vm395, %v602, 0
      %v617 = vsel %vm408, %v603, 0
      %619 = vmatprep.subr.bf16.mxu0 0
      %620 = vmatpush1.bf16.msra.mxu0 %v617
      %621 = vmatprep.subr.bf16.mxu0 0
      %622 = vmatpush1.bf16.msra.mxu0 0
      %623 = vmatprep.subr.bf16.mxu0 0
      %624 = vmatpush1.bf16.msra.mxu0 0
      %625 = vmatprep.subr.bf16.mxu0 0
      %626 = vmatpush1.bf16.msra.mxu0 0
      %627 = vmatprep.subr.bf16.mxu0 0
      %628 = vmatpush1.bf16.msra.mxu0 0
      %629 = vmatprep.subr.bf16.mxu0 0
      %630 = vmatpush1.bf16.msra.mxu0 0
      %631 = vmatprep.subr.bf16.mxu0 0
      %632 = vmatpush1.bf16.msra.mxu0 0
      %633 = vmatprep.subr.bf16.mxu0 0
      %634 = vmatpush1.bf16.msra.mxu0 0
      %635 = vmatprep.subr.bf16.mxu0 0
      %636 = vmatpush1.bf16.msra.mxu0 0
      %637 = vmatprep.subr.bf16.mxu0 0
      %638 = vmatpush1.bf16.msra.mxu0 0
      %639 = vmatprep.subr.bf16.mxu0 0
      %640 = vmatpush1.bf16.msra.mxu0 0
      %641 = vmatprep.subr.bf16.mxu0 0
      %642 = vmatpush1.bf16.msra.mxu0 0
      %643 = vmatprep.subr.bf16.mxu0 0
      %644 = vmatpush1.bf16.msra.mxu0 0
      %645 = vmatprep.subr.bf16.mxu0 0
      %646 = vmatpush1.bf16.msra.mxu0 0
      %647 = vmatprep.subr.bf16.mxu0 0
      %648 = vmatpush1.bf16.msra.mxu0 0
      %649 = vmatprep.subr.bf16.mxu0 0
      %650 = vmatpush1.bf16.msra.mxu0 0
      %651 = vmatprep.mubr.bf16.mxu0 0
      %652 = vmatmul.mubr.bf16.gmra.mrb[0].mxu0 %v605
      %v653 = vpop.f32.mrb[0].mxu0
      %v654 = vadd.f32 0.0, %v653
      %v655 = vpop.f32.mrb[0].mxu0
      %v656 = vpop.f32.mrb[0].mxu0
      %v657 = vadd.f32 0.0, %v656
      %v658 = vpop.f32.mrb[0].mxu0
      %659 = vmatprep.mubr.bf16.mxu0 0
      %660 = vmatmul.mubr.bf16.gmra.mrb[0].mxu0 %v608
      %v661 = vpop.f32.mrb[0].mxu0
      %v662 = vadd.f32 0.0, %v661
      %v663 = vpop.f32.mrb[0].mxu0
      %v664 = vpop.f32.mrb[0].mxu0
      %v665 = vadd.f32 0.0, %v664
      %v666 = vpop.f32.mrb[0].mxu0
      %667 = vmatprep.mubr.bf16.mxu0 0
      %668 = vmatmul.mubr.bf16.gmra.mrb[0].mxu0 %v611
      %v669 = vpop.f32.mrb[0].mxu0
      %v670 = vadd.f32 0.0, %v669
      %v671 = vpop.f32.mrb[0].mxu0
      %v672 = vpop.f32.mrb[0].mxu0
      %v673 = vadd.f32 0.0, %v672
      %v674 = vpop.f32.mrb[0].mxu0
      %675 = vmatprep.mubr.bf16.mxu0 0
      %676 = vmatmul.mubr.bf16.gmra.mrb[0].mxu0 %v614
      %v677 = vpop.f32.mrb[0].mxu0
      %v678 = vadd.f32 0.0, %v677
      %v679 = vpop.f32.mrb[0].mxu0
      %v680 = vpop.f32.mrb[0].mxu0
      %v681 = vadd.f32 0.0, %v680
      %v682 = vpop.f32.mrb[0].mxu0
      %683 = vdwg.mxu0
      %v684 = vadd.f32 %v531, %v654
      %v685 = vadd.f32 %v534, %v657
      %v686 = vadd.f32 %v539, %v662
      %v687 = vadd.f32 %v542, %v665
      %v688 = vadd.f32 %v547, %v670
      %v689 = vadd.f32 %v550, %v673
      %v690 = vadd.f32 %v555, %v678
      %v691 = vadd.f32 %v558, %v681
      %692 = vst.msk [vmem:[%s297] sm:$0xff] %vm483, %v684
      %693 = vst.msk [vmem:[%s297 + $0x8] sm:$0xff] %vm483, %v685
      %694 = vst.msk [vmem:[%s297 + $0x10] sm:$0xff] %vm483, %v686
      %695 = vst.msk [vmem:[%s297 + $0x18] sm:$0xff] %vm483, %v687
      %696 = vst.msk [vmem:[%s297 + $0x20] sm:$0xff] %vm483, %v688
      %697 = vst.msk [vmem:[%s297 + $0x28] sm:$0xff] %vm483, %v689
      %698 = vst.msk [vmem:[%s297 + $0x30] sm:$0xff] %vm483, %v690
      %699 = vst.msk [vmem:[%s297 + $0x38] sm:$0xff] %vm483, %v691
      %s700 = smul.u32 8, %s17
      %p701 = scmp.lt.s32.totalorder %s700, 15
      %s702 = scalar_select %p701, %s700, 15
      %s703 = smul.addr %s702, 8
      %s704 = scalar_lea.vmem %s6, %s703
      // Predicated region
      $region45: #{densenet_forward.31} parent=43 // pred_check
        %p705 = pneg %p176
      $region46: #{densenet_forward.31} parent=43 // pred_check_branch
        %707 = sbr.rel (%p705) target = $region48
      $region47: #{densenet_forward.31} parent=43 // pred_region
        %s708 = smul.u32 8, %s17
      $region48: #{densenet_forward.31} parent=43 // pred_fallthru
        _
    $region44: #{densenet_forward.31} parent=5 // pred_fallthru
      _
    %p709 = scmp.le.s32.totalorder 2, %s12
    // Predicated region
    $region49: #{densenet_forward.31} parent=5 // pred_check
      %p710 = pneg %p709
    $region50: #{densenet_forward.31} parent=5 // pred_check_branch
      %712 = sbr.rel (%p710) target = $region52
    $region51: #{densenet_forward.31} parent=5 // pred_region
      %s713 = ssub.s32 %s12, 2
      // Predicated region
      $region53: #{densenet_forward.31} parent=51 // pred_check
        %p714 = pneg %p182
      $region54: #{densenet_forward.31} parent=51 // pred_check_branch
        %716 = sbr.rel (%p714) target = $region56
      $region55: #{densenet_forward.31} parent=51 // pred_region
        %s717 = smul.u32 8, %s18
        %p718 = scmp.lt.s32.totalorder %s717, 15
        %s719 = scalar_select %p718, %s717, 15
        %s720 = smul.addr %s719, 8
        %s721 = scalar_lea.vmem %s6, %s720
      $region56: #{densenet_forward.31} parent=51 // pred_fallthru
        _
    $region52: #{densenet_forward.31} parent=5 // pred_fallthru
      _
  $region6: #{densenet_forward.31} parent=0 // loop_footer
    %s16 = sadd.s32 1, %s12
  $region7: #{densenet_forward.31} parent=0 // loop_footer_branch
    %11 = sbr.rel target = $region3
  $region8: #{densenet_forward.31} parent=0 // loop_exit
    _

// kernel: densenet_forward.32
$region0: #{densenet_forward.32}
  #allocation0 [shape = 'u32[]', space=smem, size = 0x4, offset = 0x4, fixed_abs, tag = 'smem constant byte address 0x4 - core index']
  #allocation1 [shape = 'u32[144,128]{1,0:T(1,128)}', space=vmem, size = 0x12000, scoped, tag = 'internal scratch']
  %s0 = inlined_call_operand.vmem [shape: f32[2,4,4,16], index: 0, kind: input, shape index: {}]
  %s1 = inlined_call_operand.vmem [shape: f32[2,4,4,16], index: 1, kind: input, shape index: {}]
  %s2 = inlined_call_operand.vmem [shape: f32[2,4,4,16], index: 2, kind: input, shape index: {}]
  %s3 = inlined_call_operand.vmem [shape: f32[2,4,4,16], index: 3, kind: input, shape index: {}]
  %s4 = inlined_call_operand.vmem [shape: f32[2,4,4,16], index: 4, kind: output, shape index: {}]
  %s5 = sld [smem:[#allocation0]]
  $region49: #{densenet_forward.32} parent=0
    _
  %s7 = ssub.s32 1, %s5
  %s8 = scalar_select 0, %s7, %s5
  loop: start=0, step=1, limit=4
  $region2: #{densenet_forward.32} parent=0 // loop_pre_header
    _
  $region3: #{densenet_forward.32} parent=0 // loop_header
    %s10 = sphi 0, %s14
    %p11 = scmp.ge.s32.totalorder %s10, 4
    %s20 = sphi 0, %s22
    %s23 = sphi 0, %s20
    %s24 = sphi 0, %s23
    %s40 = sphi 0, %s24
    %s46 = sphi 0, %s48
    %s49 = sphi 0, %s46
    %s50 = sphi 0, %s49
    %s66 = sphi 0, %s50
    %s72 = sphi 0, %s74
    %s75 = sphi 0, %s72
    %s76 = sphi 0, %s75
    %s92 = sphi 0, %s76
    %s98 = sphi 0, %s100
    %s101 = sphi 0, %s98
    %s102 = sphi 0, %s101
    %s118 = sphi 0, %s102
    %s124 = sphi 0, %s126
    %s127 = sphi 0, %s124
    %s128 = sphi 0, %s127
    %s144 = sphi 0, %s128
  $region4: #{densenet_forward.32} parent=0 // loop_header_branch
    %13 = sbr.rel (%p11) target = $region8
  $region5: #{densenet_forward.32} parent=0 // loop_body
    %s15 = ssub.s32 %s10, 1
    %s16 = ssub.s32 %s10, 2
    %s17 = sadd.s32 %s10, 1
    %s18 = ssub.s32 %s10, %s17
    %p19 = scmp.eq.s32.totalorder %s18, 0
    %s21 = sadd.s32 %s20, 1
    %s22 = scalar_select %p19, %s20, %s21
    %p25 = pneg %p19
    %p26 = scmp.eq.s32.totalorder %s10, 1
    %p27 = por %p25, %p26
    %p28 = scmp.ne.s32.totalorder %s20, %s23
    %p29 = scmp.eq.s32.totalorder %s10, 0
    %p30 = por %p28, %p29
    %p31 = scmp.ne.s32.totalorder %s20, %s23
    %p32 = scmp.eq.s32.totalorder %s15, 1
    %p33 = por %p31, %p32
    %p34 = scmp.ne.s32.totalorder %s23, %s24
    %p35 = scmp.eq.s32.totalorder %s15, 0
    %p36 = por %p34, %p35
    %p37 = scmp.ne.s32.totalorder %s23, %s24
    %p38 = scmp.eq.s32.totalorder %s16, 1
    %p39 = por %p37, %p38
    %p41 = scmp.ne.s32.totalorder %s24, %s40
    %p42 = scmp.eq.s32.totalorder %s16, 0
    %p43 = por %p41, %p42
    %s44 = ssub.s32 %s10, %s17
    %p45 = scmp.eq.s32.totalorder %s44, 0
    %s47 = sadd.s32 %s46, 1
    %s48 = scalar_select %p45, %s46, %s47
    %p51 = pneg %p45
    %p52 = scmp.eq.s32.totalorder %s10, 1
    %p53 = por %p51, %p52
    %p54 = scmp.ne.s32.totalorder %s46, %s49
    %p55 = scmp.eq.s32.totalorder %s10, 0
    %p56 = por %p54, %p55
    %p57 = scmp.ne.s32.totalorder %s46, %s49
    %p58 = scmp.eq.s32.totalorder %s15, 1
    %p59 = por %p57, %p58
    %p60 = scmp.ne.s32.totalorder %s49, %s50
    %p61 = scmp.eq.s32.totalorder %s15, 0
    %p62 = por %p60, %p61
    %p63 = scmp.ne.s32.totalorder %s49, %s50
    %p64 = scmp.eq.s32.totalorder %s16, 1
    %p65 = por %p63, %p64
    %p67 = scmp.ne.s32.totalorder %s50, %s66
    %p68 = scmp.eq.s32.totalorder %s16, 0
    %p69 = por %p67, %p68
    %s70 = ssub.s32 %s10, %s17
    %p71 = scmp.eq.s32.totalorder %s70, 0
    %s73 = sadd.s32 %s72, 1
    %s74 = scalar_select %p71, %s72, %s73
    %p77 = pneg %p71
    %p78 = scmp.eq.s32.totalorder %s10, 1
    %p79 = por %p77, %p78
    %p80 = scmp.ne.s32.totalorder %s72, %s75
    %p81 = scmp.eq.s32.totalorder %s10, 0
    %p82 = por %p80, %p81
    %p83 = scmp.ne.s32.totalorder %s72, %s75
    %p84 = scmp.eq.s32.totalorder %s15, 1
    %p85 = por %p83, %p84
    %p86 = scmp.ne.s32.totalorder %s75, %s76
    %p87 = scmp.eq.s32.totalorder %s15, 0
    %p88 = por %p86, %p87
    %p89 = scmp.ne.s32.totalorder %s75, %s76
    %p90 = scmp.eq.s32.totalorder %s16, 1
    %p91 = por %p89, %p90
    %p93 = scmp.ne.s32.totalorder %s76, %s92
    %p94 = scmp.eq.s32.totalorder %s16, 0
    %p95 = por %p93, %p94
    %s96 = ssub.s32 %s10, %s17
    %p97 = scmp.eq.s32.totalorder %s96, 0
    %s99 = sadd.s32 %s98, 1
    %s100 = scalar_select %p97, %s98, %s99
    %p103 = pneg %p97
    %p104 = scmp.eq.s32.totalorder %s10, 1
    %p105 = por %p103, %p104
    %p106 = scmp.ne.s32.totalorder %s98, %s101
    %p107 = scmp.eq.s32.totalorder %s10, 0
    %p108 = por %p106, %p107
    %p109 = scmp.ne.s32.totalorder %s98, %s101
    %p110 = scmp.eq.s32.totalorder %s15, 1
    %p111 = por %p109, %p110
    %p112 = scmp.ne.s32.totalorder %s101, %s102
    %p113 = scmp.eq.s32.totalorder %s15, 0
    %p114 = por %p112, %p113
    %p115 = scmp.ne.s32.totalorder %s101, %s102
    %p116 = scmp.eq.s32.totalorder %s16, 1
    %p117 = por %p115, %p116
    %p119 = scmp.ne.s32.totalorder %s102, %s118
    %p120 = scmp.eq.s32.totalorder %s16, 0
    %p121 = por %p119, %p120
    %s122 = ssub.s32 %s10, %s17
    %p123 = scmp.eq.s32.totalorder %s122, 0
    %s125 = sadd.s32 %s124, 1
    %s126 = scalar_select %p123, %s124, %s125
    %p129 = pneg %p123
    %p130 = scmp.eq.s32.totalorder %s10, 1
    %p131 = por %p129, %p130
    %p132 = scmp.ne.s32.totalorder %s124, %s127
    %p133 = scmp.eq.s32.totalorder %s10, 0
    %p134 = por %p132, %p133
    %p135 = scmp.ne.s32.totalorder %s124, %s127
    %p136 = scmp.eq.s32.totalorder %s15, 1
    %p137 = por %p135, %p136
    %p138 = scmp.ne.s32.totalorder %s127, %s128
    %p139 = scmp.eq.s32.totalorder %s15, 0
    %p140 = por %p138, %p139
    %p141 = scmp.ne.s32.totalorder %s127, %s128
    %p142 = scmp.eq.s32.totalorder %s16, 1
    %p143 = por %p141, %p142
    %p145 = scmp.ne.s32.totalorder %s128, %s144
    %p146 = scmp.eq.s32.totalorder %s16, 0
    %p147 = por %p145, %p146
    %p148 = scmp.le.s32.totalorder 1, %s10
    %p149 = scmp.lt.s32.totalorder %s10, 3
    %p150 = pnand %p148, %p149
    %p151 = pneg %p150
    // Predicated region
    $region9: #{densenet_forward.32} parent=5 // pred_check
      _
    $region10: #{densenet_forward.32} parent=5 // pred_check_branch
      %153 = sbr.rel (%p150) target = $region12
    $region11: #{densenet_forward.32} parent=5 // pred_region
      %s154 = ssub.s32 %s10, 1
    $region12: #{densenet_forward.32} parent=5 // pred_fallthru
      _
    %p155 = scmp.lt.s32.totalorder %s10, 2
    // Predicated region
    $region13: #{densenet_forward.32} parent=5 // pred_check
      %p156 = pneg %p155
    $region14: #{densenet_forward.32} parent=5 // pred_check_branch
      %158 = sbr.rel (%p156) target = $region16
    $region15: #{densenet_forward.32} parent=5 // pred_region
      // Predicated region
      $region17: #{densenet_forward.32} parent=15 // pred_check
        %p159 = pneg %p30
      $region18: #{densenet_forward.32} parent=15 // pred_check_branch
        %161 = sbr.rel (%p159) target = $region20
      $region19: #{densenet_forward.32} parent=15 // pred_region
        %p162 = scmp.lt.s32.totalorder %s10, 1
        %s163 = scalar_select %p162, %s10, 1
        %s164 = smul.addr %s163, 4
        %s165 = smul.addr %s164, 4
        %s166 = scalar_lea.vmem %s0, %s165
      $region20: #{densenet_forward.32} parent=15 // pred_fallthru
        _
      // Predicated region
      $region21: #{densenet_forward.32} parent=15 // pred_check
        %p167 = pneg %p56
      $region22: #{densenet_forward.32} parent=15 // pred_check_branch
        %169 = sbr.rel (%p167) target = $region24
      $region23: #{densenet_forward.32} parent=15 // pred_region
        %p170 = scmp.lt.s32.totalorder %s10, 1
        %s171 = scalar_select %p170, %s10, 1
        %s172 = smul.addr %s171, 4
        %s173 = smul.addr %s172, 4
        %s174 = scalar_lea.vmem %s1, %s173
      $region24: #{densenet_forward.32} parent=15 // pred_fallthru
        _
      // Predicated region
      $region25: #{densenet_forward.32} parent=15 // pred_check
        %p175 = pneg %p82
      $region26: #{densenet_forward.32} parent=15 // pred_check_branch
        %177 = sbr.rel (%p175) target = $region28
      $region27: #{densenet_forward.32} parent=15 // pred_region
        %p178 = scmp.lt.s32.totalorder %s10, 1
        %s179 = scalar_select %p178, %s10, 1
        %s180 = smul.addr %s179, 4
        %s181 = smul.addr %s180, 4
        %s182 = scalar_lea.vmem %s2, %s181
      $region28: #{densenet_forward.32} parent=15 // pred_fallthru
        _
      // Predicated region
      $region29: #{densenet_forward.32} parent=15 // pred_check
        %p183 = pneg %p108
      $region30: #{densenet_forward.32} parent=15 // pred_check_branch
        %185 = sbr.rel (%p183) target = $region32
      $region31: #{densenet_forward.32} parent=15 // pred_region
        %p186 = scmp.lt.s32.totalorder %s10, 1
        %s187 = scalar_select %p186, %s10, 1
        %s188 = smul.addr %s187, 4
        %s189 = smul.addr %s188, 4
        %s190 = scalar_lea.vmem %s3, %s189
      $region32: #{densenet_forward.32} parent=15 // pred_fallthru
        _
    $region16: #{densenet_forward.32} parent=5 // pred_fallthru
      _
    %p191 = scmp.le.s32.totalorder 1, %s10
    %p192 = scmp.lt.s32.totalorder %s10, 3
    %p193 = pnand %p191, %p192
    %p194 = pneg %p193
    // Predicated region
    $region33: #{densenet_forward.32} parent=5 // pred_check
      _
    $region34: #{densenet_forward.32} parent=5 // pred_check_branch
      %196 = sbr.rel (%p193) target = $region36
    $region35: #{densenet_forward.32} parent=5 // pred_region
      %s197 = ssub.s32 %s10, 1
      %p198 = scmp.lt.s32.totalorder %s15, 1
      %s199 = scalar_select %p198, %s15, 1
      %s200 = smul.addr %s199, 4
      %s201 = smul.addr %s200, 4
      %s202 = scalar_lea.vmem %s0, %s201
      %p203 = pneg %p36
      %p204 = pneg %p33
      %p205 = scmp.lt.s32.totalorder %s15, 1
      %s206 = scalar_select %p205, %s15, 1
      %s207 = smul.addr %s206, 4
      %s208 = smul.addr %s207, 4
      %s209 = scalar_lea.vmem %s1, %s208
      %p210 = pneg %p62
      %p211 = pneg %p59
      %p212 = scmp.lt.s32.totalorder %s15, 1
      %s213 = scalar_select %p212, %s15, 1
      %s214 = smul.addr %s213, 4
      %s215 = smul.addr %s214, 4
      %s216 = scalar_lea.vmem %s2, %s215
      %p217 = pneg %p88
      %p218 = pneg %p85
      %p219 = scmp.lt.s32.totalorder %s15, 1
      %s220 = scalar_select %p219, %s15, 1
      %s221 = smul.addr %s220, 4
      %s222 = smul.addr %s221, 4
      %s223 = scalar_lea.vmem %s3, %s222
      %p224 = pneg %p114
      %p225 = pneg %p111
      %p226 = pneg %p140
      %p227 = pneg %p137
      %p228 = scmp.lt.s32.totalorder %s15, 1
      %s229 = scalar_select %p228, %s15, 1
      %s230 = smul.addr %s229, 4
      %s231 = smul.addr %s230, 4
      %s232 = scalar_lea.vmem %s4, %s231
      %p233 = scmp.lt.s32.totalorder %s15, 1
      %s234 = scalar_select %p233, %s15, 1
      %s235 = smul.addr %s234, 4
      %s236 = smul.addr %s235, 4
      %s237 = scalar_lea.vmem %s0, %s236
      %p238 = scmp.lt.s32.totalorder %s15, 1
      %s239 = scalar_select %p238, %s15, 1
      %s240 = smul.addr %s239, 4
      %s241 = smul.addr %s240, 4
      %s242 = scalar_lea.vmem %s1, %s241
      %p243 = scmp.lt.s32.totalorder %s15, 1
      %s244 = scalar_select %p243, %s15, 1
      %s245 = smul.addr %s244, 4
      %s246 = smul.addr %s245, 4
      %s247 = scalar_lea.vmem %s2, %s246
      %p248 = scmp.lt.s32.totalorder %s15, 1
      %s249 = scalar_select %p248, %s15, 1
      %s250 = smul.addr %s249, 4
      %s251 = smul.addr %s250, 4
      %s252 = scalar_lea.vmem %s3, %s251
      %p253 = scmp.lt.s32.totalorder %s15, 1
      %s254 = scalar_select %p253, %s15, 1
      %s255 = smul.addr %s254, 4
      %s256 = smul.addr %s255, 4
      %s257 = scalar_lea.vmem %s4, %s256
      %v258 = vld [vmem:[%s237] sm:$0xf]
      %v259 = vld [vmem:[%s237 + $0x4] sm:$0xf]
      %v260 = vld [vmem:[%s237 + $0x8] sm:$0xf]
      %v261 = vld [vmem:[%s237 + $0xc] sm:$0xf]
      %v262 = vld [vmem:[%s242] sm:$0xf]
      %v263 = vld [vmem:[%s242 + $0x4] sm:$0xf]
      %v264 = vld [vmem:[%s242 + $0x8] sm:$0xf]
      %v265 = vld [vmem:[%s242 + $0xc] sm:$0xf]
      %v266 = vadd.f32 %v258, %v262
      %v267 = vadd.f32 %v259, %v263
      %v268 = vadd.f32 %v260, %v264
      %v269 = vadd.f32 %v261, %v265
      %v270 = vld [vmem:[%s247] sm:$0xf]
      %v271 = vld [vmem:[%s247 + $0x4] sm:$0xf]
      %v272 = vld [vmem:[%s247 + $0x8] sm:$0xf]
      %v273 = vld [vmem:[%s247 + $0xc] sm:$0xf]
      %v274 = vadd.f32 %v266, %v270
      %v275 = vadd.f32 %v267, %v271
      %v276 = vadd.f32 %v268, %v272
      %v277 = vadd.f32 %v269, %v273
      %v278 = vld [vmem:[%s252] sm:$0xf]
      %v279 = vld [vmem:[%s252 + $0x4] sm:$0xf]
      %v280 = vld [vmem:[%s252 + $0x8] sm:$0xf]
      %v281 = vld [vmem:[%s252 + $0xc] sm:$0xf]
      %v282 = vadd.f32 %v274, %v278
      %v283 = vadd.f32 %v275, %v279
      %v284 = vadd.f32 %v276, %v280
      %v285 = vadd.f32 %v277, %v281
      %v286 = vmul.f32 %v282, 0.25
      %v287 = vmul.f32 %v283, 0.25
      %v288 = vmul.f32 %v284, 0.25
      %v289 = vmul.f32 %v285, 0.25
      %vm290 = vcmask 125952
      %291 = vst.msk [vmem:[%s257] sm:$0xf] %vm290, %v286
      %292 = vst.msk [vmem:[%s257 + $0x4] sm:$0xf] %vm290, %v287
      %293 = vst.msk [vmem:[%s257 + $0x8] sm:$0xf] %vm290, %v288
      %294 = vst.msk [vmem:[%s257 + $0xc] sm:$0xf] %vm290, %v289
      %p295 = scmp.lt.s32.totalorder %s15, 1
      %s296 = scalar_select %p295, %s15, 1
      %s297 = smul.addr %s296, 4
      %s298 = smul.addr %s297, 4
      %s299 = scalar_lea.vmem %s4, %s298
      // Predicated region
      $region37: #{densenet_forward.32} parent=35 // pred_check
        %p300 = pneg %p137
      $region38: #{densenet_forward.32} parent=35 // pred_check_branch
        %302 = sbr.rel (%p300) target = $region40
      $region39: #{densenet_forward.32} parent=35 // pred_region
        _
      $region40: #{densenet_forward.32} parent=35 // pred_fallthru
        _
    $region36: #{densenet_forward.32} parent=5 // pred_fallthru
      _
    %p303 = scmp.le.s32.totalorder 2, %s10
    // Predicated region
    $region41: #{densenet_forward.32} parent=5 // pred_check
      %p304 = pneg %p303
    $region42: #{densenet_forward.32} parent=5 // pred_check_branch
      %306 = sbr.rel (%p304) target = $region44
    $region43: #{densenet_forward.32} parent=5 // pred_region
      %s307 = ssub.s32 %s10, 2
      // Predicated region
      $region45: #{densenet_forward.32} parent=43 // pred_check
        %p308 = pneg %p143
      $region46: #{densenet_forward.32} parent=43 // pred_check_branch
        %310 = sbr.rel (%p308) target = $region48
      $region47: #{densenet_forward.32} parent=43 // pred_region
        %p311 = scmp.lt.s32.totalorder %s16, 1
        %s312 = scalar_select %p311, %s16, 1
        %s313 = smul.addr %s312, 4
        %s314 = smul.addr %s313, 4
        %s315 = scalar_lea.vmem %s4, %s314
      $region48: #{densenet_forward.32} parent=43 // pred_fallthru
        _
    $region44: #{densenet_forward.32} parent=5 // pred_fallthru
      _
  $region6: #{densenet_forward.32} parent=0 // loop_footer
    %s14 = sadd.s32 1, %s10
  $region7: #{densenet_forward.32} parent=0 // loop_footer_branch
    %9 = sbr.rel target = $region3
  $region8: #{densenet_forward.32} parent=0 // loop_exit
    _

// kernel: densenet_forward.33
$region0: #{densenet_forward.33}
  #allocation0 [shape = 'u32[]', space=smem, size = 0x4, offset = 0x4, fixed_abs, tag = 'smem constant byte address 0x4 - core index']
  #allocation1 [shape = 'u32[144,128]{1,0:T(1,128)}', space=vmem, size = 0x12000, scoped, tag = 'internal scratch']
  %s0 = inlined_call_operand.vmem [shape: f32[32,16], index: 0, kind: input, shape index: {}]
  %s1 = inlined_call_operand.vmem [shape: bf16[16,16], index: 1, kind: input, shape index: {}]
  %s2 = inlined_call_operand.vmem [shape: f32[1,16], index: 2, kind: input, shape index: {}]
  %s3 = inlined_call_operand.vmem [shape: f32[1,16], index: 3, kind: input, shape index: {}]
  %s4 = inlined_call_operand.vmem [shape: f32[1,16], index: 4, kind: input, shape index: {}]
  %s5 = inlined_call_operand.vmem [shape: f32[1,16], index: 5, kind: input, shape index: {}]
  %s6 = inlined_call_operand.vmem [shape: f32[32,16], index: 6, kind: output, shape index: {}]
  %s7 = sld [smem:[#allocation0]]
  $region34: #{densenet_forward.33} parent=0
    _
  %s9 = ssub.s32 1, %s7
  %s10 = scalar_select 0, %s9, %s7
  // Predicated region
  $region2: #{densenet_forward.33} parent=0 // pred_check
    _
  $region3: #{densenet_forward.33} parent=0 // pred_check_branch
    %12 = sbr.rel (0) target = $region5
  $region4: #{densenet_forward.33} parent=0 // pred_region
    _
  $region5: #{densenet_forward.33} parent=0 // pred_fallthru
    _
  // Predicated region
  $region6: #{densenet_forward.33} parent=0 // pred_check
    _
  $region7: #{densenet_forward.33} parent=0 // pred_check_branch
    %14 = sbr.rel (0) target = $region9
  $region8: #{densenet_forward.33} parent=0 // pred_region
    _
  $region9: #{densenet_forward.33} parent=0 // pred_fallthru
    _
  // Predicated region
  $region10: #{densenet_forward.33} parent=0 // pred_check
    _
  $region11: #{densenet_forward.33} parent=0 // pred_check_branch
    %16 = sbr.rel (0) target = $region13
  $region12: #{densenet_forward.33} parent=0 // pred_region
    _
  $region13: #{densenet_forward.33} parent=0 // pred_fallthru
    _
  // Predicated region
  $region14: #{densenet_forward.33} parent=0 // pred_check
    _
  $region15: #{densenet_forward.33} parent=0 // pred_check_branch
    %18 = sbr.rel (0) target = $region17
  $region16: #{densenet_forward.33} parent=0 // pred_region
    _
  $region17: #{densenet_forward.33} parent=0 // pred_fallthru
    _
  // Predicated region
  $region18: #{densenet_forward.33} parent=0 // pred_check
    _
  $region19: #{densenet_forward.33} parent=0 // pred_check_branch
    %20 = sbr.rel (0) target = $region21
  $region20: #{densenet_forward.33} parent=0 // pred_region
    _
  $region21: #{densenet_forward.33} parent=0 // pred_fallthru
    _
  // Predicated region
  $region22: #{densenet_forward.33} parent=0 // pred_check
    _
  $region23: #{densenet_forward.33} parent=0 // pred_check_branch
    %22 = sbr.rel (0) target = $region25
  $region24: #{densenet_forward.33} parent=0 // pred_region
    _
  $region25: #{densenet_forward.33} parent=0 // pred_fallthru
    _
  %v24 = vld [vmem:[%s0] sm:$0xff]
  %v25 = vld [vmem:[%s0 + $0x8] sm:$0xff]
  %v26 = vld [vmem:[%s0 + $0x10] sm:$0xff]
  %v27 = vld [vmem:[%s0 + $0x18] sm:$0xff]
  %v28 = vld [vmem:[%s2] sm:$0x1]
  %v30 = vlaneseq
  %v31 = vshrl.u32 %v30, 7
  %v32 = vsub.s32 0, %v31
  %v33 = vrot.slane %v28, %v32
  %v35 = vmul.f32 %v24, %v33
  %v36 = vmul.f32 %v25, %v33
  %v37 = vmul.f32 %v26, %v33
  %v38 = vmul.f32 %v27, %v33
  %v39 = vld [vmem:[%s3] sm:$0x1]
  %v41 = vlaneseq
  %v42 = vshrl.u32 %v41, 7
  %v43 = vsub.s32 0, %v42
  %v44 = vrot.slane %v39, %v43
  %v46 = vadd.f32 %v35, %v44
  %v47 = vadd.f32 %v36, %v44
  %v48 = vadd.f32 %v37, %v44
  %v49 = vadd.f32 %v38, %v44
  %v50 = vmax.f32 %v46, 0.0
  %v51 = vmax.f32 %v47, 0.0
  %v52 = vmax.f32 %v48, 0.0
  %v53 = vmax.f32 %v49, 0.0
  %v54 = vpack.c.bf16 %v51, %v50
  %v55 = vpack.c.bf16 %v53, %v52
  %v56 = vld [vmem:[%s1] sm:$0xf]
  %v57 = vld [vmem:[%s1 + $0x4] sm:$0xf]
  %v60 = vunpack.c.l.b16 %v56
  %v61 = vunpack.c.l.b16 %v57
  %v62 = vpack.c.b16 %v61, %v60
  %vm64 = vcmask 130048
  %v66 = vsel %vm64, %v54, 0
  %v69 = vsel %vm64, %v55, 0
  %71 = vmatprep.subr.bf16.mxu0 0
  %72 = vmatpush1.bf16.msra.mxu0 %v62
  %73 = vmatprep.subr.bf16.mxu0 0
  %74 = vmatpush1.bf16.msra.mxu0 0
  %75 = vmatprep.subr.bf16.mxu0 0
  %76 = vmatpush1.bf16.msra.mxu0 0
  %77 = vmatprep.subr.bf16.mxu0 0
  %78 = vmatpush1.bf16.msra.mxu0 0
  %79 = vmatprep.subr.bf16.mxu0 0
  %80 = vmatpush1.bf16.msra.mxu0 0
  %81 = vmatprep.subr.bf16.mxu0 0
  %82 = vmatpush1.bf16.msra.mxu0 0
  %83 = vmatprep.subr.bf16.mxu0 0
  %84 = vmatpush1.bf16.msra.mxu0 0
  %85 = vmatprep.subr.bf16.mxu0 0
  %86 = vmatpush1.bf16.msra.mxu0 0
  %87 = vmatprep.subr.bf16.mxu0 0
  %88 = vmatpush1.bf16.msra.mxu0 0
  %89 = vmatprep.subr.bf16.mxu0 0
  %90 = vmatpush1.bf16.msra.mxu0 0
  %91 = vmatprep.subr.bf16.mxu0 0
  %92 = vmatpush1.bf16.msra.mxu0 0
  %93 = vmatprep.subr.bf16.mxu0 0
  %94 = vmatpush1.bf16.msra.mxu0 0
  %95 = vmatprep.subr.bf16.mxu0 0
  %96 = vmatpush1.bf16.msra.mxu0 0
  %97 = vmatprep.subr.bf16.mxu0 0
  %98 = vmatpush1.bf16.msra.mxu0 0
  %99 = vmatprep.subr.bf16.mxu0 0
  %100 = vmatpush1.bf16.msra.mxu0 0
  %101 = vmatprep.subr.bf16.mxu0 0
  %102 = vmatpush1.bf16.msra.mxu0 0
  %103 = vmatprep.mubr.bf16.mxu0 0
  %104 = vmatmul.mubr.bf16.gmra.mrb[0].mxu0 %v66
  %v105 = vpop.f32.mrb[0].mxu0
  %v106 = vadd.f32 0.0, %v105
  %v107 = vpop.f32.mrb[0].mxu0
  %v108 = vpop.f32.mrb[0].mxu0
  %v109 = vadd.f32 0.0, %v108
  %v110 = vpop.f32.mrb[0].mxu0
  %111 = vmatprep.mubr.bf16.mxu0 0
  %112 = vmatmul.mubr.bf16.gmra.mrb[0].mxu0 %v69
  %v113 = vpop.f32.mrb[0].mxu0
  %v114 = vadd.f32 0.0, %v113
  %v115 = vpop.f32.mrb[0].mxu0
  %v116 = vpop.f32.mrb[0].mxu0
  %v117 = vadd.f32 0.0, %v116
  %v118 = vpop.f32.mrb[0].mxu0
  %119 = vdwg.mxu0
  %v120 = vld [vmem:[%s4] sm:$0x1]
  %v122 = vlaneseq
  %v123 = vshrl.u32 %v122, 7
  %v124 = vsub.s32 0, %v123
  %v125 = vrot.slane %v120, %v124
  %v127 = vmul.f32 %v106, %v125
  %v128 = vmul.f32 %v109, %v125
  %v129 = vmul.f32 %v114, %v125
  %v130 = vmul.f32 %v117, %v125
  %v131 = vld [vmem:[%s5] sm:$0x1]
  %v133 = vlaneseq
  %v134 = vshrl.u32 %v133, 7
  %v135 = vsub.s32 0, %v134
  %v136 = vrot.slane %v131, %v135
  %v138 = vadd.f32 %v127, %v136
  %v139 = vadd.f32 %v128, %v136
  %v140 = vadd.f32 %v129, %v136
  %v141 = vadd.f32 %v130, %v136
  %v142 = vmax.f32 %v138, 0.0
  %v143 = vmax.f32 %v139, 0.0
  %v144 = vmax.f32 %v140, 0.0
  %v145 = vmax.f32 %v141, 0.0
  %146 = vst.msk [vmem:[%s6] sm:$0xff] %vm64, %v142
  %147 = vst.msk [vmem:[%s6 + $0x8] sm:$0xff] %vm64, %v143
  %148 = vst.msk [vmem:[%s6 + $0x10] sm:$0xff] %vm64, %v144
  %149 = vst.msk [vmem:[%s6 + $0x18] sm:$0xff] %vm64, %v145
  // Predicated region
  $region26: #{densenet_forward.33} parent=0 // pred_check
    _
  $region27: #{densenet_forward.33} parent=0 // pred_check_branch
    %151 = sbr.rel (0) target = $region29
  $region28: #{densenet_forward.33} parent=0 // pred_region
    _
  $region29: #{densenet_forward.33} parent=0 // pred_fallthru
    _
  // Predicated region
  $region30: #{densenet_forward.33} parent=0 // pred_check
    _
  $region31: #{densenet_forward.33} parent=0 // pred_check_branch
    %153 = sbr.rel (0) target = $region33
  $region32: #{densenet_forward.33} parent=0 // pred_region
    _
  $region33: #{densenet_forward.33} parent=0 // pred_fallthru
    _

// kernel: densenet_forward.35
$region0: #{densenet_forward.35}
  #allocation0 [shape = 'u32[]', space=smem, size = 0x4, offset = 0x4, fixed_abs, tag = 'smem constant byte address 0x4 - core index']
  #allocation1 [shape = 'u32[144,128]{1,0:T(1,128)}', space=vmem, size = 0x12000, scoped, tag = 'internal scratch']
  %s0 = inlined_call_operand.vmem [shape: f32[32,16], index: 0, kind: input, shape index: {}]
  %s1 = inlined_call_operand.vmem [shape: f32[32,8], index: 1, kind: input, shape index: {}]
  %s2 = inlined_call_operand.vmem [shape: bf16[24,16], index: 2, kind: input, shape index: {}]
  %s3 = inlined_call_operand.vmem [shape: f32[1,24], index: 3, kind: input, shape index: {}]
  %s4 = inlined_call_operand.vmem [shape: f32[1,24], index: 4, kind: input, shape index: {}]
  %s5 = inlined_call_operand.vmem [shape: f32[1,16], index: 5, kind: input, shape index: {}]
  %s6 = inlined_call_operand.vmem [shape: f32[1,16], index: 6, kind: input, shape index: {}]
  %s7 = inlined_call_operand.vmem [shape: f32[32,16], index: 7, kind: output, shape index: {}]
  %s8 = sld [smem:[#allocation0]]
  $region38: #{densenet_forward.35} parent=0
    _
  %s10 = ssub.s32 1, %s8
  %s11 = scalar_select 0, %s10, %s8
  // Predicated region
  $region2: #{densenet_forward.35} parent=0 // pred_check
    _
  $region3: #{densenet_forward.35} parent=0 // pred_check_branch
    %13 = sbr.rel (0) target = $region5
  $region4: #{densenet_forward.35} parent=0 // pred_region
    _
  $region5: #{densenet_forward.35} parent=0 // pred_fallthru
    _
  // Predicated region
  $region6: #{densenet_forward.35} parent=0 // pred_check
    _
  $region7: #{densenet_forward.35} parent=0 // pred_check_branch
    %15 = sbr.rel (0) target = $region9
  $region8: #{densenet_forward.35} parent=0 // pred_region
    _
  $region9: #{densenet_forward.35} parent=0 // pred_fallthru
    _
  // Predicated region
  $region10: #{densenet_forward.35} parent=0 // pred_check
    _
  $region11: #{densenet_forward.35} parent=0 // pred_check_branch
    %17 = sbr.rel (0) target = $region13
  $region12: #{densenet_forward.35} parent=0 // pred_region
    _
  $region13: #{densenet_forward.35} parent=0 // pred_fallthru
    _
  // Predicated region
  $region14: #{densenet_forward.35} parent=0 // pred_check
    _
  $region15: #{densenet_forward.35} parent=0 // pred_check_branch
    %19 = sbr.rel (0) target = $region17
  $region16: #{densenet_forward.35} parent=0 // pred_region
    _
  $region17: #{densenet_forward.35} parent=0 // pred_fallthru
    _
  // Predicated region
  $region18: #{densenet_forward.35} parent=0 // pred_check
    _
  $region19: #{densenet_forward.35} parent=0 // pred_check_branch
    %21 = sbr.rel (0) target = $region21
  $region20: #{densenet_forward.35} parent=0 // pred_region
    _
  $region21: #{densenet_forward.35} parent=0 // pred_fallthru
    _
  // Predicated region
  $region22: #{densenet_forward.35} parent=0 // pred_check
    _
  $region23: #{densenet_forward.35} parent=0 // pred_check_branch
    %23 = sbr.rel (0) target = $region25
  $region24: #{densenet_forward.35} parent=0 // pred_region
    _
  $region25: #{densenet_forward.35} parent=0 // pred_fallthru
    _
  // Predicated region
  $region26: #{densenet_forward.35} parent=0 // pred_check
    _
  $region27: #{densenet_forward.35} parent=0 // pred_check_branch
    %25 = sbr.rel (0) target = $region29
  $region28: #{densenet_forward.35} parent=0 // pred_region
    _
  $region29: #{densenet_forward.35} parent=0 // pred_fallthru
    _
  %v27 = vld [vmem:[%s0] sm:$0xff]
  %v28 = vld [vmem:[%s0 + $0x8] sm:$0xff]
  %v29 = vld [vmem:[%s0 + $0x10] sm:$0xff]
  %v30 = vld [vmem:[%s0 + $0x18] sm:$0xff]
  %v31 = vld [vmem:[%s3] sm:$0x1]
  %v33 = vlaneseq
  %v34 = vshrl.u32 %v33, 7
  %v35 = vsub.s32 0, %v34
  %v36 = vrot.slane %v31, %v35
  %v38 = vmul.f32 %v27, %v36
  %v39 = vmul.f32 %v28, %v36
  %v40 = vmul.f32 %v29, %v36
  %v41 = vmul.f32 %v30, %v36
  %v42 = vld [vmem:[%s4] sm:$0x1]
  %v44 = vlaneseq
  %v45 = vshrl.u32 %v44, 7
  %v46 = vsub.s32 0, %v45
  %v47 = vrot.slane %v42, %v46
  %v49 = vadd.f32 %v38, %v47
  %v50 = vadd.f32 %v39, %v47
  %v51 = vadd.f32 %v40, %v47
  %v52 = vadd.f32 %v41, %v47
  %v53 = vmax.f32 %v49, 0.0
  %v54 = vmax.f32 %v50, 0.0
  %v55 = vmax.f32 %v51, 0.0
  %v56 = vmax.f32 %v52, 0.0
  %v57 = vpack.c.bf16 %v54, %v53
  %v58 = vpack.c.bf16 %v56, %v55
  %v59 = vld [vmem:[%s2] sm:$0xf]
  %v60 = vld [vmem:[%s2 + $0x4] sm:$0xf]
  %v61 = vld [vmem:[%s1] sm:$0xff]
  %v62 = vld [vmem:[%s1 + $0x8] sm:$0xff]
  %v63 = vld [vmem:[%s1 + $0x10] sm:$0xff]
  %v64 = vld [vmem:[%s1 + $0x18] sm:$0xff]
  %65 = vrot.lane.b32.xlu0 %v36, 112
  %v66 = vpop.permute.xlu0 %65
  %v68 = vmul.f32 %v61, %v66
  %v69 = vmul.f32 %v62, %v66
  %v70 = vmul.f32 %v63, %v66
  %v71 = vmul.f32 %v64, %v66
  %72 = vrot.lane.b32.xlu0 %v47, 112
  %v73 = vpop.permute.xlu0 %72
  %v75 = vadd.f32 %v68, %v73
  %v76 = vadd.f32 %v69, %v73
  %v77 = vadd.f32 %v70, %v73
  %v78 = vadd.f32 %v71, %v73
  %v79 = vmax.f32 %v75, 0.0
  %v80 = vmax.f32 %v76, 0.0
  %v81 = vmax.f32 %v77, 0.0
  %v82 = vmax.f32 %v78, 0.0
  %v83 = vpack.c.bf16 %v80, %v79
  %v84 = vpack.c.bf16 %v82, %v81
  %v85 = vld [vmem:[%s2 + $0x8] sm:$0xf]
  %vm86 = vcmask 64512
  %v88 = vsel %vm86, %v83, 0
  %v91 = vsel %vm86, %v84, 0
  %vm93 = vcmask 1043456
  %v95 = vsel %vm93, %v85, 0
  %97 = vmatprep.subr.bf16.mxu0 0
  %98 = vmatpush1.bf16.msra.mxu0 %v95
  %99 = vmatprep.subr.bf16.mxu0 0
  %100 = vmatpush1.bf16.msra.mxu0 0
  %101 = vmatprep.subr.bf16.mxu0 0
  %102 = vmatpush1.bf16.msra.mxu0 0
  %103 = vmatprep.subr.bf16.mxu0 0
  %104 = vmatpush1.bf16.msra.mxu0 0
  %105 = vmatprep.subr.bf16.mxu0 0
  %106 = vmatpush1.bf16.msra.mxu0 0
  %107 = vmatprep.subr.bf16.mxu0 0
  %108 = vmatpush1.bf16.msra.mxu0 0
  %109 = vmatprep.subr.bf16.mxu0 0
  %110 = vmatpush1.bf16.msra.mxu0 0
  %111 = vmatprep.subr.bf16.mxu0 0
  %112 = vmatpush1.bf16.msra.mxu0 0
  %113 = vmatprep.subr.bf16.mxu0 0
  %114 = vmatpush1.bf16.msra.mxu0 0
  %115 = vmatprep.subr.bf16.mxu0 0
  %116 = vmatpush1.bf16.msra.mxu0 0
  %117 = vmatprep.subr.bf16.mxu0 0
  %118 = vmatpush1.bf16.msra.mxu0 0
  %119 = vmatprep.subr.bf16.mxu0 0
  %120 = vmatpush1.bf16.msra.mxu0 0
  %121 = vmatprep.subr.bf16.mxu0 0
  %122 = vmatpush1.bf16.msra.mxu0 0
  %123 = vmatprep.subr.bf16.mxu0 0
  %124 = vmatpush1.bf16.msra.mxu0 0
  %125 = vmatprep.subr.bf16.mxu0 0
  %126 = vmatpush1.bf16.msra.mxu0 0
  %127 = vmatprep.subr.bf16.mxu0 0
  %128 = vmatpush1.bf16.msra.mxu0 0
  %129 = vmatprep.mubr.bf16.mxu0 0
  %130 = vmatmul.mubr.bf16.gmra.mrb[0].mxu0 %v88
  %v131 = vpop.f32.mrb[0].mxu0
  %v132 = vadd.f32 0.0, %v131
  %v133 = vpop.f32.mrb[0].mxu0
  %v134 = vpop.f32.mrb[0].mxu0
  %v135 = vadd.f32 0.0, %v134
  %v136 = vpop.f32.mrb[0].mxu0
  %137 = vmatprep.mubr.bf16.mxu0 0
  %138 = vmatmul.mubr.bf16.gmra.mrb[0].mxu0 %v91
  %v139 = vpop.f32.mrb[0].mxu0
  %v140 = vadd.f32 0.0, %v139
  %v141 = vpop.f32.mrb[0].mxu0
  %v142 = vpop.f32.mrb[0].mxu0
  %v143 = vadd.f32 0.0, %v142
  %v144 = vpop.f32.mrb[0].mxu0
  %145 = vdwg.mxu0
  %v148 = vunpack.c.l.b16 %v59
  %v149 = vunpack.c.l.b16 %v60
  %v150 = vpack.c.b16 %v149, %v148
  %vm152 = vcmask 130048
  %v154 = vsel %vm152, %v57, 0
  %v157 = vsel %vm152, %v58, 0
  %159 = vmatprep.subr.bf16.mxu0 0
  %160 = vmatpush1.bf16.msra.mxu0 %v150
  %161 = vmatprep.subr.bf16.mxu0 0
  %162 = vmatpush1.bf16.msra.mxu0 0
  %163 = vmatprep.subr.bf16.mxu0 0
  %164 = vmatpush1.bf16.msra.mxu0 0
  %165 = vmatprep.subr.bf16.mxu0 0
  %166 = vmatpush1.bf16.msra.mxu0 0
  %167 = vmatprep.subr.bf16.mxu0 0
  %168 = vmatpush1.bf16.msra.mxu0 0
  %169 = vmatprep.subr.bf16.mxu0 0
  %170 = vmatpush1.bf16.msra.mxu0 0
  %171 = vmatprep.subr.bf16.mxu0 0
  %172 = vmatpush1.bf16.msra.mxu0 0
  %173 = vmatprep.subr.bf16.mxu0 0
  %174 = vmatpush1.bf16.msra.mxu0 0
  %175 = vmatprep.subr.bf16.mxu0 0
  %176 = vmatpush1.bf16.msra.mxu0 0
  %177 = vmatprep.subr.bf16.mxu0 0
  %178 = vmatpush1.bf16.msra.mxu0 0
  %179 = vmatprep.subr.bf16.mxu0 0
  %180 = vmatpush1.bf16.msra.mxu0 0
  %181 = vmatprep.subr.bf16.mxu0 0
  %182 = vmatpush1.bf16.msra.mxu0 0
  %183 = vmatprep.subr.bf16.mxu0 0
  %184 = vmatpush1.bf16.msra.mxu0 0
  %185 = vmatprep.subr.bf16.mxu0 0
  %186 = vmatpush1.bf16.msra.mxu0 0
  %187 = vmatprep.subr.bf16.mxu0 0
  %188 = vmatpush1.bf16.msra.mxu0 0
  %189 = vmatprep.subr.bf16.mxu0 0
  %190 = vmatpush1.bf16.msra.mxu0 0
  %191 = vmatprep.mubr.bf16.mxu0 0
  %192 = vmatmul.mubr.bf16.gmra.mrb[0].mxu0 %v154
  %v193 = vpop.f32.mrb[0].mxu0
  %v194 = vadd.f32 %v132, %v193
  %v195 = vpop.f32.mrb[0].mxu0
  %v196 = vpop.f32.mrb[0].mxu0
  %v197 = vadd.f32 %v135, %v196
  %v198 = vpop.f32.mrb[0].mxu0
  %199 = vmatprep.mubr.bf16.mxu0 0
  %200 = vmatmul.mubr.bf16.gmra.mrb[0].mxu0 %v157
  %v201 = vpop.f32.mrb[0].mxu0
  %v202 = vadd.f32 %v140, %v201
  %v203 = vpop.f32.mrb[0].mxu0
  %v204 = vpop.f32.mrb[0].mxu0
  %v205 = vadd.f32 %v143, %v204
  %v206 = vpop.f32.mrb[0].mxu0
  %207 = vdwg.mxu0
  %v208 = vld [vmem:[%s5] sm:$0x1]
  %v210 = vlaneseq
  %v211 = vshrl.u32 %v210, 7
  %v212 = vsub.s32 0, %v211
  %v213 = vrot.slane %v208, %v212
  %v215 = vmul.f32 %v194, %v213
  %v216 = vmul.f32 %v197, %v213
  %v217 = vmul.f32 %v202, %v213
  %v218 = vmul.f32 %v205, %v213
  %v219 = vld [vmem:[%s6] sm:$0x1]
  %v221 = vlaneseq
  %v222 = vshrl.u32 %v221, 7
  %v223 = vsub.s32 0, %v222
  %v224 = vrot.slane %v219, %v223
  %v226 = vadd.f32 %v215, %v224
  %v227 = vadd.f32 %v216, %v224
  %v228 = vadd.f32 %v217, %v224
  %v229 = vadd.f32 %v218, %v224
  %v230 = vmax.f32 %v226, 0.0
  %v231 = vmax.f32 %v227, 0.0
  %v232 = vmax.f32 %v228, 0.0
  %v233 = vmax.f32 %v229, 0.0
  %234 = vst.msk [vmem:[%s7] sm:$0xff] %vm152, %v230
  %235 = vst.msk [vmem:[%s7 + $0x8] sm:$0xff] %vm152, %v231
  %236 = vst.msk [vmem:[%s7 + $0x10] sm:$0xff] %vm152, %v232
  %237 = vst.msk [vmem:[%s7 + $0x18] sm:$0xff] %vm152, %v233
  // Predicated region
  $region30: #{densenet_forward.35} parent=0 // pred_check
    _
  $region31: #{densenet_forward.35} parent=0 // pred_check_branch
    %239 = sbr.rel (0) target = $region33
  $region32: #{densenet_forward.35} parent=0 // pred_region
    _
  $region33: #{densenet_forward.35} parent=0 // pred_fallthru
    _
  // Predicated region
  $region34: #{densenet_forward.35} parent=0 // pred_check
    _
  $region35: #{densenet_forward.35} parent=0 // pred_check_branch
    %241 = sbr.rel (0) target = $region37
  $region36: #{densenet_forward.35} parent=0 // pred_region
    _
  $region37: #{densenet_forward.35} parent=0 // pred_fallthru
    _

// kernel: densenet_forward.37
$region0: #{densenet_forward.37}
  #allocation0 [shape = 'u32[]', space=smem, size = 0x4, offset = 0x4, fixed_abs, tag = 'smem constant byte address 0x4 - core index']
  #allocation1 [shape = 'u32[144,128]{1,0:T(1,128)}', space=vmem, size = 0x12000, scoped, tag = 'internal scratch']
  %s0 = inlined_call_operand.vmem [shape: f32[32,16], index: 0, kind: input, shape index: {}]
  %s1 = inlined_call_operand.vmem [shape: f32[32,8], index: 1, kind: input, shape index: {}]
  %s2 = inlined_call_operand.vmem [shape: f32[32,8], index: 2, kind: input, shape index: {}]
  %s3 = inlined_call_operand.vmem [shape: bf16[32,16], index: 3, kind: input, shape index: {}]
  %s4 = inlined_call_operand.vmem [shape: f32[1,32], index: 4, kind: input, shape index: {}]
  %s5 = inlined_call_operand.vmem [shape: f32[1,32], index: 5, kind: input, shape index: {}]
  %s6 = inlined_call_operand.vmem [shape: f32[32,16], index: 6, kind: output, shape index: {}]
  %s7 = sld [smem:[#allocation0]]
  $region34: #{densenet_forward.37} parent=0
    _
  %s9 = ssub.s32 1, %s7
  %s10 = scalar_select 0, %s9, %s7
  // Predicated region
  $region2: #{densenet_forward.37} parent=0 // pred_check
    _
  $region3: #{densenet_forward.37} parent=0 // pred_check_branch
    %12 = sbr.rel (0) target = $region5
  $region4: #{densenet_forward.37} parent=0 // pred_region
    _
  $region5: #{densenet_forward.37} parent=0 // pred_fallthru
    _
  // Predicated region
  $region6: #{densenet_forward.37} parent=0 // pred_check
    _
  $region7: #{densenet_forward.37} parent=0 // pred_check_branch
    %14 = sbr.rel (0) target = $region9
  $region8: #{densenet_forward.37} parent=0 // pred_region
    _
  $region9: #{densenet_forward.37} parent=0 // pred_fallthru
    _
  // Predicated region
  $region10: #{densenet_forward.37} parent=0 // pred_check
    _
  $region11: #{densenet_forward.37} parent=0 // pred_check_branch
    %16 = sbr.rel (0) target = $region13
  $region12: #{densenet_forward.37} parent=0 // pred_region
    _
  $region13: #{densenet_forward.37} parent=0 // pred_fallthru
    _
  // Predicated region
  $region14: #{densenet_forward.37} parent=0 // pred_check
    _
  $region15: #{densenet_forward.37} parent=0 // pred_check_branch
    %18 = sbr.rel (0) target = $region17
  $region16: #{densenet_forward.37} parent=0 // pred_region
    _
  $region17: #{densenet_forward.37} parent=0 // pred_fallthru
    _
  // Predicated region
  $region18: #{densenet_forward.37} parent=0 // pred_check
    _
  $region19: #{densenet_forward.37} parent=0 // pred_check_branch
    %20 = sbr.rel (0) target = $region21
  $region20: #{densenet_forward.37} parent=0 // pred_region
    _
  $region21: #{densenet_forward.37} parent=0 // pred_fallthru
    _
  // Predicated region
  $region22: #{densenet_forward.37} parent=0 // pred_check
    _
  $region23: #{densenet_forward.37} parent=0 // pred_check_branch
    %22 = sbr.rel (0) target = $region25
  $region24: #{densenet_forward.37} parent=0 // pred_region
    _
  $region25: #{densenet_forward.37} parent=0 // pred_fallthru
    _
  %v24 = vld [vmem:[%s0] sm:$0xff]
  %v25 = vld [vmem:[%s0 + $0x8] sm:$0xff]
  %v26 = vld [vmem:[%s0 + $0x10] sm:$0xff]
  %v27 = vld [vmem:[%s0 + $0x18] sm:$0xff]
  %v28 = vld [vmem:[%s4] sm:$0x1]
  %v30 = vlaneseq
  %v31 = vshrl.u32 %v30, 7
  %v32 = vsub.s32 0, %v31
  %v33 = vrot.slane %v28, %v32
  %v35 = vmul.f32 %v24, %v33
  %v36 = vmul.f32 %v25, %v33
  %v37 = vmul.f32 %v26, %v33
  %v38 = vmul.f32 %v27, %v33
  %v39 = vld [vmem:[%s5] sm:$0x1]
  %v41 = vlaneseq
  %v42 = vshrl.u32 %v41, 7
  %v43 = vsub.s32 0, %v42
  %v44 = vrot.slane %v39, %v43
  %v46 = vadd.f32 %v35, %v44
  %v47 = vadd.f32 %v36, %v44
  %v48 = vadd.f32 %v37, %v44
  %v49 = vadd.f32 %v38, %v44
  %v50 = vmax.f32 %v46, 0.0
  %v51 = vmax.f32 %v47, 0.0
  %v52 = vmax.f32 %v48, 0.0
  %v53 = vmax.f32 %v49, 0.0
  %v54 = vpack.c.bf16 %v51, %v50
  %v55 = vpack.c.bf16 %v53, %v52
  %v56 = vld [vmem:[%s3] sm:$0xf]
  %v57 = vld [vmem:[%s3 + $0x4] sm:$0xf]
  %v58 = vld [vmem:[%s1] sm:$0xff]
  %v59 = vld [vmem:[%s1 + $0x8] sm:$0xff]
  %v60 = vld [vmem:[%s1 + $0x10] sm:$0xff]
  %v61 = vld [vmem:[%s1 + $0x18] sm:$0xff]
  %62 = vrot.lane.b32.xlu0 %v33, 112
  %v63 = vpop.permute.xlu0 %62
  %v65 = vmul.f32 %v58, %v63
  %v66 = vmul.f32 %v59, %v63
  %v67 = vmul.f32 %v60, %v63
  %v68 = vmul.f32 %v61, %v63
  %69 = vrot.lane.b32.xlu0 %v44, 112
  %v70 = vpop.permute.xlu0 %69
  %v72 = vadd.f32 %v65, %v70
  %v73 = vadd.f32 %v66, %v70
  %v74 = vadd.f32 %v67, %v70
  %v75 = vadd.f32 %v68, %v70
  %v76 = vmax.f32 %v72, 0.0
  %v77 = vmax.f32 %v73, 0.0
  %v78 = vmax.f32 %v74, 0.0
  %v79 = vmax.f32 %v75, 0.0
  %v80 = vpack.c.bf16 %v77, %v76
  %v81 = vpack.c.bf16 %v79, %v78
  %v82 = vld [vmem:[%s3 + $0x8] sm:$0xf]
  %vm83 = vcmask 64512
  %v85 = vsel %vm83, %v80, 0
  %v88 = vsel %vm83, %v81, 0
  %vm90 = vcmask 1043456
  %v92 = vsel %vm90, %v82, 0
  %94 = vmatprep.subr.bf16.mxu0 0
  %95 = vmatpush1.bf16.msra.mxu0 %v92
  %96 = vmatprep.subr.bf16.mxu0 0
  %97 = vmatpush1.bf16.msra.mxu0 0
  %98 = vmatprep.subr.bf16.mxu0 0
  %99 = vmatpush1.bf16.msra.mxu0 0
  %100 = vmatprep.subr.bf16.mxu0 0
  %101 = vmatpush1.bf16.msra.mxu0 0
  %102 = vmatprep.subr.bf16.mxu0 0
  %103 = vmatpush1.bf16.msra.mxu0 0
  %104 = vmatprep.subr.bf16.mxu0 0
  %105 = vmatpush1.bf16.msra.mxu0 0
  %106 = vmatprep.subr.bf16.mxu0 0
  %107 = vmatpush1.bf16.msra.mxu0 0
  %108 = vmatprep.subr.bf16.mxu0 0
  %109 = vmatpush1.bf16.msra.mxu0 0
  %110 = vmatprep.subr.bf16.mxu0 0
  %111 = vmatpush1.bf16.msra.mxu0 0
  %112 = vmatprep.subr.bf16.mxu0 0
  %113 = vmatpush1.bf16.msra.mxu0 0
  %114 = vmatprep.subr.bf16.mxu0 0
  %115 = vmatpush1.bf16.msra.mxu0 0
  %116 = vmatprep.subr.bf16.mxu0 0
  %117 = vmatpush1.bf16.msra.mxu0 0
  %118 = vmatprep.subr.bf16.mxu0 0
  %119 = vmatpush1.bf16.msra.mxu0 0
  %120 = vmatprep.subr.bf16.mxu0 0
  %121 = vmatpush1.bf16.msra.mxu0 0
  %122 = vmatprep.subr.bf16.mxu0 0
  %123 = vmatpush1.bf16.msra.mxu0 0
  %124 = vmatprep.subr.bf16.mxu0 0
  %125 = vmatpush1.bf16.msra.mxu0 0
  %126 = vmatprep.mubr.bf16.mxu0 0
  %127 = vmatmul.mubr.bf16.gmra.mrb[0].mxu0 %v85
  %v128 = vpop.f32.mrb[0].mxu0
  %v129 = vadd.f32 0.0, %v128
  %v130 = vpop.f32.mrb[0].mxu0
  %v131 = vpop.f32.mrb[0].mxu0
  %v132 = vadd.f32 0.0, %v131
  %v133 = vpop.f32.mrb[0].mxu0
  %134 = vmatprep.mubr.bf16.mxu0 0
  %135 = vmatmul.mubr.bf16.gmra.mrb[0].mxu0 %v88
  %v136 = vpop.f32.mrb[0].mxu0
  %v137 = vadd.f32 0.0, %v136
  %v138 = vpop.f32.mrb[0].mxu0
  %v139 = vpop.f32.mrb[0].mxu0
  %v140 = vadd.f32 0.0, %v139
  %v141 = vpop.f32.mrb[0].mxu0
  %142 = vdwg.mxu0
  %v145 = vunpack.c.l.b16 %v56
  %v146 = vunpack.c.l.b16 %v57
  %v147 = vpack.c.b16 %v146, %v145
  %vm149 = vcmask 130048
  %v151 = vsel %vm149, %v54, 0
  %v154 = vsel %vm149, %v55, 0
  %156 = vmatprep.subr.bf16.mxu0 0
  %157 = vmatpush1.bf16.msra.mxu0 %v147
  %158 = vmatprep.subr.bf16.mxu0 0
  %159 = vmatpush1.bf16.msra.mxu0 0
  %160 = vmatprep.subr.bf16.mxu0 0
  %161 = vmatpush1.bf16.msra.mxu0 0
  %162 = vmatprep.subr.bf16.mxu0 0
  %163 = vmatpush1.bf16.msra.mxu0 0
  %164 = vmatprep.subr.bf16.mxu0 0
  %165 = vmatpush1.bf16.msra.mxu0 0
  %166 = vmatprep.subr.bf16.mxu0 0
  %167 = vmatpush1.bf16.msra.mxu0 0
  %168 = vmatprep.subr.bf16.mxu0 0
  %169 = vmatpush1.bf16.msra.mxu0 0
  %170 = vmatprep.subr.bf16.mxu0 0
  %171 = vmatpush1.bf16.msra.mxu0 0
  %172 = vmatprep.subr.bf16.mxu0 0
  %173 = vmatpush1.bf16.msra.mxu0 0
  %174 = vmatprep.subr.bf16.mxu0 0
  %175 = vmatpush1.bf16.msra.mxu0 0
  %176 = vmatprep.subr.bf16.mxu0 0
  %177 = vmatpush1.bf16.msra.mxu0 0
  %178 = vmatprep.subr.bf16.mxu0 0
  %179 = vmatpush1.bf16.msra.mxu0 0
  %180 = vmatprep.subr.bf16.mxu0 0
  %181 = vmatpush1.bf16.msra.mxu0 0
  %182 = vmatprep.subr.bf16.mxu0 0
  %183 = vmatpush1.bf16.msra.mxu0 0
  %184 = vmatprep.subr.bf16.mxu0 0
  %185 = vmatpush1.bf16.msra.mxu0 0
  %186 = vmatprep.subr.bf16.mxu0 0
  %187 = vmatpush1.bf16.msra.mxu0 0
  %188 = vmatprep.mubr.bf16.mxu0 0
  %189 = vmatmul.mubr.bf16.gmra.mrb[0].mxu0 %v151
  %v190 = vpop.f32.mrb[0].mxu0
  %v191 = vadd.f32 %v129, %v190
  %v192 = vpop.f32.mrb[0].mxu0
  %v193 = vpop.f32.mrb[0].mxu0
  %v194 = vadd.f32 %v132, %v193
  %v195 = vpop.f32.mrb[0].mxu0
  %196 = vmatprep.mubr.bf16.mxu0 0
  %197 = vmatmul.mubr.bf16.gmra.mrb[0].mxu0 %v154
  %v198 = vpop.f32.mrb[0].mxu0
  %v199 = vadd.f32 %v137, %v198
  %v200 = vpop.f32.mrb[0].mxu0
  %v201 = vpop.f32.mrb[0].mxu0
  %v202 = vadd.f32 %v140, %v201
  %v203 = vpop.f32.mrb[0].mxu0
  %204 = vdwg.mxu0
  %v205 = vld [vmem:[%s2] sm:$0xff]
  %v206 = vld [vmem:[%s2 + $0x8] sm:$0xff]
  %v207 = vld [vmem:[%s2 + $0x10] sm:$0xff]
  %v208 = vld [vmem:[%s2 + $0x18] sm:$0xff]
  %209 = vrot.lane.b32.xlu0 %v33, 104
  %v210 = vpop.permute.xlu0 %209
  %v212 = vmul.f32 %v205, %v210
  %v213 = vmul.f32 %v206, %v210
  %v214 = vmul.f32 %v207, %v210
  %v215 = vmul.f32 %v208, %v210
  %216 = vrot.lane.b32.xlu0 %v44, 104
  %v217 = vpop.permute.xlu0 %216
  %v219 = vadd.f32 %v212, %v217
  %v220 = vadd.f32 %v213, %v217
  %v221 = vadd.f32 %v214, %v217
  %v222 = vadd.f32 %v215, %v217
  %v223 = vmax.f32 %v219, 0.0
  %v224 = vmax.f32 %v220, 0.0
  %v225 = vmax.f32 %v221, 0.0
  %v226 = vmax.f32 %v222, 0.0
  %v227 = vpack.c.bf16 %v224, %v223
  %v228 = vpack.c.bf16 %v226, %v225
  %v229 = vld [vmem:[%s3 + $0xc] sm:$0xf]
  %v231 = vsel %vm83, %v227, 0
  %v234 = vsel %vm83, %v228, 0
  %v237 = vsel %vm90, %v229, 0
  %239 = vmatprep.subr.bf16.mxu0 0
  %240 = vmatpush1.bf16.msra.mxu0 %v237
  %241 = vmatprep.subr.bf16.mxu0 0
  %242 = vmatpush1.bf16.msra.mxu0 0
  %243 = vmatprep.subr.bf16.mxu0 0
  %244 = vmatpush1.bf16.msra.mxu0 0
  %245 = vmatprep.subr.bf16.mxu0 0
  %246 = vmatpush1.bf16.msra.mxu0 0
  %247 = vmatprep.subr.bf16.mxu0 0
  %248 = vmatpush1.bf16.msra.mxu0 0
  %249 = vmatprep.subr.bf16.mxu0 0
  %250 = vmatpush1.bf16.msra.mxu0 0
  %251 = vmatprep.subr.bf16.mxu0 0
  %252 = vmatpush1.bf16.msra.mxu0 0
  %253 = vmatprep.subr.bf16.mxu0 0
  %254 = vmatpush1.bf16.msra.mxu0 0
  %255 = vmatprep.subr.bf16.mxu0 0
  %256 = vmatpush1.bf16.msra.mxu0 0
  %257 = vmatprep.subr.bf16.mxu0 0
  %258 = vmatpush1.bf16.msra.mxu0 0
  %259 = vmatprep.subr.bf16.mxu0 0
  %260 = vmatpush1.bf16.msra.mxu0 0
  %261 = vmatprep.subr.bf16.mxu0 0
  %262 = vmatpush1.bf16.msra.mxu0 0
  %263 = vmatprep.subr.bf16.mxu0 0
  %264 = vmatpush1.bf16.msra.mxu0 0
  %265 = vmatprep.subr.bf16.mxu0 0
  %266 = vmatpush1.bf16.msra.mxu0 0
  %267 = vmatprep.subr.bf16.mxu0 0
  %268 = vmatpush1.bf16.msra.mxu0 0
  %269 = vmatprep.subr.bf16.mxu0 0
  %270 = vmatpush1.bf16.msra.mxu0 0
  %271 = vmatprep.mubr.bf16.mxu0 0
  %272 = vmatmul.mubr.bf16.gmra.mrb[0].mxu0 %v231
  %v273 = vpop.f32.mrb[0].mxu0
  %v274 = vadd.f32 0.0, %v273
  %v275 = vpop.f32.mrb[0].mxu0
  %v276 = vpop.f32.mrb[0].mxu0
  %v277 = vadd.f32 0.0, %v276
  %v278 = vpop.f32.mrb[0].mxu0
  %279 = vmatprep.mubr.bf16.mxu0 0
  %280 = vmatmul.mubr.bf16.gmra.mrb[0].mxu0 %v234
  %v281 = vpop.f32.mrb[0].mxu0
  %v282 = vadd.f32 0.0, %v281
  %v283 = vpop.f32.mrb[0].mxu0
  %v284 = vpop.f32.mrb[0].mxu0
  %v285 = vadd.f32 0.0, %v284
  %v286 = vpop.f32.mrb[0].mxu0
  %287 = vdwg.mxu0
  %v288 = vadd.f32 %v191, %v274
  %v289 = vadd.f32 %v194, %v277
  %v290 = vadd.f32 %v199, %v282
  %v291 = vadd.f32 %v202, %v285
  %292 = vst.msk [vmem:[%s6] sm:$0xff] %vm149, %v288
  %293 = vst.msk [vmem:[%s6 + $0x8] sm:$0xff] %vm149, %v289
  %294 = vst.msk [vmem:[%s6 + $0x10] sm:$0xff] %vm149, %v290
  %295 = vst.msk [vmem:[%s6 + $0x18] sm:$0xff] %vm149, %v291
  // Predicated region
  $region26: #{densenet_forward.37} parent=0 // pred_check
    _
  $region27: #{densenet_forward.37} parent=0 // pred_check_branch
    %297 = sbr.rel (0) target = $region29
  $region28: #{densenet_forward.37} parent=0 // pred_region
    _
  $region29: #{densenet_forward.37} parent=0 // pred_fallthru
    _
  // Predicated region
  $region30: #{densenet_forward.37} parent=0 // pred_check
    _
  $region31: #{densenet_forward.37} parent=0 // pred_check_branch
    %299 = sbr.rel (0) target = $region33
  $region32: #{densenet_forward.37} parent=0 // pred_region
    _
  $region33: #{densenet_forward.37} parent=0 // pred_fallthru
    _

// kernel: densenet_forward.34
$region0: #{densenet_forward.34}
  #allocation0 [shape = 'u32[]', space=smem, size = 0x4, offset = 0x4, fixed_abs, tag = 'smem constant byte address 0x4 - core index']
  #allocation1 [shape = 'u32[144,128]{1,0:T(1,128)}', space=vmem, size = 0x12000, scoped, tag = 'internal scratch']
  %s0 = inlined_call_operand.vmem [shape: f32[2,6,6,16], index: 0, kind: input, shape index: {}]
  %s1 = inlined_call_operand.vmem [shape: bf16[9,16,8], index: 1, kind: input, shape index: {}]
  %s2 = inlined_call_operand.vmem [shape: f32[2,4,4,8], index: 2, kind: output, shape index: {}]
  %s3 = sld [smem:[#allocation0]]
  $region41: #{densenet_forward.34} parent=0
    _
  %s5 = ssub.s32 1, %s3
  %s6 = scalar_select 0, %s5, %s3
  loop: start=0, step=1, limit=4
  $region2: #{densenet_forward.34} parent=0 // loop_pre_header
    _
  $region3: #{densenet_forward.34} parent=0 // loop_header
    %s8 = sphi 0, %s12
    %p9 = scmp.ge.s32.totalorder %s8, 4
    %s18 = sphi 0, %s20
    %s21 = sphi 0, %s18
    %s22 = sphi 0, %s21
    %s38 = sphi 0, %s22
    %s42 = sphi 0, %s42
    %s44 = sphi 0, %s42
    %s45 = sphi 0, %s44
    %s59 = sphi 0, %s45
    %s65 = sphi 0, %s67
    %s68 = sphi 0, %s65
    %s69 = sphi 0, %s68
    %s85 = sphi 0, %s69
  $region4: #{densenet_forward.34} parent=0 // loop_header_branch
    %11 = sbr.rel (%p9) target = $region8
  $region5: #{densenet_forward.34} parent=0 // loop_body
    %s13 = ssub.s32 %s8, 1
    %s14 = ssub.s32 %s8, 2
    %s15 = sadd.s32 %s8, 1
    %s16 = ssub.s32 %s8, %s15
    %p17 = scmp.eq.s32.totalorder %s16, 0
    %s19 = sadd.s32 %s18, 1
    %s20 = scalar_select %p17, %s18, %s19
    %p23 = pneg %p17
    %p24 = scmp.eq.s32.totalorder %s8, 1
    %p25 = por %p23, %p24
    %p26 = scmp.ne.s32.totalorder %s18, %s21
    %p27 = scmp.eq.s32.totalorder %s8, 0
    %p28 = por %p26, %p27
    %p29 = scmp.ne.s32.totalorder %s18, %s21
    %p30 = scmp.eq.s32.totalorder %s13, 1
    %p31 = por %p29, %p30
    %p32 = scmp.ne.s32.totalorder %s21, %s22
    %p33 = scmp.eq.s32.totalorder %s13, 0
    %p34 = por %p32, %p33
    %p35 = scmp.ne.s32.totalorder %s21, %s22
    %p36 = scmp.eq.s32.totalorder %s14, 1
    %p37 = por %p35, %p36
    %p39 = scmp.ne.s32.totalorder %s22, %s38
    %p40 = scmp.eq.s32.totalorder %s14, 0
    %p41 = por %p39, %p40
    %s43 = sadd.s32 %s42, 1
    %p46 = scmp.eq.s32.totalorder %s8, 1
    %p47 = scmp.ne.s32.totalorder %s42, %s44
    %p48 = scmp.eq.s32.totalorder %s8, 0
    %p49 = por %p47, %p48
    %p50 = scmp.ne.s32.totalorder %s42, %s44
    %p51 = scmp.eq.s32.totalorder %s13, 1
    %p52 = por %p50, %p51
    %p53 = scmp.ne.s32.totalorder %s44, %s45
    %p54 = scmp.eq.s32.totalorder %s13, 0
    %p55 = por %p53, %p54
    %p56 = scmp.ne.s32.totalorder %s44, %s45
    %p57 = scmp.eq.s32.totalorder %s14, 1
    %p58 = por %p56, %p57
    %p60 = scmp.ne.s32.totalorder %s45, %s59
    %p61 = scmp.eq.s32.totalorder %s14, 0
    %p62 = por %p60, %p61
    %s63 = ssub.s32 %s8, %s15
    %p64 = scmp.eq.s32.totalorder %s63, 0
    %s66 = sadd.s32 %s65, 1
    %s67 = scalar_select %p64, %s65, %s66
    %p70 = pneg %p64
    %p71 = scmp.eq.s32.totalorder %s8, 1
    %p72 = por %p70, %p71
    %p73 = scmp.ne.s32.totalorder %s65, %s68
    %p74 = scmp.eq.s32.totalorder %s8, 0
    %p75 = por %p73, %p74
    %p76 = scmp.ne.s32.totalorder %s65, %s68
    %p77 = scmp.eq.s32.totalorder %s13, 1
    %p78 = por %p76, %p77
    %p79 = scmp.ne.s32.totalorder %s68, %s69
    %p80 = scmp.eq.s32.totalorder %s13, 0
    %p81 = por %p79, %p80
    %p82 = scmp.ne.s32.totalorder %s68, %s69
    %p83 = scmp.eq.s32.totalorder %s14, 1
    %p84 = por %p82, %p83
    %p86 = scmp.ne.s32.totalorder %s69, %s85
    %p87 = scmp.eq.s32.totalorder %s14, 0
    %p88 = por %p86, %p87
    %p89 = scmp.le.s32.totalorder 1, %s8
    %p90 = scmp.lt.s32.totalorder %s8, 3
    %p91 = pnand %p89, %p90
    %p92 = pneg %p91
    // Predicated region
    $region9: #{densenet_forward.34} parent=5 // pred_check
      _
    $region10: #{densenet_forward.34} parent=5 // pred_check_branch
      %94 = sbr.rel (%p91) target = $region12
    $region11: #{densenet_forward.34} parent=5 // pred_region
      %s95 = ssub.s32 %s8, 1
      // Predicated region
      $region13: #{densenet_forward.34} parent=11 // pred_check
        %p96 = pneg %p55
      $region14: #{densenet_forward.34} parent=11 // pred_check_branch
        %98 = sbr.rel (%p96) target = $region16
      $region15: #{densenet_forward.34} parent=11 // pred_region
        _
      $region16: #{densenet_forward.34} parent=11 // pred_fallthru
        _
    $region12: #{densenet_forward.34} parent=5 // pred_fallthru
      _
    %p99 = scmp.lt.s32.totalorder %s8, 2
    // Predicated region
    $region17: #{densenet_forward.34} parent=5 // pred_check
      %p100 = pneg %p99
    $region18: #{densenet_forward.34} parent=5 // pred_check_branch
      %102 = sbr.rel (%p100) target = $region20
    $region19: #{densenet_forward.34} parent=5 // pred_region
      // Predicated region
      $region21: #{densenet_forward.34} parent=19 // pred_check
        %p103 = pneg %p28
      $region22: #{densenet_forward.34} parent=19 // pred_check_branch
        %105 = sbr.rel (%p103) target = $region24
      $region23: #{densenet_forward.34} parent=19 // pred_region
        %p106 = scmp.lt.s32.totalorder %s8, 1
        %s107 = scalar_select %p106, %s8, 1
        %s108 = smul.addr %s107, 6
        %s109 = smul.addr %s108, 8
        %s110 = scalar_lea.vmem %s0, %s109
      $region24: #{densenet_forward.34} parent=19 // pred_fallthru
        _
    $region20: #{densenet_forward.34} parent=5 // pred_fallthru
      _
    %p111 = scmp.le.s32.totalorder 1, %s8
    %p112 = scmp.lt.s32.totalorder %s8, 3
    %p113 = pnand %p111, %p112
    %p114 = pneg %p113
    // Predicated region
    $region25: #{densenet_forward.34} parent=5 // pred_check
      _
    $region26: #{densenet_forward.34} parent=5 // pred_check_branch
      %116 = sbr.rel (%p113) target = $region28
    $region27: #{densenet_forward.34} parent=5 // pred_region
      %s117 = ssub.s32 %s8, 1
      %p118 = scmp.lt.s32.totalorder %s13, 1
      %s119 = scalar_select %p118, %s13, 1
      %s120 = smul.addr %s119, 6
      %s121 = smul.addr %s120, 8
      %s122 = scalar_lea.vmem %s0, %s121
      %p123 = pneg %p34
      %p124 = pneg %p31
      %p125 = pneg %p55
      %p126 = pneg %p52
      %p127 = pneg %p81
      %p128 = pneg %p78
      %p129 = scmp.lt.s32.totalorder %s13, 1
      %s130 = scalar_select %p129, %s13, 1
      %s131 = smul.addr %s130, 4
      %s132 = smul.addr %s131, 4
      %s133 = scalar_lea.vmem %s2, %s132
      %p134 = scmp.lt.s32.totalorder %s13, 1
      %s135 = scalar_select %p134, %s13, 1
      %s136 = smul.addr %s135, 6
      %s137 = smul.addr %s136, 8
      %s138 = scalar_lea.vmem %s0, %s137
      %p139 = scmp.lt.s32.totalorder %s13, 1
      %s140 = scalar_select %p139, %s13, 1
      %s141 = smul.addr %s140, 4
      %s142 = smul.addr %s141, 4
      %s143 = scalar_lea.vmem %s2, %s142
      %v145 = vld [vmem:[%s138] sm:$0xf]
      %v146 = vld [vmem:[%s138 + $0x8] sm:$0xf]
      %v147 = vld [vmem:[%s138 + $0x10] sm:$0xf]
      %v148 = vld [vmem:[%s138 + $0x18] sm:$0xf]
      %v153 = vcombine.low %v145, %v146
      %v154 = vcombine.low %v147, %v148
      %v157 = vpack.c.bf16 %v154, %v153
      %v158 = vld [vmem:[%s1] sm:$0xf]
      %v159 = vld [vmem:[%s1 + $0x4] sm:$0xf]
      %v160 = vld [vmem:[%s138 + $0x1] sm:$0xf]
      %v161 = vld [vmem:[%s138 + $0x9] sm:$0xf]
      %v162 = vld [vmem:[%s138 + $0x11] sm:$0xf]
      %v163 = vld [vmem:[%s138 + $0x19] sm:$0xf]
      %v168 = vcombine.low %v160, %v161
      %v169 = vcombine.low %v162, %v163
      %v172 = vpack.c.bf16 %v169, %v168
      %s173 = scalar_lea.vmem %s1, 8
      %v174 = vld [vmem:[%s173] sm:$0xf]
      %v175 = vld [vmem:[%s173 + $0x4] sm:$0xf]
      %v178 = vunpack.c.l.b16 %v174
      %v179 = vunpack.c.l.b16 %v175
      %v180 = vpack.c.b16 %v179, %v178
      %vm182 = vcmask 130048
      %v184 = vsel %vm182, %v172, 0
      %186 = vmatprep.subr.bf16.mxu0 0
      %187 = vmatpush1.bf16.msra.mxu0 %v180
      %188 = vmatprep.subr.bf16.mxu0 0
      %189 = vmatpush1.bf16.msra.mxu0 0
      %190 = vmatprep.subr.bf16.mxu0 0
      %191 = vmatpush1.bf16.msra.mxu0 0
      %192 = vmatprep.subr.bf16.mxu0 0
      %193 = vmatpush1.bf16.msra.mxu0 0
      %194 = vmatprep.subr.bf16.mxu0 0
      %195 = vmatpush1.bf16.msra.mxu0 0
      %196 = vmatprep.subr.bf16.mxu0 0
      %197 = vmatpush1.bf16.msra.mxu0 0
      %198 = vmatprep.subr.bf16.mxu0 0
      %199 = vmatpush1.bf16.msra.mxu0 0
      %200 = vmatprep.subr.bf16.mxu0 0
      %201 = vmatpush1.bf16.msra.mxu0 0
      %202 = vmatprep.subr.bf16.mxu0 0
      %203 = vmatpush1.bf16.msra.mxu0 0
      %204 = vmatprep.subr.bf16.mxu0 0
      %205 = vmatpush1.bf16.msra.mxu0 0
      %206 = vmatprep.subr.bf16.mxu0 0
      %207 = vmatpush1.bf16.msra.mxu0 0
      %208 = vmatprep.subr.bf16.mxu0 0
      %209 = vmatpush1.bf16.msra.mxu0 0
      %210 = vmatprep.subr.bf16.mxu0 0
      %211 = vmatpush1.bf16.msra.mxu0 0
      %212 = vmatprep.subr.bf16.mxu0 0
      %213 = vmatpush1.bf16.msra.mxu0 0
      %214 = vmatprep.subr.bf16.mxu0 0
      %215 = vmatpush1.bf16.msra.mxu0 0
      %216 = vmatprep.subr.bf16.mxu0 0
      %217 = vmatpush1.bf16.msra.mxu0 0
      %218 = vmatprep.mubr.bf16.mxu0 0
      %219 = vmatmul.mubr.bf16.gmra.mrb[0].mxu0 %v184
      %v220 = vpop.f32.mrb[0].mxu0
      %v221 = vadd.f32 0.0, %v220
      %v222 = vpop.f32.mrb[0].mxu0
      %v223 = vpop.f32.mrb[0].mxu0
      %v224 = vadd.f32 0.0, %v223
      %v225 = vpop.f32.mrb[0].mxu0
      %226 = vdwg.mxu0
      %v229 = vunpack.c.l.b16 %v158
      %v230 = vunpack.c.l.b16 %v159
      %v231 = vpack.c.b16 %v230, %v229
      %v234 = vsel %vm182, %v157, 0
      %236 = vmatprep.subr.bf16.mxu0 0
      %237 = vmatpush1.bf16.msra.mxu0 %v231
      %238 = vmatprep.subr.bf16.mxu0 0
      %239 = vmatpush1.bf16.msra.mxu0 0
      %240 = vmatprep.subr.bf16.mxu0 0
      %241 = vmatpush1.bf16.msra.mxu0 0
      %242 = vmatprep.subr.bf16.mxu0 0
      %243 = vmatpush1.bf16.msra.mxu0 0
      %244 = vmatprep.subr.bf16.mxu0 0
      %245 = vmatpush1.bf16.msra.mxu0 0
      %246 = vmatprep.subr.bf16.mxu0 0
      %247 = vmatpush1.bf16.msra.mxu0 0
      %248 = vmatprep.subr.bf16.mxu0 0
      %249 = vmatpush1.bf16.msra.mxu0 0
      %250 = vmatprep.subr.bf16.mxu0 0
      %251 = vmatpush1.bf16.msra.mxu0 0
      %252 = vmatprep.subr.bf16.mxu0 0
      %253 = vmatpush1.bf16.msra.mxu0 0
      %254 = vmatprep.subr.bf16.mxu0 0
      %255 = vmatpush1.bf16.msra.mxu0 0
      %256 = vmatprep.subr.bf16.mxu0 0
      %257 = vmatpush1.bf16.msra.mxu0 0
      %258 = vmatprep.subr.bf16.mxu0 0
      %259 = vmatpush1.bf16.msra.mxu0 0
      %260 = vmatprep.subr.bf16.mxu0 0
      %261 = vmatpush1.bf16.msra.mxu0 0
      %262 = vmatprep.subr.bf16.mxu0 0
      %263 = vmatpush1.bf16.msra.mxu0 0
      %264 = vmatprep.subr.bf16.mxu0 0
      %265 = vmatpush1.bf16.msra.mxu0 0
      %266 = vmatprep.subr.bf16.mxu0 0
      %267 = vmatpush1.bf16.msra.mxu0 0
      %268 = vmatprep.mubr.bf16.mxu0 0
      %269 = vmatmul.mubr.bf16.gmra.mrb[0].mxu0 %v234
      %v270 = vpop.f32.mrb[0].mxu0
      %v271 = vadd.f32 %v221, %v270
      %v272 = vpop.f32.mrb[0].mxu0
      %v273 = vpop.f32.mrb[0].mxu0
      %v274 = vadd.f32 %v224, %v273
      %v275 = vpop.f32.mrb[0].mxu0
      %276 = vdwg.mxu0
      %v277 = vld [vmem:[%s138 + $0x2] sm:$0xf]
      %v278 = vld [vmem:[%s138 + $0xa] sm:$0xf]
      %v279 = vld [vmem:[%s138 + $0x12] sm:$0xf]
      %v280 = vld [vmem:[%s138 + $0x1a] sm:$0xf]
      %v285 = vcombine.low %v277, %v278
      %v286 = vcombine.low %v279, %v280
      %v289 = vpack.c.bf16 %v286, %v285
      %s290 = scalar_lea.vmem %s1, 16
      %v291 = vld [vmem:[%s290] sm:$0xf]
      %v292 = vld [vmem:[%s290 + $0x4] sm:$0xf]
      %v295 = vunpack.c.l.b16 %v291
      %v296 = vunpack.c.l.b16 %v292
      %v297 = vpack.c.b16 %v296, %v295
      %v300 = vsel %vm182, %v289, 0
      %302 = vmatprep.subr.bf16.mxu0 0
      %303 = vmatpush1.bf16.msra.mxu0 %v297
      %304 = vmatprep.subr.bf16.mxu0 0
      %305 = vmatpush1.bf16.msra.mxu0 0
      %306 = vmatprep.subr.bf16.mxu0 0
      %307 = vmatpush1.bf16.msra.mxu0 0
      %308 = vmatprep.subr.bf16.mxu0 0
      %309 = vmatpush1.bf16.msra.mxu0 0
      %310 = vmatprep.subr.bf16.mxu0 0
      %311 = vmatpush1.bf16.msra.mxu0 0
      %312 = vmatprep.subr.bf16.mxu0 0
      %313 = vmatpush1.bf16.msra.mxu0 0
      %314 = vmatprep.subr.bf16.mxu0 0
      %315 = vmatpush1.bf16.msra.mxu0 0
      %316 = vmatprep.subr.bf16.mxu0 0
      %317 = vmatpush1.bf16.msra.mxu0 0
      %318 = vmatprep.subr.bf16.mxu0 0
      %319 = vmatpush1.bf16.msra.mxu0 0
      %320 = vmatprep.subr.bf16.mxu0 0
      %321 = vmatpush1.bf16.msra.mxu0 0
      %322 = vmatprep.subr.bf16.mxu0 0
      %323 = vmatpush1.bf16.msra.mxu0 0
      %324 = vmatprep.subr.bf16.mxu0 0
      %325 = vmatpush1.bf16.msra.mxu0 0
      %326 = vmatprep.subr.bf16.mxu0 0
      %327 = vmatpush1.bf16.msra.mxu0 0
      %328 = vmatprep.subr.bf16.mxu0 0
      %329 = vmatpush1.bf16.msra.mxu0 0
      %330 = vmatprep.subr.bf16.mxu0 0
      %331 = vmatpush1.bf16.msra.mxu0 0
      %332 = vmatprep.subr.bf16.mxu0 0
      %333 = vmatpush1.bf16.msra.mxu0 0
      %334 = vmatprep.mubr.bf16.mxu0 0
      %335 = vmatmul.mubr.bf16.gmra.mrb[0].mxu0 %v300
      %v336 = vpop.f32.mrb[0].mxu0
      %v337 = vadd.f32 0.0, %v336
      %v338 = vpop.f32.mrb[0].mxu0
      %v339 = vpop.f32.mrb[0].mxu0
      %v340 = vadd.f32 0.0, %v339
      %v341 = vpop.f32.mrb[0].mxu0
      %342 = vdwg.mxu0
      %v343 = vadd.f32 %v271, %v337
      %v344 = vadd.f32 %v274, %v340
      %s345 = scalar_lea.vmem %s138, 8
      %v346 = vld [vmem:[%s345] sm:$0xf]
      %v347 = vld [vmem:[%s345 + $0x8] sm:$0xf]
      %v348 = vld [vmem:[%s345 + $0x10] sm:$0xf]
      %v349 = vld [vmem:[%s345 + $0x18] sm:$0xf]
      %v354 = vcombine.low %v346, %v347
      %v355 = vcombine.low %v348, %v349
      %v358 = vpack.c.bf16 %v355, %v354
      %s359 = scalar_lea.vmem %s1, 24
      %v360 = vld [vmem:[%s359] sm:$0xf]
      %v361 = vld [vmem:[%s359 + $0x4] sm:$0xf]
      %v364 = vunpack.c.l.b16 %v360
      %v365 = vunpack.c.l.b16 %v361
      %v366 = vpack.c.b16 %v365, %v364
      %v369 = vsel %vm182, %v358, 0
      %371 = vmatprep.subr.bf16.mxu0 0
      %372 = vmatpush1.bf16.msra.mxu0 %v366
      %373 = vmatprep.subr.bf16.mxu0 0
      %374 = vmatpush1.bf16.msra.mxu0 0
      %375 = vmatprep.subr.bf16.mxu0 0
      %376 = vmatpush1.bf16.msra.mxu0 0
      %377 = vmatprep.subr.bf16.mxu0 0
      %378 = vmatpush1.bf16.msra.mxu0 0
      %379 = vmatprep.subr.bf16.mxu0 0
      %380 = vmatpush1.bf16.msra.mxu0 0
      %381 = vmatprep.subr.bf16.mxu0 0
      %382 = vmatpush1.bf16.msra.mxu0 0
      %383 = vmatprep.subr.bf16.mxu0 0
      %384 = vmatpush1.bf16.msra.mxu0 0
      %385 = vmatprep.subr.bf16.mxu0 0
      %386 = vmatpush1.bf16.msra.mxu0 0
      %387 = vmatprep.subr.bf16.mxu0 0
      %388 = vmatpush1.bf16.msra.mxu0 0
      %389 = vmatprep.subr.bf16.mxu0 0
      %390 = vmatpush1.bf16.msra.mxu0 0
      %391 = vmatprep.subr.bf16.mxu0 0
      %392 = vmatpush1.bf16.msra.mxu0 0
      %393 = vmatprep.subr.bf16.mxu0 0
      %394 = vmatpush1.bf16.msra.mxu0 0
      %395 = vmatprep.subr.bf16.mxu0 0
      %396 = vmatpush1.bf16.msra.mxu0 0
      %397 = vmatprep.subr.bf16.mxu0 0
      %398 = vmatpush1.bf16.msra.mxu0 0
      %399 = vmatprep.subr.bf16.mxu0 0
      %400 = vmatpush1.bf16.msra.mxu0 0
      %401 = vmatprep.subr.bf16.mxu0 0
      %402 = vmatpush1.bf16.msra.mxu0 0
      %403 = vmatprep.mubr.bf16.mxu0 0
      %404 = vmatmul.mubr.bf16.gmra.mrb[0].mxu0 %v369
      %v405 = vpop.f32.mrb[0].mxu0
      %v406 = vadd.f32 0.0, %v405
      %v407 = vpop.f32.mrb[0].mxu0
      %v408 = vpop.f32.mrb[0].mxu0
      %v409 = vadd.f32 0.0, %v408
      %v410 = vpop.f32.mrb[0].mxu0
      %411 = vdwg.mxu0
      %v412 = vadd.f32 %v343, %v406
      %v413 = vadd.f32 %v344, %v409
      %v414 = vld [vmem:[%s345 + $0x1] sm:$0xf]
      %v415 = vld [vmem:[%s345 + $0x9] sm:$0xf]
      %v416 = vld [vmem:[%s345 + $0x11] sm:$0xf]
      %v417 = vld [vmem:[%s345 + $0x19] sm:$0xf]
      %v422 = vcombine.low %v414, %v415
      %v423 = vcombine.low %v416, %v417
      %v426 = vpack.c.bf16 %v423, %v422
      %s427 = scalar_lea.vmem %s1, 32
      %v428 = vld [vmem:[%s427] sm:$0xf]
      %v429 = vld [vmem:[%s427 + $0x4] sm:$0xf]
      %v432 = vunpack.c.l.b16 %v428
      %v433 = vunpack.c.l.b16 %v429
      %v434 = vpack.c.b16 %v433, %v432
      %v437 = vsel %vm182, %v426, 0
      %439 = vmatprep.subr.bf16.mxu0 0
      %440 = vmatpush1.bf16.msra.mxu0 %v434
      %441 = vmatprep.subr.bf16.mxu0 0
      %442 = vmatpush1.bf16.msra.mxu0 0
      %443 = vmatprep.subr.bf16.mxu0 0
      %444 = vmatpush1.bf16.msra.mxu0 0
      %445 = vmatprep.subr.bf16.mxu0 0
      %446 = vmatpush1.bf16.msra.mxu0 0
      %447 = vmatprep.subr.bf16.mxu0 0
      %448 = vmatpush1.bf16.msra.mxu0 0
      %449 = vmatprep.subr.bf16.mxu0 0
      %450 = vmatpush1.bf16.msra.mxu0 0
      %451 = vmatprep.subr.bf16.mxu0 0
      %452 = vmatpush1.bf16.msra.mxu0 0
      %453 = vmatprep.subr.bf16.mxu0 0
      %454 = vmatpush1.bf16.msra.mxu0 0
      %455 = vmatprep.subr.bf16.mxu0 0
      %456 = vmatpush1.bf16.msra.mxu0 0
      %457 = vmatprep.subr.bf16.mxu0 0
      %458 = vmatpush1.bf16.msra.mxu0 0
      %459 = vmatprep.subr.bf16.mxu0 0
      %460 = vmatpush1.bf16.msra.mxu0 0
      %461 = vmatprep.subr.bf16.mxu0 0
      %462 = vmatpush1.bf16.msra.mxu0 0
      %463 = vmatprep.subr.bf16.mxu0 0
      %464 = vmatpush1.bf16.msra.mxu0 0
      %465 = vmatprep.subr.bf16.mxu0 0
      %466 = vmatpush1.bf16.msra.mxu0 0
      %467 = vmatprep.subr.bf16.mxu0 0
      %468 = vmatpush1.bf16.msra.mxu0 0
      %469 = vmatprep.subr.bf16.mxu0 0
      %470 = vmatpush1.bf16.msra.mxu0 0
      %471 = vmatprep.mubr.bf16.mxu0 0
      %472 = vmatmul.mubr.bf16.gmra.mrb[0].mxu0 %v437
      %v473 = vpop.f32.mrb[0].mxu0
      %v474 = vadd.f32 0.0, %v473
      %v475 = vpop.f32.mrb[0].mxu0
      %v476 = vpop.f32.mrb[0].mxu0
      %v477 = vadd.f32 0.0, %v476
      %v478 = vpop.f32.mrb[0].mxu0
      %479 = vdwg.mxu0
      %v480 = vadd.f32 %v412, %v474
      %v481 = vadd.f32 %v413, %v477
      %v482 = vld [vmem:[%s345 + $0x2] sm:$0xf]
      %v483 = vld [vmem:[%s345 + $0xa] sm:$0xf]
      %v484 = vld [vmem:[%s345 + $0x12] sm:$0xf]
      %v485 = vld [vmem:[%s345 + $0x1a] sm:$0xf]
      %v490 = vcombine.low %v482, %v483
      %v491 = vcombine.low %v484, %v485
      %v494 = vpack.c.bf16 %v491, %v490
      %s495 = scalar_lea.vmem %s1, 40
      %v496 = vld [vmem:[%s495] sm:$0xf]
      %v497 = vld [vmem:[%s495 + $0x4] sm:$0xf]
      %v500 = vunpack.c.l.b16 %v496
      %v501 = vunpack.c.l.b16 %v497
      %v502 = vpack.c.b16 %v501, %v500
      %v505 = vsel %vm182, %v494, 0
      %507 = vmatprep.subr.bf16.mxu0 0
      %508 = vmatpush1.bf16.msra.mxu0 %v502
      %509 = vmatprep.subr.bf16.mxu0 0
      %510 = vmatpush1.bf16.msra.mxu0 0
      %511 = vmatprep.subr.bf16.mxu0 0
      %512 = vmatpush1.bf16.msra.mxu0 0
      %513 = vmatprep.subr.bf16.mxu0 0
      %514 = vmatpush1.bf16.msra.mxu0 0
      %515 = vmatprep.subr.bf16.mxu0 0
      %516 = vmatpush1.bf16.msra.mxu0 0
      %517 = vmatprep.subr.bf16.mxu0 0
      %518 = vmatpush1.bf16.msra.mxu0 0
      %519 = vmatprep.subr.bf16.mxu0 0
      %520 = vmatpush1.bf16.msra.mxu0 0
      %521 = vmatprep.subr.bf16.mxu0 0
      %522 = vmatpush1.bf16.msra.mxu0 0
      %523 = vmatprep.subr.bf16.mxu0 0
      %524 = vmatpush1.bf16.msra.mxu0 0
      %525 = vmatprep.subr.bf16.mxu0 0
      %526 = vmatpush1.bf16.msra.mxu0 0
      %527 = vmatprep.subr.bf16.mxu0 0
      %528 = vmatpush1.bf16.msra.mxu0 0
      %529 = vmatprep.subr.bf16.mxu0 0
      %530 = vmatpush1.bf16.msra.mxu0 0
      %531 = vmatprep.subr.bf16.mxu0 0
      %532 = vmatpush1.bf16.msra.mxu0 0
      %533 = vmatprep.subr.bf16.mxu0 0
      %534 = vmatpush1.bf16.msra.mxu0 0
      %535 = vmatprep.subr.bf16.mxu0 0
      %536 = vmatpush1.bf16.msra.mxu0 0
      %537 = vmatprep.subr.bf16.mxu0 0
      %538 = vmatpush1.bf16.msra.mxu0 0
      %539 = vmatprep.mubr.bf16.mxu0 0
      %540 = vmatmul.mubr.bf16.gmra.mrb[0].mxu0 %v505
      %v541 = vpop.f32.mrb[0].mxu0
      %v542 = vadd.f32 0.0, %v541
      %v543 = vpop.f32.mrb[0].mxu0
      %v544 = vpop.f32.mrb[0].mxu0
      %v545 = vadd.f32 0.0, %v544
      %v546 = vpop.f32.mrb[0].mxu0
      %547 = vdwg.mxu0
      %v548 = vadd.f32 %v480, %v542
      %v549 = vadd.f32 %v481, %v545
      %s550 = scalar_lea.vmem %s138, 16
      %v551 = vld [vmem:[%s550] sm:$0xf]
      %v552 = vld [vmem:[%s550 + $0x8] sm:$0xf]
      %v553 = vld [vmem:[%s550 + $0x10] sm:$0xf]
      %v554 = vld [vmem:[%s550 + $0x18] sm:$0xf]
      %v559 = vcombine.low %v551, %v552
      %v560 = vcombine.low %v553, %v554
      %v563 = vpack.c.bf16 %v560, %v559
      %s564 = scalar_lea.vmem %s1, 48
      %v565 = vld [vmem:[%s564] sm:$0xf]
      %v566 = vld [vmem:[%s564 + $0x4] sm:$0xf]
      %v569 = vunpack.c.l.b16 %v565
      %v570 = vunpack.c.l.b16 %v566
      %v571 = vpack.c.b16 %v570, %v569
      %v574 = vsel %vm182, %v563, 0
      %576 = vmatprep.subr.bf16.mxu0 0
      %577 = vmatpush1.bf16.msra.mxu0 %v571
      %578 = vmatprep.subr.bf16.mxu0 0
      %579 = vmatpush1.bf16.msra.mxu0 0
      %580 = vmatprep.subr.bf16.mxu0 0
      %581 = vmatpush1.bf16.msra.mxu0 0
      %582 = vmatprep.subr.bf16.mxu0 0
      %583 = vmatpush1.bf16.msra.mxu0 0
      %584 = vmatprep.subr.bf16.mxu0 0
      %585 = vmatpush1.bf16.msra.mxu0 0
      %586 = vmatprep.subr.bf16.mxu0 0
      %587 = vmatpush1.bf16.msra.mxu0 0
      %588 = vmatprep.subr.bf16.mxu0 0
      %589 = vmatpush1.bf16.msra.mxu0 0
      %590 = vmatprep.subr.bf16.mxu0 0
      %591 = vmatpush1.bf16.msra.mxu0 0
      %592 = vmatprep.subr.bf16.mxu0 0
      %593 = vmatpush1.bf16.msra.mxu0 0
      %594 = vmatprep.subr.bf16.mxu0 0
      %595 = vmatpush1.bf16.msra.mxu0 0
      %596 = vmatprep.subr.bf16.mxu0 0
      %597 = vmatpush1.bf16.msra.mxu0 0
      %598 = vmatprep.subr.bf16.mxu0 0
      %599 = vmatpush1.bf16.msra.mxu0 0
      %600 = vmatprep.subr.bf16.mxu0 0
      %601 = vmatpush1.bf16.msra.mxu0 0
      %602 = vmatprep.subr.bf16.mxu0 0
      %603 = vmatpush1.bf16.msra.mxu0 0
      %604 = vmatprep.subr.bf16.mxu0 0
      %605 = vmatpush1.bf16.msra.mxu0 0
      %606 = vmatprep.subr.bf16.mxu0 0
      %607 = vmatpush1.bf16.msra.mxu0 0
      %608 = vmatprep.mubr.bf16.mxu0 0
      %609 = vmatmul.mubr.bf16.gmra.mrb[0].mxu0 %v574
      %v610 = vpop.f32.mrb[0].mxu0
      %v611 = vadd.f32 0.0, %v610
      %v612 = vpop.f32.mrb[0].mxu0
      %v613 = vpop.f32.mrb[0].mxu0
      %v614 = vadd.f32 0.0, %v613
      %v615 = vpop.f32.mrb[0].mxu0
      %616 = vdwg.mxu0
      %v617 = vadd.f32 %v548, %v611
      %v618 = vadd.f32 %v549, %v614
      %v619 = vld [vmem:[%s550 + $0x1] sm:$0xf]
      %v620 = vld [vmem:[%s550 + $0x9] sm:$0xf]
      %v621 = vld [vmem:[%s550 + $0x11] sm:$0xf]
      %v622 = vld [vmem:[%s550 + $0x19] sm:$0xf]
      %v627 = vcombine.low %v619, %v620
      %v628 = vcombine.low %v621, %v622
      %v631 = vpack.c.bf16 %v628, %v627
      %s632 = scalar_lea.vmem %s1, 56
      %v633 = vld [vmem:[%s632] sm:$0xf]
      %v634 = vld [vmem:[%s632 + $0x4] sm:$0xf]
      %v637 = vunpack.c.l.b16 %v633
      %v638 = vunpack.c.l.b16 %v634
      %v639 = vpack.c.b16 %v638, %v637
      %v642 = vsel %vm182, %v631, 0
      %644 = vmatprep.subr.bf16.mxu0 0
      %645 = vmatpush1.bf16.msra.mxu0 %v639
      %646 = vmatprep.subr.bf16.mxu0 0
      %647 = vmatpush1.bf16.msra.mxu0 0
      %648 = vmatprep.subr.bf16.mxu0 0
      %649 = vmatpush1.bf16.msra.mxu0 0
      %650 = vmatprep.subr.bf16.mxu0 0
      %651 = vmatpush1.bf16.msra.mxu0 0
      %652 = vmatprep.subr.bf16.mxu0 0
      %653 = vmatpush1.bf16.msra.mxu0 0
      %654 = vmatprep.subr.bf16.mxu0 0
      %655 = vmatpush1.bf16.msra.mxu0 0
      %656 = vmatprep.subr.bf16.mxu0 0
      %657 = vmatpush1.bf16.msra.mxu0 0
      %658 = vmatprep.subr.bf16.mxu0 0
      %659 = vmatpush1.bf16.msra.mxu0 0
      %660 = vmatprep.subr.bf16.mxu0 0
      %661 = vmatpush1.bf16.msra.mxu0 0
      %662 = vmatprep.subr.bf16.mxu0 0
      %663 = vmatpush1.bf16.msra.mxu0 0
      %664 = vmatprep.subr.bf16.mxu0 0
      %665 = vmatpush1.bf16.msra.mxu0 0
      %666 = vmatprep.subr.bf16.mxu0 0
      %667 = vmatpush1.bf16.msra.mxu0 0
      %668 = vmatprep.subr.bf16.mxu0 0
      %669 = vmatpush1.bf16.msra.mxu0 0
      %670 = vmatprep.subr.bf16.mxu0 0
      %671 = vmatpush1.bf16.msra.mxu0 0
      %672 = vmatprep.subr.bf16.mxu0 0
      %673 = vmatpush1.bf16.msra.mxu0 0
      %674 = vmatprep.subr.bf16.mxu0 0
      %675 = vmatpush1.bf16.msra.mxu0 0
      %676 = vmatprep.mubr.bf16.mxu0 0
      %677 = vmatmul.mubr.bf16.gmra.mrb[0].mxu0 %v642
      %v678 = vpop.f32.mrb[0].mxu0
      %v679 = vadd.f32 0.0, %v678
      %v680 = vpop.f32.mrb[0].mxu0
      %v681 = vpop.f32.mrb[0].mxu0
      %v682 = vadd.f32 0.0, %v681
      %v683 = vpop.f32.mrb[0].mxu0
      %684 = vdwg.mxu0
      %v685 = vadd.f32 %v617, %v679
      %v686 = vadd.f32 %v618, %v682
      %v687 = vld [vmem:[%s550 + $0x2] sm:$0xf]
      %v688 = vld [vmem:[%s550 + $0xa] sm:$0xf]
      %v689 = vld [vmem:[%s550 + $0x12] sm:$0xf]
      %v690 = vld [vmem:[%s550 + $0x1a] sm:$0xf]
      %v695 = vcombine.low %v687, %v688
      %v696 = vcombine.low %v689, %v690
      %v699 = vpack.c.bf16 %v696, %v695
      %s700 = scalar_lea.vmem %s1, 64
      %v701 = vld [vmem:[%s700] sm:$0xf]
      %v702 = vld [vmem:[%s700 + $0x4] sm:$0xf]
      %v705 = vunpack.c.l.b16 %v701
      %v706 = vunpack.c.l.b16 %v702
      %v707 = vpack.c.b16 %v706, %v705
      %v710 = vsel %vm182, %v699, 0
      %712 = vmatprep.subr.bf16.mxu0 0
      %713 = vmatpush1.bf16.msra.mxu0 %v707
      %714 = vmatprep.subr.bf16.mxu0 0
      %715 = vmatpush1.bf16.msra.mxu0 0
      %716 = vmatprep.subr.bf16.mxu0 0
      %717 = vmatpush1.bf16.msra.mxu0 0
      %718 = vmatprep.subr.bf16.mxu0 0
      %719 = vmatpush1.bf16.msra.mxu0 0
      %720 = vmatprep.subr.bf16.mxu0 0
      %721 = vmatpush1.bf16.msra.mxu0 0
      %722 = vmatprep.subr.bf16.mxu0 0
      %723 = vmatpush1.bf16.msra.mxu0 0
      %724 = vmatprep.subr.bf16.mxu0 0
      %725 = vmatpush1.bf16.msra.mxu0 0
      %726 = vmatprep.subr.bf16.mxu0 0
      %727 = vmatpush1.bf16.msra.mxu0 0
      %728 = vmatprep.subr.bf16.mxu0 0
      %729 = vmatpush1.bf16.msra.mxu0 0
      %730 = vmatprep.subr.bf16.mxu0 0
      %731 = vmatpush1.bf16.msra.mxu0 0
      %732 = vmatprep.subr.bf16.mxu0 0
      %733 = vmatpush1.bf16.msra.mxu0 0
      %734 = vmatprep.subr.bf16.mxu0 0
      %735 = vmatpush1.bf16.msra.mxu0 0
      %736 = vmatprep.subr.bf16.mxu0 0
      %737 = vmatpush1.bf16.msra.mxu0 0
      %738 = vmatprep.subr.bf16.mxu0 0
      %739 = vmatpush1.bf16.msra.mxu0 0
      %740 = vmatprep.subr.bf16.mxu0 0
      %741 = vmatpush1.bf16.msra.mxu0 0
      %742 = vmatprep.subr.bf16.mxu0 0
      %743 = vmatpush1.bf16.msra.mxu0 0
      %744 = vmatprep.mubr.bf16.mxu0 0
      %745 = vmatmul.mubr.bf16.gmra.mrb[0].mxu0 %v710
      %v746 = vpop.f32.mrb[0].mxu0
      %v747 = vadd.f32 0.0, %v746
      %v748 = vpop.f32.mrb[0].mxu0
      %v749 = vpop.f32.mrb[0].mxu0
      %v750 = vadd.f32 0.0, %v749
      %v751 = vpop.f32.mrb[0].mxu0
      %752 = vdwg.mxu0
      %v753 = vadd.f32 %v685, %v747
      %v754 = vadd.f32 %v686, %v750
      %v757 = vcombine.high %v753, %v753
      %v758 = vcombine.high %v754, %v754
      %vm761 = vcmask 60416
      %762 = vst.msk [vmem:[%s143] sm:$0xf] %vm761, %v753
      %763 = vst.msk [vmem:[%s143 + $0x4] sm:$0xf] %vm761, %v757
      %764 = vst.msk [vmem:[%s143 + $0x8] sm:$0xf] %vm761, %v754
      %765 = vst.msk [vmem:[%s143 + $0xc] sm:$0xf] %vm761, %v758
      %p766 = scmp.lt.s32.totalorder %s13, 1
      %s767 = scalar_select %p766, %s13, 1
      %s768 = smul.addr %s767, 4
      %s769 = smul.addr %s768, 4
      %s770 = scalar_lea.vmem %s2, %s769
      // Predicated region
      $region29: #{densenet_forward.34} parent=27 // pred_check
        %p771 = pneg %p78
      $region30: #{densenet_forward.34} parent=27 // pred_check_branch
        %773 = sbr.rel (%p771) target = $region32
      $region31: #{densenet_forward.34} parent=27 // pred_region
        _
      $region32: #{densenet_forward.34} parent=27 // pred_fallthru
        _
    $region28: #{densenet_forward.34} parent=5 // pred_fallthru
      _
    %p774 = scmp.le.s32.totalorder 2, %s8
    // Predicated region
    $region33: #{densenet_forward.34} parent=5 // pred_check
      %p775 = pneg %p774
    $region34: #{densenet_forward.34} parent=5 // pred_check_branch
      %777 = sbr.rel (%p775) target = $region36
    $region35: #{densenet_forward.34} parent=5 // pred_region
      %s778 = ssub.s32 %s8, 2
      // Predicated region
      $region37: #{densenet_forward.34} parent=35 // pred_check
        %p779 = pneg %p84
      $region38: #{densenet_forward.34} parent=35 // pred_check_branch
        %781 = sbr.rel (%p779) target = $region40
      $region39: #{densenet_forward.34} parent=35 // pred_region
        %p782 = scmp.lt.s32.totalorder %s14, 1
        %s783 = scalar_select %p782, %s14, 1
        %s784 = smul.addr %s783, 4
        %s785 = smul.addr %s784, 4
        %s786 = scalar_lea.vmem %s2, %s785
      $region40: #{densenet_forward.34} parent=35 // pred_fallthru
        _
    $region36: #{densenet_forward.34} parent=5 // pred_fallthru
      _
  $region6: #{densenet_forward.34} parent=0 // loop_footer
    %s12 = sadd.s32 1, %s8
  $region7: #{densenet_forward.34} parent=0 // loop_footer_branch
    %7 = sbr.rel target = $region3
  $region8: #{densenet_forward.34} parent=0 // loop_exit
    _

// kernel: densenet_forward.38
$region0: #{densenet_forward.38}
  #allocation0 [shape = 'u32[]', space=smem, size = 0x4, offset = 0x4, fixed_abs, tag = 'smem constant byte address 0x4 - core index']
  #allocation1 [shape = 'u32[144,128]{1,0:T(1,128)}', space=vmem, size = 0x12000, scoped, tag = 'internal scratch']
  %s0 = inlined_call_operand.vmem [shape: f32[2,2,2,16], index: 0, kind: input, shape index: {}]
  %s1 = inlined_call_operand.vmem [shape: f32[2,2,2,16], index: 1, kind: input, shape index: {}]
  %s2 = inlined_call_operand.vmem [shape: f32[2,2,2,16], index: 2, kind: input, shape index: {}]
  %s3 = inlined_call_operand.vmem [shape: f32[2,2,2,16], index: 3, kind: input, shape index: {}]
  %s4 = inlined_call_operand.vmem [shape: f32[2,2,2,16], index: 4, kind: output, shape index: {}]
  %s5 = sld [smem:[#allocation0]]
  $region49: #{densenet_forward.38} parent=0
    _
  %s7 = ssub.s32 1, %s5
  %s8 = scalar_select 0, %s7, %s5
  loop: start=0, step=1, limit=4
  $region2: #{densenet_forward.38} parent=0 // loop_pre_header
    _
  $region3: #{densenet_forward.38} parent=0 // loop_header
    %s10 = sphi 0, %s14
    %p11 = scmp.ge.s32.totalorder %s10, 4
    %s20 = sphi 0, %s22
    %s23 = sphi 0, %s20
    %s24 = sphi 0, %s23
    %s40 = sphi 0, %s24
    %s46 = sphi 0, %s48
    %s49 = sphi 0, %s46
    %s50 = sphi 0, %s49
    %s66 = sphi 0, %s50
    %s72 = sphi 0, %s74
    %s75 = sphi 0, %s72
    %s76 = sphi 0, %s75
    %s92 = sphi 0, %s76
    %s98 = sphi 0, %s100
    %s101 = sphi 0, %s98
    %s102 = sphi 0, %s101
    %s118 = sphi 0, %s102
    %s124 = sphi 0, %s126
    %s127 = sphi 0, %s124
    %s128 = sphi 0, %s127
    %s144 = sphi 0, %s128
  $region4: #{densenet_forward.38} parent=0 // loop_header_branch
    %13 = sbr.rel (%p11) target = $region8
  $region5: #{densenet_forward.38} parent=0 // loop_body
    %s15 = ssub.s32 %s10, 1
    %s16 = ssub.s32 %s10, 2
    %s17 = sadd.s32 %s10, 1
    %s18 = ssub.s32 %s10, %s17
    %p19 = scmp.eq.s32.totalorder %s18, 0
    %s21 = sadd.s32 %s20, 1
    %s22 = scalar_select %p19, %s20, %s21
    %p25 = pneg %p19
    %p26 = scmp.eq.s32.totalorder %s10, 1
    %p27 = por %p25, %p26
    %p28 = scmp.ne.s32.totalorder %s20, %s23
    %p29 = scmp.eq.s32.totalorder %s10, 0
    %p30 = por %p28, %p29
    %p31 = scmp.ne.s32.totalorder %s20, %s23
    %p32 = scmp.eq.s32.totalorder %s15, 1
    %p33 = por %p31, %p32
    %p34 = scmp.ne.s32.totalorder %s23, %s24
    %p35 = scmp.eq.s32.totalorder %s15, 0
    %p36 = por %p34, %p35
    %p37 = scmp.ne.s32.totalorder %s23, %s24
    %p38 = scmp.eq.s32.totalorder %s16, 1
    %p39 = por %p37, %p38
    %p41 = scmp.ne.s32.totalorder %s24, %s40
    %p42 = scmp.eq.s32.totalorder %s16, 0
    %p43 = por %p41, %p42
    %s44 = ssub.s32 %s10, %s17
    %p45 = scmp.eq.s32.totalorder %s44, 0
    %s47 = sadd.s32 %s46, 1
    %s48 = scalar_select %p45, %s46, %s47
    %p51 = pneg %p45
    %p52 = scmp.eq.s32.totalorder %s10, 1
    %p53 = por %p51, %p52
    %p54 = scmp.ne.s32.totalorder %s46, %s49
    %p55 = scmp.eq.s32.totalorder %s10, 0
    %p56 = por %p54, %p55
    %p57 = scmp.ne.s32.totalorder %s46, %s49
    %p58 = scmp.eq.s32.totalorder %s15, 1
    %p59 = por %p57, %p58
    %p60 = scmp.ne.s32.totalorder %s49, %s50
    %p61 = scmp.eq.s32.totalorder %s15, 0
    %p62 = por %p60, %p61
    %p63 = scmp.ne.s32.totalorder %s49, %s50
    %p64 = scmp.eq.s32.totalorder %s16, 1
    %p65 = por %p63, %p64
    %p67 = scmp.ne.s32.totalorder %s50, %s66
    %p68 = scmp.eq.s32.totalorder %s16, 0
    %p69 = por %p67, %p68
    %s70 = ssub.s32 %s10, %s17
    %p71 = scmp.eq.s32.totalorder %s70, 0
    %s73 = sadd.s32 %s72, 1
    %s74 = scalar_select %p71, %s72, %s73
    %p77 = pneg %p71
    %p78 = scmp.eq.s32.totalorder %s10, 1
    %p79 = por %p77, %p78
    %p80 = scmp.ne.s32.totalorder %s72, %s75
    %p81 = scmp.eq.s32.totalorder %s10, 0
    %p82 = por %p80, %p81
    %p83 = scmp.ne.s32.totalorder %s72, %s75
    %p84 = scmp.eq.s32.totalorder %s15, 1
    %p85 = por %p83, %p84
    %p86 = scmp.ne.s32.totalorder %s75, %s76
    %p87 = scmp.eq.s32.totalorder %s15, 0
    %p88 = por %p86, %p87
    %p89 = scmp.ne.s32.totalorder %s75, %s76
    %p90 = scmp.eq.s32.totalorder %s16, 1
    %p91 = por %p89, %p90
    %p93 = scmp.ne.s32.totalorder %s76, %s92
    %p94 = scmp.eq.s32.totalorder %s16, 0
    %p95 = por %p93, %p94
    %s96 = ssub.s32 %s10, %s17
    %p97 = scmp.eq.s32.totalorder %s96, 0
    %s99 = sadd.s32 %s98, 1
    %s100 = scalar_select %p97, %s98, %s99
    %p103 = pneg %p97
    %p104 = scmp.eq.s32.totalorder %s10, 1
    %p105 = por %p103, %p104
    %p106 = scmp.ne.s32.totalorder %s98, %s101
    %p107 = scmp.eq.s32.totalorder %s10, 0
    %p108 = por %p106, %p107
    %p109 = scmp.ne.s32.totalorder %s98, %s101
    %p110 = scmp.eq.s32.totalorder %s15, 1
    %p111 = por %p109, %p110
    %p112 = scmp.ne.s32.totalorder %s101, %s102
    %p113 = scmp.eq.s32.totalorder %s15, 0
    %p114 = por %p112, %p113
    %p115 = scmp.ne.s32.totalorder %s101, %s102
    %p116 = scmp.eq.s32.totalorder %s16, 1
    %p117 = por %p115, %p116
    %p119 = scmp.ne.s32.totalorder %s102, %s118
    %p120 = scmp.eq.s32.totalorder %s16, 0
    %p121 = por %p119, %p120
    %s122 = ssub.s32 %s10, %s17
    %p123 = scmp.eq.s32.totalorder %s122, 0
    %s125 = sadd.s32 %s124, 1
    %s126 = scalar_select %p123, %s124, %s125
    %p129 = pneg %p123
    %p130 = scmp.eq.s32.totalorder %s10, 1
    %p131 = por %p129, %p130
    %p132 = scmp.ne.s32.totalorder %s124, %s127
    %p133 = scmp.eq.s32.totalorder %s10, 0
    %p134 = por %p132, %p133
    %p135 = scmp.ne.s32.totalorder %s124, %s127
    %p136 = scmp.eq.s32.totalorder %s15, 1
    %p137 = por %p135, %p136
    %p138 = scmp.ne.s32.totalorder %s127, %s128
    %p139 = scmp.eq.s32.totalorder %s15, 0
    %p140 = por %p138, %p139
    %p141 = scmp.ne.s32.totalorder %s127, %s128
    %p142 = scmp.eq.s32.totalorder %s16, 1
    %p143 = por %p141, %p142
    %p145 = scmp.ne.s32.totalorder %s128, %s144
    %p146 = scmp.eq.s32.totalorder %s16, 0
    %p147 = por %p145, %p146
    %p148 = scmp.le.s32.totalorder 1, %s10
    %p149 = scmp.lt.s32.totalorder %s10, 3
    %p150 = pnand %p148, %p149
    %p151 = pneg %p150
    // Predicated region
    $region9: #{densenet_forward.38} parent=5 // pred_check
      _
    $region10: #{densenet_forward.38} parent=5 // pred_check_branch
      %153 = sbr.rel (%p150) target = $region12
    $region11: #{densenet_forward.38} parent=5 // pred_region
      %s154 = ssub.s32 %s10, 1
    $region12: #{densenet_forward.38} parent=5 // pred_fallthru
      _
    %p155 = scmp.lt.s32.totalorder %s10, 2
    // Predicated region
    $region13: #{densenet_forward.38} parent=5 // pred_check
      %p156 = pneg %p155
    $region14: #{densenet_forward.38} parent=5 // pred_check_branch
      %158 = sbr.rel (%p156) target = $region16
    $region15: #{densenet_forward.38} parent=5 // pred_region
      // Predicated region
      $region17: #{densenet_forward.38} parent=15 // pred_check
        %p159 = pneg %p30
      $region18: #{densenet_forward.38} parent=15 // pred_check_branch
        %161 = sbr.rel (%p159) target = $region20
      $region19: #{densenet_forward.38} parent=15 // pred_region
        %p162 = scmp.lt.s32.totalorder %s10, 1
        %s163 = scalar_select %p162, %s10, 1
        %s164 = smul.addr %s163, 2
        %s165 = smul.addr %s164, 2
        %s166 = scalar_lea.vmem %s0, %s165
      $region20: #{densenet_forward.38} parent=15 // pred_fallthru
        _
      // Predicated region
      $region21: #{densenet_forward.38} parent=15 // pred_check
        %p167 = pneg %p56
      $region22: #{densenet_forward.38} parent=15 // pred_check_branch
        %169 = sbr.rel (%p167) target = $region24
      $region23: #{densenet_forward.38} parent=15 // pred_region
        %p170 = scmp.lt.s32.totalorder %s10, 1
        %s171 = scalar_select %p170, %s10, 1
        %s172 = smul.addr %s171, 2
        %s173 = smul.addr %s172, 2
        %s174 = scalar_lea.vmem %s1, %s173
      $region24: #{densenet_forward.38} parent=15 // pred_fallthru
        _
      // Predicated region
      $region25: #{densenet_forward.38} parent=15 // pred_check
        %p175 = pneg %p82
      $region26: #{densenet_forward.38} parent=15 // pred_check_branch
        %177 = sbr.rel (%p175) target = $region28
      $region27: #{densenet_forward.38} parent=15 // pred_region
        %p178 = scmp.lt.s32.totalorder %s10, 1
        %s179 = scalar_select %p178, %s10, 1
        %s180 = smul.addr %s179, 2
        %s181 = smul.addr %s180, 2
        %s182 = scalar_lea.vmem %s2, %s181
      $region28: #{densenet_forward.38} parent=15 // pred_fallthru
        _
      // Predicated region
      $region29: #{densenet_forward.38} parent=15 // pred_check
        %p183 = pneg %p108
      $region30: #{densenet_forward.38} parent=15 // pred_check_branch
        %185 = sbr.rel (%p183) target = $region32
      $region31: #{densenet_forward.38} parent=15 // pred_region
        %p186 = scmp.lt.s32.totalorder %s10, 1
        %s187 = scalar_select %p186, %s10, 1
        %s188 = smul.addr %s187, 2
        %s189 = smul.addr %s188, 2
        %s190 = scalar_lea.vmem %s3, %s189
      $region32: #{densenet_forward.38} parent=15 // pred_fallthru
        _
    $region16: #{densenet_forward.38} parent=5 // pred_fallthru
      _
    %p191 = scmp.le.s32.totalorder 1, %s10
    %p192 = scmp.lt.s32.totalorder %s10, 3
    %p193 = pnand %p191, %p192
    %p194 = pneg %p193
    // Predicated region
    $region33: #{densenet_forward.38} parent=5 // pred_check
      _
    $region34: #{densenet_forward.38} parent=5 // pred_check_branch
      %196 = sbr.rel (%p193) target = $region36
    $region35: #{densenet_forward.38} parent=5 // pred_region
      %s197 = ssub.s32 %s10, 1
      %p198 = scmp.lt.s32.totalorder %s15, 1
      %s199 = scalar_select %p198, %s15, 1
      %s200 = smul.addr %s199, 2
      %s201 = smul.addr %s200, 2
      %s202 = scalar_lea.vmem %s0, %s201
      %p203 = pneg %p36
      %p204 = pneg %p33
      %p205 = scmp.lt.s32.totalorder %s15, 1
      %s206 = scalar_select %p205, %s15, 1
      %s207 = smul.addr %s206, 2
      %s208 = smul.addr %s207, 2
      %s209 = scalar_lea.vmem %s1, %s208
      %p210 = pneg %p62
      %p211 = pneg %p59
      %p212 = scmp.lt.s32.totalorder %s15, 1
      %s213 = scalar_select %p212, %s15, 1
      %s214 = smul.addr %s213, 2
      %s215 = smul.addr %s214, 2
      %s216 = scalar_lea.vmem %s2, %s215
      %p217 = pneg %p88
      %p218 = pneg %p85
      %p219 = scmp.lt.s32.totalorder %s15, 1
      %s220 = scalar_select %p219, %s15, 1
      %s221 = smul.addr %s220, 2
      %s222 = smul.addr %s221, 2
      %s223 = scalar_lea.vmem %s3, %s222
      %p224 = pneg %p114
      %p225 = pneg %p111
      %p226 = pneg %p140
      %p227 = pneg %p137
      %p228 = scmp.lt.s32.totalorder %s15, 1
      %s229 = scalar_select %p228, %s15, 1
      %s230 = smul.addr %s229, 2
      %s231 = smul.addr %s230, 2
      %s232 = scalar_lea.vmem %s4, %s231
      %p233 = scmp.lt.s32.totalorder %s15, 1
      %s234 = scalar_select %p233, %s15, 1
      %s235 = smul.addr %s234, 2
      %s236 = smul.addr %s235, 2
      %s237 = scalar_lea.vmem %s0, %s236
      %p238 = scmp.lt.s32.totalorder %s15, 1
      %s239 = scalar_select %p238, %s15, 1
      %s240 = smul.addr %s239, 2
      %s241 = smul.addr %s240, 2
      %s242 = scalar_lea.vmem %s1, %s241
      %p243 = scmp.lt.s32.totalorder %s15, 1
      %s244 = scalar_select %p243, %s15, 1
      %s245 = smul.addr %s244, 2
      %s246 = smul.addr %s245, 2
      %s247 = scalar_lea.vmem %s2, %s246
      %p248 = scmp.lt.s32.totalorder %s15, 1
      %s249 = scalar_select %p248, %s15, 1
      %s250 = smul.addr %s249, 2
      %s251 = smul.addr %s250, 2
      %s252 = scalar_lea.vmem %s3, %s251
      %p253 = scmp.lt.s32.totalorder %s15, 1
      %s254 = scalar_select %p253, %s15, 1
      %s255 = smul.addr %s254, 2
      %s256 = smul.addr %s255, 2
      %s257 = scalar_lea.vmem %s4, %s256
      %v258 = vld [vmem:[%s237] sm:$0x3]
      %v259 = vld [vmem:[%s237 + $0x2] sm:$0x3]
      %v260 = vld [vmem:[%s242] sm:$0x3]
      %v261 = vld [vmem:[%s242 + $0x2] sm:$0x3]
      %v262 = vadd.f32 %v258, %v260
      %v263 = vadd.f32 %v259, %v261
      %v264 = vld [vmem:[%s247] sm:$0x3]
      %v265 = vld [vmem:[%s247 + $0x2] sm:$0x3]
      %v266 = vadd.f32 %v262, %v264
      %v267 = vadd.f32 %v263, %v265
      %v268 = vld [vmem:[%s252] sm:$0x3]
      %v269 = vld [vmem:[%s252 + $0x2] sm:$0x3]
      %v270 = vadd.f32 %v266, %v268
      %v271 = vadd.f32 %v267, %v269
      %v272 = vmul.f32 %v270, 0.25
      %v273 = vmul.f32 %v271, 0.25
      %vm274 = vcmask 123904
      %275 = vst.msk [vmem:[%s257] sm:$0x3] %vm274, %v272
      %276 = vst.msk [vmem:[%s257 + $0x2] sm:$0x3] %vm274, %v273
      %p277 = scmp.lt.s32.totalorder %s15, 1
      %s278 = scalar_select %p277, %s15, 1
      %s279 = smul.addr %s278, 2
      %s280 = smul.addr %s279, 2
      %s281 = scalar_lea.vmem %s4, %s280
      // Predicated region
      $region37: #{densenet_forward.38} parent=35 // pred_check
        %p282 = pneg %p137
      $region38: #{densenet_forward.38} parent=35 // pred_check_branch
        %284 = sbr.rel (%p282) target = $region40
      $region39: #{densenet_forward.38} parent=35 // pred_region
        _
      $region40: #{densenet_forward.38} parent=35 // pred_fallthru
        _
    $region36: #{densenet_forward.38} parent=5 // pred_fallthru
      _
    %p285 = scmp.le.s32.totalorder 2, %s10
    // Predicated region
    $region41: #{densenet_forward.38} parent=5 // pred_check
      %p286 = pneg %p285
    $region42: #{densenet_forward.38} parent=5 // pred_check_branch
      %288 = sbr.rel (%p286) target = $region44
    $region43: #{densenet_forward.38} parent=5 // pred_region
      %s289 = ssub.s32 %s10, 2
      // Predicated region
      $region45: #{densenet_forward.38} parent=43 // pred_check
        %p290 = pneg %p143
      $region46: #{densenet_forward.38} parent=43 // pred_check_branch
        %292 = sbr.rel (%p290) target = $region48
      $region47: #{densenet_forward.38} parent=43 // pred_region
        %p293 = scmp.lt.s32.totalorder %s16, 1
        %s294 = scalar_select %p293, %s16, 1
        %s295 = smul.addr %s294, 2
        %s296 = smul.addr %s295, 2
        %s297 = scalar_lea.vmem %s4, %s296
      $region48: #{densenet_forward.38} parent=43 // pred_fallthru
        _
    $region44: #{densenet_forward.38} parent=5 // pred_fallthru
      _
  $region6: #{densenet_forward.38} parent=0 // loop_footer
    %s14 = sadd.s32 1, %s10
  $region7: #{densenet_forward.38} parent=0 // loop_footer_branch
    %9 = sbr.rel target = $region3
  $region8: #{densenet_forward.38} parent=0 // loop_exit
    _

// kernel: densenet_forward.39
$region0: #{densenet_forward.39}
  #allocation0 [shape = 'u32[]', space=smem, size = 0x4, offset = 0x4, fixed_abs, tag = 'smem constant byte address 0x4 - core index']
  #allocation1 [shape = 'u32[144,128]{1,0:T(1,128)}', space=vmem, size = 0x12000, scoped, tag = 'internal scratch']
  %s0 = inlined_call_operand.vmem [shape: f32[8,16], index: 0, kind: input, shape index: {}]
  %s1 = inlined_call_operand.vmem [shape: bf16[16,16], index: 1, kind: input, shape index: {}]
  %s2 = inlined_call_operand.vmem [shape: f32[1,16], index: 2, kind: input, shape index: {}]
  %s3 = inlined_call_operand.vmem [shape: f32[1,16], index: 3, kind: input, shape index: {}]
  %s4 = inlined_call_operand.vmem [shape: f32[1,16], index: 4, kind: input, shape index: {}]
  %s5 = inlined_call_operand.vmem [shape: f32[1,16], index: 5, kind: input, shape index: {}]
  %s6 = inlined_call_operand.vmem [shape: f32[8,16], index: 6, kind: output, shape index: {}]
  %s7 = sld [smem:[#allocation0]]
  $region34: #{densenet_forward.39} parent=0
    _
  %s9 = ssub.s32 1, %s7
  %s10 = scalar_select 0, %s9, %s7
  // Predicated region
  $region2: #{densenet_forward.39} parent=0 // pred_check
    _
  $region3: #{densenet_forward.39} parent=0 // pred_check_branch
    %12 = sbr.rel (0) target = $region5
  $region4: #{densenet_forward.39} parent=0 // pred_region
    _
  $region5: #{densenet_forward.39} parent=0 // pred_fallthru
    _
  // Predicated region
  $region6: #{densenet_forward.39} parent=0 // pred_check
    _
  $region7: #{densenet_forward.39} parent=0 // pred_check_branch
    %14 = sbr.rel (0) target = $region9
  $region8: #{densenet_forward.39} parent=0 // pred_region
    _
  $region9: #{densenet_forward.39} parent=0 // pred_fallthru
    _
  // Predicated region
  $region10: #{densenet_forward.39} parent=0 // pred_check
    _
  $region11: #{densenet_forward.39} parent=0 // pred_check_branch
    %16 = sbr.rel (0) target = $region13
  $region12: #{densenet_forward.39} parent=0 // pred_region
    _
  $region13: #{densenet_forward.39} parent=0 // pred_fallthru
    _
  // Predicated region
  $region14: #{densenet_forward.39} parent=0 // pred_check
    _
  $region15: #{densenet_forward.39} parent=0 // pred_check_branch
    %18 = sbr.rel (0) target = $region17
  $region16: #{densenet_forward.39} parent=0 // pred_region
    _
  $region17: #{densenet_forward.39} parent=0 // pred_fallthru
    _
  // Predicated region
  $region18: #{densenet_forward.39} parent=0 // pred_check
    _
  $region19: #{densenet_forward.39} parent=0 // pred_check_branch
    %20 = sbr.rel (0) target = $region21
  $region20: #{densenet_forward.39} parent=0 // pred_region
    _
  $region21: #{densenet_forward.39} parent=0 // pred_fallthru
    _
  // Predicated region
  $region22: #{densenet_forward.39} parent=0 // pred_check
    _
  $region23: #{densenet_forward.39} parent=0 // pred_check_branch
    %22 = sbr.rel (0) target = $region25
  $region24: #{densenet_forward.39} parent=0 // pred_region
    _
  $region25: #{densenet_forward.39} parent=0 // pred_fallthru
    _
  %v24 = vld [vmem:[%s0] sm:$0xff]
  %v25 = vld [vmem:[%s2] sm:$0x1]
  %v27 = vlaneseq
  %v28 = vshrl.u32 %v27, 7
  %v29 = vsub.s32 0, %v28
  %v30 = vrot.slane %v25, %v29
  %v32 = vmul.f32 %v24, %v30
  %v33 = vld [vmem:[%s3] sm:$0x1]
  %v35 = vlaneseq
  %v36 = vshrl.u32 %v35, 7
  %v37 = vsub.s32 0, %v36
  %v38 = vrot.slane %v33, %v37
  %v40 = vadd.f32 %v32, %v38
  %v41 = vmax.f32 %v40, 0.0
  %v42 = vpack.c.bf16 %v41, %v41
  %v43 = vld [vmem:[%s1] sm:$0xf]
  %v44 = vld [vmem:[%s1 + $0x4] sm:$0xf]
  %v47 = vunpack.c.l.b16 %v43
  %v48 = vunpack.c.l.b16 %v44
  %v49 = vpack.c.b16 %v48, %v47
  %vm51 = vcmask 130048
  %v53 = vsel %vm51, %v42, 0
  %55 = vmatprep.subr.bf16.mxu0 0
  %56 = vmatpush1.bf16.msra.mxu0 %v49
  %57 = vmatprep.subr.bf16.mxu0 0
  %58 = vmatpush1.bf16.msra.mxu0 0
  %59 = vmatprep.subr.bf16.mxu0 0
  %60 = vmatpush1.bf16.msra.mxu0 0
  %61 = vmatprep.subr.bf16.mxu0 0
  %62 = vmatpush1.bf16.msra.mxu0 0
  %63 = vmatprep.subr.bf16.mxu0 0
  %64 = vmatpush1.bf16.msra.mxu0 0
  %65 = vmatprep.subr.bf16.mxu0 0
  %66 = vmatpush1.bf16.msra.mxu0 0
  %67 = vmatprep.subr.bf16.mxu0 0
  %68 = vmatpush1.bf16.msra.mxu0 0
  %69 = vmatprep.subr.bf16.mxu0 0
  %70 = vmatpush1.bf16.msra.mxu0 0
  %71 = vmatprep.subr.bf16.mxu0 0
  %72 = vmatpush1.bf16.msra.mxu0 0
  %73 = vmatprep.subr.bf16.mxu0 0
  %74 = vmatpush1.bf16.msra.mxu0 0
  %75 = vmatprep.subr.bf16.mxu0 0
  %76 = vmatpush1.bf16.msra.mxu0 0
  %77 = vmatprep.subr.bf16.mxu0 0
  %78 = vmatpush1.bf16.msra.mxu0 0
  %79 = vmatprep.subr.bf16.mxu0 0
  %80 = vmatpush1.bf16.msra.mxu0 0
  %81 = vmatprep.subr.bf16.mxu0 0
  %82 = vmatpush1.bf16.msra.mxu0 0
  %83 = vmatprep.subr.bf16.mxu0 0
  %84 = vmatpush1.bf16.msra.mxu0 0
  %85 = vmatprep.subr.bf16.mxu0 0
  %86 = vmatpush1.bf16.msra.mxu0 0
  %87 = vmatprep.mubr.bf16.mxu0 0
  %88 = vmatmul.mubr.bf16.gmra.mrb[0].mxu0 %v53
  %v89 = vpop.f32.mrb[0].mxu0
  %v90 = vadd.f32 0.0, %v89
  %v91 = vpop.f32.mrb[0].mxu0
  %v92 = vpop.f32.mrb[0].mxu0
  %v93 = vpop.f32.mrb[0].mxu0
  %94 = vdwg.mxu0
  %v95 = vld [vmem:[%s4] sm:$0x1]
  %v97 = vlaneseq
  %v98 = vshrl.u32 %v97, 7
  %v99 = vsub.s32 0, %v98
  %v100 = vrot.slane %v95, %v99
  %v102 = vmul.f32 %v90, %v100
  %v103 = vld [vmem:[%s5] sm:$0x1]
  %v105 = vlaneseq
  %v106 = vshrl.u32 %v105, 7
  %v107 = vsub.s32 0, %v106
  %v108 = vrot.slane %v103, %v107
  %v110 = vadd.f32 %v102, %v108
  %v111 = vmax.f32 %v110, 0.0
  %112 = vst.msk [vmem:[%s6] sm:$0xff] %vm51, %v111
  // Predicated region
  $region26: #{densenet_forward.39} parent=0 // pred_check
    _
  $region27: #{densenet_forward.39} parent=0 // pred_check_branch
    %114 = sbr.rel (0) target = $region29
  $region28: #{densenet_forward.39} parent=0 // pred_region
    _
  $region29: #{densenet_forward.39} parent=0 // pred_fallthru
    _
  // Predicated region
  $region30: #{densenet_forward.39} parent=0 // pred_check
    _
  $region31: #{densenet_forward.39} parent=0 // pred_check_branch
    %116 = sbr.rel (0) target = $region33
  $region32: #{densenet_forward.39} parent=0 // pred_region
    _
  $region33: #{densenet_forward.39} parent=0 // pred_fallthru
    _

// kernel: densenet_forward.40
$region0: #{densenet_forward.40}
  #allocation0 [shape = 'u32[]', space=smem, size = 0x4, offset = 0x4, fixed_abs, tag = 'smem constant byte address 0x4 - core index']
  #allocation1 [shape = 'u32[144,128]{1,0:T(1,128)}', space=vmem, size = 0x12000, scoped, tag = 'internal scratch']
  %s0 = inlined_call_operand.vmem [shape: f32[8,144], index: 0, kind: input, shape index: {}]
  %s1 = inlined_call_operand.vmem [shape: bf16[144,8], index: 1, kind: input, shape index: {}]
  %s2 = inlined_call_operand.vmem [shape: f32[8,8], index: 2, kind: output, shape index: {}]
  %s3 = sld [smem:[#allocation0]]
  $region18: #{densenet_forward.40} parent=0
    _
  %s5 = ssub.s32 1, %s3
  %s6 = scalar_select 0, %s5, %s3
  // Predicated region
  $region2: #{densenet_forward.40} parent=0 // pred_check
    _
  $region3: #{densenet_forward.40} parent=0 // pred_check_branch
    %8 = sbr.rel (0) target = $region5
  $region4: #{densenet_forward.40} parent=0 // pred_region
    _
  $region5: #{densenet_forward.40} parent=0 // pred_fallthru
    _
  // Predicated region
  $region6: #{densenet_forward.40} parent=0 // pred_check
    _
  $region7: #{densenet_forward.40} parent=0 // pred_check_branch
    %10 = sbr.rel (0) target = $region9
  $region8: #{densenet_forward.40} parent=0 // pred_region
    _
  $region9: #{densenet_forward.40} parent=0 // pred_fallthru
    _
  %v12 = vld [vmem:[%s0] sm:$0xff]
  %v13 = vld [vmem:[%s0 + $0x8] sm:$0xff]
  %v14 = vpack.c.bf16 %v12, %v12
  %v15 = vpack.c.bf16 %v13, %v13
  %v16 = vld [vmem:[%s1] sm:$0xf]
  %v17 = vld [vmem:[%s1 + $0x4] sm:$0xf]
  %v18 = vld [vmem:[%s1 + $0x8] sm:$0xf]
  %v19 = vld [vmem:[%s1 + $0xc] sm:$0xf]
  %v20 = vld [vmem:[%s1 + $0x10] sm:$0xf]
  %v21 = vld [vmem:[%s1 + $0x14] sm:$0xf]
  %v22 = vld [vmem:[%s1 + $0x18] sm:$0xf]
  %v23 = vld [vmem:[%s1 + $0x1c] sm:$0xf]
  %v24 = vld [vmem:[%s1 + $0x20] sm:$0xf]
  %v25 = vld [vmem:[%s1 + $0x24] sm:$0xf]
  %v26 = vld [vmem:[%s1 + $0x28] sm:$0xf]
  %v27 = vld [vmem:[%s1 + $0x2c] sm:$0xf]
  %v28 = vld [vmem:[%s1 + $0x30] sm:$0xf]
  %v29 = vld [vmem:[%s1 + $0x34] sm:$0xf]
  %v30 = vld [vmem:[%s1 + $0x38] sm:$0xf]
  %v31 = vld [vmem:[%s1 + $0x3c] sm:$0xf]
  %v32 = vld [vmem:[%s1 + $0x40] sm:$0xf]
  %v33 = vld [vmem:[%s1 + $0x44] sm:$0xf]
  %v52 = vunpack.c.l.b16 %v16
  %v53 = vunpack.c.l.b16 %v17
  %v54 = vunpack.c.l.b16 %v18
  %v55 = vunpack.c.l.b16 %v19
  %v56 = vunpack.c.l.b16 %v20
  %v57 = vunpack.c.l.b16 %v21
  %v58 = vunpack.c.l.b16 %v22
  %v59 = vunpack.c.l.b16 %v23
  %v60 = vunpack.c.l.b16 %v24
  %v61 = vunpack.c.l.b16 %v25
  %v62 = vunpack.c.l.b16 %v26
  %v63 = vunpack.c.l.b16 %v27
  %v64 = vunpack.c.l.b16 %v28
  %v65 = vunpack.c.l.b16 %v29
  %v66 = vunpack.c.l.b16 %v30
  %v67 = vunpack.c.l.b16 %v31
  %v68 = vunpack.c.l.b16 %v32
  %v69 = vunpack.c.l.b16 %v33
  %v70 = vpack.c.b16 %v53, %v52
  %v71 = vpack.c.b16 %v55, %v54
  %v72 = vpack.c.b16 %v57, %v56
  %v73 = vpack.c.b16 %v59, %v58
  %v74 = vpack.c.b16 %v61, %v60
  %v75 = vpack.c.b16 %v63, %v62
  %v76 = vpack.c.b16 %v65, %v64
  %v77 = vpack.c.b16 %v67, %v66
  %v78 = vpack.c.b16 %v69, %v68
  %vm88 = vcmask 130048
  %v90 = vsel %vm88, %v15, 0
  %92 = vmatprep.subr.bf16.mxu0 0
  %93 = vmatpush1.bf16.msra.mxu0 %v70
  %94 = vmatprep.subr.bf16.mxu0 0
  %95 = vmatpush1.bf16.msra.mxu0 %v71
  %96 = vmatprep.subr.bf16.mxu0 0
  %97 = vmatpush1.bf16.msra.mxu0 %v72
  %98 = vmatprep.subr.bf16.mxu0 0
  %99 = vmatpush1.bf16.msra.mxu0 %v73
  %100 = vmatprep.subr.bf16.mxu0 0
  %101 = vmatpush1.bf16.msra.mxu0 %v74
  %102 = vmatprep.subr.bf16.mxu0 0
  %103 = vmatpush1.bf16.msra.mxu0 %v75
  %104 = vmatprep.subr.bf16.mxu0 0
  %105 = vmatpush1.bf16.msra.mxu0 %v76
  %106 = vmatprep.subr.bf16.mxu0 0
  %107 = vmatpush1.bf16.msra.mxu0 %v77
  %108 = vmatprep.subr.bf16.mxu0 0
  %109 = vmatpush1.bf16.msra.mxu0 %v78
  %110 = vmatprep.subr.bf16.mxu0 0
  %111 = vmatpush1.bf16.msra.mxu0 0
  %112 = vmatprep.subr.bf16.mxu0 0
  %113 = vmatpush1.bf16.msra.mxu0 0
  %114 = vmatprep.subr.bf16.mxu0 0
  %115 = vmatpush1.bf16.msra.mxu0 0
  %116 = vmatprep.subr.bf16.mxu0 0
  %117 = vmatpush1.bf16.msra.mxu0 0
  %118 = vmatprep.subr.bf16.mxu0 0
  %119 = vmatpush1.bf16.msra.mxu0 0
  %120 = vmatprep.subr.bf16.mxu0 0
  %121 = vmatpush1.bf16.msra.mxu0 0
  %122 = vmatprep.subr.bf16.mxu0 0
  %123 = vmatpush1.bf16.msra.mxu0 0
  %124 = vmatprep.mubr.bf16.mxu0 %v90
  %125 = vmatmul.mubr.bf16.gmra.mrb[0].mxu0 %v14
  %v126 = vpop.f32.mrb[0].mxu0
  %v127 = vadd.f32 0.0, %v126
  %v128 = vpop.f32.mrb[0].mxu0
  %v129 = vpop.f32.mrb[0].mxu0
  %v130 = vpop.f32.mrb[0].mxu0
  %131 = vdwg.mxu0
  %vm132 = vcmask 64512
  %133 = vst.msk [vmem:[%s2] sm:$0xff] %vm132, %v127
  // Predicated region
  $region10: #{densenet_forward.40} parent=0 // pred_check
    _
  $region11: #{densenet_forward.40} parent=0 // pred_check_branch
    %135 = sbr.rel (0) target = $region13
  $region12: #{densenet_forward.40} parent=0 // pred_region
    _
  $region13: #{densenet_forward.40} parent=0 // pred_fallthru
    _
  // Predicated region
  $region14: #{densenet_forward.40} parent=0 // pred_check
    _
  $region15: #{densenet_forward.40} parent=0 // pred_check_branch
    %137 = sbr.rel (0) target = $region17
  $region16: #{densenet_forward.40} parent=0 // pred_region
    _
  $region17: #{densenet_forward.40} parent=0 // pred_fallthru
    _

// kernel: densenet_forward.41
$region0: #{densenet_forward.41}
  #allocation0 [shape = 'u32[]', space=smem, size = 0x4, offset = 0x4, fixed_abs, tag = 'smem constant byte address 0x4 - core index']
  #allocation1 [shape = 'u32[144,128]{1,0:T(1,128)}', space=vmem, size = 0x12000, scoped, tag = 'internal scratch']
  %s0 = inlined_call_operand.vmem [shape: f32[8,16], index: 0, kind: input, shape index: {}]
  %s1 = inlined_call_operand.vmem [shape: f32[8,8], index: 1, kind: input, shape index: {}]
  %s2 = inlined_call_operand.vmem [shape: bf16[24,16], index: 2, kind: input, shape index: {}]
  %s3 = inlined_call_operand.vmem [shape: f32[1,24], index: 3, kind: input, shape index: {}]
  %s4 = inlined_call_operand.vmem [shape: f32[1,24], index: 4, kind: input, shape index: {}]
  %s5 = inlined_call_operand.vmem [shape: f32[1,16], index: 5, kind: input, shape index: {}]
  %s6 = inlined_call_operand.vmem [shape: f32[1,16], index: 6, kind: input, shape index: {}]
  %s7 = inlined_call_operand.vmem [shape: f32[8,16], index: 7, kind: output, shape index: {}]
  %s8 = sld [smem:[#allocation0]]
  $region38: #{densenet_forward.41} parent=0
    _
  %s10 = ssub.s32 1, %s8
  %s11 = scalar_select 0, %s10, %s8
  // Predicated region
  $region2: #{densenet_forward.41} parent=0 // pred_check
    _
  $region3: #{densenet_forward.41} parent=0 // pred_check_branch
    %13 = sbr.rel (0) target = $region5
  $region4: #{densenet_forward.41} parent=0 // pred_region
    _
  $region5: #{densenet_forward.41} parent=0 // pred_fallthru
    _
  // Predicated region
  $region6: #{densenet_forward.41} parent=0 // pred_check
    _
  $region7: #{densenet_forward.41} parent=0 // pred_check_branch
    %15 = sbr.rel (0) target = $region9
  $region8: #{densenet_forward.41} parent=0 // pred_region
    _
  $region9: #{densenet_forward.41} parent=0 // pred_fallthru
    _
  // Predicated region
  $region10: #{densenet_forward.41} parent=0 // pred_check
    _
  $region11: #{densenet_forward.41} parent=0 // pred_check_branch
    %17 = sbr.rel (0) target = $region13
  $region12: #{densenet_forward.41} parent=0 // pred_region
    _
  $region13: #{densenet_forward.41} parent=0 // pred_fallthru
    _
  // Predicated region
  $region14: #{densenet_forward.41} parent=0 // pred_check
    _
  $region15: #{densenet_forward.41} parent=0 // pred_check_branch
    %19 = sbr.rel (0) target = $region17
  $region16: #{densenet_forward.41} parent=0 // pred_region
    _
  $region17: #{densenet_forward.41} parent=0 // pred_fallthru
    _
  // Predicated region
  $region18: #{densenet_forward.41} parent=0 // pred_check
    _
  $region19: #{densenet_forward.41} parent=0 // pred_check_branch
    %21 = sbr.rel (0) target = $region21
  $region20: #{densenet_forward.41} parent=0 // pred_region
    _
  $region21: #{densenet_forward.41} parent=0 // pred_fallthru
    _
  // Predicated region
  $region22: #{densenet_forward.41} parent=0 // pred_check
    _
  $region23: #{densenet_forward.41} parent=0 // pred_check_branch
    %23 = sbr.rel (0) target = $region25
  $region24: #{densenet_forward.41} parent=0 // pred_region
    _
  $region25: #{densenet_forward.41} parent=0 // pred_fallthru
    _
  // Predicated region
  $region26: #{densenet_forward.41} parent=0 // pred_check
    _
  $region27: #{densenet_forward.41} parent=0 // pred_check_branch
    %25 = sbr.rel (0) target = $region29
  $region28: #{densenet_forward.41} parent=0 // pred_region
    _
  $region29: #{densenet_forward.41} parent=0 // pred_fallthru
    _
  %v27 = vld [vmem:[%s0] sm:$0xff]
  %v28 = vld [vmem:[%s3] sm:$0x1]
  %v30 = vlaneseq
  %v31 = vshrl.u32 %v30, 7
  %v32 = vsub.s32 0, %v31
  %v33 = vrot.slane %v28, %v32
  %v35 = vmul.f32 %v27, %v33
  %v36 = vld [vmem:[%s4] sm:$0x1]
  %v38 = vlaneseq
  %v39 = vshrl.u32 %v38, 7
  %v40 = vsub.s32 0, %v39
  %v41 = vrot.slane %v36, %v40
  %v43 = vadd.f32 %v35, %v41
  %v44 = vmax.f32 %v43, 0.0
  %v45 = vpack.c.bf16 %v44, %v44
  %v46 = vld [vmem:[%s2] sm:$0xf]
  %v47 = vld [vmem:[%s2 + $0x4] sm:$0xf]
  %v48 = vld [vmem:[%s1] sm:$0xff]
  %49 = vrot.lane.b32.xlu0 %v33, 112
  %v50 = vpop.permute.xlu0 %49
  %v52 = vmul.f32 %v48, %v50
  %53 = vrot.lane.b32.xlu0 %v41, 112
  %v54 = vpop.permute.xlu0 %53
  %v56 = vadd.f32 %v52, %v54
  %v57 = vmax.f32 %v56, 0.0
  %v58 = vpack.c.bf16 %v57, %v57
  %v59 = vld [vmem:[%s2 + $0x8] sm:$0xf]
  %vm60 = vcmask 64512
  %v62 = vsel %vm60, %v58, 0
  %vm64 = vcmask 1043456
  %v66 = vsel %vm64, %v59, 0
  %68 = vmatprep.subr.bf16.mxu0 0
  %69 = vmatpush1.bf16.msra.mxu0 %v66
  %70 = vmatprep.subr.bf16.mxu0 0
  %71 = vmatpush1.bf16.msra.mxu0 0
  %72 = vmatprep.subr.bf16.mxu0 0
  %73 = vmatpush1.bf16.msra.mxu0 0
  %74 = vmatprep.subr.bf16.mxu0 0
  %75 = vmatpush1.bf16.msra.mxu0 0
  %76 = vmatprep.subr.bf16.mxu0 0
  %77 = vmatpush1.bf16.msra.mxu0 0
  %78 = vmatprep.subr.bf16.mxu0 0
  %79 = vmatpush1.bf16.msra.mxu0 0
  %80 = vmatprep.subr.bf16.mxu0 0
  %81 = vmatpush1.bf16.msra.mxu0 0
  %82 = vmatprep.subr.bf16.mxu0 0
  %83 = vmatpush1.bf16.msra.mxu0 0
  %84 = vmatprep.subr.bf16.mxu0 0
  %85 = vmatpush1.bf16.msra.mxu0 0
  %86 = vmatprep.subr.bf16.mxu0 0
  %87 = vmatpush1.bf16.msra.mxu0 0
  %88 = vmatprep.subr.bf16.mxu0 0
  %89 = vmatpush1.bf16.msra.mxu0 0
  %90 = vmatprep.subr.bf16.mxu0 0
  %91 = vmatpush1.bf16.msra.mxu0 0
  %92 = vmatprep.subr.bf16.mxu0 0
  %93 = vmatpush1.bf16.msra.mxu0 0
  %94 = vmatprep.subr.bf16.mxu0 0
  %95 = vmatpush1.bf16.msra.mxu0 0
  %96 = vmatprep.subr.bf16.mxu0 0
  %97 = vmatpush1.bf16.msra.mxu0 0
  %98 = vmatprep.subr.bf16.mxu0 0
  %99 = vmatpush1.bf16.msra.mxu0 0
  %100 = vmatprep.mubr.bf16.mxu0 0
  %101 = vmatmul.mubr.bf16.gmra.mrb[0].mxu0 %v62
  %v102 = vpop.f32.mrb[0].mxu0
  %v103 = vadd.f32 0.0, %v102
  %v104 = vpop.f32.mrb[0].mxu0
  %v105 = vpop.f32.mrb[0].mxu0
  %v106 = vpop.f32.mrb[0].mxu0
  %107 = vdwg.mxu0
  %v110 = vunpack.c.l.b16 %v46
  %v111 = vunpack.c.l.b16 %v47
  %v112 = vpack.c.b16 %v111, %v110
  %vm114 = vcmask 130048
  %v116 = vsel %vm114, %v45, 0
  %118 = vmatprep.subr.bf16.mxu0 0
  %119 = vmatpush1.bf16.msra.mxu0 %v112
  %120 = vmatprep.subr.bf16.mxu0 0
  %121 = vmatpush1.bf16.msra.mxu0 0
  %122 = vmatprep.subr.bf16.mxu0 0
  %123 = vmatpush1.bf16.msra.mxu0 0
  %124 = vmatprep.subr.bf16.mxu0 0
  %125 = vmatpush1.bf16.msra.mxu0 0
  %126 = vmatprep.subr.bf16.mxu0 0
  %127 = vmatpush1.bf16.msra.mxu0 0
  %128 = vmatprep.subr.bf16.mxu0 0
  %129 = vmatpush1.bf16.msra.mxu0 0
  %130 = vmatprep.subr.bf16.mxu0 0
  %131 = vmatpush1.bf16.msra.mxu0 0
  %132 = vmatprep.subr.bf16.mxu0 0
  %133 = vmatpush1.bf16.msra.mxu0 0
  %134 = vmatprep.subr.bf16.mxu0 0
  %135 = vmatpush1.bf16.msra.mxu0 0
  %136 = vmatprep.subr.bf16.mxu0 0
  %137 = vmatpush1.bf16.msra.mxu0 0
  %138 = vmatprep.subr.bf16.mxu0 0
  %139 = vmatpush1.bf16.msra.mxu0 0
  %140 = vmatprep.subr.bf16.mxu0 0
  %141 = vmatpush1.bf16.msra.mxu0 0
  %142 = vmatprep.subr.bf16.mxu0 0
  %143 = vmatpush1.bf16.msra.mxu0 0
  %144 = vmatprep.subr.bf16.mxu0 0
  %145 = vmatpush1.bf16.msra.mxu0 0
  %146 = vmatprep.subr.bf16.mxu0 0
  %147 = vmatpush1.bf16.msra.mxu0 0
  %148 = vmatprep.subr.bf16.mxu0 0
  %149 = vmatpush1.bf16.msra.mxu0 0
  %150 = vmatprep.mubr.bf16.mxu0 0
  %151 = vmatmul.mubr.bf16.gmra.mrb[0].mxu0 %v116
  %v152 = vpop.f32.mrb[0].mxu0
  %v153 = vadd.f32 %v103, %v152
  %v154 = vpop.f32.mrb[0].mxu0
  %v155 = vpop.f32.mrb[0].mxu0
  %v156 = vpop.f32.mrb[0].mxu0
  %157 = vdwg.mxu0
  %v158 = vld [vmem:[%s5] sm:$0x1]
  %v160 = vlaneseq
  %v161 = vshrl.u32 %v160, 7
  %v162 = vsub.s32 0, %v161
  %v163 = vrot.slane %v158, %v162
  %v165 = vmul.f32 %v153, %v163
  %v166 = vld [vmem:[%s6] sm:$0x1]
  %v168 = vlaneseq
  %v169 = vshrl.u32 %v168, 7
  %v170 = vsub.s32 0, %v169
  %v171 = vrot.slane %v166, %v170
  %v173 = vadd.f32 %v165, %v171
  %v174 = vmax.f32 %v173, 0.0
  %175 = vst.msk [vmem:[%s7] sm:$0xff] %vm114, %v174
  // Predicated region
  $region30: #{densenet_forward.41} parent=0 // pred_check
    _
  $region31: #{densenet_forward.41} parent=0 // pred_check_branch
    %177 = sbr.rel (0) target = $region33
  $region32: #{densenet_forward.41} parent=0 // pred_region
    _
  $region33: #{densenet_forward.41} parent=0 // pred_fallthru
    _
  // Predicated region
  $region34: #{densenet_forward.41} parent=0 // pred_check
    _
  $region35: #{densenet_forward.41} parent=0 // pred_check_branch
    %179 = sbr.rel (0) target = $region37
  $region36: #{densenet_forward.41} parent=0 // pred_region
    _
  $region37: #{densenet_forward.41} parent=0 // pred_fallthru
    _

// kernel: densenet_forward.43
$region0: #{densenet_forward.43}
  #allocation0 [shape = 'u32[]', space=smem, size = 0x4, offset = 0x4, fixed_abs, tag = 'smem constant byte address 0x4 - core index']
  #allocation1 [shape = 'u32[144,128]{1,0:T(1,128)}', space=vmem, size = 0x12000, scoped, tag = 'internal scratch']
  %s0 = inlined_call_operand.vmem [shape: f32[8,16], index: 0, kind: input, shape index: {}]
  %s1 = inlined_call_operand.vmem [shape: f32[8,8], index: 1, kind: input, shape index: {}]
  %s2 = inlined_call_operand.vmem [shape: f32[8,8], index: 2, kind: input, shape index: {}]
  %s3 = inlined_call_operand.vmem [shape: bf16[32,16], index: 3, kind: input, shape index: {}]
  %s4 = inlined_call_operand.vmem [shape: f32[1,32], index: 4, kind: input, shape index: {}]
  %s5 = inlined_call_operand.vmem [shape: f32[1,32], index: 5, kind: input, shape index: {}]
  %s6 = inlined_call_operand.vmem [shape: f32[8,16], index: 6, kind: output, shape index: {}]
  %s7 = sld [smem:[#allocation0]]
  $region34: #{densenet_forward.43} parent=0
    _
  %s9 = ssub.s32 1, %s7
  %s10 = scalar_select 0, %s9, %s7
  // Predicated region
  $region2: #{densenet_forward.43} parent=0 // pred_check
    _
  $region3: #{densenet_forward.43} parent=0 // pred_check_branch
    %12 = sbr.rel (0) target = $region5
  $region4: #{densenet_forward.43} parent=0 // pred_region
    _
  $region5: #{densenet_forward.43} parent=0 // pred_fallthru
    _
  // Predicated region
  $region6: #{densenet_forward.43} parent=0 // pred_check
    _
  $region7: #{densenet_forward.43} parent=0 // pred_check_branch
    %14 = sbr.rel (0) target = $region9
  $region8: #{densenet_forward.43} parent=0 // pred_region
    _
  $region9: #{densenet_forward.43} parent=0 // pred_fallthru
    _
  // Predicated region
  $region10: #{densenet_forward.43} parent=0 // pred_check
    _
  $region11: #{densenet_forward.43} parent=0 // pred_check_branch
    %16 = sbr.rel (0) target = $region13
  $region12: #{densenet_forward.43} parent=0 // pred_region
    _
  $region13: #{densenet_forward.43} parent=0 // pred_fallthru
    _
  // Predicated region
  $region14: #{densenet_forward.43} parent=0 // pred_check
    _
  $region15: #{densenet_forward.43} parent=0 // pred_check_branch
    %18 = sbr.rel (0) target = $region17
  $region16: #{densenet_forward.43} parent=0 // pred_region
    _
  $region17: #{densenet_forward.43} parent=0 // pred_fallthru
    _
  // Predicated region
  $region18: #{densenet_forward.43} parent=0 // pred_check
    _
  $region19: #{densenet_forward.43} parent=0 // pred_check_branch
    %20 = sbr.rel (0) target = $region21
  $region20: #{densenet_forward.43} parent=0 // pred_region
    _
  $region21: #{densenet_forward.43} parent=0 // pred_fallthru
    _
  // Predicated region
  $region22: #{densenet_forward.43} parent=0 // pred_check
    _
  $region23: #{densenet_forward.43} parent=0 // pred_check_branch
    %22 = sbr.rel (0) target = $region25
  $region24: #{densenet_forward.43} parent=0 // pred_region
    _
  $region25: #{densenet_forward.43} parent=0 // pred_fallthru
    _
  %v24 = vld [vmem:[%s0] sm:$0xff]
  %v25 = vld [vmem:[%s4] sm:$0x1]
  %v27 = vlaneseq
  %v28 = vshrl.u32 %v27, 7
  %v29 = vsub.s32 0, %v28
  %v30 = vrot.slane %v25, %v29
  %v32 = vmul.f32 %v24, %v30
  %v33 = vld [vmem:[%s5] sm:$0x1]
  %v35 = vlaneseq
  %v36 = vshrl.u32 %v35, 7
  %v37 = vsub.s32 0, %v36
  %v38 = vrot.slane %v33, %v37
  %v40 = vadd.f32 %v32, %v38
  %v41 = vmax.f32 %v40, 0.0
  %v42 = vpack.c.bf16 %v41, %v41
  %v43 = vld [vmem:[%s3] sm:$0xf]
  %v44 = vld [vmem:[%s3 + $0x4] sm:$0xf]
  %v45 = vld [vmem:[%s1] sm:$0xff]
  %46 = vrot.lane.b32.xlu0 %v30, 112
  %v47 = vpop.permute.xlu0 %46
  %v49 = vmul.f32 %v45, %v47
  %50 = vrot.lane.b32.xlu0 %v38, 112
  %v51 = vpop.permute.xlu0 %50
  %v53 = vadd.f32 %v49, %v51
  %v54 = vmax.f32 %v53, 0.0
  %v55 = vpack.c.bf16 %v54, %v54
  %v56 = vld [vmem:[%s3 + $0x8] sm:$0xf]
  %vm57 = vcmask 64512
  %v59 = vsel %vm57, %v55, 0
  %vm61 = vcmask 1043456
  %v63 = vsel %vm61, %v56, 0
  %65 = vmatprep.subr.bf16.mxu0 0
  %66 = vmatpush1.bf16.msra.mxu0 %v63
  %67 = vmatprep.subr.bf16.mxu0 0
  %68 = vmatpush1.bf16.msra.mxu0 0
  %69 = vmatprep.subr.bf16.mxu0 0
  %70 = vmatpush1.bf16.msra.mxu0 0
  %71 = vmatprep.subr.bf16.mxu0 0
  %72 = vmatpush1.bf16.msra.mxu0 0
  %73 = vmatprep.subr.bf16.mxu0 0
  %74 = vmatpush1.bf16.msra.mxu0 0
  %75 = vmatprep.subr.bf16.mxu0 0
  %76 = vmatpush1.bf16.msra.mxu0 0
  %77 = vmatprep.subr.bf16.mxu0 0
  %78 = vmatpush1.bf16.msra.mxu0 0
  %79 = vmatprep.subr.bf16.mxu0 0
  %80 = vmatpush1.bf16.msra.mxu0 0
  %81 = vmatprep.subr.bf16.mxu0 0
  %82 = vmatpush1.bf16.msra.mxu0 0
  %83 = vmatprep.subr.bf16.mxu0 0
  %84 = vmatpush1.bf16.msra.mxu0 0
  %85 = vmatprep.subr.bf16.mxu0 0
  %86 = vmatpush1.bf16.msra.mxu0 0
  %87 = vmatprep.subr.bf16.mxu0 0
  %88 = vmatpush1.bf16.msra.mxu0 0
  %89 = vmatprep.subr.bf16.mxu0 0
  %90 = vmatpush1.bf16.msra.mxu0 0
  %91 = vmatprep.subr.bf16.mxu0 0
  %92 = vmatpush1.bf16.msra.mxu0 0
  %93 = vmatprep.subr.bf16.mxu0 0
  %94 = vmatpush1.bf16.msra.mxu0 0
  %95 = vmatprep.subr.bf16.mxu0 0
  %96 = vmatpush1.bf16.msra.mxu0 0
  %97 = vmatprep.mubr.bf16.mxu0 0
  %98 = vmatmul.mubr.bf16.gmra.mrb[0].mxu0 %v59
  %v99 = vpop.f32.mrb[0].mxu0
  %v100 = vadd.f32 0.0, %v99
  %v101 = vpop.f32.mrb[0].mxu0
  %v102 = vpop.f32.mrb[0].mxu0
  %v103 = vpop.f32.mrb[0].mxu0
  %104 = vdwg.mxu0
  %v107 = vunpack.c.l.b16 %v43
  %v108 = vunpack.c.l.b16 %v44
  %v109 = vpack.c.b16 %v108, %v107
  %vm111 = vcmask 130048
  %v113 = vsel %vm111, %v42, 0
  %115 = vmatprep.subr.bf16.mxu0 0
  %116 = vmatpush1.bf16.msra.mxu0 %v109
  %117 = vmatprep.subr.bf16.mxu0 0
  %118 = vmatpush1.bf16.msra.mxu0 0
  %119 = vmatprep.subr.bf16.mxu0 0
  %120 = vmatpush1.bf16.msra.mxu0 0
  %121 = vmatprep.subr.bf16.mxu0 0
  %122 = vmatpush1.bf16.msra.mxu0 0
  %123 = vmatprep.subr.bf16.mxu0 0
  %124 = vmatpush1.bf16.msra.mxu0 0
  %125 = vmatprep.subr.bf16.mxu0 0
  %126 = vmatpush1.bf16.msra.mxu0 0
  %127 = vmatprep.subr.bf16.mxu0 0
  %128 = vmatpush1.bf16.msra.mxu0 0
  %129 = vmatprep.subr.bf16.mxu0 0
  %130 = vmatpush1.bf16.msra.mxu0 0
  %131 = vmatprep.subr.bf16.mxu0 0
  %132 = vmatpush1.bf16.msra.mxu0 0
  %133 = vmatprep.subr.bf16.mxu0 0
  %134 = vmatpush1.bf16.msra.mxu0 0
  %135 = vmatprep.subr.bf16.mxu0 0
  %136 = vmatpush1.bf16.msra.mxu0 0
  %137 = vmatprep.subr.bf16.mxu0 0
  %138 = vmatpush1.bf16.msra.mxu0 0
  %139 = vmatprep.subr.bf16.mxu0 0
  %140 = vmatpush1.bf16.msra.mxu0 0
  %141 = vmatprep.subr.bf16.mxu0 0
  %142 = vmatpush1.bf16.msra.mxu0 0
  %143 = vmatprep.subr.bf16.mxu0 0
  %144 = vmatpush1.bf16.msra.mxu0 0
  %145 = vmatprep.subr.bf16.mxu0 0
  %146 = vmatpush1.bf16.msra.mxu0 0
  %147 = vmatprep.mubr.bf16.mxu0 0
  %148 = vmatmul.mubr.bf16.gmra.mrb[0].mxu0 %v113
  %v149 = vpop.f32.mrb[0].mxu0
  %v150 = vadd.f32 %v100, %v149
  %v151 = vpop.f32.mrb[0].mxu0
  %v152 = vpop.f32.mrb[0].mxu0
  %v153 = vpop.f32.mrb[0].mxu0
  %154 = vdwg.mxu0
  %v155 = vld [vmem:[%s2] sm:$0xff]
  %156 = vrot.lane.b32.xlu0 %v30, 104
  %v157 = vpop.permute.xlu0 %156
  %v159 = vmul.f32 %v155, %v157
  %160 = vrot.lane.b32.xlu0 %v38, 104
  %v161 = vpop.permute.xlu0 %160
  %v163 = vadd.f32 %v159, %v161
  %v164 = vmax.f32 %v163, 0.0
  %v165 = vpack.c.bf16 %v164, %v164
  %v166 = vld [vmem:[%s3 + $0xc] sm:$0xf]
  %v168 = vsel %vm57, %v165, 0
  %v171 = vsel %vm61, %v166, 0
  %173 = vmatprep.subr.bf16.mxu0 0
  %174 = vmatpush1.bf16.msra.mxu0 %v171
  %175 = vmatprep.subr.bf16.mxu0 0
  %176 = vmatpush1.bf16.msra.mxu0 0
  %177 = vmatprep.subr.bf16.mxu0 0
  %178 = vmatpush1.bf16.msra.mxu0 0
  %179 = vmatprep.subr.bf16.mxu0 0
  %180 = vmatpush1.bf16.msra.mxu0 0
  %181 = vmatprep.subr.bf16.mxu0 0
  %182 = vmatpush1.bf16.msra.mxu0 0
  %183 = vmatprep.subr.bf16.mxu0 0
  %184 = vmatpush1.bf16.msra.mxu0 0
  %185 = vmatprep.subr.bf16.mxu0 0
  %186 = vmatpush1.bf16.msra.mxu0 0
  %187 = vmatprep.subr.bf16.mxu0 0
  %188 = vmatpush1.bf16.msra.mxu0 0
  %189 = vmatprep.subr.bf16.mxu0 0
  %190 = vmatpush1.bf16.msra.mxu0 0
  %191 = vmatprep.subr.bf16.mxu0 0
  %192 = vmatpush1.bf16.msra.mxu0 0
  %193 = vmatprep.subr.bf16.mxu0 0
  %194 = vmatpush1.bf16.msra.mxu0 0
  %195 = vmatprep.subr.bf16.mxu0 0
  %196 = vmatpush1.bf16.msra.mxu0 0
  %197 = vmatprep.subr.bf16.mxu0 0
  %198 = vmatpush1.bf16.msra.mxu0 0
  %199 = vmatprep.subr.bf16.mxu0 0
  %200 = vmatpush1.bf16.msra.mxu0 0
  %201 = vmatprep.subr.bf16.mxu0 0
  %202 = vmatpush1.bf16.msra.mxu0 0
  %203 = vmatprep.subr.bf16.mxu0 0
  %204 = vmatpush1.bf16.msra.mxu0 0
  %205 = vmatprep.mubr.bf16.mxu0 0
  %206 = vmatmul.mubr.bf16.gmra.mrb[0].mxu0 %v168
  %v207 = vpop.f32.mrb[0].mxu0
  %v208 = vadd.f32 0.0, %v207
  %v209 = vpop.f32.mrb[0].mxu0
  %v210 = vpop.f32.mrb[0].mxu0
  %v211 = vpop.f32.mrb[0].mxu0
  %212 = vdwg.mxu0
  %v213 = vadd.f32 %v150, %v208
  %214 = vst.msk [vmem:[%s6] sm:$0xff] %vm111, %v213
  // Predicated region
  $region26: #{densenet_forward.43} parent=0 // pred_check
    _
  $region27: #{densenet_forward.43} parent=0 // pred_check_branch
    %216 = sbr.rel (0) target = $region29
  $region28: #{densenet_forward.43} parent=0 // pred_region
    _
  $region29: #{densenet_forward.43} parent=0 // pred_fallthru
    _
  // Predicated region
  $region30: #{densenet_forward.43} parent=0 // pred_check
    _
  $region31: #{densenet_forward.43} parent=0 // pred_check_branch
    %218 = sbr.rel (0) target = $region33
  $region32: #{densenet_forward.43} parent=0 // pred_region
    _
  $region33: #{densenet_forward.43} parent=0 // pred_fallthru
    _

// kernel: densenet_forward.44
$region0: #{densenet_forward.44}
  #allocation0 [shape = 'u32[]', space=smem, size = 0x4, offset = 0x4, fixed_abs, tag = 'smem constant byte address 0x4 - core index']
  #allocation1 [shape = 'u32[144,128]{1,0:T(1,128)}', space=vmem, size = 0x12000, scoped, tag = 'internal scratch']
  %s0 = inlined_call_operand.vmem [shape: f32[2,1,1,16], index: 0, kind: input, shape index: {}]
  %s1 = inlined_call_operand.vmem [shape: f32[2,1,1,16], index: 1, kind: input, shape index: {}]
  %s2 = inlined_call_operand.vmem [shape: f32[2,1,1,16], index: 2, kind: input, shape index: {}]
  %s3 = inlined_call_operand.vmem [shape: f32[2,1,1,16], index: 3, kind: input, shape index: {}]
  %s4 = inlined_call_operand.vmem [shape: f32[2,1,1,16], index: 4, kind: output, shape index: {}]
  %s5 = sld [smem:[#allocation0]]
  $region49: #{densenet_forward.44} parent=0
    _
  %s7 = ssub.s32 1, %s5
  %s8 = scalar_select 0, %s7, %s5
  loop: start=0, step=1, limit=4
  $region2: #{densenet_forward.44} parent=0 // loop_pre_header
    _
  $region3: #{densenet_forward.44} parent=0 // loop_header
    %s10 = sphi 0, %s14
    %p11 = scmp.ge.s32.totalorder %s10, 4
    %s20 = sphi 0, %s22
    %s23 = sphi 0, %s20
    %s24 = sphi 0, %s23
    %s40 = sphi 0, %s24
    %s46 = sphi 0, %s48
    %s49 = sphi 0, %s46
    %s50 = sphi 0, %s49
    %s66 = sphi 0, %s50
    %s72 = sphi 0, %s74
    %s75 = sphi 0, %s72
    %s76 = sphi 0, %s75
    %s92 = sphi 0, %s76
    %s98 = sphi 0, %s100
    %s101 = sphi 0, %s98
    %s102 = sphi 0, %s101
    %s118 = sphi 0, %s102
    %s124 = sphi 0, %s126
    %s127 = sphi 0, %s124
    %s128 = sphi 0, %s127
    %s144 = sphi 0, %s128
  $region4: #{densenet_forward.44} parent=0 // loop_header_branch
    %13 = sbr.rel (%p11) target = $region8
  $region5: #{densenet_forward.44} parent=0 // loop_body
    %s15 = ssub.s32 %s10, 1
    %s16 = ssub.s32 %s10, 2
    %s17 = sadd.s32 %s10, 1
    %s18 = ssub.s32 %s10, %s17
    %p19 = scmp.eq.s32.totalorder %s18, 0
    %s21 = sadd.s32 %s20, 1
    %s22 = scalar_select %p19, %s20, %s21
    %p25 = pneg %p19
    %p26 = scmp.eq.s32.totalorder %s10, 1
    %p27 = por %p25, %p26
    %p28 = scmp.ne.s32.totalorder %s20, %s23
    %p29 = scmp.eq.s32.totalorder %s10, 0
    %p30 = por %p28, %p29
    %p31 = scmp.ne.s32.totalorder %s20, %s23
    %p32 = scmp.eq.s32.totalorder %s15, 1
    %p33 = por %p31, %p32
    %p34 = scmp.ne.s32.totalorder %s23, %s24
    %p35 = scmp.eq.s32.totalorder %s15, 0
    %p36 = por %p34, %p35
    %p37 = scmp.ne.s32.totalorder %s23, %s24
    %p38 = scmp.eq.s32.totalorder %s16, 1
    %p39 = por %p37, %p38
    %p41 = scmp.ne.s32.totalorder %s24, %s40
    %p42 = scmp.eq.s32.totalorder %s16, 0
    %p43 = por %p41, %p42
    %s44 = ssub.s32 %s10, %s17
    %p45 = scmp.eq.s32.totalorder %s44, 0
    %s47 = sadd.s32 %s46, 1
    %s48 = scalar_select %p45, %s46, %s47
    %p51 = pneg %p45
    %p52 = scmp.eq.s32.totalorder %s10, 1
    %p53 = por %p51, %p52
    %p54 = scmp.ne.s32.totalorder %s46, %s49
    %p55 = scmp.eq.s32.totalorder %s10, 0
    %p56 = por %p54, %p55
    %p57 = scmp.ne.s32.totalorder %s46, %s49
    %p58 = scmp.eq.s32.totalorder %s15, 1
    %p59 = por %p57, %p58
    %p60 = scmp.ne.s32.totalorder %s49, %s50
    %p61 = scmp.eq.s32.totalorder %s15, 0
    %p62 = por %p60, %p61
    %p63 = scmp.ne.s32.totalorder %s49, %s50
    %p64 = scmp.eq.s32.totalorder %s16, 1
    %p65 = por %p63, %p64
    %p67 = scmp.ne.s32.totalorder %s50, %s66
    %p68 = scmp.eq.s32.totalorder %s16, 0
    %p69 = por %p67, %p68
    %s70 = ssub.s32 %s10, %s17
    %p71 = scmp.eq.s32.totalorder %s70, 0
    %s73 = sadd.s32 %s72, 1
    %s74 = scalar_select %p71, %s72, %s73
    %p77 = pneg %p71
    %p78 = scmp.eq.s32.totalorder %s10, 1
    %p79 = por %p77, %p78
    %p80 = scmp.ne.s32.totalorder %s72, %s75
    %p81 = scmp.eq.s32.totalorder %s10, 0
    %p82 = por %p80, %p81
    %p83 = scmp.ne.s32.totalorder %s72, %s75
    %p84 = scmp.eq.s32.totalorder %s15, 1
    %p85 = por %p83, %p84
    %p86 = scmp.ne.s32.totalorder %s75, %s76
    %p87 = scmp.eq.s32.totalorder %s15, 0
    %p88 = por %p86, %p87
    %p89 = scmp.ne.s32.totalorder %s75, %s76
    %p90 = scmp.eq.s32.totalorder %s16, 1
    %p91 = por %p89, %p90
    %p93 = scmp.ne.s32.totalorder %s76, %s92
    %p94 = scmp.eq.s32.totalorder %s16, 0
    %p95 = por %p93, %p94
    %s96 = ssub.s32 %s10, %s17
    %p97 = scmp.eq.s32.totalorder %s96, 0
    %s99 = sadd.s32 %s98, 1
    %s100 = scalar_select %p97, %s98, %s99
    %p103 = pneg %p97
    %p104 = scmp.eq.s32.totalorder %s10, 1
    %p105 = por %p103, %p104
    %p106 = scmp.ne.s32.totalorder %s98, %s101
    %p107 = scmp.eq.s32.totalorder %s10, 0
    %p108 = por %p106, %p107
    %p109 = scmp.ne.s32.totalorder %s98, %s101
    %p110 = scmp.eq.s32.totalorder %s15, 1
    %p111 = por %p109, %p110
    %p112 = scmp.ne.s32.totalorder %s101, %s102
    %p113 = scmp.eq.s32.totalorder %s15, 0
    %p114 = por %p112, %p113
    %p115 = scmp.ne.s32.totalorder %s101, %s102
    %p116 = scmp.eq.s32.totalorder %s16, 1
    %p117 = por %p115, %p116
    %p119 = scmp.ne.s32.totalorder %s102, %s118
    %p120 = scmp.eq.s32.totalorder %s16, 0
    %p121 = por %p119, %p120
    %s122 = ssub.s32 %s10, %s17
    %p123 = scmp.eq.s32.totalorder %s122, 0
    %s125 = sadd.s32 %s124, 1
    %s126 = scalar_select %p123, %s124, %s125
    %p129 = pneg %p123
    %p130 = scmp.eq.s32.totalorder %s10, 1
    %p131 = por %p129, %p130
    %p132 = scmp.ne.s32.totalorder %s124, %s127
    %p133 = scmp.eq.s32.totalorder %s10, 0
    %p134 = por %p132, %p133
    %p135 = scmp.ne.s32.totalorder %s124, %s127
    %p136 = scmp.eq.s32.totalorder %s15, 1
    %p137 = por %p135, %p136
    %p138 = scmp.ne.s32.totalorder %s127, %s128
    %p139 = scmp.eq.s32.totalorder %s15, 0
    %p140 = por %p138, %p139
    %p141 = scmp.ne.s32.totalorder %s127, %s128
    %p142 = scmp.eq.s32.totalorder %s16, 1
    %p143 = por %p141, %p142
    %p145 = scmp.ne.s32.totalorder %s128, %s144
    %p146 = scmp.eq.s32.totalorder %s16, 0
    %p147 = por %p145, %p146
    %p148 = scmp.le.s32.totalorder 1, %s10
    %p149 = scmp.lt.s32.totalorder %s10, 3
    %p150 = pnand %p148, %p149
    %p151 = pneg %p150
    // Predicated region
    $region9: #{densenet_forward.44} parent=5 // pred_check
      _
    $region10: #{densenet_forward.44} parent=5 // pred_check_branch
      %153 = sbr.rel (%p150) target = $region12
    $region11: #{densenet_forward.44} parent=5 // pred_region
      %s154 = ssub.s32 %s10, 1
    $region12: #{densenet_forward.44} parent=5 // pred_fallthru
      _
    %p155 = scmp.lt.s32.totalorder %s10, 2
    // Predicated region
    $region13: #{densenet_forward.44} parent=5 // pred_check
      %p156 = pneg %p155
    $region14: #{densenet_forward.44} parent=5 // pred_check_branch
      %158 = sbr.rel (%p156) target = $region16
    $region15: #{densenet_forward.44} parent=5 // pred_region
      // Predicated region
      $region17: #{densenet_forward.44} parent=15 // pred_check
        %p159 = pneg %p30
      $region18: #{densenet_forward.44} parent=15 // pred_check_branch
        %161 = sbr.rel (%p159) target = $region20
      $region19: #{densenet_forward.44} parent=15 // pred_region
        %p162 = scmp.lt.s32.totalorder %s10, 1
        %s163 = scalar_select %p162, %s10, 1
        %s164 = scalar_lea.vmem %s0, %s163
      $region20: #{densenet_forward.44} parent=15 // pred_fallthru
        _
      // Predicated region
      $region21: #{densenet_forward.44} parent=15 // pred_check
        %p165 = pneg %p56
      $region22: #{densenet_forward.44} parent=15 // pred_check_branch
        %167 = sbr.rel (%p165) target = $region24
      $region23: #{densenet_forward.44} parent=15 // pred_region
        %p168 = scmp.lt.s32.totalorder %s10, 1
        %s169 = scalar_select %p168, %s10, 1
        %s170 = scalar_lea.vmem %s1, %s169
      $region24: #{densenet_forward.44} parent=15 // pred_fallthru
        _
      // Predicated region
      $region25: #{densenet_forward.44} parent=15 // pred_check
        %p171 = pneg %p82
      $region26: #{densenet_forward.44} parent=15 // pred_check_branch
        %173 = sbr.rel (%p171) target = $region28
      $region27: #{densenet_forward.44} parent=15 // pred_region
        %p174 = scmp.lt.s32.totalorder %s10, 1
        %s175 = scalar_select %p174, %s10, 1
        %s176 = scalar_lea.vmem %s2, %s175
      $region28: #{densenet_forward.44} parent=15 // pred_fallthru
        _
      // Predicated region
      $region29: #{densenet_forward.44} parent=15 // pred_check
        %p177 = pneg %p108
      $region30: #{densenet_forward.44} parent=15 // pred_check_branch
        %179 = sbr.rel (%p177) target = $region32
      $region31: #{densenet_forward.44} parent=15 // pred_region
        %p180 = scmp.lt.s32.totalorder %s10, 1
        %s181 = scalar_select %p180, %s10, 1
        %s182 = scalar_lea.vmem %s3, %s181
      $region32: #{densenet_forward.44} parent=15 // pred_fallthru
        _
    $region16: #{densenet_forward.44} parent=5 // pred_fallthru
      _
    %p183 = scmp.le.s32.totalorder 1, %s10
    %p184 = scmp.lt.s32.totalorder %s10, 3
    %p185 = pnand %p183, %p184
    %p186 = pneg %p185
    // Predicated region
    $region33: #{densenet_forward.44} parent=5 // pred_check
      _
    $region34: #{densenet_forward.44} parent=5 // pred_check_branch
      %188 = sbr.rel (%p185) target = $region36
    $region35: #{densenet_forward.44} parent=5 // pred_region
      %s189 = ssub.s32 %s10, 1
      %p190 = scmp.lt.s32.totalorder %s15, 1
      %s191 = scalar_select %p190, %s15, 1
      %s192 = scalar_lea.vmem %s0, %s191
      %p193 = pneg %p36
      %p194 = pneg %p33
      %p195 = scmp.lt.s32.totalorder %s15, 1
      %s196 = scalar_select %p195, %s15, 1
      %s197 = scalar_lea.vmem %s1, %s196
      %p198 = pneg %p62
      %p199 = pneg %p59
      %p200 = scmp.lt.s32.totalorder %s15, 1
      %s201 = scalar_select %p200, %s15, 1
      %s202 = scalar_lea.vmem %s2, %s201
      %p203 = pneg %p88
      %p204 = pneg %p85
      %p205 = scmp.lt.s32.totalorder %s15, 1
      %s206 = scalar_select %p205, %s15, 1
      %s207 = scalar_lea.vmem %s3, %s206
      %p208 = pneg %p114
      %p209 = pneg %p111
      %p210 = pneg %p140
      %p211 = pneg %p137
      %p212 = scmp.lt.s32.totalorder %s15, 1
      %s213 = scalar_select %p212, %s15, 1
      %s214 = scalar_lea.vmem %s4, %s213
      %p215 = scmp.lt.s32.totalorder %s15, 1
      %s216 = scalar_select %p215, %s15, 1
      %s217 = scalar_lea.vmem %s0, %s216
      %p218 = scmp.lt.s32.totalorder %s15, 1
      %s219 = scalar_select %p218, %s15, 1
      %s220 = scalar_lea.vmem %s1, %s219
      %p221 = scmp.lt.s32.totalorder %s15, 1
      %s222 = scalar_select %p221, %s15, 1
      %s223 = scalar_lea.vmem %s2, %s222
      %p224 = scmp.lt.s32.totalorder %s15, 1
      %s225 = scalar_select %p224, %s15, 1
      %s226 = scalar_lea.vmem %s3, %s225
      %p227 = scmp.lt.s32.totalorder %s15, 1
      %s228 = scalar_select %p227, %s15, 1
      %s229 = scalar_lea.vmem %s4, %s228
      %v230 = vld [vmem:[%s217] sm:$0x1]
      %v231 = vld [vmem:[%s220] sm:$0x1]
      %v232 = vadd.f32 %v230, %v231
      %v233 = vld [vmem:[%s223] sm:$0x1]
      %v234 = vadd.f32 %v232, %v233
      %v235 = vld [vmem:[%s226] sm:$0x1]
      %v236 = vadd.f32 %v234, %v235
      %v237 = vmul.f32 %v236, 0.25
      %vm238 = vcmask 122880
      %239 = vst.msk [vmem:[%s229] sm:$0x1] %vm238, %v237
      %p240 = scmp.lt.s32.totalorder %s15, 1
      %s241 = scalar_select %p240, %s15, 1
      %s242 = scalar_lea.vmem %s4, %s241
      // Predicated region
      $region37: #{densenet_forward.44} parent=35 // pred_check
        %p243 = pneg %p137
      $region38: #{densenet_forward.44} parent=35 // pred_check_branch
        %245 = sbr.rel (%p243) target = $region40
      $region39: #{densenet_forward.44} parent=35 // pred_region
        _
      $region40: #{densenet_forward.44} parent=35 // pred_fallthru
        _
    $region36: #{densenet_forward.44} parent=5 // pred_fallthru
      _
    %p246 = scmp.le.s32.totalorder 2, %s10
    // Predicated region
    $region41: #{densenet_forward.44} parent=5 // pred_check
      %p247 = pneg %p246
    $region42: #{densenet_forward.44} parent=5 // pred_check_branch
      %249 = sbr.rel (%p247) target = $region44
    $region43: #{densenet_forward.44} parent=5 // pred_region
      %s250 = ssub.s32 %s10, 2
      // Predicated region
      $region45: #{densenet_forward.44} parent=43 // pred_check
        %p251 = pneg %p143
      $region46: #{densenet_forward.44} parent=43 // pred_check_branch
        %253 = sbr.rel (%p251) target = $region48
      $region47: #{densenet_forward.44} parent=43 // pred_region
        %p254 = scmp.lt.s32.totalorder %s16, 1
        %s255 = scalar_select %p254, %s16, 1
        %s256 = scalar_lea.vmem %s4, %s255
      $region48: #{densenet_forward.44} parent=43 // pred_fallthru
        _
    $region44: #{densenet_forward.44} parent=5 // pred_fallthru
      _
  $region6: #{densenet_forward.44} parent=0 // loop_footer
    %s14 = sadd.s32 1, %s10
  $region7: #{densenet_forward.44} parent=0 // loop_footer_branch
    %9 = sbr.rel target = $region3
  $region8: #{densenet_forward.44} parent=0 // loop_exit
    _

// kernel: densenet_forward.49
$region0: #{densenet_forward.49}
  #allocation0 [shape = 'u32[]', space=smem, size = 0x4, offset = 0x4, fixed_abs, tag = 'smem constant byte address 0x4 - core index']
  #allocation1 [shape = 'u32[144,128]{1,0:T(1,128)}', space=vmem, size = 0x12000, scoped, tag = 'internal scratch']
  %s0 = inlined_call_operand.vmem [shape: f32[8,1,1,16], index: 0, kind: input, shape index: {}]
  %s1 = inlined_call_operand.vmem [shape: f32[8,1,1,8], index: 1, kind: input, shape index: {}]
  %s2 = inlined_call_operand.vmem [shape: f32[8,1,1,8], index: 2, kind: input, shape index: {}]
  %s3 = inlined_call_operand.vmem [shape: bf16[32,512], index: 3, kind: input, shape index: {}]
  %s4 = inlined_call_operand.vmem [shape: f32[1,512], index: 4, kind: input, shape index: {}]
  %s5 = inlined_call_operand.vmem [shape: bf16[512,16], index: 5, kind: input, shape index: {}]
  %s6 = inlined_call_operand.vmem [shape: f32[1,16], index: 6, kind: input, shape index: {}]
  %s7 = inlined_call_operand.vmem [shape: f32[8,16], index: 7, kind: output, shape index: {}]
  %s8 = sld [smem:[#allocation0]]
  $region38: #{densenet_forward.49} parent=0
    _
  %s10 = ssub.s32 1, %s8
  %s11 = scalar_select 0, %s10, %s8
  // Predicated region
  $region2: #{densenet_forward.49} parent=0 // pred_check
    _
  $region3: #{densenet_forward.49} parent=0 // pred_check_branch
    %13 = sbr.rel (0) target = $region5
  $region4: #{densenet_forward.49} parent=0 // pred_region
    _
  $region5: #{densenet_forward.49} parent=0 // pred_fallthru
    _
  // Predicated region
  $region6: #{densenet_forward.49} parent=0 // pred_check
    _
  $region7: #{densenet_forward.49} parent=0 // pred_check_branch
    %15 = sbr.rel (0) target = $region9
  $region8: #{densenet_forward.49} parent=0 // pred_region
    _
  $region9: #{densenet_forward.49} parent=0 // pred_fallthru
    _
  // Predicated region
  $region10: #{densenet_forward.49} parent=0 // pred_check
    _
  $region11: #{densenet_forward.49} parent=0 // pred_check_branch
    %17 = sbr.rel (0) target = $region13
  $region12: #{densenet_forward.49} parent=0 // pred_region
    _
  $region13: #{densenet_forward.49} parent=0 // pred_fallthru
    _
  // Predicated region
  $region14: #{densenet_forward.49} parent=0 // pred_check
    _
  $region15: #{densenet_forward.49} parent=0 // pred_check_branch
    %19 = sbr.rel (0) target = $region17
  $region16: #{densenet_forward.49} parent=0 // pred_region
    _
  $region17: #{densenet_forward.49} parent=0 // pred_fallthru
    _
  // Predicated region
  $region18: #{densenet_forward.49} parent=0 // pred_check
    _
  $region19: #{densenet_forward.49} parent=0 // pred_check_branch
    %21 = sbr.rel (0) target = $region21
  $region20: #{densenet_forward.49} parent=0 // pred_region
    _
  $region21: #{densenet_forward.49} parent=0 // pred_fallthru
    _
  // Predicated region
  $region22: #{densenet_forward.49} parent=0 // pred_check
    _
  $region23: #{densenet_forward.49} parent=0 // pred_check_branch
    %23 = sbr.rel (0) target = $region25
  $region24: #{densenet_forward.49} parent=0 // pred_region
    _
  $region25: #{densenet_forward.49} parent=0 // pred_fallthru
    _
  // Predicated region
  $region26: #{densenet_forward.49} parent=0 // pred_check
    _
  $region27: #{densenet_forward.49} parent=0 // pred_check_branch
    %25 = sbr.rel (0) target = $region29
  $region28: #{densenet_forward.49} parent=0 // pred_region
    _
  $region29: #{densenet_forward.49} parent=0 // pred_fallthru
    _
  %v27 = vld [vmem:[%s0] sm:$0x1]
  %v28 = vld [vmem:[%s0 + $0x1] sm:$0x1]
  %v29 = vld [vmem:[%s0 + $0x2] sm:$0x1]
  %v30 = vld [vmem:[%s0 + $0x3] sm:$0x1]
  %v31 = vld [vmem:[%s0 + $0x4] sm:$0x1]
  %v32 = vld [vmem:[%s0 + $0x5] sm:$0x1]
  %v33 = vld [vmem:[%s0 + $0x6] sm:$0x1]
  %v34 = vld [vmem:[%s0 + $0x7] sm:$0x1]
  %v35 = vmax.f32 %v27, 0.0
  %v36 = vmax.f32 %v28, 0.0
  %v37 = vmax.f32 %v29, 0.0
  %v38 = vmax.f32 %v30, 0.0
  %v39 = vmax.f32 %v31, 0.0
  %v40 = vmax.f32 %v32, 0.0
  %v41 = vmax.f32 %v33, 0.0
  %v42 = vmax.f32 %v34, 0.0
  %v43 = vadd.f32 %v35, 0.0
  %v44 = vadd.f32 %v36, 0.0
  %v45 = vadd.f32 %v37, 0.0
  %v46 = vadd.f32 %v38, 0.0
  %v47 = vadd.f32 %v39, 0.0
  %v48 = vadd.f32 %v40, 0.0
  %v49 = vadd.f32 %v41, 0.0
  %v50 = vadd.f32 %v42, 0.0
  %v51 = vadd.f32 %v43, 0.0
  %v52 = vadd.f32 %v44, 0.0
  %v53 = vadd.f32 %v45, 0.0
  %v54 = vadd.f32 %v46, 0.0
  %v55 = vadd.f32 %v47, 0.0
  %v56 = vadd.f32 %v48, 0.0
  %v57 = vadd.f32 %v49, 0.0
  %v58 = vadd.f32 %v50, 0.0
  %v59 = vpack.c.bf16 %v51, %v51
  %v60 = vpack.c.bf16 %v52, %v52
  %v61 = vpack.c.bf16 %v53, %v53
  %v62 = vpack.c.bf16 %v54, %v54
  %v63 = vpack.c.bf16 %v55, %v55
  %v64 = vpack.c.bf16 %v56, %v56
  %v65 = vpack.c.bf16 %v57, %v57
  %v66 = vpack.c.bf16 %v58, %v58
  %v67 = vld [vmem:[%s3] sm:$0xff]
  %v68 = vld [vmem:[%s3 + $0x8] sm:$0xff]
  %v69 = vld [vmem:[%s3 + $0x10] sm:$0xff]
  %v70 = vld [vmem:[%s3 + $0x18] sm:$0xff]
  %v71 = vld [vmem:[%s1] sm:$0x1]
  %v72 = vld [vmem:[%s1 + $0x1] sm:$0x1]
  %v73 = vld [vmem:[%s1 + $0x2] sm:$0x1]
  %v74 = vld [vmem:[%s1 + $0x3] sm:$0x1]
  %v75 = vld [vmem:[%s1 + $0x4] sm:$0x1]
  %v76 = vld [vmem:[%s1 + $0x5] sm:$0x1]
  %v77 = vld [vmem:[%s1 + $0x6] sm:$0x1]
  %v78 = vld [vmem:[%s1 + $0x7] sm:$0x1]
  %v79 = vmax.f32 %v71, 0.0
  %v80 = vmax.f32 %v72, 0.0
  %v81 = vmax.f32 %v73, 0.0
  %v82 = vmax.f32 %v74, 0.0
  %v83 = vmax.f32 %v75, 0.0
  %v84 = vmax.f32 %v76, 0.0
  %v85 = vmax.f32 %v77, 0.0
  %v86 = vmax.f32 %v78, 0.0
  %v87 = vadd.f32 %v79, 0.0
  %v88 = vadd.f32 %v80, 0.0
  %v89 = vadd.f32 %v81, 0.0
  %v90 = vadd.f32 %v82, 0.0
  %v91 = vadd.f32 %v83, 0.0
  %v92 = vadd.f32 %v84, 0.0
  %v93 = vadd.f32 %v85, 0.0
  %v94 = vadd.f32 %v86, 0.0
  %v95 = vadd.f32 %v87, 0.0
  %v96 = vadd.f32 %v88, 0.0
  %v97 = vadd.f32 %v89, 0.0
  %v98 = vadd.f32 %v90, 0.0
  %v99 = vadd.f32 %v91, 0.0
  %v100 = vadd.f32 %v92, 0.0
  %v101 = vadd.f32 %v93, 0.0
  %v102 = vadd.f32 %v94, 0.0
  %v103 = vpack.c.bf16 %v95, %v95
  %v104 = vpack.c.bf16 %v96, %v96
  %v105 = vpack.c.bf16 %v97, %v97
  %v106 = vpack.c.bf16 %v98, %v98
  %v107 = vpack.c.bf16 %v99, %v99
  %v108 = vpack.c.bf16 %v100, %v100
  %v109 = vpack.c.bf16 %v101, %v101
  %v110 = vpack.c.bf16 %v102, %v102
  %v111 = vld [vmem:[%s3 + $0x20] sm:$0xff]
  %v112 = vld [vmem:[%s3 + $0x28] sm:$0xff]
  %v121 = vunpack.c.l.b16 %v103
  %v122 = vunpack.c.l.b16 %v104
  %v123 = vunpack.c.l.b16 %v105
  %v124 = vunpack.c.l.b16 %v106
  %v125 = vunpack.c.l.b16 %v107
  %v126 = vunpack.c.l.b16 %v108
  %v127 = vunpack.c.l.b16 %v109
  %v128 = vunpack.c.l.b16 %v110
  %v129 = vrot.slane %v122, 7
  %vm130 = vcmask 1041409
  %v131 = vsel %vm130, %v129, %v121
  %v132 = vrot.slane %v123, 6
  %vm133 = vcmask 1042434
  %v134 = vsel %vm133, %v132, %v131
  %v135 = vrot.slane %v124, 5
  %vm136 = vcmask 1043459
  %v137 = vsel %vm136, %v135, %v134
  %v138 = vrot.slane %v125, 4
  %vm139 = vcmask 1044484
  %v140 = vsel %vm139, %v138, %v137
  %v141 = vrot.slane %v126, 3
  %vm142 = vcmask 1045509
  %v143 = vsel %vm142, %v141, %v140
  %v144 = vrot.slane %v127, 2
  %vm145 = vcmask 1046534
  %v146 = vsel %vm145, %v144, %v143
  %v147 = vrot.slane %v128, 1
  %vm148 = vcmask 1047559
  %v149 = vsel %vm148, %v147, %v146
  %v150 = vpack.c.b16 %v149, %v149
  %v153 = vunpack.c.l.b16 %v111
  %v154 = vunpack.c.h.b16 %v111
  %v155 = vunpack.c.l.b16 %v112
  %v156 = vunpack.c.h.b16 %v112
  %v157 = vpack.c.b16 %v153, %v153
  %v158 = vpack.c.b16 %v154, %v154
  %v159 = vpack.c.b16 %v155, %v155
  %v160 = vpack.c.b16 %v156, %v156
  %vm161 = vcmask 64512
  %v163 = vsel %vm161, %v150, 0
  %vm165 = vcmask 1043456
  %v167 = vsel %vm165, %v157, 0
  %v170 = vsel %vm165, %v158, 0
  %v173 = vsel %vm165, %v159, 0
  %v176 = vsel %vm165, %v160, 0
  %178 = vmatprep.subr.bf16.mxu0 %v170
  %179 = vmatpush1.bf16.msra.mxu0 %v167
  %180 = vmatprep.subr.bf16.mxu0 0
  %181 = vmatpush1.bf16.msra.mxu0 0
  %182 = vmatprep.subr.bf16.mxu0 0
  %183 = vmatpush1.bf16.msra.mxu0 0
  %184 = vmatprep.subr.bf16.mxu0 0
  %185 = vmatpush1.bf16.msra.mxu0 0
  %186 = vmatprep.subr.bf16.mxu0 0
  %187 = vmatpush1.bf16.msra.mxu0 0
  %188 = vmatprep.subr.bf16.mxu0 0
  %189 = vmatpush1.bf16.msra.mxu0 0
  %190 = vmatprep.subr.bf16.mxu0 0
  %191 = vmatpush1.bf16.msra.mxu0 0
  %192 = vmatprep.subr.bf16.mxu0 0
  %193 = vmatpush1.bf16.msra.mxu0 0
  %194 = vmatprep.subr.bf16.mxu0 0
  %195 = vmatpush1.bf16.msra.mxu0 0
  %196 = vmatprep.subr.bf16.mxu0 0
  %197 = vmatpush1.bf16.msra.mxu0 0
  %198 = vmatprep.subr.bf16.mxu0 0
  %199 = vmatpush1.bf16.msra.mxu0 0
  %200 = vmatprep.subr.bf16.mxu0 0
  %201 = vmatpush1.bf16.msra.mxu0 0
  %202 = vmatprep.subr.bf16.mxu0 0
  %203 = vmatpush1.bf16.msra.mxu0 0
  %204 = vmatprep.subr.bf16.mxu0 0
  %205 = vmatpush1.bf16.msra.mxu0 0
  %206 = vmatprep.subr.bf16.mxu0 0
  %207 = vmatpush1.bf16.msra.mxu0 0
  %208 = vmatprep.subr.bf16.mxu0 0
  %209 = vmatpush1.bf16.msra.mxu0 0
  %210 = vmatprep.mubr.bf16.mxu0 0
  %211 = vmatmul.mubr.bf16.gmra.mrb[0].mxu0 %v163
  %v212 = vpop.f32.mrb[0].mxu0
  %v213 = vadd.f32 0.0, %v212
  %v214 = vpop.f32.mrb[0].mxu0
  %v215 = vadd.f32 0.0, %v214
  %v216 = vpop.f32.mrb[0].mxu0
  %v217 = vpop.f32.mrb[0].mxu0
  %218 = vdwg.mxu0
  %219 = vmatprep.subr.bf16.mxu0 %v176
  %220 = vmatpush1.bf16.msra.mxu0 %v173
  %221 = vmatprep.subr.bf16.mxu0 0
  %222 = vmatpush1.bf16.msra.mxu0 0
  %223 = vmatprep.subr.bf16.mxu0 0
  %224 = vmatpush1.bf16.msra.mxu0 0
  %225 = vmatprep.subr.bf16.mxu0 0
  %226 = vmatpush1.bf16.msra.mxu0 0
  %227 = vmatprep.subr.bf16.mxu0 0
  %228 = vmatpush1.bf16.msra.mxu0 0
  %229 = vmatprep.subr.bf16.mxu0 0
  %230 = vmatpush1.bf16.msra.mxu0 0
  %231 = vmatprep.subr.bf16.mxu0 0
  %232 = vmatpush1.bf16.msra.mxu0 0
  %233 = vmatprep.subr.bf16.mxu0 0
  %234 = vmatpush1.bf16.msra.mxu0 0
  %235 = vmatprep.subr.bf16.mxu0 0
  %236 = vmatpush1.bf16.msra.mxu0 0
  %237 = vmatprep.subr.bf16.mxu0 0
  %238 = vmatpush1.bf16.msra.mxu0 0
  %239 = vmatprep.subr.bf16.mxu0 0
  %240 = vmatpush1.bf16.msra.mxu0 0
  %241 = vmatprep.subr.bf16.mxu0 0
  %242 = vmatpush1.bf16.msra.mxu0 0
  %243 = vmatprep.subr.bf16.mxu0 0
  %244 = vmatpush1.bf16.msra.mxu0 0
  %245 = vmatprep.subr.bf16.mxu0 0
  %246 = vmatpush1.bf16.msra.mxu0 0
  %247 = vmatprep.subr.bf16.mxu0 0
  %248 = vmatpush1.bf16.msra.mxu0 0
  %249 = vmatprep.subr.bf16.mxu0 0
  %250 = vmatpush1.bf16.msra.mxu0 0
  %251 = vmatprep.mubr.bf16.mxu0 0
  %252 = vmatmul.mubr.bf16.gmra.mrb[0].mxu0 %v163
  %v253 = vpop.f32.mrb[0].mxu0
  %v254 = vadd.f32 0.0, %v253
  %v255 = vpop.f32.mrb[0].mxu0
  %v256 = vadd.f32 0.0, %v255
  %v257 = vpop.f32.mrb[0].mxu0
  %v258 = vpop.f32.mrb[0].mxu0
  %259 = vdwg.mxu0
  %v268 = vunpack.c.l.b16 %v59
  %v269 = vunpack.c.l.b16 %v60
  %v270 = vunpack.c.l.b16 %v61
  %v271 = vunpack.c.l.b16 %v62
  %v272 = vunpack.c.l.b16 %v63
  %v273 = vunpack.c.l.b16 %v64
  %v274 = vunpack.c.l.b16 %v65
  %v275 = vunpack.c.l.b16 %v66
  %v276 = vrot.slane %v269, 7
  %v277 = vsel %vm130, %v276, %v268
  %v278 = vrot.slane %v270, 6
  %v279 = vsel %vm133, %v278, %v277
  %v280 = vrot.slane %v271, 5
  %v281 = vsel %vm136, %v280, %v279
  %v282 = vrot.slane %v272, 4
  %v283 = vsel %vm139, %v282, %v281
  %v284 = vrot.slane %v273, 3
  %v285 = vsel %vm142, %v284, %v283
  %v286 = vrot.slane %v274, 2
  %v287 = vsel %vm145, %v286, %v285
  %v288 = vrot.slane %v275, 1
  %v289 = vsel %vm148, %v288, %v287
  %v290 = vpack.c.b16 %v289, %v289
  %v295 = vunpack.c.l.b16 %v67
  %v296 = vunpack.c.h.b16 %v67
  %v297 = vunpack.c.l.b16 %v68
  %v298 = vunpack.c.h.b16 %v68
  %v299 = vunpack.c.l.b16 %v69
  %v300 = vunpack.c.h.b16 %v69
  %v301 = vunpack.c.l.b16 %v70
  %v302 = vunpack.c.h.b16 %v70
  %v303 = vpack.c.b16 %v299, %v295
  %v304 = vpack.c.b16 %v300, %v296
  %v305 = vpack.c.b16 %v301, %v297
  %v306 = vpack.c.b16 %v302, %v298
  %vm311 = vcmask 130048
  %v313 = vsel %vm311, %v290, 0
  %315 = vmatprep.subr.bf16.mxu0 %v304
  %316 = vmatpush1.bf16.msra.mxu0 %v303
  %317 = vmatprep.subr.bf16.mxu0 0
  %318 = vmatpush1.bf16.msra.mxu0 0
  %319 = vmatprep.subr.bf16.mxu0 0
  %320 = vmatpush1.bf16.msra.mxu0 0
  %321 = vmatprep.subr.bf16.mxu0 0
  %322 = vmatpush1.bf16.msra.mxu0 0
  %323 = vmatprep.subr.bf16.mxu0 0
  %324 = vmatpush1.bf16.msra.mxu0 0
  %325 = vmatprep.subr.bf16.mxu0 0
  %326 = vmatpush1.bf16.msra.mxu0 0
  %327 = vmatprep.subr.bf16.mxu0 0
  %328 = vmatpush1.bf16.msra.mxu0 0
  %329 = vmatprep.subr.bf16.mxu0 0
  %330 = vmatpush1.bf16.msra.mxu0 0
  %331 = vmatprep.subr.bf16.mxu0 0
  %332 = vmatpush1.bf16.msra.mxu0 0
  %333 = vmatprep.subr.bf16.mxu0 0
  %334 = vmatpush1.bf16.msra.mxu0 0
  %335 = vmatprep.subr.bf16.mxu0 0
  %336 = vmatpush1.bf16.msra.mxu0 0
  %337 = vmatprep.subr.bf16.mxu0 0
  %338 = vmatpush1.bf16.msra.mxu0 0
  %339 = vmatprep.subr.bf16.mxu0 0
  %340 = vmatpush1.bf16.msra.mxu0 0
  %341 = vmatprep.subr.bf16.mxu0 0
  %342 = vmatpush1.bf16.msra.mxu0 0
  %343 = vmatprep.subr.bf16.mxu0 0
  %344 = vmatpush1.bf16.msra.mxu0 0
  %345 = vmatprep.subr.bf16.mxu0 0
  %346 = vmatpush1.bf16.msra.mxu0 0
  %347 = vmatprep.mubr.bf16.mxu0 0
  %348 = vmatmul.mubr.bf16.gmra.mrb[0].mxu0 %v313
  %v349 = vpop.f32.mrb[0].mxu0
  %v350 = vadd.f32 %v213, %v349
  %v351 = vpop.f32.mrb[0].mxu0
  %v352 = vadd.f32 %v215, %v351
  %v353 = vpop.f32.mrb[0].mxu0
  %v354 = vpop.f32.mrb[0].mxu0
  %355 = vdwg.mxu0
  %356 = vmatprep.subr.bf16.mxu0 %v306
  %357 = vmatpush1.bf16.msra.mxu0 %v305
  %358 = vmatprep.subr.bf16.mxu0 0
  %359 = vmatpush1.bf16.msra.mxu0 0
  %360 = vmatprep.subr.bf16.mxu0 0
  %361 = vmatpush1.bf16.msra.mxu0 0
  %362 = vmatprep.subr.bf16.mxu0 0
  %363 = vmatpush1.bf16.msra.mxu0 0
  %364 = vmatprep.subr.bf16.mxu0 0
  %365 = vmatpush1.bf16.msra.mxu0 0
  %366 = vmatprep.subr.bf16.mxu0 0
  %367 = vmatpush1.bf16.msra.mxu0 0
  %368 = vmatprep.subr.bf16.mxu0 0
  %369 = vmatpush1.bf16.msra.mxu0 0
  %370 = vmatprep.subr.bf16.mxu0 0
  %371 = vmatpush1.bf16.msra.mxu0 0
  %372 = vmatprep.subr.bf16.mxu0 0
  %373 = vmatpush1.bf16.msra.mxu0 0
  %374 = vmatprep.subr.bf16.mxu0 0
  %375 = vmatpush1.bf16.msra.mxu0 0
  %376 = vmatprep.subr.bf16.mxu0 0
  %377 = vmatpush1.bf16.msra.mxu0 0
  %378 = vmatprep.subr.bf16.mxu0 0
  %379 = vmatpush1.bf16.msra.mxu0 0
  %380 = vmatprep.subr.bf16.mxu0 0
  %381 = vmatpush1.bf16.msra.mxu0 0
  %382 = vmatprep.subr.bf16.mxu0 0
  %383 = vmatpush1.bf16.msra.mxu0 0
  %384 = vmatprep.subr.bf16.mxu0 0
  %385 = vmatpush1.bf16.msra.mxu0 0
  %386 = vmatprep.subr.bf16.mxu0 0
  %387 = vmatpush1.bf16.msra.mxu0 0
  %388 = vmatprep.mubr.bf16.mxu0 0
  %389 = vmatmul.mubr.bf16.gmra.mrb[0].mxu0 %v313
  %v390 = vpop.f32.mrb[0].mxu0
  %v391 = vadd.f32 %v254, %v390
  %v392 = vpop.f32.mrb[0].mxu0
  %v393 = vadd.f32 %v256, %v392
  %v394 = vpop.f32.mrb[0].mxu0
  %v395 = vpop.f32.mrb[0].mxu0
  %396 = vdwg.mxu0
  %v397 = vld [vmem:[%s2] sm:$0x1]
  %v398 = vld [vmem:[%s2 + $0x1] sm:$0x1]
  %v399 = vld [vmem:[%s2 + $0x2] sm:$0x1]
  %v400 = vld [vmem:[%s2 + $0x3] sm:$0x1]
  %v401 = vld [vmem:[%s2 + $0x4] sm:$0x1]
  %v402 = vld [vmem:[%s2 + $0x5] sm:$0x1]
  %v403 = vld [vmem:[%s2 + $0x6] sm:$0x1]
  %v404 = vld [vmem:[%s2 + $0x7] sm:$0x1]
  %v405 = vmax.f32 %v397, 0.0
  %v406 = vmax.f32 %v398, 0.0
  %v407 = vmax.f32 %v399, 0.0
  %v408 = vmax.f32 %v400, 0.0
  %v409 = vmax.f32 %v401, 0.0
  %v410 = vmax.f32 %v402, 0.0
  %v411 = vmax.f32 %v403, 0.0
  %v412 = vmax.f32 %v404, 0.0
  %v413 = vadd.f32 %v405, 0.0
  %v414 = vadd.f32 %v406, 0.0
  %v415 = vadd.f32 %v407, 0.0
  %v416 = vadd.f32 %v408, 0.0
  %v417 = vadd.f32 %v409, 0.0
  %v418 = vadd.f32 %v410, 0.0
  %v419 = vadd.f32 %v411, 0.0
  %v420 = vadd.f32 %v412, 0.0
  %v421 = vadd.f32 %v413, 0.0
  %v422 = vadd.f32 %v414, 0.0
  %v423 = vadd.f32 %v415, 0.0
  %v424 = vadd.f32 %v416, 0.0
  %v425 = vadd.f32 %v417, 0.0
  %v426 = vadd.f32 %v418, 0.0
  %v427 = vadd.f32 %v419, 0.0
  %v428 = vadd.f32 %v420, 0.0
  %v429 = vpack.c.bf16 %v421, %v421
  %v430 = vpack.c.bf16 %v422, %v422
  %v431 = vpack.c.bf16 %v423, %v423
  %v432 = vpack.c.bf16 %v424, %v424
  %v433 = vpack.c.bf16 %v425, %v425
  %v434 = vpack.c.bf16 %v426, %v426
  %v435 = vpack.c.bf16 %v427, %v427
  %v436 = vpack.c.bf16 %v428, %v428
  %v437 = vld [vmem:[%s3 + $0x30] sm:$0xff]
  %v438 = vld [vmem:[%s3 + $0x38] sm:$0xff]
  %v447 = vunpack.c.l.b16 %v429
  %v448 = vunpack.c.l.b16 %v430
  %v449 = vunpack.c.l.b16 %v431
  %v450 = vunpack.c.l.b16 %v432
  %v451 = vunpack.c.l.b16 %v433
  %v452 = vunpack.c.l.b16 %v434
  %v453 = vunpack.c.l.b16 %v435
  %v454 = vunpack.c.l.b16 %v436
  %v455 = vrot.slane %v448, 7
  %v456 = vsel %vm130, %v455, %v447
  %v457 = vrot.slane %v449, 6
  %v458 = vsel %vm133, %v457, %v456
  %v459 = vrot.slane %v450, 5
  %v460 = vsel %vm136, %v459, %v458
  %v461 = vrot.slane %v451, 4
  %v462 = vsel %vm139, %v461, %v460
  %v463 = vrot.slane %v452, 3
  %v464 = vsel %vm142, %v463, %v462
  %v465 = vrot.slane %v453, 2
  %v466 = vsel %vm145, %v465, %v464
  %v467 = vrot.slane %v454, 1
  %v468 = vsel %vm148, %v467, %v466
  %v469 = vpack.c.b16 %v468, %v468
  %v472 = vunpack.c.l.b16 %v437
  %v473 = vunpack.c.h.b16 %v437
  %v474 = vunpack.c.l.b16 %v438
  %v475 = vunpack.c.h.b16 %v438
  %v476 = vpack.c.b16 %v472, %v472
  %v477 = vpack.c.b16 %v473, %v473
  %v478 = vpack.c.b16 %v474, %v474
  %v479 = vpack.c.b16 %v475, %v475
  %v481 = vsel %vm161, %v469, 0
  %v484 = vsel %vm165, %v476, 0
  %v487 = vsel %vm165, %v477, 0
  %v490 = vsel %vm165, %v478, 0
  %v493 = vsel %vm165, %v479, 0
  %495 = vmatprep.subr.bf16.mxu0 %v487
  %496 = vmatpush1.bf16.msra.mxu0 %v484
  %497 = vmatprep.subr.bf16.mxu0 0
  %498 = vmatpush1.bf16.msra.mxu0 0
  %499 = vmatprep.subr.bf16.mxu0 0
  %500 = vmatpush1.bf16.msra.mxu0 0
  %501 = vmatprep.subr.bf16.mxu0 0
  %502 = vmatpush1.bf16.msra.mxu0 0
  %503 = vmatprep.subr.bf16.mxu0 0
  %504 = vmatpush1.bf16.msra.mxu0 0
  %505 = vmatprep.subr.bf16.mxu0 0
  %506 = vmatpush1.bf16.msra.mxu0 0
  %507 = vmatprep.subr.bf16.mxu0 0
  %508 = vmatpush1.bf16.msra.mxu0 0
  %509 = vmatprep.subr.bf16.mxu0 0
  %510 = vmatpush1.bf16.msra.mxu0 0
  %511 = vmatprep.subr.bf16.mxu0 0
  %512 = vmatpush1.bf16.msra.mxu0 0
  %513 = vmatprep.subr.bf16.mxu0 0
  %514 = vmatpush1.bf16.msra.mxu0 0
  %515 = vmatprep.subr.bf16.mxu0 0
  %516 = vmatpush1.bf16.msra.mxu0 0
  %517 = vmatprep.subr.bf16.mxu0 0
  %518 = vmatpush1.bf16.msra.mxu0 0
  %519 = vmatprep.subr.bf16.mxu0 0
  %520 = vmatpush1.bf16.msra.mxu0 0
  %521 = vmatprep.subr.bf16.mxu0 0
  %522 = vmatpush1.bf16.msra.mxu0 0
  %523 = vmatprep.subr.bf16.mxu0 0
  %524 = vmatpush1.bf16.msra.mxu0 0
  %525 = vmatprep.subr.bf16.mxu0 0
  %526 = vmatpush1.bf16.msra.mxu0 0
  %527 = vmatprep.mubr.bf16.mxu0 0
  %528 = vmatmul.mubr.bf16.gmra.mrb[0].mxu0 %v481
  %v529 = vpop.f32.mrb[0].mxu0
  %v530 = vadd.f32 0.0, %v529
  %v531 = vpop.f32.mrb[0].mxu0
  %v532 = vadd.f32 0.0, %v531
  %v533 = vpop.f32.mrb[0].mxu0
  %v534 = vpop.f32.mrb[0].mxu0
  %535 = vdwg.mxu0
  %536 = vmatprep.subr.bf16.mxu0 %v493
  %537 = vmatpush1.bf16.msra.mxu0 %v490
  %538 = vmatprep.subr.bf16.mxu0 0
  %539 = vmatpush1.bf16.msra.mxu0 0
  %540 = vmatprep.subr.bf16.mxu0 0
  %541 = vmatpush1.bf16.msra.mxu0 0
  %542 = vmatprep.subr.bf16.mxu0 0
  %543 = vmatpush1.bf16.msra.mxu0 0
  %544 = vmatprep.subr.bf16.mxu0 0
  %545 = vmatpush1.bf16.msra.mxu0 0
  %546 = vmatprep.subr.bf16.mxu0 0
  %547 = vmatpush1.bf16.msra.mxu0 0
  %548 = vmatprep.subr.bf16.mxu0 0
  %549 = vmatpush1.bf16.msra.mxu0 0
  %550 = vmatprep.subr.bf16.mxu0 0
  %551 = vmatpush1.bf16.msra.mxu0 0
  %552 = vmatprep.subr.bf16.mxu0 0
  %553 = vmatpush1.bf16.msra.mxu0 0
  %554 = vmatprep.subr.bf16.mxu0 0
  %555 = vmatpush1.bf16.msra.mxu0 0
  %556 = vmatprep.subr.bf16.mxu0 0
  %557 = vmatpush1.bf16.msra.mxu0 0
  %558 = vmatprep.subr.bf16.mxu0 0
  %559 = vmatpush1.bf16.msra.mxu0 0
  %560 = vmatprep.subr.bf16.mxu0 0
  %561 = vmatpush1.bf16.msra.mxu0 0
  %562 = vmatprep.subr.bf16.mxu0 0
  %563 = vmatpush1.bf16.msra.mxu0 0
  %564 = vmatprep.subr.bf16.mxu0 0
  %565 = vmatpush1.bf16.msra.mxu0 0
  %566 = vmatprep.subr.bf16.mxu0 0
  %567 = vmatpush1.bf16.msra.mxu0 0
  %568 = vmatprep.mubr.bf16.mxu0 0
  %569 = vmatmul.mubr.bf16.gmra.mrb[0].mxu0 %v481
  %v570 = vpop.f32.mrb[0].mxu0
  %v571 = vadd.f32 0.0, %v570
  %v572 = vpop.f32.mrb[0].mxu0
  %v573 = vadd.f32 0.0, %v572
  %v574 = vpop.f32.mrb[0].mxu0
  %v575 = vpop.f32.mrb[0].mxu0
  %576 = vdwg.mxu0
  %v577 = vadd.f32 %v350, %v530
  %v578 = vadd.f32 %v352, %v532
  %v579 = vadd.f32 %v391, %v571
  %v580 = vadd.f32 %v393, %v573
  %v581 = vld [vmem:[%s4] sm:$0xf]
  %v583 = vlaneseq
  %v584 = vshrl.u32 %v583, 7
  %v585 = vsub.s32 0, %v584
  %v586 = vrot.slane %v581, %v585
  %v587 = vlaneseq
  %v588 = vshrl.u32 %v587, 7
  %v589 = vsub.s32 1, %v588
  %v590 = vrot.slane %v581, %v589
  %v591 = vlaneseq
  %v592 = vshrl.u32 %v591, 7
  %v593 = vsub.s32 2, %v592
  %v594 = vrot.slane %v581, %v593
  %v595 = vlaneseq
  %v596 = vshrl.u32 %v595, 7
  %v597 = vsub.s32 3, %v596
  %v598 = vrot.slane %v581, %v597
  %v603 = vadd.f32 %v577, %v586
  %v604 = vadd.f32 %v578, %v590
  %v605 = vadd.f32 %v579, %v594
  %v606 = vadd.f32 %v580, %v598
  %v607 = vmax.f32 %v603, 0.0
  %v608 = vmax.f32 %v604, 0.0
  %v609 = vmax.f32 %v605, 0.0
  %v610 = vmax.f32 %v606, 0.0
  %v611 = vpack.c.bf16 %v607, %v607
  %v612 = vpack.c.bf16 %v608, %v608
  %v613 = vpack.c.bf16 %v609, %v609
  %v614 = vpack.c.bf16 %v610, %v610
  %v615 = vld [vmem:[%s5] sm:$0xf]
  %v616 = vld [vmem:[%s5 + $0x4] sm:$0xf]
  %v617 = vld [vmem:[%s5 + $0x8] sm:$0xf]
  %v618 = vld [vmem:[%s5 + $0xc] sm:$0xf]
  %v619 = vld [vmem:[%s5 + $0x10] sm:$0xf]
  %v620 = vld [vmem:[%s5 + $0x14] sm:$0xf]
  %v621 = vld [vmem:[%s5 + $0x18] sm:$0xf]
  %v622 = vld [vmem:[%s5 + $0x1c] sm:$0xf]
  %v623 = vld [vmem:[%s5 + $0x20] sm:$0xf]
  %v624 = vld [vmem:[%s5 + $0x24] sm:$0xf]
  %v625 = vld [vmem:[%s5 + $0x28] sm:$0xf]
  %v626 = vld [vmem:[%s5 + $0x2c] sm:$0xf]
  %v627 = vld [vmem:[%s5 + $0x30] sm:$0xf]
  %v628 = vld [vmem:[%s5 + $0x34] sm:$0xf]
  %v629 = vld [vmem:[%s5 + $0x38] sm:$0xf]
  %v630 = vld [vmem:[%s5 + $0x3c] sm:$0xf]
  %v631 = vld [vmem:[%s5 + $0x40] sm:$0xf]
  %v632 = vld [vmem:[%s5 + $0x44] sm:$0xf]
  %v633 = vld [vmem:[%s5 + $0x48] sm:$0xf]
  %v634 = vld [vmem:[%s5 + $0x4c] sm:$0xf]
  %v635 = vld [vmem:[%s5 + $0x50] sm:$0xf]
  %v636 = vld [vmem:[%s5 + $0x54] sm:$0xf]
  %v637 = vld [vmem:[%s5 + $0x58] sm:$0xf]
  %v638 = vld [vmem:[%s5 + $0x5c] sm:$0xf]
  %v639 = vld [vmem:[%s5 + $0x60] sm:$0xf]
  %v640 = vld [vmem:[%s5 + $0x64] sm:$0xf]
  %v641 = vld [vmem:[%s5 + $0x68] sm:$0xf]
  %v642 = vld [vmem:[%s5 + $0x6c] sm:$0xf]
  %v643 = vld [vmem:[%s5 + $0x70] sm:$0xf]
  %v644 = vld [vmem:[%s5 + $0x74] sm:$0xf]
  %v645 = vld [vmem:[%s5 + $0x78] sm:$0xf]
  %v646 = vld [vmem:[%s5 + $0x7c] sm:$0xf]
  %v647 = vld [vmem:[%s5 + $0x80] sm:$0xf]
  %v648 = vld [vmem:[%s5 + $0x84] sm:$0xf]
  %v649 = vld [vmem:[%s5 + $0x88] sm:$0xf]
  %v650 = vld [vmem:[%s5 + $0x8c] sm:$0xf]
  %v651 = vld [vmem:[%s5 + $0x90] sm:$0xf]
  %v652 = vld [vmem:[%s5 + $0x94] sm:$0xf]
  %v653 = vld [vmem:[%s5 + $0x98] sm:$0xf]
  %v654 = vld [vmem:[%s5 + $0x9c] sm:$0xf]
  %v655 = vld [vmem:[%s5 + $0xa0] sm:$0xf]
  %v656 = vld [vmem:[%s5 + $0xa4] sm:$0xf]
  %v657 = vld [vmem:[%s5 + $0xa8] sm:$0xf]
  %v658 = vld [vmem:[%s5 + $0xac] sm:$0xf]
  %v659 = vld [vmem:[%s5 + $0xb0] sm:$0xf]
  %v660 = vld [vmem:[%s5 + $0xb4] sm:$0xf]
  %v661 = vld [vmem:[%s5 + $0xb8] sm:$0xf]
  %v662 = vld [vmem:[%s5 + $0xbc] sm:$0xf]
  %v663 = vld [vmem:[%s5 + $0xc0] sm:$0xf]
  %v664 = vld [vmem:[%s5 + $0xc4] sm:$0xf]
  %v665 = vld [vmem:[%s5 + $0xc8] sm:$0xf]
  %v666 = vld [vmem:[%s5 + $0xcc] sm:$0xf]
  %v667 = vld [vmem:[%s5 + $0xd0] sm:$0xf]
  %v668 = vld [vmem:[%s5 + $0xd4] sm:$0xf]
  %v669 = vld [vmem:[%s5 + $0xd8] sm:$0xf]
  %v670 = vld [vmem:[%s5 + $0xdc] sm:$0xf]
  %v671 = vld [vmem:[%s5 + $0xe0] sm:$0xf]
  %v672 = vld [vmem:[%s5 + $0xe4] sm:$0xf]
  %v673 = vld [vmem:[%s5 + $0xe8] sm:$0xf]
  %v674 = vld [vmem:[%s5 + $0xec] sm:$0xf]
  %v675 = vld [vmem:[%s5 + $0xf0] sm:$0xf]
  %v676 = vld [vmem:[%s5 + $0xf4] sm:$0xf]
  %v677 = vld [vmem:[%s5 + $0xf8] sm:$0xf]
  %v678 = vld [vmem:[%s5 + $0xfc] sm:$0xf]
  %v679 = vld [vmem:[%s6] sm:$0x1]
  %v681 = vlaneseq
  %v682 = vshrl.u32 %v681, 7
  %v683 = vsub.s32 0, %v682
  %v684 = vrot.slane %v679, %v683
  %v750 = vunpack.c.l.b16 %v615
  %v751 = vunpack.c.l.b16 %v616
  %v752 = vunpack.c.l.b16 %v617
  %v753 = vunpack.c.l.b16 %v618
  %v754 = vunpack.c.l.b16 %v619
  %v755 = vunpack.c.l.b16 %v620
  %v756 = vunpack.c.l.b16 %v621
  %v757 = vunpack.c.l.b16 %v622
  %v758 = vunpack.c.l.b16 %v623
  %v759 = vunpack.c.l.b16 %v624
  %v760 = vunpack.c.l.b16 %v625
  %v761 = vunpack.c.l.b16 %v626
  %v762 = vunpack.c.l.b16 %v627
  %v763 = vunpack.c.l.b16 %v628
  %v764 = vunpack.c.l.b16 %v629
  %v765 = vunpack.c.l.b16 %v630
  %v766 = vunpack.c.l.b16 %v631
  %v767 = vunpack.c.l.b16 %v632
  %v768 = vunpack.c.l.b16 %v633
  %v769 = vunpack.c.l.b16 %v634
  %v770 = vunpack.c.l.b16 %v635
  %v771 = vunpack.c.l.b16 %v636
  %v772 = vunpack.c.l.b16 %v637
  %v773 = vunpack.c.l.b16 %v638
  %v774 = vunpack.c.l.b16 %v639
  %v775 = vunpack.c.l.b16 %v640
  %v776 = vunpack.c.l.b16 %v641
  %v777 = vunpack.c.l.b16 %v642
  %v778 = vunpack.c.l.b16 %v643
  %v779 = vunpack.c.l.b16 %v644
  %v780 = vunpack.c.l.b16 %v645
  %v781 = vunpack.c.l.b16 %v646
  %v782 = vunpack.c.l.b16 %v647
  %v783 = vunpack.c.l.b16 %v648
  %v784 = vunpack.c.l.b16 %v649
  %v785 = vunpack.c.l.b16 %v650
  %v786 = vunpack.c.l.b16 %v651
  %v787 = vunpack.c.l.b16 %v652
  %v788 = vunpack.c.l.b16 %v653
  %v789 = vunpack.c.l.b16 %v654
  %v790 = vunpack.c.l.b16 %v655
  %v791 = vunpack.c.l.b16 %v656
  %v792 = vunpack.c.l.b16 %v657
  %v793 = vunpack.c.l.b16 %v658
  %v794 = vunpack.c.l.b16 %v659
  %v795 = vunpack.c.l.b16 %v660
  %v796 = vunpack.c.l.b16 %v661
  %v797 = vunpack.c.l.b16 %v662
  %v798 = vunpack.c.l.b16 %v663
  %v799 = vunpack.c.l.b16 %v664
  %v800 = vunpack.c.l.b16 %v665
  %v801 = vunpack.c.l.b16 %v666
  %v802 = vunpack.c.l.b16 %v667
  %v803 = vunpack.c.l.b16 %v668
  %v804 = vunpack.c.l.b16 %v669
  %v805 = vunpack.c.l.b16 %v670
  %v806 = vunpack.c.l.b16 %v671
  %v807 = vunpack.c.l.b16 %v672
  %v808 = vunpack.c.l.b16 %v673
  %v809 = vunpack.c.l.b16 %v674
  %v810 = vunpack.c.l.b16 %v675
  %v811 = vunpack.c.l.b16 %v676
  %v812 = vunpack.c.l.b16 %v677
  %v813 = vunpack.c.l.b16 %v678
  %v814 = vpack.c.b16 %v751, %v750
  %v815 = vpack.c.b16 %v753, %v752
  %v816 = vpack.c.b16 %v755, %v754
  %v817 = vpack.c.b16 %v757, %v756
  %v818 = vpack.c.b16 %v759, %v758
  %v819 = vpack.c.b16 %v761, %v760
  %v820 = vpack.c.b16 %v763, %v762
  %v821 = vpack.c.b16 %v765, %v764
  %v822 = vpack.c.b16 %v767, %v766
  %v823 = vpack.c.b16 %v769, %v768
  %v824 = vpack.c.b16 %v771, %v770
  %v825 = vpack.c.b16 %v773, %v772
  %v826 = vpack.c.b16 %v775, %v774
  %v827 = vpack.c.b16 %v777, %v776
  %v828 = vpack.c.b16 %v779, %v778
  %v829 = vpack.c.b16 %v781, %v780
  %v830 = vpack.c.b16 %v783, %v782
  %v831 = vpack.c.b16 %v785, %v784
  %v832 = vpack.c.b16 %v787, %v786
  %v833 = vpack.c.b16 %v789, %v788
  %v834 = vpack.c.b16 %v791, %v790
  %v835 = vpack.c.b16 %v793, %v792
  %v836 = vpack.c.b16 %v795, %v794
  %v837 = vpack.c.b16 %v797, %v796
  %v838 = vpack.c.b16 %v799, %v798
  %v839 = vpack.c.b16 %v801, %v800
  %v840 = vpack.c.b16 %v803, %v802
  %v841 = vpack.c.b16 %v805, %v804
  %v842 = vpack.c.b16 %v807, %v806
  %v843 = vpack.c.b16 %v809, %v808
  %v844 = vpack.c.b16 %v811, %v810
  %v845 = vpack.c.b16 %v813, %v812
  %878 = vmatprep.subr.bf16.mxu0 0
  %879 = vmatpush1.bf16.msra.mxu0 %v814
  %880 = vmatprep.subr.bf16.mxu0 0
  %881 = vmatpush1.bf16.msra.mxu0 %v815
  %882 = vmatprep.subr.bf16.mxu0 0
  %883 = vmatpush1.bf16.msra.mxu0 %v816
  %884 = vmatprep.subr.bf16.mxu0 0
  %885 = vmatpush1.bf16.msra.mxu0 %v817
  %886 = vmatprep.subr.bf16.mxu0 0
  %887 = vmatpush1.bf16.msra.mxu0 %v818
  %888 = vmatprep.subr.bf16.mxu0 0
  %889 = vmatpush1.bf16.msra.mxu0 %v819
  %890 = vmatprep.subr.bf16.mxu0 0
  %891 = vmatpush1.bf16.msra.mxu0 %v820
  %892 = vmatprep.subr.bf16.mxu0 0
  %893 = vmatpush1.bf16.msra.mxu0 %v821
  %894 = vmatprep.subr.bf16.mxu0 0
  %895 = vmatpush1.bf16.msra.mxu0 %v822
  %896 = vmatprep.subr.bf16.mxu0 0
  %897 = vmatpush1.bf16.msra.mxu0 %v823
  %898 = vmatprep.subr.bf16.mxu0 0
  %899 = vmatpush1.bf16.msra.mxu0 %v824
  %900 = vmatprep.subr.bf16.mxu0 0
  %901 = vmatpush1.bf16.msra.mxu0 %v825
  %902 = vmatprep.subr.bf16.mxu0 0
  %903 = vmatpush1.bf16.msra.mxu0 %v826
  %904 = vmatprep.subr.bf16.mxu0 0
  %905 = vmatpush1.bf16.msra.mxu0 %v827
  %906 = vmatprep.subr.bf16.mxu0 0
  %907 = vmatpush1.bf16.msra.mxu0 %v828
  %908 = vmatprep.subr.bf16.mxu0 0
  %909 = vmatpush1.bf16.msra.mxu0 %v829
  %910 = vmatprep.mubr.bf16.mxu0 %v612
  %911 = vmatmul.mubr.bf16.gmra.mrb[0].mxu0 %v611
  %v912 = vpop.f32.mrb[0].mxu0
  %v913 = vadd.f32 %v684, %v912
  %v914 = vpop.f32.mrb[0].mxu0
  %v915 = vpop.f32.mrb[0].mxu0
  %v916 = vpop.f32.mrb[0].mxu0
  %917 = vdwg.mxu0
  %918 = vmatprep.subr.bf16.mxu0 0
  %919 = vmatpush1.bf16.msra.mxu0 %v830
  %920 = vmatprep.subr.bf16.mxu0 0
  %921 = vmatpush1.bf16.msra.mxu0 %v831
  %922 = vmatprep.subr.bf16.mxu0 0
  %923 = vmatpush1.bf16.msra.mxu0 %v832
  %924 = vmatprep.subr.bf16.mxu0 0
  %925 = vmatpush1.bf16.msra.mxu0 %v833
  %926 = vmatprep.subr.bf16.mxu0 0
  %927 = vmatpush1.bf16.msra.mxu0 %v834
  %928 = vmatprep.subr.bf16.mxu0 0
  %929 = vmatpush1.bf16.msra.mxu0 %v835
  %930 = vmatprep.subr.bf16.mxu0 0
  %931 = vmatpush1.bf16.msra.mxu0 %v836
  %932 = vmatprep.subr.bf16.mxu0 0
  %933 = vmatpush1.bf16.msra.mxu0 %v837
  %934 = vmatprep.subr.bf16.mxu0 0
  %935 = vmatpush1.bf16.msra.mxu0 %v838
  %936 = vmatprep.subr.bf16.mxu0 0
  %937 = vmatpush1.bf16.msra.mxu0 %v839
  %938 = vmatprep.subr.bf16.mxu0 0
  %939 = vmatpush1.bf16.msra.mxu0 %v840
  %940 = vmatprep.subr.bf16.mxu0 0
  %941 = vmatpush1.bf16.msra.mxu0 %v841
  %942 = vmatprep.subr.bf16.mxu0 0
  %943 = vmatpush1.bf16.msra.mxu0 %v842
  %944 = vmatprep.subr.bf16.mxu0 0
  %945 = vmatpush1.bf16.msra.mxu0 %v843
  %946 = vmatprep.subr.bf16.mxu0 0
  %947 = vmatpush1.bf16.msra.mxu0 %v844
  %948 = vmatprep.subr.bf16.mxu0 0
  %949 = vmatpush1.bf16.msra.mxu0 %v845
  %950 = vmatprep.mubr.bf16.mxu0 %v614
  %951 = vmatmul.mubr.bf16.gmra.mrb[0].mxu0 %v613
  %v952 = vpop.f32.mrb[0].mxu0
  %v953 = vadd.f32 %v913, %v952
  %v954 = vpop.f32.mrb[0].mxu0
  %v955 = vpop.f32.mrb[0].mxu0
  %v956 = vpop.f32.mrb[0].mxu0
  %957 = vdwg.mxu0
  %958 = vst.msk [vmem:[%s7] sm:$0xff] %vm311, %v953
  // Predicated region
  $region30: #{densenet_forward.49} parent=0 // pred_check
    _
  $region31: #{densenet_forward.49} parent=0 // pred_check_branch
    %960 = sbr.rel (0) target = $region33
  $region32: #{densenet_forward.49} parent=0 // pred_region
    _
  $region33: #{densenet_forward.49} parent=0 // pred_fallthru
    _
  // Predicated region
  $region34: #{densenet_forward.49} parent=0 // pred_check
    _
  $region35: #{densenet_forward.49} parent=0 // pred_check_branch
    %962 = sbr.rel (0) target = $region37
  $region36: #{densenet_forward.49} parent=0 // pred_region
    _
  $region37: #{densenet_forward.49} parent=0 // pred_fallthru
    _

</llo_original>
